<compile_context>
chip_gen: v7x
topology: tpu7x:2x2x1
jax: 0.10.0
libtpu: 0.0.40
codegen_flags: <defaults>
</compile_context>

<pallas_src>
import jax
import jax.numpy as jnp
from jax.experimental import pallas as pl
from jax.experimental.pallas import tpu as pltpu

# Hyperparameters from the PyTorch module
CTX_LENGTH = 32
N_EMBD = 384
N_HEAD = 6
N_LAYER = 2
HEAD_SIZE = N_EMBD // N_HEAD   # 64
VOCAB_PAD = 128                # lane-dense lm_head output (V=65 padded to 128)


def _fused_forward_kernel(x_ref, mask_ref, wqkv_ref, lm_w_ref, lm_b_ref, o_ref, sa_ref):
    """Full model forward for one batch tile, resident in VMEM/vregs.

    x_ref:    (Bt, T, C)          batch tile of embedded tokens (f32)
    mask_ref: (T, T)              additive causal bias (0 / -1e30), f32
    wqkv_ref: (N_LAYER, C, 3C)    per-layer fused [Wq | Wk | Wv], bf16 (heads contiguous)
    lm_w_ref: (C, VOCAB_PAD)      lm_head weight, bf16, vocab padded to 128 lanes
    lm_b_ref: (1, VOCAB_PAD)      lm_head bias, f32 (zeros in padding)
    o_ref:    (Bt, T, VOCAB_PAD)  padded logits, f32
    sa_ref:   (Bt, T, C)          f32 scratch: per-head outputs written at lane offsets
    """
    Bt, T, C = x_ref.shape
    R = Bt * T
    D = HEAD_SIZE
    scale = jnp.float32(D ** -0.5)          # k.shape[-1] ** -0.5

    x = x_ref[...]                          # (Bt, T, C) f32 residual stream
    bias = mask_ref[...]                    # (T, T) f32, broadcasts over (Bt, heads)

    for layer in range(N_LAYER):            # static, unrolled (2 layers)
        # ONE wide MXU matmul covering all heads' Q, K and V projections, M = Bt*T rows.
        qkv = jnp.dot(x.reshape(R, C).astype(jnp.bfloat16), wqkv_ref[layer],
                      preferred_element_type=jnp.float32)            # (R, 3C) f32
        # single bf16 cast for all of q/k/v (attention MXU operands)
        qkv = qkv.reshape(Bt, T, 3 * C).astype(jnp.bfloat16)         # (Bt, T, 3C)

        for h in range(N_HEAD):             # static unroll; tiny (T,T) cores per head
            qh = qkv[:, :, h * D:(h + 1) * D]                        # (Bt, T, D)
            kh = qkv[:, :, C + h * D:C + (h + 1) * D]
            vh = qkv[:, :, 2 * C + h * D:2 * C + (h + 1) * D]
            # scores = q @ k^T * scale, contracted on D, batched over the batch tile
            s = jnp.einsum('bqd,bkd->bqk', qh, kh,
                           preferred_element_type=jnp.float32)       # (Bt, T, T) f32
            s = s * scale + bias            # masked_fill(tril==0, -inf); stays in f32
            s = s - jnp.max(s, axis=-1, keepdims=True)
            e = jnp.exp(s)
            p = e / jnp.sum(e, axis=-1, keepdims=True)               # f32 softmax
            # nn.Dropout(0.2) is identity at inference time (no-op here)
            oh = jnp.einsum('bqk,bkd->bqd', p.astype(jnp.bfloat16), vh,
                            preferred_element_type=jnp.float32)      # (Bt, T, D) f32
            # write directly at this head's lane offset -> replaces torch.cat over heads
            sa_ref[:, :, h * D:(h + 1) * D] = oh

        x = x + sa_ref[...]                 # residual connection (f32)

    # lm_head: lane-dense padded output, bf16 operands, f32 accumulate + bias
    logits = jnp.dot(x.reshape(R, C).astype(jnp.bfloat16), lm_w_ref[...],
                     preferred_element_type=jnp.float32) + lm_b_ref[...]
    o_ref[...] = logits.reshape(Bt, T, VOCAB_PAD).astype(o_ref.dtype)


def fused_forward(x_emb, wqkv, lm_w, lm_b, mask_bias, vocab_size):
    """Single fused pallas_call: 2 transformer blocks + lm_head, gridded over batch tiles."""
    B, T, C = x_emb.shape
    # Batch tile: fold enough batch elements per grid step to give the MXU ~256 rows
    # (or the whole batch if smaller); must divide B so blocks tile exactly.
    bt = min(B, max(1, 256 // T))
    while B % bt:
        bt -= 1
    grid = (B // bt,)                       # (1,) for the B=2 demo: one grid step total

    logits_pad = pl.pallas_call(
        _fused_forward_kernel,
        out_shape=jax.ShapeDtypeStruct((B, T, VOCAB_PAD), jnp.float32),
        grid=grid,
        in_specs=[
            pl.BlockSpec((bt, T, C), lambda b: (b, 0, 0)),
            # loop-invariant blocks below (constant index_map): fetched once per call
            pl.BlockSpec((T, T), lambda b: (0, 0)),
            pl.BlockSpec((N_LAYER, C, 3 * C), lambda b: (0, 0, 0)),
            pl.BlockSpec((C, VOCAB_PAD), lambda b: (0, 0)),
            pl.BlockSpec((1, VOCAB_PAD), lambda b: (0, 0)),
        ],
        out_specs=pl.BlockSpec((bt, T, VOCAB_PAD), lambda b: (b, 0, 0)),
        scratch_shapes=[pltpu.VMEM((bt, T, N_EMBD), jnp.float32)],
        compiler_params=pltpu.CompilerParams(
            dimension_semantics=("parallel",),          # batch-tile axis -> megacore
            vmem_limit_bytes=32 * 1024 * 1024,          # explicit; ~4 MB actually used
        ),
    )(x_emb, mask_bias, wqkv, lm_w, lm_b)
    # strip vocab padding outside the kernel (kept lane-dense inside)
    return logits_pad[:, :, :vocab_size]


def init_params(key, vocab_size):
    """Deterministic init mirroring _init_weights: N(0, 0.02) weights, zero biases."""
    ks = jax.random.split(key, 4)
    std = 0.02
    lm_w = std * jax.random.normal(ks[2], (N_EMBD, vocab_size), jnp.float32)
    lm_w = jnp.pad(lm_w, ((0, 0), (0, VOCAB_PAD - vocab_size)))   # zero padding columns
    wqkv = std * jax.random.normal(ks[3], (N_LAYER, N_EMBD, 3 * N_EMBD), jnp.float32)
    params = {
        "w_e": std * jax.random.normal(ks[0], (vocab_size, N_EMBD), jnp.float32),
        "w_pos": std * jax.random.normal(ks[1], (CTX_LENGTH, N_EMBD), jnp.float32),
        # weights stored bf16 in HBM: halves the dominant weight DMA (cast once, here)
        "lm_w": lm_w.astype(jnp.bfloat16),
        "lm_b": jnp.zeros((1, VOCAB_PAD), jnp.float32),
        # per-layer fused QKV weight: cols [0:C]=Wq, [C:2C]=Wk, [2C:3C]=Wv, each head's
        # D=64 columns contiguous (matches torch.cat head layout)
        "wqkv": wqkv.astype(jnp.bfloat16),
    }
    # TODO(synk): self.w_o (Linear(d_model, vocab_size)) and MultiHeadAttention.proj are
    # created in __init__ but never used in forward(); intentionally omitted.
    return params


def _causal_bias(T):
    row = jnp.arange(T)[:, None]
    col = jnp.arange(T)[None, :]
    return jnp.where(row >= col, 0.0, -1e30).astype(jnp.float32)   # (T, T)


@jax.jit
def forward(params, tokens):
    """Equivalent of OneLayerModel.forward(x, targets=None) -> logits (loss is None)."""
    B, T = tokens.shape
    vocab_size = params["w_e"].shape[0]
    # glue: embedding gathers + positional add (tiny vs. the weight DMA at these sizes)
    # TODO(synk): fuse the token-id gather into the kernel via PrefetchScalarGridSpec
    # once B*T is large enough for the activation HBM round trip to matter.
    x = params["w_e"][tokens] + params["w_pos"][:T][None, :, :]          # (B, T, C) f32
    mask_bias = _causal_bias(T)
    logits = fused_forward(x, params["wqkv"], params["lm_w"], params["lm_b"],
                           mask_bias, vocab_size)
    return logits


def reference_forward(params, tokens):
    """Pure-JAX f32 reference (same bf16-quantized weights) for a correctness check."""
    hp = jax.lax.Precision.HIGHEST
    B, T = tokens.shape
    V = params["w_e"].shape[0]
    C, D, H = N_EMBD, HEAD_SIZE, N_HEAD
    x = params["w_e"][tokens] + params["w_pos"][:T][None, :, :]
    bias = _causal_bias(T)
    wqkv = params["wqkv"].astype(jnp.float32)
    for layer in range(N_LAYER):
        qkv = jnp.einsum('btc,cz->btz', x, wqkv[layer], precision=hp)
        heads = []
        for h in range(H):
            q = qkv[:, :, h * D:(h + 1) * D]
            k = qkv[:, :, C + h * D:C + (h + 1) * D]
            v = qkv[:, :, 2 * C + h * D:2 * C + (h + 1) * D]
            s = jnp.einsum('bqd,bkd->bqk', q, k, precision=hp) * (D ** -0.5) + bias
            p = jax.nn.softmax(s, axis=-1)
            heads.append(jnp.einsum('bqk,bkd->bqd', p, v, precision=hp))
        x = x + jnp.concatenate(heads, axis=-1)
    lm_w = params["lm_w"].astype(jnp.float32)[:, :V]
    return jnp.einsum('btc,cv->btv', x, lm_w, precision=hp) + params["lm_b"][0, :V]


if __name__ == "__main__":
    key = jax.random.PRNGKey(0)
    k_param, k_tok = jax.random.split(key)

    vocab_size = 65           # small vocab (tiny-shakespeare style)
    B, T = 2, 8               # T <= ctx_length (32)

    params = init_params(k_param, vocab_size)
    tokens = jax.random.randint(k_tok, (B, T), 0, vocab_size, dtype=jnp.int32)

    logits = forward(params, tokens)
    logits = jax.block_until_ready(logits)

    assert logits.shape == (B, T, vocab_size), logits.shape
    assert bool(jnp.all(jnp.isfinite(logits)))

    ref = jax.block_until_ready(reference_forward(params, tokens))
    max_err = float(jnp.max(jnp.abs(logits - ref)))
    assert max_err < 5e-3, max_err   # bf16 MXU operands vs f32 reference

    print("KERNEL_OK")
</pallas_src>

<mosaic_0001>
module attributes {stable_mosaic.version = 11 : i64} {
  func.func @_fused_forward_kernel(%arg0: i32, %arg1: memref<2x8x384xf32, #tpu.memory_space<vmem>>, %arg2: memref<8x8xf32, #tpu.memory_space<vmem>>, %arg3: memref<2x384x1152xbf16, #tpu.memory_space<vmem>>, %arg4: memref<384x128xbf16, #tpu.memory_space<vmem>>, %arg5: memref<1x128xf32, #tpu.memory_space<vmem>>, %arg6: memref<2x8x128xf32, #tpu.memory_space<vmem>>, %arg7: memref<2x8x384xf32, #tpu.memory_space<vmem>>) attributes {dimension_semantics = [#tpu.dimension_semantics<parallel>], iteration_bounds = array<i64: 1>, scalar_prefetch = 0 : i64, scratch_operands = 1 : i64, tpu.core_type = #tpu.core_type<tc>, window_params = [{transform_indices = @transform_0, window_bounds = array<i64: 2, 8, 384>}, {pipeline_mode = #tpu.pipeline_mode<synchronous>, transform_indices = @transform_1, window_bounds = array<i64: 8, 8>}, {pipeline_mode = #tpu.pipeline_mode<synchronous>, transform_indices = @transform_2, window_bounds = array<i64: 2, 384, 1152>}, {pipeline_mode = #tpu.pipeline_mode<synchronous>, transform_indices = @transform_3, window_bounds = array<i64: 384, 128>}, {pipeline_mode = #tpu.pipeline_mode<synchronous>, transform_indices = @transform_4, window_bounds = array<i64: 1, 128>}, {transform_indices = @transform_5, window_bounds = array<i64: 2, 8, 128>}]} {
    %c0 = arith.constant 0 : index
    %c0_0 = arith.constant 0 : index
    %c0_1 = arith.constant 0 : index
    %0 = vector.load %arg1[%c0, %c0_0, %c0_1] : memref<2x8x384xf32, #tpu.memory_space<vmem>>, vector<2x8x384xf32>
    %c0_2 = arith.constant 0 : index
    %c0_3 = arith.constant 0 : index
    %1 = vector.load %arg2[%c0_2, %c0_3] : memref<8x8xf32, #tpu.memory_space<vmem>>, vector<8x8xf32>
    %2 = vector.shape_cast %0 : vector<2x8x384xf32> to vector<16x384xf32>
    %3 = arith.truncf %2 : vector<16x384xf32> to vector<16x384xbf16>
    %c0_4 = arith.constant 0 : index
    %c0_5 = arith.constant 0 : index
    %c0_6 = arith.constant 0 : index
    %4 = vector.load %arg3[%c0_4, %c0_5, %c0_6] : memref<2x384x1152xbf16, #tpu.memory_space<vmem>>, vector<1x384x1152xbf16>
    %5 = vector.shape_cast %4 : vector<1x384x1152xbf16> to vector<384x1152xbf16>
    %cst = arith.constant dense<0.000000e+00> : vector<16x1152xf32>
    %6 = tpu.matmul %3, %5, %cst {dimension_numbers = #tpu.dot_dimension_numbers<[1], [0], [0], [1], [0, 0, 1, 1], [], []>} : vector<16x384xbf16>, vector<384x1152xbf16>, vector<16x1152xf32> -> vector<16x1152xf32>
    %7 = vector.shape_cast %6 : vector<16x1152xf32> to vector<2x8x1152xf32>
    %8 = arith.truncf %7 : vector<2x8x1152xf32> to vector<2x8x1152xbf16>
    %9 = vector.extract_strided_slice %8 {offsets = [0, 0, 0], sizes = [2, 8, 64], strides = [1, 1, 1]} : vector<2x8x1152xbf16> to vector<2x8x64xbf16>
    %10 = vector.extract_strided_slice %8 {offsets = [0, 0, 384], sizes = [2, 8, 64], strides = [1, 1, 1]} : vector<2x8x1152xbf16> to vector<2x8x64xbf16>
    %11 = vector.extract_strided_slice %8 {offsets = [0, 0, 768], sizes = [2, 8, 64], strides = [1, 1, 1]} : vector<2x8x1152xbf16> to vector<2x8x64xbf16>
    "tpu.trace_start"() <{level = 10 : i32, message = "bqd,bkd->bqk"}> : () -> ()
    %cst_7 = arith.constant dense<0.000000e+00> : vector<2x8x8xf32>
    %12 = tpu.matmul %9, %10, %cst_7 {dimension_numbers = #tpu.dot_dimension_numbers<[2], [2], [1], [1], [0, 0, 0, 1, 1, 1], [0], [0]>} : vector<2x8x64xbf16>, vector<2x8x64xbf16>, vector<2x8x8xf32> -> vector<2x8x8xf32>
    "tpu.trace_stop"() : () -> ()
    %cst_8 = arith.constant 1.250000e-01 : f32
    %13 = vector.broadcast %cst_8 : f32 to vector<2x8x8xf32>
    %14 = arith.mulf %12, %13 : vector<2x8x8xf32>
    %15 = vector.shape_cast %1 : vector<8x8xf32> to vector<1x8x8xf32>
    %16 = vector.broadcast %15 : vector<1x8x8xf32> to vector<2x8x8xf32>
    %17 = arith.addf %14, %16 : vector<2x8x8xf32>
    %cst_9 = arith.constant dense<0xFF800000> : vector<2x8xf32>
    %18 = vector.multi_reduction <maximumf>, %17, %cst_9 [2] : vector<2x8x8xf32> to vector<2x8xf32>
    %19 = vector.shape_cast %18 : vector<2x8xf32> to vector<2x8x1xf32>
    %20 = vector.broadcast %19 : vector<2x8x1xf32> to vector<2x8x8xf32>
    %21 = arith.subf %17, %20 : vector<2x8x8xf32>
    %22 = math.exp %21 : vector<2x8x8xf32>
    %cst_10 = arith.constant dense<0.000000e+00> : vector<2x8xf32>
    %23 = vector.multi_reduction <add>, %22, %cst_10 [2] : vector<2x8x8xf32> to vector<2x8xf32>
    %24 = vector.shape_cast %23 : vector<2x8xf32> to vector<2x8x1xf32>
    %25 = vector.broadcast %24 : vector<2x8x1xf32> to vector<2x8x8xf32>
    %26 = arith.divf %22, %25 : vector<2x8x8xf32>
    %27 = arith.truncf %26 : vector<2x8x8xf32> to vector<2x8x8xbf16>
    "tpu.trace_start"() <{level = 10 : i32, message = "bqk,bkd->bqd"}> : () -> ()
    %cst_11 = arith.constant dense<0.000000e+00> : vector<2x8x64xf32>
    %28 = tpu.matmul %27, %11, %cst_11 {dimension_numbers = #tpu.dot_dimension_numbers<[2], [1], [1], [2], [0, 0, 0, 1, 1, 2], [0], [0]>} : vector<2x8x8xbf16>, vector<2x8x64xbf16>, vector<2x8x64xf32> -> vector<2x8x64xf32>
    "tpu.trace_stop"() : () -> ()
    %c0_12 = arith.constant 0 : index
    %c0_13 = arith.constant 0 : index
    %c0_14 = arith.constant 0 : index
    %29 = vector.load %arg7[%c0_12, %c0_13, %c0_14] : memref<2x8x384xf32, #tpu.memory_space<vmem>>, vector<2x8x64xf32>
    tpu.vector_store %arg7[%c0_12, %c0_13, %c0_14], %28 {strides = array<i32>} : memref<2x8x384xf32, #tpu.memory_space<vmem>>, vector<2x8x64xf32>,
    %30 = vector.extract_strided_slice %8 {offsets = [0, 0, 64], sizes = [2, 8, 64], strides = [1, 1, 1]} : vector<2x8x1152xbf16> to vector<2x8x64xbf16>
    %31 = vector.extract_strided_slice %8 {offsets = [0, 0, 448], sizes = [2, 8, 64], strides = [1, 1, 1]} : vector<2x8x1152xbf16> to vector<2x8x64xbf16>
    %32 = vector.extract_strided_slice %8 {offsets = [0, 0, 832], sizes = [2, 8, 64], strides = [1, 1, 1]} : vector<2x8x1152xbf16> to vector<2x8x64xbf16>
    "tpu.trace_start"() <{level = 10 : i32, message = "bqd,bkd->bqk"}> : () -> ()
    %cst_15 = arith.constant dense<0.000000e+00> : vector<2x8x8xf32>
    %33 = tpu.matmul %30, %31, %cst_15 {dimension_numbers = #tpu.dot_dimension_numbers<[2], [2], [1], [1], [0, 0, 0, 1, 1, 1], [0], [0]>} : vector<2x8x64xbf16>, vector<2x8x64xbf16>, vector<2x8x8xf32> -> vector<2x8x8xf32>
    "tpu.trace_stop"() : () -> ()
    %cst_16 = arith.constant 1.250000e-01 : f32
    %34 = vector.broadcast %cst_16 : f32 to vector<2x8x8xf32>
    %35 = arith.mulf %33, %34 : vector<2x8x8xf32>
    %36 = vector.shape_cast %1 : vector<8x8xf32> to vector<1x8x8xf32>
    %37 = vector.broadcast %36 : vector<1x8x8xf32> to vector<2x8x8xf32>
    %38 = arith.addf %35, %37 : vector<2x8x8xf32>
    %cst_17 = arith.constant dense<0xFF800000> : vector<2x8xf32>
    %39 = vector.multi_reduction <maximumf>, %38, %cst_17 [2] : vector<2x8x8xf32> to vector<2x8xf32>
    %40 = vector.shape_cast %39 : vector<2x8xf32> to vector<2x8x1xf32>
    %41 = vector.broadcast %40 : vector<2x8x1xf32> to vector<2x8x8xf32>
    %42 = arith.subf %38, %41 : vector<2x8x8xf32>
    %43 = math.exp %42 : vector<2x8x8xf32>
    %cst_18 = arith.constant dense<0.000000e+00> : vector<2x8xf32>
    %44 = vector.multi_reduction <add>, %43, %cst_18 [2] : vector<2x8x8xf32> to vector<2x8xf32>
    %45 = vector.shape_cast %44 : vector<2x8xf32> to vector<2x8x1xf32>
    %46 = vector.broadcast %45 : vector<2x8x1xf32> to vector<2x8x8xf32>
    %47 = arith.divf %43, %46 : vector<2x8x8xf32>
    %48 = arith.truncf %47 : vector<2x8x8xf32> to vector<2x8x8xbf16>
    "tpu.trace_start"() <{level = 10 : i32, message = "bqk,bkd->bqd"}> : () -> ()
    %cst_19 = arith.constant dense<0.000000e+00> : vector<2x8x64xf32>
    %49 = tpu.matmul %48, %32, %cst_19 {dimension_numbers = #tpu.dot_dimension_numbers<[2], [1], [1], [2], [0, 0, 0, 1, 1, 2], [0], [0]>} : vector<2x8x8xbf16>, vector<2x8x64xbf16>, vector<2x8x64xf32> -> vector<2x8x64xf32>
    "tpu.trace_stop"() : () -> ()
    %c0_20 = arith.constant 0 : index
    %c0_21 = arith.constant 0 : index
    %c64 = arith.constant 64 : index
    %50 = vector.load %arg7[%c0_20, %c0_21, %c64] : memref<2x8x384xf32, #tpu.memory_space<vmem>>, vector<2x8x64xf32>
    tpu.vector_store %arg7[%c0_20, %c0_21, %c64], %49 {strides = array<i32>} : memref<2x8x384xf32, #tpu.memory_space<vmem>>, vector<2x8x64xf32>,
    %51 = vector.extract_strided_slice %8 {offsets = [0, 0, 128], sizes = [2, 8, 64], strides = [1, 1, 1]} : vector<2x8x1152xbf16> to vector<2x8x64xbf16>
    %52 = vector.extract_strided_slice %8 {offsets = [0, 0, 512], sizes = [2, 8, 64], strides = [1, 1, 1]} : vector<2x8x1152xbf16> to vector<2x8x64xbf16>
    %53 = vector.extract_strided_slice %8 {offsets = [0, 0, 896], sizes = [2, 8, 64], strides = [1, 1, 1]} : vector<2x8x1152xbf16> to vector<2x8x64xbf16>
    "tpu.trace_start"() <{level = 10 : i32, message = "bqd,bkd->bqk"}> : () -> ()
    %cst_22 = arith.constant dense<0.000000e+00> : vector<2x8x8xf32>
    %54 = tpu.matmul %51, %52, %cst_22 {dimension_numbers = #tpu.dot_dimension_numbers<[2], [2], [1], [1], [0, 0, 0, 1, 1, 1], [0], [0]>} : vector<2x8x64xbf16>, vector<2x8x64xbf16>, vector<2x8x8xf32> -> vector<2x8x8xf32>
    "tpu.trace_stop"() : () -> ()
    %cst_23 = arith.constant 1.250000e-01 : f32
    %55 = vector.broadcast %cst_23 : f32 to vector<2x8x8xf32>
    %56 = arith.mulf %54, %55 : vector<2x8x8xf32>
    %57 = vector.shape_cast %1 : vector<8x8xf32> to vector<1x8x8xf32>
    %58 = vector.broadcast %57 : vector<1x8x8xf32> to vector<2x8x8xf32>
    %59 = arith.addf %56, %58 : vector<2x8x8xf32>
    %cst_24 = arith.constant dense<0xFF800000> : vector<2x8xf32>
    %60 = vector.multi_reduction <maximumf>, %59, %cst_24 [2] : vector<2x8x8xf32> to vector<2x8xf32>
    %61 = vector.shape_cast %60 : vector<2x8xf32> to vector<2x8x1xf32>
    %62 = vector.broadcast %61 : vector<2x8x1xf32> to vector<2x8x8xf32>
    %63 = arith.subf %59, %62 : vector<2x8x8xf32>
    %64 = math.exp %63 : vector<2x8x8xf32>
    %cst_25 = arith.constant dense<0.000000e+00> : vector<2x8xf32>
    %65 = vector.multi_reduction <add>, %64, %cst_25 [2] : vector<2x8x8xf32> to vector<2x8xf32>
    %66 = vector.shape_cast %65 : vector<2x8xf32> to vector<2x8x1xf32>
    %67 = vector.broadcast %66 : vector<2x8x1xf32> to vector<2x8x8xf32>
    %68 = arith.divf %64, %67 : vector<2x8x8xf32>
    %69 = arith.truncf %68 : vector<2x8x8xf32> to vector<2x8x8xbf16>
    "tpu.trace_start"() <{level = 10 : i32, message = "bqk,bkd->bqd"}> : () -> ()
    %cst_26 = arith.constant dense<0.000000e+00> : vector<2x8x64xf32>
    %70 = tpu.matmul %69, %53, %cst_26 {dimension_numbers = #tpu.dot_dimension_numbers<[2], [1], [1], [2], [0, 0, 0, 1, 1, 2], [0], [0]>} : vector<2x8x8xbf16>, vector<2x8x64xbf16>, vector<2x8x64xf32> -> vector<2x8x64xf32>
    "tpu.trace_stop"() : () -> ()
    %c0_27 = arith.constant 0 : index
    %c0_28 = arith.constant 0 : index
    %c128 = arith.constant 128 : index
    %71 = vector.load %arg7[%c0_27, %c0_28, %c128] : memref<2x8x384xf32, #tpu.memory_space<vmem>>, vector<2x8x64xf32>
    tpu.vector_store %arg7[%c0_27, %c0_28, %c128], %70 {strides = array<i32>} : memref<2x8x384xf32, #tpu.memory_space<vmem>>, vector<2x8x64xf32>,
    %72 = vector.extract_strided_slice %8 {offsets = [0, 0, 192], sizes = [2, 8, 64], strides = [1, 1, 1]} : vector<2x8x1152xbf16> to vector<2x8x64xbf16>
    %73 = vector.extract_strided_slice %8 {offsets = [0, 0, 576], sizes = [2, 8, 64], strides = [1, 1, 1]} : vector<2x8x1152xbf16> to vector<2x8x64xbf16>
    %74 = vector.extract_strided_slice %8 {offsets = [0, 0, 960], sizes = [2, 8, 64], strides = [1, 1, 1]} : vector<2x8x1152xbf16> to vector<2x8x64xbf16>
    "tpu.trace_start"() <{level = 10 : i32, message = "bqd,bkd->bqk"}> : () -> ()
    %cst_29 = arith.constant dense<0.000000e+00> : vector<2x8x8xf32>
    %75 = tpu.matmul %72, %73, %cst_29 {dimension_numbers = #tpu.dot_dimension_numbers<[2], [2], [1], [1], [0, 0, 0, 1, 1, 1], [0], [0]>} : vector<2x8x64xbf16>, vector<2x8x64xbf16>, vector<2x8x8xf32> -> vector<2x8x8xf32>
    "tpu.trace_stop"() : () -> ()
    %cst_30 = arith.constant 1.250000e-01 : f32
    %76 = vector.broadcast %cst_30 : f32 to vector<2x8x8xf32>
    %77 = arith.mulf %75, %76 : vector<2x8x8xf32>
    %78 = vector.shape_cast %1 : vector<8x8xf32> to vector<1x8x8xf32>
    %79 = vector.broadcast %78 : vector<1x8x8xf32> to vector<2x8x8xf32>
    %80 = arith.addf %77, %79 : vector<2x8x8xf32>
    %cst_31 = arith.constant dense<0xFF800000> : vector<2x8xf32>
    %81 = vector.multi_reduction <maximumf>, %80, %cst_31 [2] : vector<2x8x8xf32> to vector<2x8xf32>
    %82 = vector.shape_cast %81 : vector<2x8xf32> to vector<2x8x1xf32>
    %83 = vector.broadcast %82 : vector<2x8x1xf32> to vector<2x8x8xf32>
    %84 = arith.subf %80, %83 : vector<2x8x8xf32>
    %85 = math.exp %84 : vector<2x8x8xf32>
    %cst_32 = arith.constant dense<0.000000e+00> : vector<2x8xf32>
    %86 = vector.multi_reduction <add>, %85, %cst_32 [2] : vector<2x8x8xf32> to vector<2x8xf32>
    %87 = vector.shape_cast %86 : vector<2x8xf32> to vector<2x8x1xf32>
    %88 = vector.broadcast %87 : vector<2x8x1xf32> to vector<2x8x8xf32>
    %89 = arith.divf %85, %88 : vector<2x8x8xf32>
    %90 = arith.truncf %89 : vector<2x8x8xf32> to vector<2x8x8xbf16>
    "tpu.trace_start"() <{level = 10 : i32, message = "bqk,bkd->bqd"}> : () -> ()
    %cst_33 = arith.constant dense<0.000000e+00> : vector<2x8x64xf32>
    %91 = tpu.matmul %90, %74, %cst_33 {dimension_numbers = #tpu.dot_dimension_numbers<[2], [1], [1], [2], [0, 0, 0, 1, 1, 2], [0], [0]>} : vector<2x8x8xbf16>, vector<2x8x64xbf16>, vector<2x8x64xf32> -> vector<2x8x64xf32>
    "tpu.trace_stop"() : () -> ()
    %c0_34 = arith.constant 0 : index
    %c0_35 = arith.constant 0 : index
    %c192 = arith.constant 192 : index
    %92 = vector.load %arg7[%c0_34, %c0_35, %c192] : memref<2x8x384xf32, #tpu.memory_space<vmem>>, vector<2x8x64xf32>
    tpu.vector_store %arg7[%c0_34, %c0_35, %c192], %91 {strides = array<i32>} : memref<2x8x384xf32, #tpu.memory_space<vmem>>, vector<2x8x64xf32>,
    %93 = vector.extract_strided_slice %8 {offsets = [0, 0, 256], sizes = [2, 8, 64], strides = [1, 1, 1]} : vector<2x8x1152xbf16> to vector<2x8x64xbf16>
    %94 = vector.extract_strided_slice %8 {offsets = [0, 0, 640], sizes = [2, 8, 64], strides = [1, 1, 1]} : vector<2x8x1152xbf16> to vector<2x8x64xbf16>
    %95 = vector.extract_strided_slice %8 {offsets = [0, 0, 1024], sizes = [2, 8, 64], strides = [1, 1, 1]} : vector<2x8x1152xbf16> to vector<2x8x64xbf16>
    "tpu.trace_start"() <{level = 10 : i32, message = "bqd,bkd->bqk"}> : () -> ()
    %cst_36 = arith.constant dense<0.000000e+00> : vector<2x8x8xf32>
    %96 = tpu.matmul %93, %94, %cst_36 {dimension_numbers = #tpu.dot_dimension_numbers<[2], [2], [1], [1], [0, 0, 0, 1, 1, 1], [0], [0]>} : vector<2x8x64xbf16>, vector<2x8x64xbf16>, vector<2x8x8xf32> -> vector<2x8x8xf32>
    "tpu.trace_stop"() : () -> ()
    %cst_37 = arith.constant 1.250000e-01 : f32
    %97 = vector.broadcast %cst_37 : f32 to vector<2x8x8xf32>
    %98 = arith.mulf %96, %97 : vector<2x8x8xf32>
    %99 = vector.shape_cast %1 : vector<8x8xf32> to vector<1x8x8xf32>
    %100 = vector.broadcast %99 : vector<1x8x8xf32> to vector<2x8x8xf32>
    %101 = arith.addf %98, %100 : vector<2x8x8xf32>
    %cst_38 = arith.constant dense<0xFF800000> : vector<2x8xf32>
    %102 = vector.multi_reduction <maximumf>, %101, %cst_38 [2] : vector<2x8x8xf32> to vector<2x8xf32>
    %103 = vector.shape_cast %102 : vector<2x8xf32> to vector<2x8x1xf32>
    %104 = vector.broadcast %103 : vector<2x8x1xf32> to vector<2x8x8xf32>
    %105 = arith.subf %101, %104 : vector<2x8x8xf32>
    %106 = math.exp %105 : vector<2x8x8xf32>
    %cst_39 = arith.constant dense<0.000000e+00> : vector<2x8xf32>
    %107 = vector.multi_reduction <add>, %106, %cst_39 [2] : vector<2x8x8xf32> to vector<2x8xf32>
    %108 = vector.shape_cast %107 : vector<2x8xf32> to vector<2x8x1xf32>
    %109 = vector.broadcast %108 : vector<2x8x1xf32> to vector<2x8x8xf32>
    %110 = arith.divf %106, %109 : vector<2x8x8xf32>
    %111 = arith.truncf %110 : vector<2x8x8xf32> to vector<2x8x8xbf16>
    "tpu.trace_start"() <{level = 10 : i32, message = "bqk,bkd->bqd"}> : () -> ()
    %cst_40 = arith.constant dense<0.000000e+00> : vector<2x8x64xf32>
    %112 = tpu.matmul %111, %95, %cst_40 {dimension_numbers = #tpu.dot_dimension_numbers<[2], [1], [1], [2], [0, 0, 0, 1, 1, 2], [0], [0]>} : vector<2x8x8xbf16>, vector<2x8x64xbf16>, vector<2x8x64xf32> -> vector<2x8x64xf32>
    "tpu.trace_stop"() : () -> ()
    %c0_41 = arith.constant 0 : index
    %c0_42 = arith.constant 0 : index
    %c256 = arith.constant 256 : index
    %113 = vector.load %arg7[%c0_41, %c0_42, %c256] : memref<2x8x384xf32, #tpu.memory_space<vmem>>, vector<2x8x64xf32>
    tpu.vector_store %arg7[%c0_41, %c0_42, %c256], %112 {strides = array<i32>} : memref<2x8x384xf32, #tpu.memory_space<vmem>>, vector<2x8x64xf32>,
    %114 = vector.extract_strided_slice %8 {offsets = [0, 0, 320], sizes = [2, 8, 64], strides = [1, 1, 1]} : vector<2x8x1152xbf16> to vector<2x8x64xbf16>
    %115 = vector.extract_strided_slice %8 {offsets = [0, 0, 704], sizes = [2, 8, 64], strides = [1, 1, 1]} : vector<2x8x1152xbf16> to vector<2x8x64xbf16>
    %116 = vector.extract_strided_slice %8 {offsets = [0, 0, 1088], sizes = [2, 8, 64], strides = [1, 1, 1]} : vector<2x8x1152xbf16> to vector<2x8x64xbf16>
    "tpu.trace_start"() <{level = 10 : i32, message = "bqd,bkd->bqk"}> : () -> ()
    %cst_43 = arith.constant dense<0.000000e+00> : vector<2x8x8xf32>
    %117 = tpu.matmul %114, %115, %cst_43 {dimension_numbers = #tpu.dot_dimension_numbers<[2], [2], [1], [1], [0, 0, 0, 1, 1, 1], [0], [0]>} : vector<2x8x64xbf16>, vector<2x8x64xbf16>, vector<2x8x8xf32> -> vector<2x8x8xf32>
    "tpu.trace_stop"() : () -> ()
    %cst_44 = arith.constant 1.250000e-01 : f32
    %118 = vector.broadcast %cst_44 : f32 to vector<2x8x8xf32>
    %119 = arith.mulf %117, %118 : vector<2x8x8xf32>
    %120 = vector.shape_cast %1 : vector<8x8xf32> to vector<1x8x8xf32>
    %121 = vector.broadcast %120 : vector<1x8x8xf32> to vector<2x8x8xf32>
    %122 = arith.addf %119, %121 : vector<2x8x8xf32>
    %cst_45 = arith.constant dense<0xFF800000> : vector<2x8xf32>
    %123 = vector.multi_reduction <maximumf>, %122, %cst_45 [2] : vector<2x8x8xf32> to vector<2x8xf32>
    %124 = vector.shape_cast %123 : vector<2x8xf32> to vector<2x8x1xf32>
    %125 = vector.broadcast %124 : vector<2x8x1xf32> to vector<2x8x8xf32>
    %126 = arith.subf %122, %125 : vector<2x8x8xf32>
    %127 = math.exp %126 : vector<2x8x8xf32>
    %cst_46 = arith.constant dense<0.000000e+00> : vector<2x8xf32>
    %128 = vector.multi_reduction <add>, %127, %cst_46 [2] : vector<2x8x8xf32> to vector<2x8xf32>
    %129 = vector.shape_cast %128 : vector<2x8xf32> to vector<2x8x1xf32>
    %130 = vector.broadcast %129 : vector<2x8x1xf32> to vector<2x8x8xf32>
    %131 = arith.divf %127, %130 : vector<2x8x8xf32>
    %132 = arith.truncf %131 : vector<2x8x8xf32> to vector<2x8x8xbf16>
    "tpu.trace_start"() <{level = 10 : i32, message = "bqk,bkd->bqd"}> : () -> ()
    %cst_47 = arith.constant dense<0.000000e+00> : vector<2x8x64xf32>
    %133 = tpu.matmul %132, %116, %cst_47 {dimension_numbers = #tpu.dot_dimension_numbers<[2], [1], [1], [2], [0, 0, 0, 1, 1, 2], [0], [0]>} : vector<2x8x8xbf16>, vector<2x8x64xbf16>, vector<2x8x64xf32> -> vector<2x8x64xf32>
    "tpu.trace_stop"() : () -> ()
    %c0_48 = arith.constant 0 : index
    %c0_49 = arith.constant 0 : index
    %c320 = arith.constant 320 : index
    %134 = vector.load %arg7[%c0_48, %c0_49, %c320] : memref<2x8x384xf32, #tpu.memory_space<vmem>>, vector<2x8x64xf32>
    tpu.vector_store %arg7[%c0_48, %c0_49, %c320], %133 {strides = array<i32>} : memref<2x8x384xf32, #tpu.memory_space<vmem>>, vector<2x8x64xf32>,
    %c0_50 = arith.constant 0 : index
    %c0_51 = arith.constant 0 : index
    %c0_52 = arith.constant 0 : index
    %135 = vector.load %arg7[%c0_50, %c0_51, %c0_52] : memref<2x8x384xf32, #tpu.memory_space<vmem>>, vector<2x8x384xf32>
    %136 = arith.addf %0, %135 : vector<2x8x384xf32>
    %137 = vector.shape_cast %136 : vector<2x8x384xf32> to vector<16x384xf32>
    %138 = arith.truncf %137 : vector<16x384xf32> to vector<16x384xbf16>
    %c1 = arith.constant 1 : index
    %c0_53 = arith.constant 0 : index
    %c0_54 = arith.constant 0 : index
    %139 = vector.load %arg3[%c1, %c0_53, %c0_54] : memref<2x384x1152xbf16, #tpu.memory_space<vmem>>, vector<1x384x1152xbf16>
    %140 = vector.shape_cast %139 : vector<1x384x1152xbf16> to vector<384x1152xbf16>
    %cst_55 = arith.constant dense<0.000000e+00> : vector<16x1152xf32>
    %141 = tpu.matmul %138, %140, %cst_55 {dimension_numbers = #tpu.dot_dimension_numbers<[1], [0], [0], [1], [0, 0, 1, 1], [], []>} : vector<16x384xbf16>, vector<384x1152xbf16>, vector<16x1152xf32> -> vector<16x1152xf32>
    %142 = vector.shape_cast %141 : vector<16x1152xf32> to vector<2x8x1152xf32>
    %143 = arith.truncf %142 : vector<2x8x1152xf32> to vector<2x8x1152xbf16>
    %144 = vector.extract_strided_slice %143 {offsets = [0, 0, 0], sizes = [2, 8, 64], strides = [1, 1, 1]} : vector<2x8x1152xbf16> to vector<2x8x64xbf16>
    %145 = vector.extract_strided_slice %143 {offsets = [0, 0, 384], sizes = [2, 8, 64], strides = [1, 1, 1]} : vector<2x8x1152xbf16> to vector<2x8x64xbf16>
    %146 = vector.extract_strided_slice %143 {offsets = [0, 0, 768], sizes = [2, 8, 64], strides = [1, 1, 1]} : vector<2x8x1152xbf16> to vector<2x8x64xbf16>
    "tpu.trace_start"() <{level = 10 : i32, message = "bqd,bkd->bqk"}> : () -> ()
    %cst_56 = arith.constant dense<0.000000e+00> : vector<2x8x8xf32>
    %147 = tpu.matmul %144, %145, %cst_56 {dimension_numbers = #tpu.dot_dimension_numbers<[2], [2], [1], [1], [0, 0, 0, 1, 1, 1], [0], [0]>} : vector<2x8x64xbf16>, vector<2x8x64xbf16>, vector<2x8x8xf32> -> vector<2x8x8xf32>
    "tpu.trace_stop"() : () -> ()
    %cst_57 = arith.constant 1.250000e-01 : f32
    %148 = vector.broadcast %cst_57 : f32 to vector<2x8x8xf32>
    %149 = arith.mulf %147, %148 : vector<2x8x8xf32>
    %150 = vector.shape_cast %1 : vector<8x8xf32> to vector<1x8x8xf32>
    %151 = vector.broadcast %150 : vector<1x8x8xf32> to vector<2x8x8xf32>
    %152 = arith.addf %149, %151 : vector<2x8x8xf32>
    %cst_58 = arith.constant dense<0xFF800000> : vector<2x8xf32>
    %153 = vector.multi_reduction <maximumf>, %152, %cst_58 [2] : vector<2x8x8xf32> to vector<2x8xf32>
    %154 = vector.shape_cast %153 : vector<2x8xf32> to vector<2x8x1xf32>
    %155 = vector.broadcast %154 : vector<2x8x1xf32> to vector<2x8x8xf32>
    %156 = arith.subf %152, %155 : vector<2x8x8xf32>
    %157 = math.exp %156 : vector<2x8x8xf32>
    %cst_59 = arith.constant dense<0.000000e+00> : vector<2x8xf32>
    %158 = vector.multi_reduction <add>, %157, %cst_59 [2] : vector<2x8x8xf32> to vector<2x8xf32>
    %159 = vector.shape_cast %158 : vector<2x8xf32> to vector<2x8x1xf32>
    %160 = vector.broadcast %159 : vector<2x8x1xf32> to vector<2x8x8xf32>
    %161 = arith.divf %157, %160 : vector<2x8x8xf32>
    %162 = arith.truncf %161 : vector<2x8x8xf32> to vector<2x8x8xbf16>
    "tpu.trace_start"() <{level = 10 : i32, message = "bqk,bkd->bqd"}> : () -> ()
    %cst_60 = arith.constant dense<0.000000e+00> : vector<2x8x64xf32>
    %163 = tpu.matmul %162, %146, %cst_60 {dimension_numbers = #tpu.dot_dimension_numbers<[2], [1], [1], [2], [0, 0, 0, 1, 1, 2], [0], [0]>} : vector<2x8x8xbf16>, vector<2x8x64xbf16>, vector<2x8x64xf32> -> vector<2x8x64xf32>
    "tpu.trace_stop"() : () -> ()
    %c0_61 = arith.constant 0 : index
    %c0_62 = arith.constant 0 : index
    %c0_63 = arith.constant 0 : index
    %164 = vector.load %arg7[%c0_61, %c0_62, %c0_63] : memref<2x8x384xf32, #tpu.memory_space<vmem>>, vector<2x8x64xf32>
    tpu.vector_store %arg7[%c0_61, %c0_62, %c0_63], %163 {strides = array<i32>} : memref<2x8x384xf32, #tpu.memory_space<vmem>>, vector<2x8x64xf32>,
    %165 = vector.extract_strided_slice %143 {offsets = [0, 0, 64], sizes = [2, 8, 64], strides = [1, 1, 1]} : vector<2x8x1152xbf16> to vector<2x8x64xbf16>
    %166 = vector.extract_strided_slice %143 {offsets = [0, 0, 448], sizes = [2, 8, 64], strides = [1, 1, 1]} : vector<2x8x1152xbf16> to vector<2x8x64xbf16>
    %167 = vector.extract_strided_slice %143 {offsets = [0, 0, 832], sizes = [2, 8, 64], strides = [1, 1, 1]} : vector<2x8x1152xbf16> to vector<2x8x64xbf16>
    "tpu.trace_start"() <{level = 10 : i32, message = "bqd,bkd->bqk"}> : () -> ()
    %cst_64 = arith.constant dense<0.000000e+00> : vector<2x8x8xf32>
    %168 = tpu.matmul %165, %166, %cst_64 {dimension_numbers = #tpu.dot_dimension_numbers<[2], [2], [1], [1], [0, 0, 0, 1, 1, 1], [0], [0]>} : vector<2x8x64xbf16>, vector<2x8x64xbf16>, vector<2x8x8xf32> -> vector<2x8x8xf32>
    "tpu.trace_stop"() : () -> ()
    %cst_65 = arith.constant 1.250000e-01 : f32
    %169 = vector.broadcast %cst_65 : f32 to vector<2x8x8xf32>
    %170 = arith.mulf %168, %169 : vector<2x8x8xf32>
    %171 = vector.shape_cast %1 : vector<8x8xf32> to vector<1x8x8xf32>
    %172 = vector.broadcast %171 : vector<1x8x8xf32> to vector<2x8x8xf32>
    %173 = arith.addf %170, %172 : vector<2x8x8xf32>
    %cst_66 = arith.constant dense<0xFF800000> : vector<2x8xf32>
    %174 = vector.multi_reduction <maximumf>, %173, %cst_66 [2] : vector<2x8x8xf32> to vector<2x8xf32>
    %175 = vector.shape_cast %174 : vector<2x8xf32> to vector<2x8x1xf32>
    %176 = vector.broadcast %175 : vector<2x8x1xf32> to vector<2x8x8xf32>
    %177 = arith.subf %173, %176 : vector<2x8x8xf32>
    %178 = math.exp %177 : vector<2x8x8xf32>
    %cst_67 = arith.constant dense<0.000000e+00> : vector<2x8xf32>
    %179 = vector.multi_reduction <add>, %178, %cst_67 [2] : vector<2x8x8xf32> to vector<2x8xf32>
    %180 = vector.shape_cast %179 : vector<2x8xf32> to vector<2x8x1xf32>
    %181 = vector.broadcast %180 : vector<2x8x1xf32> to vector<2x8x8xf32>
    %182 = arith.divf %178, %181 : vector<2x8x8xf32>
    %183 = arith.truncf %182 : vector<2x8x8xf32> to vector<2x8x8xbf16>
    "tpu.trace_start"() <{level = 10 : i32, message = "bqk,bkd->bqd"}> : () -> ()
    %cst_68 = arith.constant dense<0.000000e+00> : vector<2x8x64xf32>
    %184 = tpu.matmul %183, %167, %cst_68 {dimension_numbers = #tpu.dot_dimension_numbers<[2], [1], [1], [2], [0, 0, 0, 1, 1, 2], [0], [0]>} : vector<2x8x8xbf16>, vector<2x8x64xbf16>, vector<2x8x64xf32> -> vector<2x8x64xf32>
    "tpu.trace_stop"() : () -> ()
    %c0_69 = arith.constant 0 : index
    %c0_70 = arith.constant 0 : index
    %c64_71 = arith.constant 64 : index
    %185 = vector.load %arg7[%c0_69, %c0_70, %c64_71] : memref<2x8x384xf32, #tpu.memory_space<vmem>>, vector<2x8x64xf32>
    tpu.vector_store %arg7[%c0_69, %c0_70, %c64_71], %184 {strides = array<i32>} : memref<2x8x384xf32, #tpu.memory_space<vmem>>, vector<2x8x64xf32>,
    %186 = vector.extract_strided_slice %143 {offsets = [0, 0, 128], sizes = [2, 8, 64], strides = [1, 1, 1]} : vector<2x8x1152xbf16> to vector<2x8x64xbf16>
    %187 = vector.extract_strided_slice %143 {offsets = [0, 0, 512], sizes = [2, 8, 64], strides = [1, 1, 1]} : vector<2x8x1152xbf16> to vector<2x8x64xbf16>
    %188 = vector.extract_strided_slice %143 {offsets = [0, 0, 896], sizes = [2, 8, 64], strides = [1, 1, 1]} : vector<2x8x1152xbf16> to vector<2x8x64xbf16>
    "tpu.trace_start"() <{level = 10 : i32, message = "bqd,bkd->bqk"}> : () -> ()
    %cst_72 = arith.constant dense<0.000000e+00> : vector<2x8x8xf32>
    %189 = tpu.matmul %186, %187, %cst_72 {dimension_numbers = #tpu.dot_dimension_numbers<[2], [2], [1], [1], [0, 0, 0, 1, 1, 1], [0], [0]>} : vector<2x8x64xbf16>, vector<2x8x64xbf16>, vector<2x8x8xf32> -> vector<2x8x8xf32>
    "tpu.trace_stop"() : () -> ()
    %cst_73 = arith.constant 1.250000e-01 : f32
    %190 = vector.broadcast %cst_73 : f32 to vector<2x8x8xf32>
    %191 = arith.mulf %189, %190 : vector<2x8x8xf32>
    %192 = vector.shape_cast %1 : vector<8x8xf32> to vector<1x8x8xf32>
    %193 = vector.broadcast %192 : vector<1x8x8xf32> to vector<2x8x8xf32>
    %194 = arith.addf %191, %193 : vector<2x8x8xf32>
    %cst_74 = arith.constant dense<0xFF800000> : vector<2x8xf32>
    %195 = vector.multi_reduction <maximumf>, %194, %cst_74 [2] : vector<2x8x8xf32> to vector<2x8xf32>
    %196 = vector.shape_cast %195 : vector<2x8xf32> to vector<2x8x1xf32>
    %197 = vector.broadcast %196 : vector<2x8x1xf32> to vector<2x8x8xf32>
    %198 = arith.subf %194, %197 : vector<2x8x8xf32>
    %199 = math.exp %198 : vector<2x8x8xf32>
    %cst_75 = arith.constant dense<0.000000e+00> : vector<2x8xf32>
    %200 = vector.multi_reduction <add>, %199, %cst_75 [2] : vector<2x8x8xf32> to vector<2x8xf32>
    %201 = vector.shape_cast %200 : vector<2x8xf32> to vector<2x8x1xf32>
    %202 = vector.broadcast %201 : vector<2x8x1xf32> to vector<2x8x8xf32>
    %203 = arith.divf %199, %202 : vector<2x8x8xf32>
    %204 = arith.truncf %203 : vector<2x8x8xf32> to vector<2x8x8xbf16>
    "tpu.trace_start"() <{level = 10 : i32, message = "bqk,bkd->bqd"}> : () -> ()
    %cst_76 = arith.constant dense<0.000000e+00> : vector<2x8x64xf32>
    %205 = tpu.matmul %204, %188, %cst_76 {dimension_numbers = #tpu.dot_dimension_numbers<[2], [1], [1], [2], [0, 0, 0, 1, 1, 2], [0], [0]>} : vector<2x8x8xbf16>, vector<2x8x64xbf16>, vector<2x8x64xf32> -> vector<2x8x64xf32>
    "tpu.trace_stop"() : () -> ()
    %c0_77 = arith.constant 0 : index
    %c0_78 = arith.constant 0 : index
    %c128_79 = arith.constant 128 : index
    %206 = vector.load %arg7[%c0_77, %c0_78, %c128_79] : memref<2x8x384xf32, #tpu.memory_space<vmem>>, vector<2x8x64xf32>
    tpu.vector_store %arg7[%c0_77, %c0_78, %c128_79], %205 {strides = array<i32>} : memref<2x8x384xf32, #tpu.memory_space<vmem>>, vector<2x8x64xf32>,
    %207 = vector.extract_strided_slice %143 {offsets = [0, 0, 192], sizes = [2, 8, 64], strides = [1, 1, 1]} : vector<2x8x1152xbf16> to vector<2x8x64xbf16>
    %208 = vector.extract_strided_slice %143 {offsets = [0, 0, 576], sizes = [2, 8, 64], strides = [1, 1, 1]} : vector<2x8x1152xbf16> to vector<2x8x64xbf16>
    %209 = vector.extract_strided_slice %143 {offsets = [0, 0, 960], sizes = [2, 8, 64], strides = [1, 1, 1]} : vector<2x8x1152xbf16> to vector<2x8x64xbf16>
    "tpu.trace_start"() <{level = 10 : i32, message = "bqd,bkd->bqk"}> : () -> ()
    %cst_80 = arith.constant dense<0.000000e+00> : vector<2x8x8xf32>
    %210 = tpu.matmul %207, %208, %cst_80 {dimension_numbers = #tpu.dot_dimension_numbers<[2], [2], [1], [1], [0, 0, 0, 1, 1, 1], [0], [0]>} : vector<2x8x64xbf16>, vector<2x8x64xbf16>, vector<2x8x8xf32> -> vector<2x8x8xf32>
    "tpu.trace_stop"() : () -> ()
    %cst_81 = arith.constant 1.250000e-01 : f32
    %211 = vector.broadcast %cst_81 : f32 to vector<2x8x8xf32>
    %212 = arith.mulf %210, %211 : vector<2x8x8xf32>
    %213 = vector.shape_cast %1 : vector<8x8xf32> to vector<1x8x8xf32>
    %214 = vector.broadcast %213 : vector<1x8x8xf32> to vector<2x8x8xf32>
    %215 = arith.addf %212, %214 : vector<2x8x8xf32>
    %cst_82 = arith.constant dense<0xFF800000> : vector<2x8xf32>
    %216 = vector.multi_reduction <maximumf>, %215, %cst_82 [2] : vector<2x8x8xf32> to vector<2x8xf32>
    %217 = vector.shape_cast %216 : vector<2x8xf32> to vector<2x8x1xf32>
    %218 = vector.broadcast %217 : vector<2x8x1xf32> to vector<2x8x8xf32>
    %219 = arith.subf %215, %218 : vector<2x8x8xf32>
    %220 = math.exp %219 : vector<2x8x8xf32>
    %cst_83 = arith.constant dense<0.000000e+00> : vector<2x8xf32>
    %221 = vector.multi_reduction <add>, %220, %cst_83 [2] : vector<2x8x8xf32> to vector<2x8xf32>
    %222 = vector.shape_cast %221 : vector<2x8xf32> to vector<2x8x1xf32>
    %223 = vector.broadcast %222 : vector<2x8x1xf32> to vector<2x8x8xf32>
    %224 = arith.divf %220, %223 : vector<2x8x8xf32>
    %225 = arith.truncf %224 : vector<2x8x8xf32> to vector<2x8x8xbf16>
    "tpu.trace_start"() <{level = 10 : i32, message = "bqk,bkd->bqd"}> : () -> ()
    %cst_84 = arith.constant dense<0.000000e+00> : vector<2x8x64xf32>
    %226 = tpu.matmul %225, %209, %cst_84 {dimension_numbers = #tpu.dot_dimension_numbers<[2], [1], [1], [2], [0, 0, 0, 1, 1, 2], [0], [0]>} : vector<2x8x8xbf16>, vector<2x8x64xbf16>, vector<2x8x64xf32> -> vector<2x8x64xf32>
    "tpu.trace_stop"() : () -> ()
    %c0_85 = arith.constant 0 : index
    %c0_86 = arith.constant 0 : index
    %c192_87 = arith.constant 192 : index
    %227 = vector.load %arg7[%c0_85, %c0_86, %c192_87] : memref<2x8x384xf32, #tpu.memory_space<vmem>>, vector<2x8x64xf32>
    tpu.vector_store %arg7[%c0_85, %c0_86, %c192_87], %226 {strides = array<i32>} : memref<2x8x384xf32, #tpu.memory_space<vmem>>, vector<2x8x64xf32>,
    %228 = vector.extract_strided_slice %143 {offsets = [0, 0, 256], sizes = [2, 8, 64], strides = [1, 1, 1]} : vector<2x8x1152xbf16> to vector<2x8x64xbf16>
    %229 = vector.extract_strided_slice %143 {offsets = [0, 0, 640], sizes = [2, 8, 64], strides = [1, 1, 1]} : vector<2x8x1152xbf16> to vector<2x8x64xbf16>
    %230 = vector.extract_strided_slice %143 {offsets = [0, 0, 1024], sizes = [2, 8, 64], strides = [1, 1, 1]} : vector<2x8x1152xbf16> to vector<2x8x64xbf16>
    "tpu.trace_start"() <{level = 10 : i32, message = "bqd,bkd->bqk"}> : () -> ()
    %cst_88 = arith.constant dense<0.000000e+00> : vector<2x8x8xf32>
    %231 = tpu.matmul %228, %229, %cst_88 {dimension_numbers = #tpu.dot_dimension_numbers<[2], [2], [1], [1], [0, 0, 0, 1, 1, 1], [0], [0]>} : vector<2x8x64xbf16>, vector<2x8x64xbf16>, vector<2x8x8xf32> -> vector<2x8x8xf32>
    "tpu.trace_stop"() : () -> ()
    %cst_89 = arith.constant 1.250000e-01 : f32
    %232 = vector.broadcast %cst_89 : f32 to vector<2x8x8xf32>
    %233 = arith.mulf %231, %232 : vector<2x8x8xf32>
    %234 = vector.shape_cast %1 : vector<8x8xf32> to vector<1x8x8xf32>
    %235 = vector.broadcast %234 : vector<1x8x8xf32> to vector<2x8x8xf32>
    %236 = arith.addf %233, %235 : vector<2x8x8xf32>
    %cst_90 = arith.constant dense<0xFF800000> : vector<2x8xf32>
    %237 = vector.multi_reduction <maximumf>, %236, %cst_90 [2] : vector<2x8x8xf32> to vector<2x8xf32>
    %238 = vector.shape_cast %237 : vector<2x8xf32> to vector<2x8x1xf32>
    %239 = vector.broadcast %238 : vector<2x8x1xf32> to vector<2x8x8xf32>
    %240 = arith.subf %236, %239 : vector<2x8x8xf32>
    %241 = math.exp %240 : vector<2x8x8xf32>
    %cst_91 = arith.constant dense<0.000000e+00> : vector<2x8xf32>
    %242 = vector.multi_reduction <add>, %241, %cst_91 [2] : vector<2x8x8xf32> to vector<2x8xf32>
    %243 = vector.shape_cast %242 : vector<2x8xf32> to vector<2x8x1xf32>
    %244 = vector.broadcast %243 : vector<2x8x1xf32> to vector<2x8x8xf32>
    %245 = arith.divf %241, %244 : vector<2x8x8xf32>
    %246 = arith.truncf %245 : vector<2x8x8xf32> to vector<2x8x8xbf16>
    "tpu.trace_start"() <{level = 10 : i32, message = "bqk,bkd->bqd"}> : () -> ()
    %cst_92 = arith.constant dense<0.000000e+00> : vector<2x8x64xf32>
    %247 = tpu.matmul %246, %230, %cst_92 {dimension_numbers = #tpu.dot_dimension_numbers<[2], [1], [1], [2], [0, 0, 0, 1, 1, 2], [0], [0]>} : vector<2x8x8xbf16>, vector<2x8x64xbf16>, vector<2x8x64xf32> -> vector<2x8x64xf32>
    "tpu.trace_stop"() : () -> ()
    %c0_93 = arith.constant 0 : index
    %c0_94 = arith.constant 0 : index
    %c256_95 = arith.constant 256 : index
    %248 = vector.load %arg7[%c0_93, %c0_94, %c256_95] : memref<2x8x384xf32, #tpu.memory_space<vmem>>, vector<2x8x64xf32>
    tpu.vector_store %arg7[%c0_93, %c0_94, %c256_95], %247 {strides = array<i32>} : memref<2x8x384xf32, #tpu.memory_space<vmem>>, vector<2x8x64xf32>,
    %249 = vector.extract_strided_slice %143 {offsets = [0, 0, 320], sizes = [2, 8, 64], strides = [1, 1, 1]} : vector<2x8x1152xbf16> to vector<2x8x64xbf16>
    %250 = vector.extract_strided_slice %143 {offsets = [0, 0, 704], sizes = [2, 8, 64], strides = [1, 1, 1]} : vector<2x8x1152xbf16> to vector<2x8x64xbf16>
    %251 = vector.extract_strided_slice %143 {offsets = [0, 0, 1088], sizes = [2, 8, 64], strides = [1, 1, 1]} : vector<2x8x1152xbf16> to vector<2x8x64xbf16>
    "tpu.trace_start"() <{level = 10 : i32, message = "bqd,bkd->bqk"}> : () -> ()
    %cst_96 = arith.constant dense<0.000000e+00> : vector<2x8x8xf32>
    %252 = tpu.matmul %249, %250, %cst_96 {dimension_numbers = #tpu.dot_dimension_numbers<[2], [2], [1], [1], [0, 0, 0, 1, 1, 1], [0], [0]>} : vector<2x8x64xbf16>, vector<2x8x64xbf16>, vector<2x8x8xf32> -> vector<2x8x8xf32>
    "tpu.trace_stop"() : () -> ()
    %cst_97 = arith.constant 1.250000e-01 : f32
    %253 = vector.broadcast %cst_97 : f32 to vector<2x8x8xf32>
    %254 = arith.mulf %252, %253 : vector<2x8x8xf32>
    %255 = vector.shape_cast %1 : vector<8x8xf32> to vector<1x8x8xf32>
    %256 = vector.broadcast %255 : vector<1x8x8xf32> to vector<2x8x8xf32>
    %257 = arith.addf %254, %256 : vector<2x8x8xf32>
    %cst_98 = arith.constant dense<0xFF800000> : vector<2x8xf32>
    %258 = vector.multi_reduction <maximumf>, %257, %cst_98 [2] : vector<2x8x8xf32> to vector<2x8xf32>
    %259 = vector.shape_cast %258 : vector<2x8xf32> to vector<2x8x1xf32>
    %260 = vector.broadcast %259 : vector<2x8x1xf32> to vector<2x8x8xf32>
    %261 = arith.subf %257, %260 : vector<2x8x8xf32>
    %262 = math.exp %261 : vector<2x8x8xf32>
    %cst_99 = arith.constant dense<0.000000e+00> : vector<2x8xf32>
    %263 = vector.multi_reduction <add>, %262, %cst_99 [2] : vector<2x8x8xf32> to vector<2x8xf32>
    %264 = vector.shape_cast %263 : vector<2x8xf32> to vector<2x8x1xf32>
    %265 = vector.broadcast %264 : vector<2x8x1xf32> to vector<2x8x8xf32>
    %266 = arith.divf %262, %265 : vector<2x8x8xf32>
    %267 = arith.truncf %266 : vector<2x8x8xf32> to vector<2x8x8xbf16>
    "tpu.trace_start"() <{level = 10 : i32, message = "bqk,bkd->bqd"}> : () -> ()
    %cst_100 = arith.constant dense<0.000000e+00> : vector<2x8x64xf32>
    %268 = tpu.matmul %267, %251, %cst_100 {dimension_numbers = #tpu.dot_dimension_numbers<[2], [1], [1], [2], [0, 0, 0, 1, 1, 2], [0], [0]>} : vector<2x8x8xbf16>, vector<2x8x64xbf16>, vector<2x8x64xf32> -> vector<2x8x64xf32>
    "tpu.trace_stop"() : () -> ()
    %c0_101 = arith.constant 0 : index
    %c0_102 = arith.constant 0 : index
    %c320_103 = arith.constant 320 : index
    %269 = vector.load %arg7[%c0_101, %c0_102, %c320_103] : memref<2x8x384xf32, #tpu.memory_space<vmem>>, vector<2x8x64xf32>
    tpu.vector_store %arg7[%c0_101, %c0_102, %c320_103], %268 {strides = array<i32>} : memref<2x8x384xf32, #tpu.memory_space<vmem>>, vector<2x8x64xf32>,
    %c0_104 = arith.constant 0 : index
    %c0_105 = arith.constant 0 : index
    %c0_106 = arith.constant 0 : index
    %270 = vector.load %arg7[%c0_104, %c0_105, %c0_106] : memref<2x8x384xf32, #tpu.memory_space<vmem>>, vector<2x8x384xf32>
    %271 = arith.addf %136, %270 : vector<2x8x384xf32>
    %272 = vector.shape_cast %271 : vector<2x8x384xf32> to vector<16x384xf32>
    %273 = arith.truncf %272 : vector<16x384xf32> to vector<16x384xbf16>
    %c0_107 = arith.constant 0 : index
    %c0_108 = arith.constant 0 : index
    %274 = vector.load %arg4[%c0_107, %c0_108] : memref<384x128xbf16, #tpu.memory_space<vmem>>, vector<384x128xbf16>
    %cst_109 = arith.constant dense<0.000000e+00> : vector<16x128xf32>
    %275 = tpu.matmul %273, %274, %cst_109 {dimension_numbers = #tpu.dot_dimension_numbers<[1], [0], [0], [1], [0, 0, 1, 1], [], []>} : vector<16x384xbf16>, vector<384x128xbf16>, vector<16x128xf32> -> vector<16x128xf32>
    %c0_110 = arith.constant 0 : index
    %c0_111 = arith.constant 0 : index
    %276 = vector.load %arg5[%c0_110, %c0_111] : memref<1x128xf32, #tpu.memory_space<vmem>>, vector<1x128xf32>
    %277 = vector.broadcast %276 : vector<1x128xf32> to vector<16x128xf32>
    %278 = arith.addf %275, %277 : vector<16x128xf32>
    %279 = vector.shape_cast %278 : vector<16x128xf32> to vector<2x8x128xf32>
    %c0_112 = arith.constant 0 : index
    %c0_113 = arith.constant 0 : index
    %c0_114 = arith.constant 0 : index
    %280 = vector.load %arg6[%c0_112, %c0_113, %c0_114] : memref<2x8x128xf32, #tpu.memory_space<vmem>>, vector<2x8x128xf32>
    tpu.vector_store %arg6[%c0_112, %c0_113, %c0_114], %279 {strides = array<i32>} : memref<2x8x128xf32, #tpu.memory_space<vmem>>, vector<2x8x128xf32>,
    return
  }
  func.func @transform_0(%arg0: i32) -> (i32, i32, i32) {
    %c0_i32 = arith.constant 0 : i32
    %c0_i32_0 = arith.constant 0 : i32
    %c0_i32_1 = arith.constant 0 : i32
    return %arg0, %c0_i32, %c0_i32_0 : i32, i32, i32
  }
  func.func @transform_1(%arg0: i32) -> (i32, i32) {
    %c0_i32 = arith.constant 0 : i32
    %c0_i32_0 = arith.constant 0 : i32
    %c0_i32_1 = arith.constant 0 : i32
    return %c0_i32, %c0_i32_0 : i32, i32
  }
  func.func @transform_2(%arg0: i32) -> (i32, i32, i32) {
    %c0_i32 = arith.constant 0 : i32
    %c0_i32_0 = arith.constant 0 : i32
    %c0_i32_1 = arith.constant 0 : i32
    %c0_i32_2 = arith.constant 0 : i32
    return %c0_i32, %c0_i32_0, %c0_i32_1 : i32, i32, i32
  }
  func.func @transform_3(%arg0: i32) -> (i32, i32) {
    %c0_i32 = arith.constant 0 : i32
    %c0_i32_0 = arith.constant 0 : i32
    %c0_i32_1 = arith.constant 0 : i32
    return %c0_i32, %c0_i32_0 : i32, i32
  }
  func.func @transform_4(%arg0: i32) -> (i32, i32) {
    %c0_i32 = arith.constant 0 : i32
    %c0_i32_0 = arith.constant 0 : i32
    %c0_i32_1 = arith.constant 0 : i32
    return %c0_i32, %c0_i32_0 : i32, i32
  }
  func.func @transform_5(%arg0: i32) -> (i32, i32, i32) {
    %c0_i32 = arith.constant 0 : i32
    %c0_i32_0 = arith.constant 0 : i32
    %c0_i32_1 = arith.constant 0 : i32
    return %arg0, %c0_i32, %c0_i32_0 : i32, i32, i32
  }
}

</mosaic_0001>

<llo_original>
// kernel: forward.1
$region0: #{forward.1}
  #allocation0 [shape = 'u32[]', space=smem, size = 0x4, offset = 0x4, fixed_abs, tag = 'smem constant byte address 0x4 - core index']
  #allocation1 [shape = 'u32[144,128]{1,0:T(1,128)}', space=vmem, size = 0x12000, scoped, tag = 'internal scratch']
  #allocation2 [shape = 'f32[2,8,384]{2,1,0:T(8,128)}', space=vmem, size = 0x6000, scoped, tag = 'scratch operand']
  %s0 = inlined_call_operand.vmem [shape: f32[2,8,384], index: 0, kind: input, shape index: {}]
  %s1 = inlined_call_operand.vmem [shape: f32[8,8], index: 1, kind: input, shape index: {}]
  %s2 = inlined_call_operand.hbm [shape: bf16[2,384,1152], index: 2, kind: input, shape index: {}]
  %s3 = inlined_call_operand.hbm [shape: bf16[384,128], index: 3, kind: input, shape index: {}]
  %s4 = inlined_call_operand.hbm [shape: f32[1,128], index: 4, kind: input, shape index: {}]
  %s5 = inlined_call_operand.hbm [shape: f32[2,8,128], index: 5, kind: output, shape index: {}]
  %s6 = sld [smem:[#allocation0]]
  $region42: #{forward.1} parent=0
    _
  %s8 = ssub.s32 1, %s6
  %s9 = scalar_select 0, %s8, %s6
  $region1: #{forward.1} parent=0
    #allocation3 [shape = 'u8[1769472]{0}', space=vmem, size = 0x1b0000, scoped, tag = 'input window, operand 2, single buffered']
    #allocation4 [shape = 's32[1]{0}', space=sflag, size = 0x4, scoped, tag = 'scoped memory for forward.1']
    #allocation5 [shape = 's32[1]{0}', space=sflag, size = 0x4, scoped, tag = 'scoped memory for forward.1']
    #allocation6 [shape = 'u8[98304]{0}', space=vmem, size = 0x18000, scoped, tag = 'input window, operand 3, single buffered']
    #allocation7 [shape = 's32[1]{0}', space=sflag, size = 0x4, scoped, tag = 'scoped memory for forward.1']
    #allocation8 [shape = 'u8[512]{0}', space=vmem, size = 0x400, scoped, tag = 'input window, operand 4, single buffered']
    #allocation9 [shape = 'u8[8192]{0}', space=vmem, size = 0x2000, scoped, tag = 'output window, operand 0, single buffered']
    %10 = vsyncpa [#allocation4], 0
    %11 = vsyncpa [#allocation7], 0
    %12 = vsyncpa [#allocation5], 0
    // Predicated region
    $region2: #{forward.1} parent=1 // pred_check
      _
    $region3: #{forward.1} parent=1 // pred_check_branch
      %14 = sbr.rel (0) target = $region5
    $region4: #{forward.1} parent=1 // pred_region
      _
    $region5: #{forward.1} parent=1 // pred_fallthru
      _
    // Predicated region
    $region6: #{forward.1} parent=1 // pred_check
      _
    $region7: #{forward.1} parent=1 // pred_check_branch
      %16 = sbr.rel (0) target = $region9
    $region8: #{forward.1} parent=1 // pred_region
      _
    $region9: #{forward.1} parent=1 // pred_fallthru
      _
    // Predicated region
    $region10: #{forward.1} parent=1 // pred_check
      _
    $region11: #{forward.1} parent=1 // pred_check_branch
      %18 = sbr.rel (0) target = $region13
    $region12: #{forward.1} parent=1 // pred_region
      %s20 = ssub.s32 55296, 55296
      %21 = vsyncadd [#allocation4], %s20
      %s22 = sshll.u32 [#allocation3], 4
      %s23 = int_to_ptr.vmem [resolvable:$true] %s22
      %28 = dma.hbm_to_vmem [thread:$0]  %s2, 55296, %s23, [#allocation4], 576, 576, 36
    $region13: #{forward.1} parent=1 // pred_fallthru
      _
    // Predicated region
    $region14: #{forward.1} parent=1 // pred_check
      _
    $region15: #{forward.1} parent=1 // pred_check_branch
      %30 = sbr.rel (0) target = $region17
    $region16: #{forward.1} parent=1 // pred_region
      %s32 = ssub.s32 3072, 3072
      %33 = vsyncadd [#allocation7], %s32
      %s34 = sshll.u32 [#allocation6], 4
      %s35 = int_to_ptr.vmem [resolvable:$true] %s34
      %40 = dma.hbm_to_vmem [thread:$0]  %s3, 3072, %s35, [#allocation7], 64, 64, 4
    $region17: #{forward.1} parent=1 // pred_fallthru
      _
    // Predicated region
    $region18: #{forward.1} parent=1 // pred_check
      _
    $region19: #{forward.1} parent=1 // pred_check_branch
      %42 = sbr.rel (0) target = $region21
    $region20: #{forward.1} parent=1 // pred_region
      %s44 = ssub.s32 16, 16
      %45 = vsyncadd [#allocation7], %s44
      %s47 = sshll.u32 [#allocation8], 4
      %s48 = int_to_ptr.vmem [resolvable:$true] %s47
      %50 = dma.hbm_to_vmem [thread:$0]  %s4, 16, %s48, [#allocation7]
    $region21: #{forward.1} parent=1 // pred_fallthru
      _
    // Predicated region
    $region22: #{forward.1} parent=1 // pred_check
      _
    $region23: #{forward.1} parent=1 // pred_check_branch
      %52 = sbr.rel (0) target = $region25
    $region24: #{forward.1} parent=1 // pred_region
      %53 = dma.done [#allocation4], 55296
    $region25: #{forward.1} parent=1 // pred_fallthru
      _
    // Predicated region
    $region26: #{forward.1} parent=1 // pred_check
      _
    $region27: #{forward.1} parent=1 // pred_check_branch
      %55 = sbr.rel (0) target = $region29
    $region28: #{forward.1} parent=1 // pred_region
      %56 = dma.done [#allocation7], 3072
    $region29: #{forward.1} parent=1 // pred_fallthru
      _
    // Predicated region
    $region30: #{forward.1} parent=1 // pred_check
      _
    $region31: #{forward.1} parent=1 // pred_check_branch
      %58 = sbr.rel (0) target = $region33
    $region32: #{forward.1} parent=1 // pred_region
      %59 = dma.done [#allocation7], 16
    $region33: #{forward.1} parent=1 // pred_fallthru
      _
    %v61 = vld [vmem:[%s0] sm:$0xff]
    %v62 = vld [vmem:[%s0 + $0x8] sm:$0xff]
    %v63 = vld [vmem:[%s0 + $0x10] sm:$0xff]
    %v64 = vld [vmem:[%s0 + $0x18] sm:$0xff]
    %v65 = vld [vmem:[%s0 + $0x20] sm:$0xff]
    %v66 = vld [vmem:[%s0 + $0x28] sm:$0xff]
    %v67 = vld [vmem:[%s1] sm:$0xff]
    %v68 = vpack.c.bf16 %v64, %v61
    %v69 = vpack.c.bf16 %v65, %v62
    %v70 = vpack.c.bf16 %v66, %v63
    %v71 = vld [vmem:[#allocation3] sm:$0xff]
    %v72 = vld [vmem:[#allocation3 + $0x8] sm:$0xff]
    %v73 = vld [vmem:[#allocation3 + $0x10] sm:$0xff]
    %v74 = vld [vmem:[#allocation3 + $0x18] sm:$0xff]
    %v75 = vld [vmem:[#allocation3 + $0x20] sm:$0xf]
    %v76 = vld [vmem:[#allocation3 + $0x24] sm:$0xff]
    %v77 = vld [vmem:[#allocation3 + $0x2c] sm:$0xff]
    %v78 = vld [vmem:[#allocation3 + $0x34] sm:$0xff]
    %v79 = vld [vmem:[#allocation3 + $0x3c] sm:$0xff]
    %v80 = vld [vmem:[#allocation3 + $0x44] sm:$0xf]
    %v81 = vld [vmem:[#allocation3 + $0x48] sm:$0xff]
    %v82 = vld [vmem:[#allocation3 + $0x50] sm:$0xff]
    %v83 = vld [vmem:[#allocation3 + $0x58] sm:$0xff]
    %v84 = vld [vmem:[#allocation3 + $0x60] sm:$0xff]
    %v85 = vld [vmem:[#allocation3 + $0x68] sm:$0xf]
    %v86 = vld [vmem:[#allocation3 + $0x6c] sm:$0xff]
    %v87 = vld [vmem:[#allocation3 + $0x74] sm:$0xff]
    %v88 = vld [vmem:[#allocation3 + $0x7c] sm:$0xff]
    %v89 = vld [vmem:[#allocation3 + $0x84] sm:$0xff]
    %v90 = vld [vmem:[#allocation3 + $0x8c] sm:$0xf]
    %v91 = vld [vmem:[#allocation3 + $0x90] sm:$0xff]
    %v92 = vld [vmem:[#allocation3 + $0x98] sm:$0xff]
    %v93 = vld [vmem:[#allocation3 + $0xa0] sm:$0xff]
    %v94 = vld [vmem:[#allocation3 + $0xa8] sm:$0xff]
    %v95 = vld [vmem:[#allocation3 + $0xb0] sm:$0xf]
    %v96 = vld [vmem:[#allocation3 + $0xb4] sm:$0xff]
    %v97 = vld [vmem:[#allocation3 + $0xbc] sm:$0xff]
    %v98 = vld [vmem:[#allocation3 + $0xc4] sm:$0xff]
    %v99 = vld [vmem:[#allocation3 + $0xcc] sm:$0xff]
    %v100 = vld [vmem:[#allocation3 + $0xd4] sm:$0xf]
    %v101 = vld [vmem:[#allocation3 + $0xd8] sm:$0xff]
    %v102 = vld [vmem:[#allocation3 + $0xe0] sm:$0xff]
    %v103 = vld [vmem:[#allocation3 + $0xe8] sm:$0xff]
    %v104 = vld [vmem:[#allocation3 + $0xf0] sm:$0xff]
    %v105 = vld [vmem:[#allocation3 + $0xf8] sm:$0xf]
    %v106 = vld [vmem:[#allocation3 + $0xfc] sm:$0xff]
    %v107 = vld [vmem:[#allocation3 + $0x104] sm:$0xff]
    %v108 = vld [vmem:[#allocation3 + $0x10c] sm:$0xff]
    %v109 = vld [vmem:[#allocation3 + $0x114] sm:$0xff]
    %v110 = vld [vmem:[#allocation3 + $0x11c] sm:$0xf]
    %v111 = vld [vmem:[#allocation3 + $0x120] sm:$0xff]
    %v112 = vld [vmem:[#allocation3 + $0x128] sm:$0xff]
    %v113 = vld [vmem:[#allocation3 + $0x130] sm:$0xff]
    %v114 = vld [vmem:[#allocation3 + $0x138] sm:$0xff]
    %v115 = vld [vmem:[#allocation3 + $0x140] sm:$0xf]
    %v116 = vld [vmem:[#allocation3 + $0x144] sm:$0xff]
    %v117 = vld [vmem:[#allocation3 + $0x14c] sm:$0xff]
    %v118 = vld [vmem:[#allocation3 + $0x154] sm:$0xff]
    %v119 = vld [vmem:[#allocation3 + $0x15c] sm:$0xff]
    %v120 = vld [vmem:[#allocation3 + $0x164] sm:$0xf]
    %v121 = vld [vmem:[#allocation3 + $0x168] sm:$0xff]
    %v122 = vld [vmem:[#allocation3 + $0x170] sm:$0xff]
    %v123 = vld [vmem:[#allocation3 + $0x178] sm:$0xff]
    %v124 = vld [vmem:[#allocation3 + $0x180] sm:$0xff]
    %v125 = vld [vmem:[#allocation3 + $0x188] sm:$0xf]
    %v126 = vld [vmem:[#allocation3 + $0x18c] sm:$0xff]
    %v127 = vld [vmem:[#allocation3 + $0x194] sm:$0xff]
    %v128 = vld [vmem:[#allocation3 + $0x19c] sm:$0xff]
    %v129 = vld [vmem:[#allocation3 + $0x1a4] sm:$0xff]
    %v130 = vld [vmem:[#allocation3 + $0x1ac] sm:$0xf]
    %v131 = vld [vmem:[#allocation3 + $0x1b0] sm:$0xff]
    %v132 = vld [vmem:[#allocation3 + $0x1b8] sm:$0xff]
    %v133 = vld [vmem:[#allocation3 + $0x1c0] sm:$0xff]
    %v134 = vld [vmem:[#allocation3 + $0x1c8] sm:$0xff]
    %v135 = vld [vmem:[#allocation3 + $0x1d0] sm:$0xf]
    %v136 = vld [vmem:[#allocation3 + $0x1d4] sm:$0xff]
    %v137 = vld [vmem:[#allocation3 + $0x1dc] sm:$0xff]
    %v138 = vld [vmem:[#allocation3 + $0x1e4] sm:$0xff]
    %v139 = vld [vmem:[#allocation3 + $0x1ec] sm:$0xff]
    %v140 = vld [vmem:[#allocation3 + $0x1f4] sm:$0xf]
    %v141 = vld [vmem:[#allocation3 + $0x1f8] sm:$0xff]
    %v142 = vld [vmem:[#allocation3 + $0x200] sm:$0xff]
    %v143 = vld [vmem:[#allocation3 + $0x208] sm:$0xff]
    %v144 = vld [vmem:[#allocation3 + $0x210] sm:$0xff]
    %v145 = vld [vmem:[#allocation3 + $0x218] sm:$0xf]
    %v146 = vld [vmem:[#allocation3 + $0x21c] sm:$0xff]
    %v147 = vld [vmem:[#allocation3 + $0x224] sm:$0xff]
    %v148 = vld [vmem:[#allocation3 + $0x22c] sm:$0xff]
    %v149 = vld [vmem:[#allocation3 + $0x234] sm:$0xff]
    %v150 = vld [vmem:[#allocation3 + $0x23c] sm:$0xf]
    %v151 = vld [vmem:[#allocation3 + $0x240] sm:$0xff]
    %v152 = vld [vmem:[#allocation3 + $0x248] sm:$0xff]
    %v153 = vld [vmem:[#allocation3 + $0x250] sm:$0xff]
    %v154 = vld [vmem:[#allocation3 + $0x258] sm:$0xff]
    %v155 = vld [vmem:[#allocation3 + $0x260] sm:$0xf]
    %v156 = vld [vmem:[#allocation3 + $0x264] sm:$0xff]
    %v157 = vld [vmem:[#allocation3 + $0x26c] sm:$0xff]
    %v158 = vld [vmem:[#allocation3 + $0x274] sm:$0xff]
    %v159 = vld [vmem:[#allocation3 + $0x27c] sm:$0xff]
    %v160 = vld [vmem:[#allocation3 + $0x284] sm:$0xf]
    %v161 = vld [vmem:[#allocation3 + $0x288] sm:$0xff]
    %v162 = vld [vmem:[#allocation3 + $0x290] sm:$0xff]
    %v163 = vld [vmem:[#allocation3 + $0x298] sm:$0xff]
    %v164 = vld [vmem:[#allocation3 + $0x2a0] sm:$0xff]
    %v165 = vld [vmem:[#allocation3 + $0x2a8] sm:$0xf]
    %v166 = vld [vmem:[#allocation3 + $0x2ac] sm:$0xff]
    %v167 = vld [vmem:[#allocation3 + $0x2b4] sm:$0xff]
    %v168 = vld [vmem:[#allocation3 + $0x2bc] sm:$0xff]
    %v169 = vld [vmem:[#allocation3 + $0x2c4] sm:$0xff]
    %v170 = vld [vmem:[#allocation3 + $0x2cc] sm:$0xf]
    %v171 = vld [vmem:[#allocation3 + $0x2d0] sm:$0xff]
    %v172 = vld [vmem:[#allocation3 + $0x2d8] sm:$0xff]
    %v173 = vld [vmem:[#allocation3 + $0x2e0] sm:$0xff]
    %v174 = vld [vmem:[#allocation3 + $0x2e8] sm:$0xff]
    %v175 = vld [vmem:[#allocation3 + $0x2f0] sm:$0xf]
    %v176 = vld [vmem:[#allocation3 + $0x2f4] sm:$0xff]
    %v177 = vld [vmem:[#allocation3 + $0x2fc] sm:$0xff]
    %v178 = vld [vmem:[#allocation3 + $0x304] sm:$0xff]
    %v179 = vld [vmem:[#allocation3 + $0x30c] sm:$0xff]
    %v180 = vld [vmem:[#allocation3 + $0x314] sm:$0xf]
    %v181 = vld [vmem:[#allocation3 + $0x318] sm:$0xff]
    %v182 = vld [vmem:[#allocation3 + $0x320] sm:$0xff]
    %v183 = vld [vmem:[#allocation3 + $0x328] sm:$0xff]
    %v184 = vld [vmem:[#allocation3 + $0x330] sm:$0xff]
    %v185 = vld [vmem:[#allocation3 + $0x338] sm:$0xf]
    %v186 = vld [vmem:[#allocation3 + $0x33c] sm:$0xff]
    %v187 = vld [vmem:[#allocation3 + $0x344] sm:$0xff]
    %v188 = vld [vmem:[#allocation3 + $0x34c] sm:$0xff]
    %v189 = vld [vmem:[#allocation3 + $0x354] sm:$0xff]
    %v190 = vld [vmem:[#allocation3 + $0x35c] sm:$0xf]
    %v191 = vld [vmem:[#allocation3 + $0x360] sm:$0xff]
    %v192 = vld [vmem:[#allocation3 + $0x368] sm:$0xff]
    %v193 = vld [vmem:[#allocation3 + $0x370] sm:$0xff]
    %v194 = vld [vmem:[#allocation3 + $0x378] sm:$0xff]
    %v195 = vld [vmem:[#allocation3 + $0x380] sm:$0xf]
    %v196 = vld [vmem:[#allocation3 + $0x384] sm:$0xff]
    %v197 = vld [vmem:[#allocation3 + $0x38c] sm:$0xff]
    %v198 = vld [vmem:[#allocation3 + $0x394] sm:$0xff]
    %v199 = vld [vmem:[#allocation3 + $0x39c] sm:$0xff]
    %v200 = vld [vmem:[#allocation3 + $0x3a4] sm:$0xf]
    %v201 = vld [vmem:[#allocation3 + $0x3a8] sm:$0xff]
    %v202 = vld [vmem:[#allocation3 + $0x3b0] sm:$0xff]
    %v203 = vld [vmem:[#allocation3 + $0x3b8] sm:$0xff]
    %v204 = vld [vmem:[#allocation3 + $0x3c0] sm:$0xff]
    %v205 = vld [vmem:[#allocation3 + $0x3c8] sm:$0xf]
    %v206 = vld [vmem:[#allocation3 + $0x3cc] sm:$0xff]
    %v207 = vld [vmem:[#allocation3 + $0x3d4] sm:$0xff]
    %v208 = vld [vmem:[#allocation3 + $0x3dc] sm:$0xff]
    %v209 = vld [vmem:[#allocation3 + $0x3e4] sm:$0xff]
    %v210 = vld [vmem:[#allocation3 + $0x3ec] sm:$0xf]
    %v211 = vld [vmem:[#allocation3 + $0x3f0] sm:$0xff]
    %v212 = vld [vmem:[#allocation3 + $0x3f8] sm:$0xff]
    %v213 = vld [vmem:[#allocation3 + $0x400] sm:$0xff]
    %v214 = vld [vmem:[#allocation3 + $0x408] sm:$0xff]
    %v215 = vld [vmem:[#allocation3 + $0x410] sm:$0xf]
    %v216 = vld [vmem:[#allocation3 + $0x414] sm:$0xff]
    %v217 = vld [vmem:[#allocation3 + $0x41c] sm:$0xff]
    %v218 = vld [vmem:[#allocation3 + $0x424] sm:$0xff]
    %v219 = vld [vmem:[#allocation3 + $0x42c] sm:$0xff]
    %v220 = vld [vmem:[#allocation3 + $0x434] sm:$0xf]
    %v221 = vld [vmem:[#allocation3 + $0x438] sm:$0xff]
    %v222 = vld [vmem:[#allocation3 + $0x440] sm:$0xff]
    %v223 = vld [vmem:[#allocation3 + $0x448] sm:$0xff]
    %v224 = vld [vmem:[#allocation3 + $0x450] sm:$0xff]
    %v225 = vld [vmem:[#allocation3 + $0x458] sm:$0xf]
    %v226 = vld [vmem:[#allocation3 + $0x45c] sm:$0xff]
    %v227 = vld [vmem:[#allocation3 + $0x464] sm:$0xff]
    %v228 = vld [vmem:[#allocation3 + $0x46c] sm:$0xff]
    %v229 = vld [vmem:[#allocation3 + $0x474] sm:$0xff]
    %v230 = vld [vmem:[#allocation3 + $0x47c] sm:$0xf]
    %v231 = vld [vmem:[#allocation3 + $0x480] sm:$0xff]
    %v232 = vld [vmem:[#allocation3 + $0x488] sm:$0xff]
    %v233 = vld [vmem:[#allocation3 + $0x490] sm:$0xff]
    %v234 = vld [vmem:[#allocation3 + $0x498] sm:$0xff]
    %v235 = vld [vmem:[#allocation3 + $0x4a0] sm:$0xf]
    %v236 = vld [vmem:[#allocation3 + $0x4a4] sm:$0xff]
    %v237 = vld [vmem:[#allocation3 + $0x4ac] sm:$0xff]
    %v238 = vld [vmem:[#allocation3 + $0x4b4] sm:$0xff]
    %v239 = vld [vmem:[#allocation3 + $0x4bc] sm:$0xff]
    %v240 = vld [vmem:[#allocation3 + $0x4c4] sm:$0xf]
    %v241 = vld [vmem:[#allocation3 + $0x4c8] sm:$0xff]
    %v242 = vld [vmem:[#allocation3 + $0x4d0] sm:$0xff]
    %v243 = vld [vmem:[#allocation3 + $0x4d8] sm:$0xff]
    %v244 = vld [vmem:[#allocation3 + $0x4e0] sm:$0xff]
    %v245 = vld [vmem:[#allocation3 + $0x4e8] sm:$0xf]
    %v246 = vld [vmem:[#allocation3 + $0x4ec] sm:$0xff]
    %v247 = vld [vmem:[#allocation3 + $0x4f4] sm:$0xff]
    %v248 = vld [vmem:[#allocation3 + $0x4fc] sm:$0xff]
    %v249 = vld [vmem:[#allocation3 + $0x504] sm:$0xff]
    %v250 = vld [vmem:[#allocation3 + $0x50c] sm:$0xf]
    %v251 = vld [vmem:[#allocation3 + $0x510] sm:$0xff]
    %v252 = vld [vmem:[#allocation3 + $0x518] sm:$0xff]
    %v253 = vld [vmem:[#allocation3 + $0x520] sm:$0xff]
    %v254 = vld [vmem:[#allocation3 + $0x528] sm:$0xff]
    %v255 = vld [vmem:[#allocation3 + $0x530] sm:$0xf]
    %v256 = vld [vmem:[#allocation3 + $0x534] sm:$0xff]
    %v257 = vld [vmem:[#allocation3 + $0x53c] sm:$0xff]
    %v258 = vld [vmem:[#allocation3 + $0x544] sm:$0xff]
    %v259 = vld [vmem:[#allocation3 + $0x54c] sm:$0xff]
    %v260 = vld [vmem:[#allocation3 + $0x554] sm:$0xf]
    %v261 = vld [vmem:[#allocation3 + $0x558] sm:$0xff]
    %v262 = vld [vmem:[#allocation3 + $0x560] sm:$0xff]
    %v263 = vld [vmem:[#allocation3 + $0x568] sm:$0xff]
    %v264 = vld [vmem:[#allocation3 + $0x570] sm:$0xff]
    %v265 = vld [vmem:[#allocation3 + $0x578] sm:$0xf]
    %v266 = vld [vmem:[#allocation3 + $0x57c] sm:$0xff]
    %v267 = vld [vmem:[#allocation3 + $0x584] sm:$0xff]
    %v268 = vld [vmem:[#allocation3 + $0x58c] sm:$0xff]
    %v269 = vld [vmem:[#allocation3 + $0x594] sm:$0xff]
    %v270 = vld [vmem:[#allocation3 + $0x59c] sm:$0xf]
    %v271 = vld [vmem:[#allocation3 + $0x5a0] sm:$0xff]
    %v272 = vld [vmem:[#allocation3 + $0x5a8] sm:$0xff]
    %v273 = vld [vmem:[#allocation3 + $0x5b0] sm:$0xff]
    %v274 = vld [vmem:[#allocation3 + $0x5b8] sm:$0xff]
    %v275 = vld [vmem:[#allocation3 + $0x5c0] sm:$0xf]
    %v276 = vld [vmem:[#allocation3 + $0x5c4] sm:$0xff]
    %v277 = vld [vmem:[#allocation3 + $0x5cc] sm:$0xff]
    %v278 = vld [vmem:[#allocation3 + $0x5d4] sm:$0xff]
    %v279 = vld [vmem:[#allocation3 + $0x5dc] sm:$0xff]
    %v280 = vld [vmem:[#allocation3 + $0x5e4] sm:$0xf]
    %v281 = vld [vmem:[#allocation3 + $0x5e8] sm:$0xff]
    %v282 = vld [vmem:[#allocation3 + $0x5f0] sm:$0xff]
    %v283 = vld [vmem:[#allocation3 + $0x5f8] sm:$0xff]
    %v284 = vld [vmem:[#allocation3 + $0x600] sm:$0xff]
    %v285 = vld [vmem:[#allocation3 + $0x608] sm:$0xf]
    %v286 = vld [vmem:[#allocation3 + $0x60c] sm:$0xff]
    %v287 = vld [vmem:[#allocation3 + $0x614] sm:$0xff]
    %v288 = vld [vmem:[#allocation3 + $0x61c] sm:$0xff]
    %v289 = vld [vmem:[#allocation3 + $0x624] sm:$0xff]
    %v290 = vld [vmem:[#allocation3 + $0x62c] sm:$0xf]
    %v291 = vld [vmem:[#allocation3 + $0x630] sm:$0xff]
    %v292 = vld [vmem:[#allocation3 + $0x638] sm:$0xff]
    %v293 = vld [vmem:[#allocation3 + $0x640] sm:$0xff]
    %v294 = vld [vmem:[#allocation3 + $0x648] sm:$0xff]
    %v295 = vld [vmem:[#allocation3 + $0x650] sm:$0xf]
    %v296 = vld [vmem:[#allocation3 + $0x654] sm:$0xff]
    %v297 = vld [vmem:[#allocation3 + $0x65c] sm:$0xff]
    %v298 = vld [vmem:[#allocation3 + $0x664] sm:$0xff]
    %v299 = vld [vmem:[#allocation3 + $0x66c] sm:$0xff]
    %v300 = vld [vmem:[#allocation3 + $0x674] sm:$0xf]
    %v301 = vld [vmem:[#allocation3 + $0x678] sm:$0xff]
    %v302 = vld [vmem:[#allocation3 + $0x680] sm:$0xff]
    %v303 = vld [vmem:[#allocation3 + $0x688] sm:$0xff]
    %v304 = vld [vmem:[#allocation3 + $0x690] sm:$0xff]
    %v305 = vld [vmem:[#allocation3 + $0x698] sm:$0xf]
    %v306 = vld [vmem:[#allocation3 + $0x69c] sm:$0xff]
    %v307 = vld [vmem:[#allocation3 + $0x6a4] sm:$0xff]
    %v308 = vld [vmem:[#allocation3 + $0x6ac] sm:$0xff]
    %v309 = vld [vmem:[#allocation3 + $0x6b4] sm:$0xff]
    %v310 = vld [vmem:[#allocation3 + $0x6bc] sm:$0xf]
    %v551 = vunpack.c.l.b16 %v71
    %v552 = vunpack.c.h.b16 %v71
    %v553 = vunpack.c.l.b16 %v72
    %v554 = vunpack.c.h.b16 %v72
    %v555 = vunpack.c.l.b16 %v73
    %v556 = vunpack.c.h.b16 %v73
    %v557 = vunpack.c.l.b16 %v74
    %v558 = vunpack.c.h.b16 %v74
    %v559 = vunpack.c.l.b16 %v75
    %v560 = vunpack.c.l.b16 %v76
    %v561 = vunpack.c.h.b16 %v76
    %v562 = vunpack.c.l.b16 %v77
    %v563 = vunpack.c.h.b16 %v77
    %v564 = vunpack.c.l.b16 %v78
    %v565 = vunpack.c.h.b16 %v78
    %v566 = vunpack.c.l.b16 %v79
    %v567 = vunpack.c.h.b16 %v79
    %v568 = vunpack.c.l.b16 %v80
    %v569 = vunpack.c.l.b16 %v81
    %v570 = vunpack.c.h.b16 %v81
    %v571 = vunpack.c.l.b16 %v82
    %v572 = vunpack.c.h.b16 %v82
    %v573 = vunpack.c.l.b16 %v83
    %v574 = vunpack.c.h.b16 %v83
    %v575 = vunpack.c.l.b16 %v84
    %v576 = vunpack.c.h.b16 %v84
    %v577 = vunpack.c.l.b16 %v85
    %v578 = vunpack.c.l.b16 %v86
    %v579 = vunpack.c.h.b16 %v86
    %v580 = vunpack.c.l.b16 %v87
    %v581 = vunpack.c.h.b16 %v87
    %v582 = vunpack.c.l.b16 %v88
    %v583 = vunpack.c.h.b16 %v88
    %v584 = vunpack.c.l.b16 %v89
    %v585 = vunpack.c.h.b16 %v89
    %v586 = vunpack.c.l.b16 %v90
    %v587 = vunpack.c.l.b16 %v91
    %v588 = vunpack.c.h.b16 %v91
    %v589 = vunpack.c.l.b16 %v92
    %v590 = vunpack.c.h.b16 %v92
    %v591 = vunpack.c.l.b16 %v93
    %v592 = vunpack.c.h.b16 %v93
    %v593 = vunpack.c.l.b16 %v94
    %v594 = vunpack.c.h.b16 %v94
    %v595 = vunpack.c.l.b16 %v95
    %v596 = vunpack.c.l.b16 %v96
    %v597 = vunpack.c.h.b16 %v96
    %v598 = vunpack.c.l.b16 %v97
    %v599 = vunpack.c.h.b16 %v97
    %v600 = vunpack.c.l.b16 %v98
    %v601 = vunpack.c.h.b16 %v98
    %v602 = vunpack.c.l.b16 %v99
    %v603 = vunpack.c.h.b16 %v99
    %v604 = vunpack.c.l.b16 %v100
    %v605 = vunpack.c.l.b16 %v101
    %v606 = vunpack.c.h.b16 %v101
    %v607 = vunpack.c.l.b16 %v102
    %v608 = vunpack.c.h.b16 %v102
    %v609 = vunpack.c.l.b16 %v103
    %v610 = vunpack.c.h.b16 %v103
    %v611 = vunpack.c.l.b16 %v104
    %v612 = vunpack.c.h.b16 %v104
    %v613 = vunpack.c.l.b16 %v105
    %v614 = vunpack.c.l.b16 %v106
    %v615 = vunpack.c.h.b16 %v106
    %v616 = vunpack.c.l.b16 %v107
    %v617 = vunpack.c.h.b16 %v107
    %v618 = vunpack.c.l.b16 %v108
    %v619 = vunpack.c.h.b16 %v108
    %v620 = vunpack.c.l.b16 %v109
    %v621 = vunpack.c.h.b16 %v109
    %v622 = vunpack.c.l.b16 %v110
    %v623 = vunpack.c.l.b16 %v111
    %v624 = vunpack.c.h.b16 %v111
    %v625 = vunpack.c.l.b16 %v112
    %v626 = vunpack.c.h.b16 %v112
    %v627 = vunpack.c.l.b16 %v113
    %v628 = vunpack.c.h.b16 %v113
    %v629 = vunpack.c.l.b16 %v114
    %v630 = vunpack.c.h.b16 %v114
    %v631 = vunpack.c.l.b16 %v115
    %v632 = vunpack.c.l.b16 %v116
    %v633 = vunpack.c.h.b16 %v116
    %v634 = vunpack.c.l.b16 %v117
    %v635 = vunpack.c.h.b16 %v117
    %v636 = vunpack.c.l.b16 %v118
    %v637 = vunpack.c.h.b16 %v118
    %v638 = vunpack.c.l.b16 %v119
    %v639 = vunpack.c.h.b16 %v119
    %v640 = vunpack.c.l.b16 %v120
    %v641 = vunpack.c.l.b16 %v121
    %v642 = vunpack.c.h.b16 %v121
    %v643 = vunpack.c.l.b16 %v122
    %v644 = vunpack.c.h.b16 %v122
    %v645 = vunpack.c.l.b16 %v123
    %v646 = vunpack.c.h.b16 %v123
    %v647 = vunpack.c.l.b16 %v124
    %v648 = vunpack.c.h.b16 %v124
    %v649 = vunpack.c.l.b16 %v125
    %v650 = vunpack.c.l.b16 %v126
    %v651 = vunpack.c.h.b16 %v126
    %v652 = vunpack.c.l.b16 %v127
    %v653 = vunpack.c.h.b16 %v127
    %v654 = vunpack.c.l.b16 %v128
    %v655 = vunpack.c.h.b16 %v128
    %v656 = vunpack.c.l.b16 %v129
    %v657 = vunpack.c.h.b16 %v129
    %v658 = vunpack.c.l.b16 %v130
    %v659 = vunpack.c.l.b16 %v131
    %v660 = vunpack.c.h.b16 %v131
    %v661 = vunpack.c.l.b16 %v132
    %v662 = vunpack.c.h.b16 %v132
    %v663 = vunpack.c.l.b16 %v133
    %v664 = vunpack.c.h.b16 %v133
    %v665 = vunpack.c.l.b16 %v134
    %v666 = vunpack.c.h.b16 %v134
    %v667 = vunpack.c.l.b16 %v135
    %v668 = vunpack.c.l.b16 %v136
    %v669 = vunpack.c.h.b16 %v136
    %v670 = vunpack.c.l.b16 %v137
    %v671 = vunpack.c.h.b16 %v137
    %v672 = vunpack.c.l.b16 %v138
    %v673 = vunpack.c.h.b16 %v138
    %v674 = vunpack.c.l.b16 %v139
    %v675 = vunpack.c.h.b16 %v139
    %v676 = vunpack.c.l.b16 %v140
    %v677 = vunpack.c.l.b16 %v141
    %v678 = vunpack.c.h.b16 %v141
    %v679 = vunpack.c.l.b16 %v142
    %v680 = vunpack.c.h.b16 %v142
    %v681 = vunpack.c.l.b16 %v143
    %v682 = vunpack.c.h.b16 %v143
    %v683 = vunpack.c.l.b16 %v144
    %v684 = vunpack.c.h.b16 %v144
    %v685 = vunpack.c.l.b16 %v145
    %v686 = vunpack.c.l.b16 %v146
    %v687 = vunpack.c.h.b16 %v146
    %v688 = vunpack.c.l.b16 %v147
    %v689 = vunpack.c.h.b16 %v147
    %v690 = vunpack.c.l.b16 %v148
    %v691 = vunpack.c.h.b16 %v148
    %v692 = vunpack.c.l.b16 %v149
    %v693 = vunpack.c.h.b16 %v149
    %v694 = vunpack.c.l.b16 %v150
    %v695 = vunpack.c.l.b16 %v151
    %v696 = vunpack.c.h.b16 %v151
    %v697 = vunpack.c.l.b16 %v152
    %v698 = vunpack.c.h.b16 %v152
    %v699 = vunpack.c.l.b16 %v153
    %v700 = vunpack.c.h.b16 %v153
    %v701 = vunpack.c.l.b16 %v154
    %v702 = vunpack.c.h.b16 %v154
    %v703 = vunpack.c.l.b16 %v155
    %v704 = vunpack.c.l.b16 %v156
    %v705 = vunpack.c.h.b16 %v156
    %v706 = vunpack.c.l.b16 %v157
    %v707 = vunpack.c.h.b16 %v157
    %v708 = vunpack.c.l.b16 %v158
    %v709 = vunpack.c.h.b16 %v158
    %v710 = vunpack.c.l.b16 %v159
    %v711 = vunpack.c.h.b16 %v159
    %v712 = vunpack.c.l.b16 %v160
    %v713 = vunpack.c.l.b16 %v161
    %v714 = vunpack.c.h.b16 %v161
    %v715 = vunpack.c.l.b16 %v162
    %v716 = vunpack.c.h.b16 %v162
    %v717 = vunpack.c.l.b16 %v163
    %v718 = vunpack.c.h.b16 %v163
    %v719 = vunpack.c.l.b16 %v164
    %v720 = vunpack.c.h.b16 %v164
    %v721 = vunpack.c.l.b16 %v165
    %v722 = vunpack.c.l.b16 %v166
    %v723 = vunpack.c.h.b16 %v166
    %v724 = vunpack.c.l.b16 %v167
    %v725 = vunpack.c.h.b16 %v167
    %v726 = vunpack.c.l.b16 %v168
    %v727 = vunpack.c.h.b16 %v168
    %v728 = vunpack.c.l.b16 %v169
    %v729 = vunpack.c.h.b16 %v169
    %v730 = vunpack.c.l.b16 %v170
    %v731 = vunpack.c.l.b16 %v171
    %v732 = vunpack.c.h.b16 %v171
    %v733 = vunpack.c.l.b16 %v172
    %v734 = vunpack.c.h.b16 %v172
    %v735 = vunpack.c.l.b16 %v173
    %v736 = vunpack.c.h.b16 %v173
    %v737 = vunpack.c.l.b16 %v174
    %v738 = vunpack.c.h.b16 %v174
    %v739 = vunpack.c.l.b16 %v175
    %v740 = vunpack.c.l.b16 %v176
    %v741 = vunpack.c.h.b16 %v176
    %v742 = vunpack.c.l.b16 %v177
    %v743 = vunpack.c.h.b16 %v177
    %v744 = vunpack.c.l.b16 %v178
    %v745 = vunpack.c.h.b16 %v178
    %v746 = vunpack.c.l.b16 %v179
    %v747 = vunpack.c.h.b16 %v179
    %v748 = vunpack.c.l.b16 %v180
    %v749 = vunpack.c.l.b16 %v181
    %v750 = vunpack.c.h.b16 %v181
    %v751 = vunpack.c.l.b16 %v182
    %v752 = vunpack.c.h.b16 %v182
    %v753 = vunpack.c.l.b16 %v183
    %v754 = vunpack.c.h.b16 %v183
    %v755 = vunpack.c.l.b16 %v184
    %v756 = vunpack.c.h.b16 %v184
    %v757 = vunpack.c.l.b16 %v185
    %v758 = vunpack.c.l.b16 %v186
    %v759 = vunpack.c.h.b16 %v186
    %v760 = vunpack.c.l.b16 %v187
    %v761 = vunpack.c.h.b16 %v187
    %v762 = vunpack.c.l.b16 %v188
    %v763 = vunpack.c.h.b16 %v188
    %v764 = vunpack.c.l.b16 %v189
    %v765 = vunpack.c.h.b16 %v189
    %v766 = vunpack.c.l.b16 %v190
    %v767 = vunpack.c.l.b16 %v191
    %v768 = vunpack.c.h.b16 %v191
    %v769 = vunpack.c.l.b16 %v192
    %v770 = vunpack.c.h.b16 %v192
    %v771 = vunpack.c.l.b16 %v193
    %v772 = vunpack.c.h.b16 %v193
    %v773 = vunpack.c.l.b16 %v194
    %v774 = vunpack.c.h.b16 %v194
    %v775 = vunpack.c.l.b16 %v195
    %v776 = vunpack.c.l.b16 %v196
    %v777 = vunpack.c.h.b16 %v196
    %v778 = vunpack.c.l.b16 %v197
    %v779 = vunpack.c.h.b16 %v197
    %v780 = vunpack.c.l.b16 %v198
    %v781 = vunpack.c.h.b16 %v198
    %v782 = vunpack.c.l.b16 %v199
    %v783 = vunpack.c.h.b16 %v199
    %v784 = vunpack.c.l.b16 %v200
    %v785 = vunpack.c.l.b16 %v201
    %v786 = vunpack.c.h.b16 %v201
    %v787 = vunpack.c.l.b16 %v202
    %v788 = vunpack.c.h.b16 %v202
    %v789 = vunpack.c.l.b16 %v203
    %v790 = vunpack.c.h.b16 %v203
    %v791 = vunpack.c.l.b16 %v204
    %v792 = vunpack.c.h.b16 %v204
    %v793 = vunpack.c.l.b16 %v205
    %v794 = vunpack.c.l.b16 %v206
    %v795 = vunpack.c.h.b16 %v206
    %v796 = vunpack.c.l.b16 %v207
    %v797 = vunpack.c.h.b16 %v207
    %v798 = vunpack.c.l.b16 %v208
    %v799 = vunpack.c.h.b16 %v208
    %v800 = vunpack.c.l.b16 %v209
    %v801 = vunpack.c.h.b16 %v209
    %v802 = vunpack.c.l.b16 %v210
    %v803 = vunpack.c.l.b16 %v211
    %v804 = vunpack.c.h.b16 %v211
    %v805 = vunpack.c.l.b16 %v212
    %v806 = vunpack.c.h.b16 %v212
    %v807 = vunpack.c.l.b16 %v213
    %v808 = vunpack.c.h.b16 %v213
    %v809 = vunpack.c.l.b16 %v214
    %v810 = vunpack.c.h.b16 %v214
    %v811 = vunpack.c.l.b16 %v215
    %v812 = vunpack.c.l.b16 %v216
    %v813 = vunpack.c.h.b16 %v216
    %v814 = vunpack.c.l.b16 %v217
    %v815 = vunpack.c.h.b16 %v217
    %v816 = vunpack.c.l.b16 %v218
    %v817 = vunpack.c.h.b16 %v218
    %v818 = vunpack.c.l.b16 %v219
    %v819 = vunpack.c.h.b16 %v219
    %v820 = vunpack.c.l.b16 %v220
    %v821 = vunpack.c.l.b16 %v221
    %v822 = vunpack.c.h.b16 %v221
    %v823 = vunpack.c.l.b16 %v222
    %v824 = vunpack.c.h.b16 %v222
    %v825 = vunpack.c.l.b16 %v223
    %v826 = vunpack.c.h.b16 %v223
    %v827 = vunpack.c.l.b16 %v224
    %v828 = vunpack.c.h.b16 %v224
    %v829 = vunpack.c.l.b16 %v225
    %v830 = vunpack.c.l.b16 %v226
    %v831 = vunpack.c.h.b16 %v226
    %v832 = vunpack.c.l.b16 %v227
    %v833 = vunpack.c.h.b16 %v227
    %v834 = vunpack.c.l.b16 %v228
    %v835 = vunpack.c.h.b16 %v228
    %v836 = vunpack.c.l.b16 %v229
    %v837 = vunpack.c.h.b16 %v229
    %v838 = vunpack.c.l.b16 %v230
    %v839 = vunpack.c.l.b16 %v231
    %v840 = vunpack.c.h.b16 %v231
    %v841 = vunpack.c.l.b16 %v232
    %v842 = vunpack.c.h.b16 %v232
    %v843 = vunpack.c.l.b16 %v233
    %v844 = vunpack.c.h.b16 %v233
    %v845 = vunpack.c.l.b16 %v234
    %v846 = vunpack.c.h.b16 %v234
    %v847 = vunpack.c.l.b16 %v235
    %v848 = vunpack.c.l.b16 %v236
    %v849 = vunpack.c.h.b16 %v236
    %v850 = vunpack.c.l.b16 %v237
    %v851 = vunpack.c.h.b16 %v237
    %v852 = vunpack.c.l.b16 %v238
    %v853 = vunpack.c.h.b16 %v238
    %v854 = vunpack.c.l.b16 %v239
    %v855 = vunpack.c.h.b16 %v239
    %v856 = vunpack.c.l.b16 %v240
    %v857 = vunpack.c.l.b16 %v241
    %v858 = vunpack.c.h.b16 %v241
    %v859 = vunpack.c.l.b16 %v242
    %v860 = vunpack.c.h.b16 %v242
    %v861 = vunpack.c.l.b16 %v243
    %v862 = vunpack.c.h.b16 %v243
    %v863 = vunpack.c.l.b16 %v244
    %v864 = vunpack.c.h.b16 %v244
    %v865 = vunpack.c.l.b16 %v245
    %v866 = vunpack.c.l.b16 %v246
    %v867 = vunpack.c.h.b16 %v246
    %v868 = vunpack.c.l.b16 %v247
    %v869 = vunpack.c.h.b16 %v247
    %v870 = vunpack.c.l.b16 %v248
    %v871 = vunpack.c.h.b16 %v248
    %v872 = vunpack.c.l.b16 %v249
    %v873 = vunpack.c.h.b16 %v249
    %v874 = vunpack.c.l.b16 %v250
    %v875 = vunpack.c.l.b16 %v251
    %v876 = vunpack.c.h.b16 %v251
    %v877 = vunpack.c.l.b16 %v252
    %v878 = vunpack.c.h.b16 %v252
    %v879 = vunpack.c.l.b16 %v253
    %v880 = vunpack.c.h.b16 %v253
    %v881 = vunpack.c.l.b16 %v254
    %v882 = vunpack.c.h.b16 %v254
    %v883 = vunpack.c.l.b16 %v255
    %v884 = vunpack.c.l.b16 %v256
    %v885 = vunpack.c.h.b16 %v256
    %v886 = vunpack.c.l.b16 %v257
    %v887 = vunpack.c.h.b16 %v257
    %v888 = vunpack.c.l.b16 %v258
    %v889 = vunpack.c.h.b16 %v258
    %v890 = vunpack.c.l.b16 %v259
    %v891 = vunpack.c.h.b16 %v259
    %v892 = vunpack.c.l.b16 %v260
    %v893 = vunpack.c.l.b16 %v261
    %v894 = vunpack.c.h.b16 %v261
    %v895 = vunpack.c.l.b16 %v262
    %v896 = vunpack.c.h.b16 %v262
    %v897 = vunpack.c.l.b16 %v263
    %v898 = vunpack.c.h.b16 %v263
    %v899 = vunpack.c.l.b16 %v264
    %v900 = vunpack.c.h.b16 %v264
    %v901 = vunpack.c.l.b16 %v265
    %v902 = vunpack.c.l.b16 %v266
    %v903 = vunpack.c.h.b16 %v266
    %v904 = vunpack.c.l.b16 %v267
    %v905 = vunpack.c.h.b16 %v267
    %v906 = vunpack.c.l.b16 %v268
    %v907 = vunpack.c.h.b16 %v268
    %v908 = vunpack.c.l.b16 %v269
    %v909 = vunpack.c.h.b16 %v269
    %v910 = vunpack.c.l.b16 %v270
    %v911 = vunpack.c.l.b16 %v271
    %v912 = vunpack.c.h.b16 %v271
    %v913 = vunpack.c.l.b16 %v272
    %v914 = vunpack.c.h.b16 %v272
    %v915 = vunpack.c.l.b16 %v273
    %v916 = vunpack.c.h.b16 %v273
    %v917 = vunpack.c.l.b16 %v274
    %v918 = vunpack.c.h.b16 %v274
    %v919 = vunpack.c.l.b16 %v275
    %v920 = vunpack.c.l.b16 %v276
    %v921 = vunpack.c.h.b16 %v276
    %v922 = vunpack.c.l.b16 %v277
    %v923 = vunpack.c.h.b16 %v277
    %v924 = vunpack.c.l.b16 %v278
    %v925 = vunpack.c.h.b16 %v278
    %v926 = vunpack.c.l.b16 %v279
    %v927 = vunpack.c.h.b16 %v279
    %v928 = vunpack.c.l.b16 %v280
    %v929 = vunpack.c.l.b16 %v281
    %v930 = vunpack.c.h.b16 %v281
    %v931 = vunpack.c.l.b16 %v282
    %v932 = vunpack.c.h.b16 %v282
    %v933 = vunpack.c.l.b16 %v283
    %v934 = vunpack.c.h.b16 %v283
    %v935 = vunpack.c.l.b16 %v284
    %v936 = vunpack.c.h.b16 %v284
    %v937 = vunpack.c.l.b16 %v285
    %v938 = vunpack.c.l.b16 %v286
    %v939 = vunpack.c.h.b16 %v286
    %v940 = vunpack.c.l.b16 %v287
    %v941 = vunpack.c.h.b16 %v287
    %v942 = vunpack.c.l.b16 %v288
    %v943 = vunpack.c.h.b16 %v288
    %v944 = vunpack.c.l.b16 %v289
    %v945 = vunpack.c.h.b16 %v289
    %v946 = vunpack.c.l.b16 %v290
    %v947 = vunpack.c.l.b16 %v291
    %v948 = vunpack.c.h.b16 %v291
    %v949 = vunpack.c.l.b16 %v292
    %v950 = vunpack.c.h.b16 %v292
    %v951 = vunpack.c.l.b16 %v293
    %v952 = vunpack.c.h.b16 %v293
    %v953 = vunpack.c.l.b16 %v294
    %v954 = vunpack.c.h.b16 %v294
    %v955 = vunpack.c.l.b16 %v295
    %v956 = vunpack.c.l.b16 %v296
    %v957 = vunpack.c.h.b16 %v296
    %v958 = vunpack.c.l.b16 %v297
    %v959 = vunpack.c.h.b16 %v297
    %v960 = vunpack.c.l.b16 %v298
    %v961 = vunpack.c.h.b16 %v298
    %v962 = vunpack.c.l.b16 %v299
    %v963 = vunpack.c.h.b16 %v299
    %v964 = vunpack.c.l.b16 %v300
    %v965 = vunpack.c.l.b16 %v301
    %v966 = vunpack.c.h.b16 %v301
    %v967 = vunpack.c.l.b16 %v302
    %v968 = vunpack.c.h.b16 %v302
    %v969 = vunpack.c.l.b16 %v303
    %v970 = vunpack.c.h.b16 %v303
    %v971 = vunpack.c.l.b16 %v304
    %v972 = vunpack.c.h.b16 %v304
    %v973 = vunpack.c.l.b16 %v305
    %v974 = vunpack.c.l.b16 %v306
    %v975 = vunpack.c.h.b16 %v306
    %v976 = vunpack.c.l.b16 %v307
    %v977 = vunpack.c.h.b16 %v307
    %v978 = vunpack.c.l.b16 %v308
    %v979 = vunpack.c.h.b16 %v308
    %v980 = vunpack.c.l.b16 %v309
    %v981 = vunpack.c.h.b16 %v309
    %v982 = vunpack.c.l.b16 %v310
    %v983 = vpack.c.b16 %v560, %v551
    %v984 = vpack.c.b16 %v561, %v552
    %v985 = vpack.c.b16 %v562, %v553
    %v986 = vpack.c.b16 %v563, %v554
    %v987 = vpack.c.b16 %v564, %v555
    %v988 = vpack.c.b16 %v565, %v556
    %v989 = vpack.c.b16 %v566, %v557
    %v990 = vpack.c.b16 %v567, %v558
    %v991 = vpack.c.b16 %v568, %v559
    %v992 = vpack.c.b16 %v578, %v569
    %v993 = vpack.c.b16 %v579, %v570
    %v994 = vpack.c.b16 %v580, %v571
    %v995 = vpack.c.b16 %v581, %v572
    %v996 = vpack.c.b16 %v582, %v573
    %v997 = vpack.c.b16 %v583, %v574
    %v998 = vpack.c.b16 %v584, %v575
    %v999 = vpack.c.b16 %v585, %v576
    %v1000 = vpack.c.b16 %v586, %v577
    %v1001 = vpack.c.b16 %v596, %v587
    %v1002 = vpack.c.b16 %v597, %v588
    %v1003 = vpack.c.b16 %v598, %v589
    %v1004 = vpack.c.b16 %v599, %v590
    %v1005 = vpack.c.b16 %v600, %v591
    %v1006 = vpack.c.b16 %v601, %v592
    %v1007 = vpack.c.b16 %v602, %v593
    %v1008 = vpack.c.b16 %v603, %v594
    %v1009 = vpack.c.b16 %v604, %v595
    %v1010 = vpack.c.b16 %v614, %v605
    %v1011 = vpack.c.b16 %v615, %v606
    %v1012 = vpack.c.b16 %v616, %v607
    %v1013 = vpack.c.b16 %v617, %v608
    %v1014 = vpack.c.b16 %v618, %v609
    %v1015 = vpack.c.b16 %v619, %v610
    %v1016 = vpack.c.b16 %v620, %v611
    %v1017 = vpack.c.b16 %v621, %v612
    %v1018 = vpack.c.b16 %v622, %v613
    %v1019 = vpack.c.b16 %v632, %v623
    %v1020 = vpack.c.b16 %v633, %v624
    %v1021 = vpack.c.b16 %v634, %v625
    %v1022 = vpack.c.b16 %v635, %v626
    %v1023 = vpack.c.b16 %v636, %v627
    %v1024 = vpack.c.b16 %v637, %v628
    %v1025 = vpack.c.b16 %v638, %v629
    %v1026 = vpack.c.b16 %v639, %v630
    %v1027 = vpack.c.b16 %v640, %v631
    %v1028 = vpack.c.b16 %v650, %v641
    %v1029 = vpack.c.b16 %v651, %v642
    %v1030 = vpack.c.b16 %v652, %v643
    %v1031 = vpack.c.b16 %v653, %v644
    %v1032 = vpack.c.b16 %v654, %v645
    %v1033 = vpack.c.b16 %v655, %v646
    %v1034 = vpack.c.b16 %v656, %v647
    %v1035 = vpack.c.b16 %v657, %v648
    %v1036 = vpack.c.b16 %v658, %v649
    %v1037 = vpack.c.b16 %v668, %v659
    %v1038 = vpack.c.b16 %v669, %v660
    %v1039 = vpack.c.b16 %v670, %v661
    %v1040 = vpack.c.b16 %v671, %v662
    %v1041 = vpack.c.b16 %v672, %v663
    %v1042 = vpack.c.b16 %v673, %v664
    %v1043 = vpack.c.b16 %v674, %v665
    %v1044 = vpack.c.b16 %v675, %v666
    %v1045 = vpack.c.b16 %v676, %v667
    %v1046 = vpack.c.b16 %v686, %v677
    %v1047 = vpack.c.b16 %v687, %v678
    %v1048 = vpack.c.b16 %v688, %v679
    %v1049 = vpack.c.b16 %v689, %v680
    %v1050 = vpack.c.b16 %v690, %v681
    %v1051 = vpack.c.b16 %v691, %v682
    %v1052 = vpack.c.b16 %v692, %v683
    %v1053 = vpack.c.b16 %v693, %v684
    %v1054 = vpack.c.b16 %v694, %v685
    %v1055 = vpack.c.b16 %v704, %v695
    %v1056 = vpack.c.b16 %v705, %v696
    %v1057 = vpack.c.b16 %v706, %v697
    %v1058 = vpack.c.b16 %v707, %v698
    %v1059 = vpack.c.b16 %v708, %v699
    %v1060 = vpack.c.b16 %v709, %v700
    %v1061 = vpack.c.b16 %v710, %v701
    %v1062 = vpack.c.b16 %v711, %v702
    %v1063 = vpack.c.b16 %v712, %v703
    %v1064 = vpack.c.b16 %v722, %v713
    %v1065 = vpack.c.b16 %v723, %v714
    %v1066 = vpack.c.b16 %v724, %v715
    %v1067 = vpack.c.b16 %v725, %v716
    %v1068 = vpack.c.b16 %v726, %v717
    %v1069 = vpack.c.b16 %v727, %v718
    %v1070 = vpack.c.b16 %v728, %v719
    %v1071 = vpack.c.b16 %v729, %v720
    %v1072 = vpack.c.b16 %v730, %v721
    %v1073 = vpack.c.b16 %v740, %v731
    %v1074 = vpack.c.b16 %v741, %v732
    %v1075 = vpack.c.b16 %v742, %v733
    %v1076 = vpack.c.b16 %v743, %v734
    %v1077 = vpack.c.b16 %v744, %v735
    %v1078 = vpack.c.b16 %v745, %v736
    %v1079 = vpack.c.b16 %v746, %v737
    %v1080 = vpack.c.b16 %v747, %v738
    %v1081 = vpack.c.b16 %v748, %v739
    %v1082 = vpack.c.b16 %v758, %v749
    %v1083 = vpack.c.b16 %v759, %v750
    %v1084 = vpack.c.b16 %v760, %v751
    %v1085 = vpack.c.b16 %v761, %v752
    %v1086 = vpack.c.b16 %v762, %v753
    %v1087 = vpack.c.b16 %v763, %v754
    %v1088 = vpack.c.b16 %v764, %v755
    %v1089 = vpack.c.b16 %v765, %v756
    %v1090 = vpack.c.b16 %v766, %v757
    %v1091 = vpack.c.b16 %v776, %v767
    %v1092 = vpack.c.b16 %v777, %v768
    %v1093 = vpack.c.b16 %v778, %v769
    %v1094 = vpack.c.b16 %v779, %v770
    %v1095 = vpack.c.b16 %v780, %v771
    %v1096 = vpack.c.b16 %v781, %v772
    %v1097 = vpack.c.b16 %v782, %v773
    %v1098 = vpack.c.b16 %v783, %v774
    %v1099 = vpack.c.b16 %v784, %v775
    %v1100 = vpack.c.b16 %v794, %v785
    %v1101 = vpack.c.b16 %v795, %v786
    %v1102 = vpack.c.b16 %v796, %v787
    %v1103 = vpack.c.b16 %v797, %v788
    %v1104 = vpack.c.b16 %v798, %v789
    %v1105 = vpack.c.b16 %v799, %v790
    %v1106 = vpack.c.b16 %v800, %v791
    %v1107 = vpack.c.b16 %v801, %v792
    %v1108 = vpack.c.b16 %v802, %v793
    %v1109 = vpack.c.b16 %v812, %v803
    %v1110 = vpack.c.b16 %v813, %v804
    %v1111 = vpack.c.b16 %v814, %v805
    %v1112 = vpack.c.b16 %v815, %v806
    %v1113 = vpack.c.b16 %v816, %v807
    %v1114 = vpack.c.b16 %v817, %v808
    %v1115 = vpack.c.b16 %v818, %v809
    %v1116 = vpack.c.b16 %v819, %v810
    %v1117 = vpack.c.b16 %v820, %v811
    %v1118 = vpack.c.b16 %v830, %v821
    %v1119 = vpack.c.b16 %v831, %v822
    %v1120 = vpack.c.b16 %v832, %v823
    %v1121 = vpack.c.b16 %v833, %v824
    %v1122 = vpack.c.b16 %v834, %v825
    %v1123 = vpack.c.b16 %v835, %v826
    %v1124 = vpack.c.b16 %v836, %v827
    %v1125 = vpack.c.b16 %v837, %v828
    %v1126 = vpack.c.b16 %v838, %v829
    %v1127 = vpack.c.b16 %v848, %v839
    %v1128 = vpack.c.b16 %v849, %v840
    %v1129 = vpack.c.b16 %v850, %v841
    %v1130 = vpack.c.b16 %v851, %v842
    %v1131 = vpack.c.b16 %v852, %v843
    %v1132 = vpack.c.b16 %v853, %v844
    %v1133 = vpack.c.b16 %v854, %v845
    %v1134 = vpack.c.b16 %v855, %v846
    %v1135 = vpack.c.b16 %v856, %v847
    %v1136 = vpack.c.b16 %v866, %v857
    %v1137 = vpack.c.b16 %v867, %v858
    %v1138 = vpack.c.b16 %v868, %v859
    %v1139 = vpack.c.b16 %v869, %v860
    %v1140 = vpack.c.b16 %v870, %v861
    %v1141 = vpack.c.b16 %v871, %v862
    %v1142 = vpack.c.b16 %v872, %v863
    %v1143 = vpack.c.b16 %v873, %v864
    %v1144 = vpack.c.b16 %v874, %v865
    %v1145 = vpack.c.b16 %v884, %v875
    %v1146 = vpack.c.b16 %v885, %v876
    %v1147 = vpack.c.b16 %v886, %v877
    %v1148 = vpack.c.b16 %v887, %v878
    %v1149 = vpack.c.b16 %v888, %v879
    %v1150 = vpack.c.b16 %v889, %v880
    %v1151 = vpack.c.b16 %v890, %v881
    %v1152 = vpack.c.b16 %v891, %v882
    %v1153 = vpack.c.b16 %v892, %v883
    %v1154 = vpack.c.b16 %v902, %v893
    %v1155 = vpack.c.b16 %v903, %v894
    %v1156 = vpack.c.b16 %v904, %v895
    %v1157 = vpack.c.b16 %v905, %v896
    %v1158 = vpack.c.b16 %v906, %v897
    %v1159 = vpack.c.b16 %v907, %v898
    %v1160 = vpack.c.b16 %v908, %v899
    %v1161 = vpack.c.b16 %v909, %v900
    %v1162 = vpack.c.b16 %v910, %v901
    %v1163 = vpack.c.b16 %v920, %v911
    %v1164 = vpack.c.b16 %v921, %v912
    %v1165 = vpack.c.b16 %v922, %v913
    %v1166 = vpack.c.b16 %v923, %v914
    %v1167 = vpack.c.b16 %v924, %v915
    %v1168 = vpack.c.b16 %v925, %v916
    %v1169 = vpack.c.b16 %v926, %v917
    %v1170 = vpack.c.b16 %v927, %v918
    %v1171 = vpack.c.b16 %v928, %v919
    %v1172 = vpack.c.b16 %v938, %v929
    %v1173 = vpack.c.b16 %v939, %v930
    %v1174 = vpack.c.b16 %v940, %v931
    %v1175 = vpack.c.b16 %v941, %v932
    %v1176 = vpack.c.b16 %v942, %v933
    %v1177 = vpack.c.b16 %v943, %v934
    %v1178 = vpack.c.b16 %v944, %v935
    %v1179 = vpack.c.b16 %v945, %v936
    %v1180 = vpack.c.b16 %v946, %v937
    %v1181 = vpack.c.b16 %v956, %v947
    %v1182 = vpack.c.b16 %v957, %v948
    %v1183 = vpack.c.b16 %v958, %v949
    %v1184 = vpack.c.b16 %v959, %v950
    %v1185 = vpack.c.b16 %v960, %v951
    %v1186 = vpack.c.b16 %v961, %v952
    %v1187 = vpack.c.b16 %v962, %v953
    %v1188 = vpack.c.b16 %v963, %v954
    %v1189 = vpack.c.b16 %v964, %v955
    %v1190 = vpack.c.b16 %v974, %v965
    %v1191 = vpack.c.b16 %v975, %v966
    %v1192 = vpack.c.b16 %v976, %v967
    %v1193 = vpack.c.b16 %v977, %v968
    %v1194 = vpack.c.b16 %v978, %v969
    %v1195 = vpack.c.b16 %v979, %v970
    %v1196 = vpack.c.b16 %v980, %v971
    %v1197 = vpack.c.b16 %v981, %v972
    %v1198 = vpack.c.b16 %v982, %v973
    %1415 = vmatprep.subr.bf16.mxu0 %v984
    %1416 = vmatpush1.bf16.msra.mxu0 %v983
    %1417 = vmatprep.subr.bf16.mxu0 %v993
    %1418 = vmatpush1.bf16.msra.mxu0 %v992
    %1419 = vmatprep.subr.bf16.mxu0 %v1002
    %1420 = vmatpush1.bf16.msra.mxu0 %v1001
    %1421 = vmatprep.subr.bf16.mxu0 %v1011
    %1422 = vmatpush1.bf16.msra.mxu0 %v1010
    %1423 = vmatprep.subr.bf16.mxu0 %v1020
    %1424 = vmatpush1.bf16.msra.mxu0 %v1019
    %1425 = vmatprep.subr.bf16.mxu0 %v1029
    %1426 = vmatpush1.bf16.msra.mxu0 %v1028
    %1427 = vmatprep.subr.bf16.mxu0 %v1038
    %1428 = vmatpush1.bf16.msra.mxu0 %v1037
    %1429 = vmatprep.subr.bf16.mxu0 %v1047
    %1430 = vmatpush1.bf16.msra.mxu0 %v1046
    %1431 = vmatprep.subr.bf16.mxu0 %v1056
    %1432 = vmatpush1.bf16.msra.mxu0 %v1055
    %1433 = vmatprep.subr.bf16.mxu0 %v1065
    %1434 = vmatpush1.bf16.msra.mxu0 %v1064
    %1435 = vmatprep.subr.bf16.mxu0 %v1074
    %1436 = vmatpush1.bf16.msra.mxu0 %v1073
    %1437 = vmatprep.subr.bf16.mxu0 %v1083
    %1438 = vmatpush1.bf16.msra.mxu0 %v1082
    %1439 = vmatprep.subr.bf16.mxu0 %v1092
    %1440 = vmatpush1.bf16.msra.mxu0 %v1091
    %1441 = vmatprep.subr.bf16.mxu0 %v1101
    %1442 = vmatpush1.bf16.msra.mxu0 %v1100
    %1443 = vmatprep.subr.bf16.mxu0 %v1110
    %1444 = vmatpush1.bf16.msra.mxu0 %v1109
    %1445 = vmatprep.subr.bf16.mxu0 %v1119
    %1446 = vmatpush1.bf16.msra.mxu0 %v1118
    %1447 = vmatprep.mubr.bf16.mxu0 %v69
    %1448 = vmatmul.mubr.bf16.gmra.mrb[0].mxu0 %v68
    %v1449 = vpop.f32.mrb[0].mxu0
    %v1450 = vadd.f32 0.0, %v1449
    %v1451 = vpop.f32.mrb[0].mxu0
    %v1452 = vadd.f32 0.0, %v1451
    %v1453 = vpop.f32.mrb[0].mxu0
    %v1454 = vadd.f32 0.0, %v1453
    %v1455 = vpop.f32.mrb[0].mxu0
    %v1456 = vadd.f32 0.0, %v1455
    %1457 = vdwg.mxu0
    %1458 = vmatprep.subr.bf16.mxu0 %v1128
    %1459 = vmatpush1.bf16.msra.mxu0 %v1127
    %1460 = vmatprep.subr.bf16.mxu0 %v1137
    %1461 = vmatpush1.bf16.msra.mxu0 %v1136
    %1462 = vmatprep.subr.bf16.mxu0 %v1146
    %1463 = vmatpush1.bf16.msra.mxu0 %v1145
    %1464 = vmatprep.subr.bf16.mxu0 %v1155
    %1465 = vmatpush1.bf16.msra.mxu0 %v1154
    %1466 = vmatprep.subr.bf16.mxu0 %v1164
    %1467 = vmatpush1.bf16.msra.mxu0 %v1163
    %1468 = vmatprep.subr.bf16.mxu0 %v1173
    %1469 = vmatpush1.bf16.msra.mxu0 %v1172
    %1470 = vmatprep.subr.bf16.mxu0 %v1182
    %1471 = vmatpush1.bf16.msra.mxu0 %v1181
    %1472 = vmatprep.subr.bf16.mxu0 %v1191
    %1473 = vmatpush1.bf16.msra.mxu0 %v1190
    %1474 = vmatprep.subr.bf16.mxu0 0
    %1475 = vmatpush1.bf16.msra.mxu0 0
    %1476 = vmatprep.subr.bf16.mxu0 0
    %1477 = vmatpush1.bf16.msra.mxu0 0
    %1478 = vmatprep.subr.bf16.mxu0 0
    %1479 = vmatpush1.bf16.msra.mxu0 0
    %1480 = vmatprep.subr.bf16.mxu0 0
    %1481 = vmatpush1.bf16.msra.mxu0 0
    %1482 = vmatprep.subr.bf16.mxu0 0
    %1483 = vmatpush1.bf16.msra.mxu0 0
    %1484 = vmatprep.subr.bf16.mxu0 0
    %1485 = vmatpush1.bf16.msra.mxu0 0
    %1486 = vmatprep.subr.bf16.mxu0 0
    %1487 = vmatpush1.bf16.msra.mxu0 0
    %1488 = vmatprep.subr.bf16.mxu0 0
    %1489 = vmatpush1.bf16.msra.mxu0 0
    %1490 = vmatprep.mubr.bf16.mxu0 0
    %1491 = vmatmul.mubr.bf16.gmra.mrb[0].mxu0 %v70
    %v1492 = vpop.f32.mrb[0].mxu0
    %v1493 = vadd.f32 %v1450, %v1492
    %v1494 = vpop.f32.mrb[0].mxu0
    %v1495 = vadd.f32 %v1452, %v1494
    %v1496 = vpop.f32.mrb[0].mxu0
    %v1497 = vadd.f32 %v1454, %v1496
    %v1498 = vpop.f32.mrb[0].mxu0
    %v1499 = vadd.f32 %v1456, %v1498
    %1500 = vdwg.mxu0
    %1501 = vmatprep.subr.bf16.mxu0 %v986
    %1502 = vmatpush1.bf16.msra.mxu0 %v985
    %1503 = vmatprep.subr.bf16.mxu0 %v995
    %1504 = vmatpush1.bf16.msra.mxu0 %v994
    %1505 = vmatprep.subr.bf16.mxu0 %v1004
    %1506 = vmatpush1.bf16.msra.mxu0 %v1003
    %1507 = vmatprep.subr.bf16.mxu0 %v1013
    %1508 = vmatpush1.bf16.msra.mxu0 %v1012
    %1509 = vmatprep.subr.bf16.mxu0 %v1022
    %1510 = vmatpush1.bf16.msra.mxu0 %v1021
    %1511 = vmatprep.subr.bf16.mxu0 %v1031
    %1512 = vmatpush1.bf16.msra.mxu0 %v1030
    %1513 = vmatprep.subr.bf16.mxu0 %v1040
    %1514 = vmatpush1.bf16.msra.mxu0 %v1039
    %1515 = vmatprep.subr.bf16.mxu0 %v1049
    %1516 = vmatpush1.bf16.msra.mxu0 %v1048
    %1517 = vmatprep.subr.bf16.mxu0 %v1058
    %1518 = vmatpush1.bf16.msra.mxu0 %v1057
    %1519 = vmatprep.subr.bf16.mxu0 %v1067
    %1520 = vmatpush1.bf16.msra.mxu0 %v1066
    %1521 = vmatprep.subr.bf16.mxu0 %v1076
    %1522 = vmatpush1.bf16.msra.mxu0 %v1075
    %1523 = vmatprep.subr.bf16.mxu0 %v1085
    %1524 = vmatpush1.bf16.msra.mxu0 %v1084
    %1525 = vmatprep.subr.bf16.mxu0 %v1094
    %1526 = vmatpush1.bf16.msra.mxu0 %v1093
    %1527 = vmatprep.subr.bf16.mxu0 %v1103
    %1528 = vmatpush1.bf16.msra.mxu0 %v1102
    %1529 = vmatprep.subr.bf16.mxu0 %v1112
    %1530 = vmatpush1.bf16.msra.mxu0 %v1111
    %1531 = vmatprep.subr.bf16.mxu0 %v1121
    %1532 = vmatpush1.bf16.msra.mxu0 %v1120
    %1533 = vmatprep.mubr.bf16.mxu0 %v69
    %1534 = vmatmul.mubr.bf16.gmra.mrb[0].mxu0 %v68
    %v1535 = vpop.f32.mrb[0].mxu0
    %v1536 = vadd.f32 0.0, %v1535
    %v1537 = vpop.f32.mrb[0].mxu0
    %v1538 = vadd.f32 0.0, %v1537
    %v1539 = vpop.f32.mrb[0].mxu0
    %v1540 = vadd.f32 0.0, %v1539
    %v1541 = vpop.f32.mrb[0].mxu0
    %v1542 = vadd.f32 0.0, %v1541
    %1543 = vdwg.mxu0
    %1544 = vmatprep.subr.bf16.mxu0 %v1130
    %1545 = vmatpush1.bf16.msra.mxu0 %v1129
    %1546 = vmatprep.subr.bf16.mxu0 %v1139
    %1547 = vmatpush1.bf16.msra.mxu0 %v1138
    %1548 = vmatprep.subr.bf16.mxu0 %v1148
    %1549 = vmatpush1.bf16.msra.mxu0 %v1147
    %1550 = vmatprep.subr.bf16.mxu0 %v1157
    %1551 = vmatpush1.bf16.msra.mxu0 %v1156
    %1552 = vmatprep.subr.bf16.mxu0 %v1166
    %1553 = vmatpush1.bf16.msra.mxu0 %v1165
    %1554 = vmatprep.subr.bf16.mxu0 %v1175
    %1555 = vmatpush1.bf16.msra.mxu0 %v1174
    %1556 = vmatprep.subr.bf16.mxu0 %v1184
    %1557 = vmatpush1.bf16.msra.mxu0 %v1183
    %1558 = vmatprep.subr.bf16.mxu0 %v1193
    %1559 = vmatpush1.bf16.msra.mxu0 %v1192
    %1560 = vmatprep.subr.bf16.mxu0 0
    %1561 = vmatpush1.bf16.msra.mxu0 0
    %1562 = vmatprep.subr.bf16.mxu0 0
    %1563 = vmatpush1.bf16.msra.mxu0 0
    %1564 = vmatprep.subr.bf16.mxu0 0
    %1565 = vmatpush1.bf16.msra.mxu0 0
    %1566 = vmatprep.subr.bf16.mxu0 0
    %1567 = vmatpush1.bf16.msra.mxu0 0
    %1568 = vmatprep.subr.bf16.mxu0 0
    %1569 = vmatpush1.bf16.msra.mxu0 0
    %1570 = vmatprep.subr.bf16.mxu0 0
    %1571 = vmatpush1.bf16.msra.mxu0 0
    %1572 = vmatprep.subr.bf16.mxu0 0
    %1573 = vmatpush1.bf16.msra.mxu0 0
    %1574 = vmatprep.subr.bf16.mxu0 0
    %1575 = vmatpush1.bf16.msra.mxu0 0
    %1576 = vmatprep.mubr.bf16.mxu0 0
    %1577 = vmatmul.mubr.bf16.gmra.mrb[0].mxu0 %v70
    %v1578 = vpop.f32.mrb[0].mxu0
    %v1579 = vadd.f32 %v1536, %v1578
    %v1580 = vpop.f32.mrb[0].mxu0
    %v1581 = vadd.f32 %v1538, %v1580
    %v1582 = vpop.f32.mrb[0].mxu0
    %v1583 = vadd.f32 %v1540, %v1582
    %v1584 = vpop.f32.mrb[0].mxu0
    %v1585 = vadd.f32 %v1542, %v1584
    %1586 = vdwg.mxu0
    %1587 = vmatprep.subr.bf16.mxu0 %v988
    %1588 = vmatpush1.bf16.msra.mxu0 %v987
    %1589 = vmatprep.subr.bf16.mxu0 %v997
    %1590 = vmatpush1.bf16.msra.mxu0 %v996
    %1591 = vmatprep.subr.bf16.mxu0 %v1006
    %1592 = vmatpush1.bf16.msra.mxu0 %v1005
    %1593 = vmatprep.subr.bf16.mxu0 %v1015
    %1594 = vmatpush1.bf16.msra.mxu0 %v1014
    %1595 = vmatprep.subr.bf16.mxu0 %v1024
    %1596 = vmatpush1.bf16.msra.mxu0 %v1023
    %1597 = vmatprep.subr.bf16.mxu0 %v1033
    %1598 = vmatpush1.bf16.msra.mxu0 %v1032
    %1599 = vmatprep.subr.bf16.mxu0 %v1042
    %1600 = vmatpush1.bf16.msra.mxu0 %v1041
    %1601 = vmatprep.subr.bf16.mxu0 %v1051
    %1602 = vmatpush1.bf16.msra.mxu0 %v1050
    %1603 = vmatprep.subr.bf16.mxu0 %v1060
    %1604 = vmatpush1.bf16.msra.mxu0 %v1059
    %1605 = vmatprep.subr.bf16.mxu0 %v1069
    %1606 = vmatpush1.bf16.msra.mxu0 %v1068
    %1607 = vmatprep.subr.bf16.mxu0 %v1078
    %1608 = vmatpush1.bf16.msra.mxu0 %v1077
    %1609 = vmatprep.subr.bf16.mxu0 %v1087
    %1610 = vmatpush1.bf16.msra.mxu0 %v1086
    %1611 = vmatprep.subr.bf16.mxu0 %v1096
    %1612 = vmatpush1.bf16.msra.mxu0 %v1095
    %1613 = vmatprep.subr.bf16.mxu0 %v1105
    %1614 = vmatpush1.bf16.msra.mxu0 %v1104
    %1615 = vmatprep.subr.bf16.mxu0 %v1114
    %1616 = vmatpush1.bf16.msra.mxu0 %v1113
    %1617 = vmatprep.subr.bf16.mxu0 %v1123
    %1618 = vmatpush1.bf16.msra.mxu0 %v1122
    %1619 = vmatprep.mubr.bf16.mxu0 %v69
    %1620 = vmatmul.mubr.bf16.gmra.mrb[0].mxu0 %v68
    %v1621 = vpop.f32.mrb[0].mxu0
    %v1622 = vadd.f32 0.0, %v1621
    %v1623 = vpop.f32.mrb[0].mxu0
    %v1624 = vadd.f32 0.0, %v1623
    %v1625 = vpop.f32.mrb[0].mxu0
    %v1626 = vadd.f32 0.0, %v1625
    %v1627 = vpop.f32.mrb[0].mxu0
    %v1628 = vadd.f32 0.0, %v1627
    %1629 = vdwg.mxu0
    %1630 = vmatprep.subr.bf16.mxu0 %v1132
    %1631 = vmatpush1.bf16.msra.mxu0 %v1131
    %1632 = vmatprep.subr.bf16.mxu0 %v1141
    %1633 = vmatpush1.bf16.msra.mxu0 %v1140
    %1634 = vmatprep.subr.bf16.mxu0 %v1150
    %1635 = vmatpush1.bf16.msra.mxu0 %v1149
    %1636 = vmatprep.subr.bf16.mxu0 %v1159
    %1637 = vmatpush1.bf16.msra.mxu0 %v1158
    %1638 = vmatprep.subr.bf16.mxu0 %v1168
    %1639 = vmatpush1.bf16.msra.mxu0 %v1167
    %1640 = vmatprep.subr.bf16.mxu0 %v1177
    %1641 = vmatpush1.bf16.msra.mxu0 %v1176
    %1642 = vmatprep.subr.bf16.mxu0 %v1186
    %1643 = vmatpush1.bf16.msra.mxu0 %v1185
    %1644 = vmatprep.subr.bf16.mxu0 %v1195
    %1645 = vmatpush1.bf16.msra.mxu0 %v1194
    %1646 = vmatprep.subr.bf16.mxu0 0
    %1647 = vmatpush1.bf16.msra.mxu0 0
    %1648 = vmatprep.subr.bf16.mxu0 0
    %1649 = vmatpush1.bf16.msra.mxu0 0
    %1650 = vmatprep.subr.bf16.mxu0 0
    %1651 = vmatpush1.bf16.msra.mxu0 0
    %1652 = vmatprep.subr.bf16.mxu0 0
    %1653 = vmatpush1.bf16.msra.mxu0 0
    %1654 = vmatprep.subr.bf16.mxu0 0
    %1655 = vmatpush1.bf16.msra.mxu0 0
    %1656 = vmatprep.subr.bf16.mxu0 0
    %1657 = vmatpush1.bf16.msra.mxu0 0
    %1658 = vmatprep.subr.bf16.mxu0 0
    %1659 = vmatpush1.bf16.msra.mxu0 0
    %1660 = vmatprep.subr.bf16.mxu0 0
    %1661 = vmatpush1.bf16.msra.mxu0 0
    %1662 = vmatprep.mubr.bf16.mxu0 0
    %1663 = vmatmul.mubr.bf16.gmra.mrb[0].mxu0 %v70
    %v1664 = vpop.f32.mrb[0].mxu0
    %v1665 = vadd.f32 %v1622, %v1664
    %v1666 = vpop.f32.mrb[0].mxu0
    %v1667 = vadd.f32 %v1624, %v1666
    %v1668 = vpop.f32.mrb[0].mxu0
    %v1669 = vadd.f32 %v1626, %v1668
    %v1670 = vpop.f32.mrb[0].mxu0
    %v1671 = vadd.f32 %v1628, %v1670
    %1672 = vdwg.mxu0
    %1673 = vmatprep.subr.bf16.mxu0 %v990
    %1674 = vmatpush1.bf16.msra.mxu0 %v989
    %1675 = vmatprep.subr.bf16.mxu0 %v999
    %1676 = vmatpush1.bf16.msra.mxu0 %v998
    %1677 = vmatprep.subr.bf16.mxu0 %v1008
    %1678 = vmatpush1.bf16.msra.mxu0 %v1007
    %1679 = vmatprep.subr.bf16.mxu0 %v1017
    %1680 = vmatpush1.bf16.msra.mxu0 %v1016
    %1681 = vmatprep.subr.bf16.mxu0 %v1026
    %1682 = vmatpush1.bf16.msra.mxu0 %v1025
    %1683 = vmatprep.subr.bf16.mxu0 %v1035
    %1684 = vmatpush1.bf16.msra.mxu0 %v1034
    %1685 = vmatprep.subr.bf16.mxu0 %v1044
    %1686 = vmatpush1.bf16.msra.mxu0 %v1043
    %1687 = vmatprep.subr.bf16.mxu0 %v1053
    %1688 = vmatpush1.bf16.msra.mxu0 %v1052
    %1689 = vmatprep.subr.bf16.mxu0 %v1062
    %1690 = vmatpush1.bf16.msra.mxu0 %v1061
    %1691 = vmatprep.subr.bf16.mxu0 %v1071
    %1692 = vmatpush1.bf16.msra.mxu0 %v1070
    %1693 = vmatprep.subr.bf16.mxu0 %v1080
    %1694 = vmatpush1.bf16.msra.mxu0 %v1079
    %1695 = vmatprep.subr.bf16.mxu0 %v1089
    %1696 = vmatpush1.bf16.msra.mxu0 %v1088
    %1697 = vmatprep.subr.bf16.mxu0 %v1098
    %1698 = vmatpush1.bf16.msra.mxu0 %v1097
    %1699 = vmatprep.subr.bf16.mxu0 %v1107
    %1700 = vmatpush1.bf16.msra.mxu0 %v1106
    %1701 = vmatprep.subr.bf16.mxu0 %v1116
    %1702 = vmatpush1.bf16.msra.mxu0 %v1115
    %1703 = vmatprep.subr.bf16.mxu0 %v1125
    %1704 = vmatpush1.bf16.msra.mxu0 %v1124
    %1705 = vmatprep.mubr.bf16.mxu0 %v69
    %1706 = vmatmul.mubr.bf16.gmra.mrb[0].mxu0 %v68
    %v1707 = vpop.f32.mrb[0].mxu0
    %v1708 = vadd.f32 0.0, %v1707
    %v1709 = vpop.f32.mrb[0].mxu0
    %v1710 = vadd.f32 0.0, %v1709
    %v1711 = vpop.f32.mrb[0].mxu0
    %v1712 = vadd.f32 0.0, %v1711
    %v1713 = vpop.f32.mrb[0].mxu0
    %v1714 = vadd.f32 0.0, %v1713
    %1715 = vdwg.mxu0
    %1716 = vmatprep.subr.bf16.mxu0 %v1134
    %1717 = vmatpush1.bf16.msra.mxu0 %v1133
    %1718 = vmatprep.subr.bf16.mxu0 %v1143
    %1719 = vmatpush1.bf16.msra.mxu0 %v1142
    %1720 = vmatprep.subr.bf16.mxu0 %v1152
    %1721 = vmatpush1.bf16.msra.mxu0 %v1151
    %1722 = vmatprep.subr.bf16.mxu0 %v1161
    %1723 = vmatpush1.bf16.msra.mxu0 %v1160
    %1724 = vmatprep.subr.bf16.mxu0 %v1170
    %1725 = vmatpush1.bf16.msra.mxu0 %v1169
    %1726 = vmatprep.subr.bf16.mxu0 %v1179
    %1727 = vmatpush1.bf16.msra.mxu0 %v1178
    %1728 = vmatprep.subr.bf16.mxu0 %v1188
    %1729 = vmatpush1.bf16.msra.mxu0 %v1187
    %1730 = vmatprep.subr.bf16.mxu0 %v1197
    %1731 = vmatpush1.bf16.msra.mxu0 %v1196
    %1732 = vmatprep.subr.bf16.mxu0 0
    %1733 = vmatpush1.bf16.msra.mxu0 0
    %1734 = vmatprep.subr.bf16.mxu0 0
    %1735 = vmatpush1.bf16.msra.mxu0 0
    %1736 = vmatprep.subr.bf16.mxu0 0
    %1737 = vmatpush1.bf16.msra.mxu0 0
    %1738 = vmatprep.subr.bf16.mxu0 0
    %1739 = vmatpush1.bf16.msra.mxu0 0
    %1740 = vmatprep.subr.bf16.mxu0 0
    %1741 = vmatpush1.bf16.msra.mxu0 0
    %1742 = vmatprep.subr.bf16.mxu0 0
    %1743 = vmatpush1.bf16.msra.mxu0 0
    %1744 = vmatprep.subr.bf16.mxu0 0
    %1745 = vmatpush1.bf16.msra.mxu0 0
    %1746 = vmatprep.subr.bf16.mxu0 0
    %1747 = vmatpush1.bf16.msra.mxu0 0
    %1748 = vmatprep.mubr.bf16.mxu0 0
    %1749 = vmatmul.mubr.bf16.gmra.mrb[0].mxu0 %v70
    %v1750 = vpop.f32.mrb[0].mxu0
    %v1751 = vadd.f32 %v1708, %v1750
    %v1752 = vpop.f32.mrb[0].mxu0
    %v1753 = vadd.f32 %v1710, %v1752
    %v1754 = vpop.f32.mrb[0].mxu0
    %v1755 = vadd.f32 %v1712, %v1754
    %v1756 = vpop.f32.mrb[0].mxu0
    %v1757 = vadd.f32 %v1714, %v1756
    %1758 = vdwg.mxu0
    %1759 = vmatprep.subr.bf16.mxu0 0
    %1760 = vmatpush1.bf16.msra.mxu0 %v991
    %1761 = vmatprep.subr.bf16.mxu0 0
    %1762 = vmatpush1.bf16.msra.mxu0 %v1000
    %1763 = vmatprep.subr.bf16.mxu0 0
    %1764 = vmatpush1.bf16.msra.mxu0 %v1009
    %1765 = vmatprep.subr.bf16.mxu0 0
    %1766 = vmatpush1.bf16.msra.mxu0 %v1018
    %1767 = vmatprep.subr.bf16.mxu0 0
    %1768 = vmatpush1.bf16.msra.mxu0 %v1027
    %1769 = vmatprep.subr.bf16.mxu0 0
    %1770 = vmatpush1.bf16.msra.mxu0 %v1036
    %1771 = vmatprep.subr.bf16.mxu0 0
    %1772 = vmatpush1.bf16.msra.mxu0 %v1045
    %1773 = vmatprep.subr.bf16.mxu0 0
    %1774 = vmatpush1.bf16.msra.mxu0 %v1054
    %1775 = vmatprep.subr.bf16.mxu0 0
    %1776 = vmatpush1.bf16.msra.mxu0 %v1063
    %1777 = vmatprep.subr.bf16.mxu0 0
    %1778 = vmatpush1.bf16.msra.mxu0 %v1072
    %1779 = vmatprep.subr.bf16.mxu0 0
    %1780 = vmatpush1.bf16.msra.mxu0 %v1081
    %1781 = vmatprep.subr.bf16.mxu0 0
    %1782 = vmatpush1.bf16.msra.mxu0 %v1090
    %1783 = vmatprep.subr.bf16.mxu0 0
    %1784 = vmatpush1.bf16.msra.mxu0 %v1099
    %1785 = vmatprep.subr.bf16.mxu0 0
    %1786 = vmatpush1.bf16.msra.mxu0 %v1108
    %1787 = vmatprep.subr.bf16.mxu0 0
    %1788 = vmatpush1.bf16.msra.mxu0 %v1117
    %1789 = vmatprep.subr.bf16.mxu0 0
    %1790 = vmatpush1.bf16.msra.mxu0 %v1126
    %1791 = vmatprep.mubr.bf16.mxu0 %v69
    %1792 = vmatmul.mubr.bf16.gmra.mrb[0].mxu0 %v68
    %v1793 = vpop.f32.mrb[0].mxu0
    %v1794 = vadd.f32 0.0, %v1793
    %v1795 = vpop.f32.mrb[0].mxu0
    %v1796 = vpop.f32.mrb[0].mxu0
    %v1797 = vadd.f32 0.0, %v1796
    %v1798 = vpop.f32.mrb[0].mxu0
    %1799 = vdwg.mxu0
    %1800 = vmatprep.subr.bf16.mxu0 0
    %1801 = vmatpush1.bf16.msra.mxu0 %v1135
    %1802 = vmatprep.subr.bf16.mxu0 0
    %1803 = vmatpush1.bf16.msra.mxu0 %v1144
    %1804 = vmatprep.subr.bf16.mxu0 0
    %1805 = vmatpush1.bf16.msra.mxu0 %v1153
    %1806 = vmatprep.subr.bf16.mxu0 0
    %1807 = vmatpush1.bf16.msra.mxu0 %v1162
    %1808 = vmatprep.subr.bf16.mxu0 0
    %1809 = vmatpush1.bf16.msra.mxu0 %v1171
    %1810 = vmatprep.subr.bf16.mxu0 0
    %1811 = vmatpush1.bf16.msra.mxu0 %v1180
    %1812 = vmatprep.subr.bf16.mxu0 0
    %1813 = vmatpush1.bf16.msra.mxu0 %v1189
    %1814 = vmatprep.subr.bf16.mxu0 0
    %1815 = vmatpush1.bf16.msra.mxu0 %v1198
    %1816 = vmatprep.subr.bf16.mxu0 0
    %1817 = vmatpush1.bf16.msra.mxu0 0
    %1818 = vmatprep.subr.bf16.mxu0 0
    %1819 = vmatpush1.bf16.msra.mxu0 0
    %1820 = vmatprep.subr.bf16.mxu0 0
    %1821 = vmatpush1.bf16.msra.mxu0 0
    %1822 = vmatprep.subr.bf16.mxu0 0
    %1823 = vmatpush1.bf16.msra.mxu0 0
    %1824 = vmatprep.subr.bf16.mxu0 0
    %1825 = vmatpush1.bf16.msra.mxu0 0
    %1826 = vmatprep.subr.bf16.mxu0 0
    %1827 = vmatpush1.bf16.msra.mxu0 0
    %1828 = vmatprep.subr.bf16.mxu0 0
    %1829 = vmatpush1.bf16.msra.mxu0 0
    %1830 = vmatprep.subr.bf16.mxu0 0
    %1831 = vmatpush1.bf16.msra.mxu0 0
    %1832 = vmatprep.mubr.bf16.mxu0 0
    %1833 = vmatmul.mubr.bf16.gmra.mrb[0].mxu0 %v70
    %v1834 = vpop.f32.mrb[0].mxu0
    %v1835 = vadd.f32 %v1794, %v1834
    %v1836 = vpop.f32.mrb[0].mxu0
    %v1837 = vpop.f32.mrb[0].mxu0
    %v1838 = vadd.f32 %v1797, %v1837
    %v1839 = vpop.f32.mrb[0].mxu0
    %1840 = vdwg.mxu0
    %v1841 = vpack.c.bf16 %v1493, %v1493
    %v1842 = vpack.c.bf16 %v1495, %v1495
    %v1843 = vpack.c.bf16 %v1579, %v1579
    %v1844 = vpack.c.bf16 %v1581, %v1581
    %v1845 = vpack.c.bf16 %v1665, %v1665
    %v1846 = vpack.c.bf16 %v1667, %v1667
    %v1847 = vpack.c.bf16 %v1751, %v1751
    %v1848 = vpack.c.bf16 %v1753, %v1753
    %v1849 = vpack.c.bf16 %v1835, %v1835
    %v1850 = vpack.c.bf16 %v1497, %v1497
    %v1851 = vpack.c.bf16 %v1499, %v1499
    %v1852 = vpack.c.bf16 %v1583, %v1583
    %v1853 = vpack.c.bf16 %v1585, %v1585
    %v1854 = vpack.c.bf16 %v1669, %v1669
    %v1855 = vpack.c.bf16 %v1671, %v1671
    %v1856 = vpack.c.bf16 %v1755, %v1755
    %v1857 = vpack.c.bf16 %v1757, %v1757
    %v1858 = vpack.c.bf16 %v1838, %v1838
    %vm1859 = vcmask 523264
    %v1861 = vsel %vm1859, %v1841, 0
    %v1864 = vsel %vm1859, %v1844, 0
    %1866 = vmatprep.subr.bf16.mxu0 0
    %1867 = vmatpush1.bf16.xpose.msra.mxu0 %v1864
    %1868 = vmatprep.subr.bf16.mxu0 0
    %1869 = vmatpush1.bf16.xpose.msra.mxu0 0
    %1870 = vmatprep.subr.bf16.mxu0 0
    %1871 = vmatpush1.bf16.xpose.msra.mxu0 0
    %1872 = vmatprep.subr.bf16.mxu0 0
    %1873 = vmatpush1.bf16.xpose.msra.mxu0 0
    %1874 = vmatprep.subr.bf16.mxu0 0
    %1875 = vmatpush1.bf16.xpose.msra.mxu0 0
    %1876 = vmatprep.subr.bf16.mxu0 0
    %1877 = vmatpush1.bf16.xpose.msra.mxu0 0
    %1878 = vmatprep.subr.bf16.mxu0 0
    %1879 = vmatpush1.bf16.xpose.msra.mxu0 0
    %1880 = vmatprep.subr.bf16.mxu0 0
    %1881 = vmatpush1.bf16.xpose.msra.mxu0 0
    %1882 = vmatprep.subr.bf16.mxu0 0
    %1883 = vmatpush1.bf16.xpose.msra.mxu0 0
    %1884 = vmatprep.subr.bf16.mxu0 0
    %1885 = vmatpush1.bf16.xpose.msra.mxu0 0
    %1886 = vmatprep.subr.bf16.mxu0 0
    %1887 = vmatpush1.bf16.xpose.msra.mxu0 0
    %1888 = vmatprep.subr.bf16.mxu0 0
    %1889 = vmatpush1.bf16.xpose.msra.mxu0 0
    %1890 = vmatprep.subr.bf16.mxu0 0
    %1891 = vmatpush1.bf16.xpose.msra.mxu0 0
    %1892 = vmatprep.subr.bf16.mxu0 0
    %1893 = vmatpush1.bf16.xpose.msra.mxu0 0
    %1894 = vmatprep.subr.bf16.mxu0 0
    %1895 = vmatpush1.bf16.xpose.msra.mxu0 0
    %1896 = vmatprep.subr.bf16.mxu0 0
    %1897 = vmatpush1.bf16.xpose.msra.mxu0 0
    %1898 = vmatprep.mubr.bf16.mxu0 0
    %1899 = vmatmul.mubr.bf16.gmra.mrb[0].mxu0 %v1861
    %v1900 = vpop.f32.mrb[0].mxu0
    %v1901 = vadd.f32 0.0, %v1900
    %v1902 = vpop.f32.mrb[0].mxu0
    %v1903 = vpop.f32.mrb[0].mxu0
    %v1904 = vpop.f32.mrb[0].mxu0
    %1905 = vdwg.mxu0
    %v1907 = vsel %vm1859, %v1850, 0
    %v1910 = vsel %vm1859, %v1853, 0
    %1912 = vmatprep.subr.bf16.mxu0 0
    %1913 = vmatpush1.bf16.xpose.msra.mxu0 %v1910
    %1914 = vmatprep.subr.bf16.mxu0 0
    %1915 = vmatpush1.bf16.xpose.msra.mxu0 0
    %1916 = vmatprep.subr.bf16.mxu0 0
    %1917 = vmatpush1.bf16.xpose.msra.mxu0 0
    %1918 = vmatprep.subr.bf16.mxu0 0
    %1919 = vmatpush1.bf16.xpose.msra.mxu0 0
    %1920 = vmatprep.subr.bf16.mxu0 0
    %1921 = vmatpush1.bf16.xpose.msra.mxu0 0
    %1922 = vmatprep.subr.bf16.mxu0 0
    %1923 = vmatpush1.bf16.xpose.msra.mxu0 0
    %1924 = vmatprep.subr.bf16.mxu0 0
    %1925 = vmatpush1.bf16.xpose.msra.mxu0 0
    %1926 = vmatprep.subr.bf16.mxu0 0
    %1927 = vmatpush1.bf16.xpose.msra.mxu0 0
    %1928 = vmatprep.subr.bf16.mxu0 0
    %1929 = vmatpush1.bf16.xpose.msra.mxu0 0
    %1930 = vmatprep.subr.bf16.mxu0 0
    %1931 = vmatpush1.bf16.xpose.msra.mxu0 0
    %1932 = vmatprep.subr.bf16.mxu0 0
    %1933 = vmatpush1.bf16.xpose.msra.mxu0 0
    %1934 = vmatprep.subr.bf16.mxu0 0
    %1935 = vmatpush1.bf16.xpose.msra.mxu0 0
    %1936 = vmatprep.subr.bf16.mxu0 0
    %1937 = vmatpush1.bf16.xpose.msra.mxu0 0
    %1938 = vmatprep.subr.bf16.mxu0 0
    %1939 = vmatpush1.bf16.xpose.msra.mxu0 0
    %1940 = vmatprep.subr.bf16.mxu0 0
    %1941 = vmatpush1.bf16.xpose.msra.mxu0 0
    %1942 = vmatprep.subr.bf16.mxu0 0
    %1943 = vmatpush1.bf16.xpose.msra.mxu0 0
    %1944 = vmatprep.mubr.bf16.mxu0 0
    %1945 = vmatmul.mubr.bf16.gmra.mrb[0].mxu0 %v1907
    %v1946 = vpop.f32.mrb[0].mxu0
    %v1947 = vadd.f32 0.0, %v1946
    %v1948 = vpop.f32.mrb[0].mxu0
    %v1949 = vpop.f32.mrb[0].mxu0
    %v1950 = vpop.f32.mrb[0].mxu0
    %1951 = vdwg.mxu0
    %v1952 = vmul.f32 %v1901, 0.125
    %v1953 = vmul.f32 %v1947, 0.125
    %v1954 = vadd.f32 %v1952, %v67
    %v1955 = vadd.f32 %v1953, %v67
    %vm1956 = vcmask 64512
    %v1957 = vsel %vm1956, %v1954, -inf
    %1958 = vmax.xlane.f32.xlu0 %v1957
    %v1959 = vpop.xlane.xlu0 %1958
    %v1960 = vsel %vm1956, %v1955, -inf
    %1961 = vmax.xlane.f32.xlu0 %v1960
    %v1962 = vpop.xlane.xlu0 %1961
    %v1963 = vsub.f32 %v1954, %v1959
    %v1964 = vsub.f32 %v1955, %v1962
    %v1965 = vmul.f32 %v1963, 1.442695
    %v1966 = vpow.pop %v1965
    %v1967 = vmul.f32 %v1964, 1.442695
    %v1968 = vpow.pop %v1967
    %v1969 = vsel %vm1956, %v1966, 0.0
    %1970 = vadd.xlane.f32.xlu0 %v1969
    %v1971 = vpop.xlane.xlu0 %1970
    %v1972 = vsel %vm1956, %v1968, 0.0
    %1973 = vadd.xlane.f32.xlu0 %v1972
    %v1974 = vpop.xlane.xlu0 %1973
    %v1975 = vrcp.pop %v1971
    %v1976 = vmul.f32 %v1966, %v1975
    %v1977 = vrcp.pop %v1974
    %v1978 = vmul.f32 %v1968, %v1977
    %v1979 = vpack.c.bf16 %v1976, %v1976
    %v1980 = vpack.c.bf16 %v1978, %v1978
    %v1982 = vsel %vm1956, %v1979, 0
    %vm1984 = vcmask 1043456
    %v1986 = vsel %vm1984, %v1847, 0
    %1988 = vmatprep.subr.bf16.mxu0 0
    %1989 = vmatpush1.bf16.msra.mxu0 %v1986
    %1990 = vmatprep.subr.bf16.mxu0 0
    %1991 = vmatpush1.bf16.msra.mxu0 0
    %1992 = vmatprep.subr.bf16.mxu0 0
    %1993 = vmatpush1.bf16.msra.mxu0 0
    %1994 = vmatprep.subr.bf16.mxu0 0
    %1995 = vmatpush1.bf16.msra.mxu0 0
    %1996 = vmatprep.subr.bf16.mxu0 0
    %1997 = vmatpush1.bf16.msra.mxu0 0
    %1998 = vmatprep.subr.bf16.mxu0 0
    %1999 = vmatpush1.bf16.msra.mxu0 0
    %2000 = vmatprep.subr.bf16.mxu0 0
    %2001 = vmatpush1.bf16.msra.mxu0 0
    %2002 = vmatprep.subr.bf16.mxu0 0
    %2003 = vmatpush1.bf16.msra.mxu0 0
    %2004 = vmatprep.subr.bf16.mxu0 0
    %2005 = vmatpush1.bf16.msra.mxu0 0
    %2006 = vmatprep.subr.bf16.mxu0 0
    %2007 = vmatpush1.bf16.msra.mxu0 0
    %2008 = vmatprep.subr.bf16.mxu0 0
    %2009 = vmatpush1.bf16.msra.mxu0 0
    %2010 = vmatprep.subr.bf16.mxu0 0
    %2011 = vmatpush1.bf16.msra.mxu0 0
    %2012 = vmatprep.subr.bf16.mxu0 0
    %2013 = vmatpush1.bf16.msra.mxu0 0
    %2014 = vmatprep.subr.bf16.mxu0 0
    %2015 = vmatpush1.bf16.msra.mxu0 0
    %2016 = vmatprep.subr.bf16.mxu0 0
    %2017 = vmatpush1.bf16.msra.mxu0 0
    %2018 = vmatprep.subr.bf16.mxu0 0
    %2019 = vmatpush1.bf16.msra.mxu0 0
    %2020 = vmatprep.mubr.bf16.mxu0 0
    %2021 = vmatmul.mubr.bf16.gmra.mrb[0].mxu0 %v1982
    %v2022 = vpop.f32.mrb[0].mxu0
    %v2023 = vadd.f32 0.0, %v2022
    %v2024 = vpop.f32.mrb[0].mxu0
    %v2025 = vpop.f32.mrb[0].mxu0
    %v2026 = vpop.f32.mrb[0].mxu0
    %2027 = vdwg.mxu0
    %v2029 = vsel %vm1956, %v1980, 0
    %v2032 = vsel %vm1984, %v1856, 0
    %2034 = vmatprep.subr.bf16.mxu0 0
    %2035 = vmatpush1.bf16.msra.mxu0 %v2032
    %2036 = vmatprep.subr.bf16.mxu0 0
    %2037 = vmatpush1.bf16.msra.mxu0 0
    %2038 = vmatprep.subr.bf16.mxu0 0
    %2039 = vmatpush1.bf16.msra.mxu0 0
    %2040 = vmatprep.subr.bf16.mxu0 0
    %2041 = vmatpush1.bf16.msra.mxu0 0
    %2042 = vmatprep.subr.bf16.mxu0 0
    %2043 = vmatpush1.bf16.msra.mxu0 0
    %2044 = vmatprep.subr.bf16.mxu0 0
    %2045 = vmatpush1.bf16.msra.mxu0 0
    %2046 = vmatprep.subr.bf16.mxu0 0
    %2047 = vmatpush1.bf16.msra.mxu0 0
    %2048 = vmatprep.subr.bf16.mxu0 0
    %2049 = vmatpush1.bf16.msra.mxu0 0
    %2050 = vmatprep.subr.bf16.mxu0 0
    %2051 = vmatpush1.bf16.msra.mxu0 0
    %2052 = vmatprep.subr.bf16.mxu0 0
    %2053 = vmatpush1.bf16.msra.mxu0 0
    %2054 = vmatprep.subr.bf16.mxu0 0
    %2055 = vmatpush1.bf16.msra.mxu0 0
    %2056 = vmatprep.subr.bf16.mxu0 0
    %2057 = vmatpush1.bf16.msra.mxu0 0
    %2058 = vmatprep.subr.bf16.mxu0 0
    %2059 = vmatpush1.bf16.msra.mxu0 0
    %2060 = vmatprep.subr.bf16.mxu0 0
    %2061 = vmatpush1.bf16.msra.mxu0 0
    %2062 = vmatprep.subr.bf16.mxu0 0
    %2063 = vmatpush1.bf16.msra.mxu0 0
    %2064 = vmatprep.subr.bf16.mxu0 0
    %2065 = vmatpush1.bf16.msra.mxu0 0
    %2066 = vmatprep.mubr.bf16.mxu0 0
    %2067 = vmatmul.mubr.bf16.gmra.mrb[0].mxu0 %v2029
    %v2068 = vpop.f32.mrb[0].mxu0
    %v2069 = vadd.f32 0.0, %v2068
    %v2070 = vpop.f32.mrb[0].mxu0
    %v2071 = vpop.f32.mrb[0].mxu0
    %v2072 = vpop.f32.mrb[0].mxu0
    %2073 = vdwg.mxu0
    %2074 = vst.msk [vmem:[#allocation2] sm:$0xff] %vm1859, %v2023
    %2075 = vst.msk [vmem:[#allocation2 + $0x18] sm:$0xff] %vm1859, %v2069
    %2077 = vrot.lane.b32.xlu0 %v1841, 64
    %v2078 = vpop.permute.xlu0 %2077
    %2080 = vrot.lane.b32.xlu0 %v1844, 64
    %v2081 = vpop.permute.xlu0 %2080
    %v2083 = vsel %vm1859, %v2078, 0
    %v2086 = vsel %vm1859, %v2081, 0
    %2088 = vmatprep.subr.bf16.mxu0 0
    %2089 = vmatpush1.bf16.xpose.msra.mxu0 %v2086
    %2090 = vmatprep.subr.bf16.mxu0 0
    %2091 = vmatpush1.bf16.xpose.msra.mxu0 0
    %2092 = vmatprep.subr.bf16.mxu0 0
    %2093 = vmatpush1.bf16.xpose.msra.mxu0 0
    %2094 = vmatprep.subr.bf16.mxu0 0
    %2095 = vmatpush1.bf16.xpose.msra.mxu0 0
    %2096 = vmatprep.subr.bf16.mxu0 0
    %2097 = vmatpush1.bf16.xpose.msra.mxu0 0
    %2098 = vmatprep.subr.bf16.mxu0 0
    %2099 = vmatpush1.bf16.xpose.msra.mxu0 0
    %2100 = vmatprep.subr.bf16.mxu0 0
    %2101 = vmatpush1.bf16.xpose.msra.mxu0 0
    %2102 = vmatprep.subr.bf16.mxu0 0
    %2103 = vmatpush1.bf16.xpose.msra.mxu0 0
    %2104 = vmatprep.subr.bf16.mxu0 0
    %2105 = vmatpush1.bf16.xpose.msra.mxu0 0
    %2106 = vmatprep.subr.bf16.mxu0 0
    %2107 = vmatpush1.bf16.xpose.msra.mxu0 0
    %2108 = vmatprep.subr.bf16.mxu0 0
    %2109 = vmatpush1.bf16.xpose.msra.mxu0 0
    %2110 = vmatprep.subr.bf16.mxu0 0
    %2111 = vmatpush1.bf16.xpose.msra.mxu0 0
    %2112 = vmatprep.subr.bf16.mxu0 0
    %2113 = vmatpush1.bf16.xpose.msra.mxu0 0
    %2114 = vmatprep.subr.bf16.mxu0 0
    %2115 = vmatpush1.bf16.xpose.msra.mxu0 0
    %2116 = vmatprep.subr.bf16.mxu0 0
    %2117 = vmatpush1.bf16.xpose.msra.mxu0 0
    %2118 = vmatprep.subr.bf16.mxu0 0
    %2119 = vmatpush1.bf16.xpose.msra.mxu0 0
    %2120 = vmatprep.mubr.bf16.mxu0 0
    %2121 = vmatmul.mubr.bf16.gmra.mrb[0].mxu0 %v2083
    %v2122 = vpop.f32.mrb[0].mxu0
    %v2123 = vadd.f32 0.0, %v2122
    %v2124 = vpop.f32.mrb[0].mxu0
    %v2125 = vpop.f32.mrb[0].mxu0
    %v2126 = vpop.f32.mrb[0].mxu0
    %2127 = vdwg.mxu0
    %2129 = vrot.lane.b32.xlu0 %v1850, 64
    %v2130 = vpop.permute.xlu0 %2129
    %2132 = vrot.lane.b32.xlu0 %v1853, 64
    %v2133 = vpop.permute.xlu0 %2132
    %v2135 = vsel %vm1859, %v2130, 0
    %v2138 = vsel %vm1859, %v2133, 0
    %2140 = vmatprep.subr.bf16.mxu0 0
    %2141 = vmatpush1.bf16.xpose.msra.mxu0 %v2138
    %2142 = vmatprep.subr.bf16.mxu0 0
    %2143 = vmatpush1.bf16.xpose.msra.mxu0 0
    %2144 = vmatprep.subr.bf16.mxu0 0
    %2145 = vmatpush1.bf16.xpose.msra.mxu0 0
    %2146 = vmatprep.subr.bf16.mxu0 0
    %2147 = vmatpush1.bf16.xpose.msra.mxu0 0
    %2148 = vmatprep.subr.bf16.mxu0 0
    %2149 = vmatpush1.bf16.xpose.msra.mxu0 0
    %2150 = vmatprep.subr.bf16.mxu0 0
    %2151 = vmatpush1.bf16.xpose.msra.mxu0 0
    %2152 = vmatprep.subr.bf16.mxu0 0
    %2153 = vmatpush1.bf16.xpose.msra.mxu0 0
    %2154 = vmatprep.subr.bf16.mxu0 0
    %2155 = vmatpush1.bf16.xpose.msra.mxu0 0
    %2156 = vmatprep.subr.bf16.mxu0 0
    %2157 = vmatpush1.bf16.xpose.msra.mxu0 0
    %2158 = vmatprep.subr.bf16.mxu0 0
    %2159 = vmatpush1.bf16.xpose.msra.mxu0 0
    %2160 = vmatprep.subr.bf16.mxu0 0
    %2161 = vmatpush1.bf16.xpose.msra.mxu0 0
    %2162 = vmatprep.subr.bf16.mxu0 0
    %2163 = vmatpush1.bf16.xpose.msra.mxu0 0
    %2164 = vmatprep.subr.bf16.mxu0 0
    %2165 = vmatpush1.bf16.xpose.msra.mxu0 0
    %2166 = vmatprep.subr.bf16.mxu0 0
    %2167 = vmatpush1.bf16.xpose.msra.mxu0 0
    %2168 = vmatprep.subr.bf16.mxu0 0
    %2169 = vmatpush1.bf16.xpose.msra.mxu0 0
    %2170 = vmatprep.subr.bf16.mxu0 0
    %2171 = vmatpush1.bf16.xpose.msra.mxu0 0
    %2172 = vmatprep.mubr.bf16.mxu0 0
    %2173 = vmatmul.mubr.bf16.gmra.mrb[0].mxu0 %v2135
    %v2174 = vpop.f32.mrb[0].mxu0
    %v2175 = vadd.f32 0.0, %v2174
    %v2176 = vpop.f32.mrb[0].mxu0
    %v2177 = vpop.f32.mrb[0].mxu0
    %v2178 = vpop.f32.mrb[0].mxu0
    %2179 = vdwg.mxu0
    %v2180 = vmul.f32 %v2123, 0.125
    %v2181 = vmul.f32 %v2175, 0.125
    %v2182 = vadd.f32 %v2180, %v67
    %v2183 = vadd.f32 %v2181, %v67
    %v2184 = vsel %vm1956, %v2182, -inf
    %2185 = vmax.xlane.f32.xlu0 %v2184
    %v2186 = vpop.xlane.xlu0 %2185
    %v2187 = vsel %vm1956, %v2183, -inf
    %2188 = vmax.xlane.f32.xlu0 %v2187
    %v2189 = vpop.xlane.xlu0 %2188
    %v2190 = vsub.f32 %v2182, %v2186
    %v2191 = vsub.f32 %v2183, %v2189
    %v2192 = vmul.f32 %v2190, 1.442695
    %v2193 = vpow.pop %v2192
    %v2194 = vmul.f32 %v2191, 1.442695
    %v2195 = vpow.pop %v2194
    %v2196 = vsel %vm1956, %v2193, 0.0
    %2197 = vadd.xlane.f32.xlu0 %v2196
    %v2198 = vpop.xlane.xlu0 %2197
    %v2199 = vsel %vm1956, %v2195, 0.0
    %2200 = vadd.xlane.f32.xlu0 %v2199
    %v2201 = vpop.xlane.xlu0 %2200
    %v2202 = vrcp.pop %v2198
    %v2203 = vmul.f32 %v2193, %v2202
    %v2204 = vrcp.pop %v2201
    %v2205 = vmul.f32 %v2195, %v2204
    %v2206 = vpack.c.bf16 %v2203, %v2203
    %v2207 = vpack.c.bf16 %v2205, %v2205
    %2209 = vrot.lane.b32.xlu0 %v1847, 64
    %v2210 = vpop.permute.xlu0 %2209
    %v2212 = vsel %vm1956, %v2206, 0
    %v2215 = vsel %vm1984, %v2210, 0
    %2217 = vmatprep.subr.bf16.mxu0 0
    %2218 = vmatpush1.bf16.msra.mxu0 %v2215
    %2219 = vmatprep.subr.bf16.mxu0 0
    %2220 = vmatpush1.bf16.msra.mxu0 0
    %2221 = vmatprep.subr.bf16.mxu0 0
    %2222 = vmatpush1.bf16.msra.mxu0 0
    %2223 = vmatprep.subr.bf16.mxu0 0
    %2224 = vmatpush1.bf16.msra.mxu0 0
    %2225 = vmatprep.subr.bf16.mxu0 0
    %2226 = vmatpush1.bf16.msra.mxu0 0
    %2227 = vmatprep.subr.bf16.mxu0 0
    %2228 = vmatpush1.bf16.msra.mxu0 0
    %2229 = vmatprep.subr.bf16.mxu0 0
    %2230 = vmatpush1.bf16.msra.mxu0 0
    %2231 = vmatprep.subr.bf16.mxu0 0
    %2232 = vmatpush1.bf16.msra.mxu0 0
    %2233 = vmatprep.subr.bf16.mxu0 0
    %2234 = vmatpush1.bf16.msra.mxu0 0
    %2235 = vmatprep.subr.bf16.mxu0 0
    %2236 = vmatpush1.bf16.msra.mxu0 0
    %2237 = vmatprep.subr.bf16.mxu0 0
    %2238 = vmatpush1.bf16.msra.mxu0 0
    %2239 = vmatprep.subr.bf16.mxu0 0
    %2240 = vmatpush1.bf16.msra.mxu0 0
    %2241 = vmatprep.subr.bf16.mxu0 0
    %2242 = vmatpush1.bf16.msra.mxu0 0
    %2243 = vmatprep.subr.bf16.mxu0 0
    %2244 = vmatpush1.bf16.msra.mxu0 0
    %2245 = vmatprep.subr.bf16.mxu0 0
    %2246 = vmatpush1.bf16.msra.mxu0 0
    %2247 = vmatprep.subr.bf16.mxu0 0
    %2248 = vmatpush1.bf16.msra.mxu0 0
    %2249 = vmatprep.mubr.bf16.mxu0 0
    %2250 = vmatmul.mubr.bf16.gmra.mrb[0].mxu0 %v2212
    %v2251 = vpop.f32.mrb[0].mxu0
    %v2252 = vadd.f32 0.0, %v2251
    %v2253 = vpop.f32.mrb[0].mxu0
    %v2254 = vpop.f32.mrb[0].mxu0
    %v2255 = vpop.f32.mrb[0].mxu0
    %2256 = vdwg.mxu0
    %2258 = vrot.lane.b32.xlu0 %v1856, 64
    %v2259 = vpop.permute.xlu0 %2258
    %v2261 = vsel %vm1956, %v2207, 0
    %v2264 = vsel %vm1984, %v2259, 0
    %2266 = vmatprep.subr.bf16.mxu0 0
    %2267 = vmatpush1.bf16.msra.mxu0 %v2264
    %2268 = vmatprep.subr.bf16.mxu0 0
    %2269 = vmatpush1.bf16.msra.mxu0 0
    %2270 = vmatprep.subr.bf16.mxu0 0
    %2271 = vmatpush1.bf16.msra.mxu0 0
    %2272 = vmatprep.subr.bf16.mxu0 0
    %2273 = vmatpush1.bf16.msra.mxu0 0
    %2274 = vmatprep.subr.bf16.mxu0 0
    %2275 = vmatpush1.bf16.msra.mxu0 0
    %2276 = vmatprep.subr.bf16.mxu0 0
    %2277 = vmatpush1.bf16.msra.mxu0 0
    %2278 = vmatprep.subr.bf16.mxu0 0
    %2279 = vmatpush1.bf16.msra.mxu0 0
    %2280 = vmatprep.subr.bf16.mxu0 0
    %2281 = vmatpush1.bf16.msra.mxu0 0
    %2282 = vmatprep.subr.bf16.mxu0 0
    %2283 = vmatpush1.bf16.msra.mxu0 0
    %2284 = vmatprep.subr.bf16.mxu0 0
    %2285 = vmatpush1.bf16.msra.mxu0 0
    %2286 = vmatprep.subr.bf16.mxu0 0
    %2287 = vmatpush1.bf16.msra.mxu0 0
    %2288 = vmatprep.subr.bf16.mxu0 0
    %2289 = vmatpush1.bf16.msra.mxu0 0
    %2290 = vmatprep.subr.bf16.mxu0 0
    %2291 = vmatpush1.bf16.msra.mxu0 0
    %2292 = vmatprep.subr.bf16.mxu0 0
    %2293 = vmatpush1.bf16.msra.mxu0 0
    %2294 = vmatprep.subr.bf16.mxu0 0
    %2295 = vmatpush1.bf16.msra.mxu0 0
    %2296 = vmatprep.subr.bf16.mxu0 0
    %2297 = vmatpush1.bf16.msra.mxu0 0
    %2298 = vmatprep.mubr.bf16.mxu0 0
    %2299 = vmatmul.mubr.bf16.gmra.mrb[0].mxu0 %v2261
    %v2300 = vpop.f32.mrb[0].mxu0
    %v2301 = vadd.f32 0.0, %v2300
    %v2302 = vpop.f32.mrb[0].mxu0
    %v2303 = vpop.f32.mrb[0].mxu0
    %v2304 = vpop.f32.mrb[0].mxu0
    %2305 = vdwg.mxu0
    %2308 = vrot.lane.b32.xlu0 %v2252, 64
    %v2309 = vpop.permute.xlu0 %2308
    %2310 = vrot.lane.b32.xlu0 %v2301, 64
    %v2311 = vpop.permute.xlu0 %2310
    %vm2314 = vcmask 1048064
    %2315 = vst.msk [vmem:[#allocation2] sm:$0xff] %vm2314, %v2309
    %2316 = vst.msk [vmem:[#allocation2 + $0x18] sm:$0xff] %vm2314, %v2311
    %v2318 = vsel %vm1859, %v1842, 0
    %v2321 = vsel %vm1859, %v1845, 0
    %2323 = vmatprep.subr.bf16.mxu0 0
    %2324 = vmatpush1.bf16.xpose.msra.mxu0 %v2321
    %2325 = vmatprep.subr.bf16.mxu0 0
    %2326 = vmatpush1.bf16.xpose.msra.mxu0 0
    %2327 = vmatprep.subr.bf16.mxu0 0
    %2328 = vmatpush1.bf16.xpose.msra.mxu0 0
    %2329 = vmatprep.subr.bf16.mxu0 0
    %2330 = vmatpush1.bf16.xpose.msra.mxu0 0
    %2331 = vmatprep.subr.bf16.mxu0 0
    %2332 = vmatpush1.bf16.xpose.msra.mxu0 0
    %2333 = vmatprep.subr.bf16.mxu0 0
    %2334 = vmatpush1.bf16.xpose.msra.mxu0 0
    %2335 = vmatprep.subr.bf16.mxu0 0
    %2336 = vmatpush1.bf16.xpose.msra.mxu0 0
    %2337 = vmatprep.subr.bf16.mxu0 0
    %2338 = vmatpush1.bf16.xpose.msra.mxu0 0
    %2339 = vmatprep.subr.bf16.mxu0 0
    %2340 = vmatpush1.bf16.xpose.msra.mxu0 0
    %2341 = vmatprep.subr.bf16.mxu0 0
    %2342 = vmatpush1.bf16.xpose.msra.mxu0 0
    %2343 = vmatprep.subr.bf16.mxu0 0
    %2344 = vmatpush1.bf16.xpose.msra.mxu0 0
    %2345 = vmatprep.subr.bf16.mxu0 0
    %2346 = vmatpush1.bf16.xpose.msra.mxu0 0
    %2347 = vmatprep.subr.bf16.mxu0 0
    %2348 = vmatpush1.bf16.xpose.msra.mxu0 0
    %2349 = vmatprep.subr.bf16.mxu0 0
    %2350 = vmatpush1.bf16.xpose.msra.mxu0 0
    %2351 = vmatprep.subr.bf16.mxu0 0
    %2352 = vmatpush1.bf16.xpose.msra.mxu0 0
    %2353 = vmatprep.subr.bf16.mxu0 0
    %2354 = vmatpush1.bf16.xpose.msra.mxu0 0
    %2355 = vmatprep.mubr.bf16.mxu0 0
    %2356 = vmatmul.mubr.bf16.gmra.mrb[0].mxu0 %v2318
    %v2357 = vpop.f32.mrb[0].mxu0
    %v2358 = vadd.f32 0.0, %v2357
    %v2359 = vpop.f32.mrb[0].mxu0
    %v2360 = vpop.f32.mrb[0].mxu0
    %v2361 = vpop.f32.mrb[0].mxu0
    %2362 = vdwg.mxu0
    %v2364 = vsel %vm1859, %v1851, 0
    %v2367 = vsel %vm1859, %v1854, 0
    %2369 = vmatprep.subr.bf16.mxu0 0
    %2370 = vmatpush1.bf16.xpose.msra.mxu0 %v2367
    %2371 = vmatprep.subr.bf16.mxu0 0
    %2372 = vmatpush1.bf16.xpose.msra.mxu0 0
    %2373 = vmatprep.subr.bf16.mxu0 0
    %2374 = vmatpush1.bf16.xpose.msra.mxu0 0
    %2375 = vmatprep.subr.bf16.mxu0 0
    %2376 = vmatpush1.bf16.xpose.msra.mxu0 0
    %2377 = vmatprep.subr.bf16.mxu0 0
    %2378 = vmatpush1.bf16.xpose.msra.mxu0 0
    %2379 = vmatprep.subr.bf16.mxu0 0
    %2380 = vmatpush1.bf16.xpose.msra.mxu0 0
    %2381 = vmatprep.subr.bf16.mxu0 0
    %2382 = vmatpush1.bf16.xpose.msra.mxu0 0
    %2383 = vmatprep.subr.bf16.mxu0 0
    %2384 = vmatpush1.bf16.xpose.msra.mxu0 0
    %2385 = vmatprep.subr.bf16.mxu0 0
    %2386 = vmatpush1.bf16.xpose.msra.mxu0 0
    %2387 = vmatprep.subr.bf16.mxu0 0
    %2388 = vmatpush1.bf16.xpose.msra.mxu0 0
    %2389 = vmatprep.subr.bf16.mxu0 0
    %2390 = vmatpush1.bf16.xpose.msra.mxu0 0
    %2391 = vmatprep.subr.bf16.mxu0 0
    %2392 = vmatpush1.bf16.xpose.msra.mxu0 0
    %2393 = vmatprep.subr.bf16.mxu0 0
    %2394 = vmatpush1.bf16.xpose.msra.mxu0 0
    %2395 = vmatprep.subr.bf16.mxu0 0
    %2396 = vmatpush1.bf16.xpose.msra.mxu0 0
    %2397 = vmatprep.subr.bf16.mxu0 0
    %2398 = vmatpush1.bf16.xpose.msra.mxu0 0
    %2399 = vmatprep.subr.bf16.mxu0 0
    %2400 = vmatpush1.bf16.xpose.msra.mxu0 0
    %2401 = vmatprep.mubr.bf16.mxu0 0
    %2402 = vmatmul.mubr.bf16.gmra.mrb[0].mxu0 %v2364
    %v2403 = vpop.f32.mrb[0].mxu0
    %v2404 = vadd.f32 0.0, %v2403
    %v2405 = vpop.f32.mrb[0].mxu0
    %v2406 = vpop.f32.mrb[0].mxu0
    %v2407 = vpop.f32.mrb[0].mxu0
    %2408 = vdwg.mxu0
    %v2409 = vmul.f32 %v2358, 0.125
    %v2410 = vmul.f32 %v2404, 0.125
    %v2411 = vadd.f32 %v2409, %v67
    %v2412 = vadd.f32 %v2410, %v67
    %v2413 = vsel %vm1956, %v2411, -inf
    %2414 = vmax.xlane.f32.xlu0 %v2413
    %v2415 = vpop.xlane.xlu0 %2414
    %v2416 = vsel %vm1956, %v2412, -inf
    %2417 = vmax.xlane.f32.xlu0 %v2416
    %v2418 = vpop.xlane.xlu0 %2417
    %v2419 = vsub.f32 %v2411, %v2415
    %v2420 = vsub.f32 %v2412, %v2418
    %v2421 = vmul.f32 %v2419, 1.442695
    %v2422 = vpow.pop %v2421
    %v2423 = vmul.f32 %v2420, 1.442695
    %v2424 = vpow.pop %v2423
    %v2425 = vsel %vm1956, %v2422, 0.0
    %2426 = vadd.xlane.f32.xlu0 %v2425
    %v2427 = vpop.xlane.xlu0 %2426
    %v2428 = vsel %vm1956, %v2424, 0.0
    %2429 = vadd.xlane.f32.xlu0 %v2428
    %v2430 = vpop.xlane.xlu0 %2429
    %v2431 = vrcp.pop %v2427
    %v2432 = vmul.f32 %v2422, %v2431
    %v2433 = vrcp.pop %v2430
    %v2434 = vmul.f32 %v2424, %v2433
    %v2435 = vpack.c.bf16 %v2432, %v2432
    %v2436 = vpack.c.bf16 %v2434, %v2434
    %v2438 = vsel %vm1956, %v2435, 0
    %v2441 = vsel %vm1984, %v1848, 0
    %2443 = vmatprep.subr.bf16.mxu0 0
    %2444 = vmatpush1.bf16.msra.mxu0 %v2441
    %2445 = vmatprep.subr.bf16.mxu0 0
    %2446 = vmatpush1.bf16.msra.mxu0 0
    %2447 = vmatprep.subr.bf16.mxu0 0
    %2448 = vmatpush1.bf16.msra.mxu0 0
    %2449 = vmatprep.subr.bf16.mxu0 0
    %2450 = vmatpush1.bf16.msra.mxu0 0
    %2451 = vmatprep.subr.bf16.mxu0 0
    %2452 = vmatpush1.bf16.msra.mxu0 0
    %2453 = vmatprep.subr.bf16.mxu0 0
    %2454 = vmatpush1.bf16.msra.mxu0 0
    %2455 = vmatprep.subr.bf16.mxu0 0
    %2456 = vmatpush1.bf16.msra.mxu0 0
    %2457 = vmatprep.subr.bf16.mxu0 0
    %2458 = vmatpush1.bf16.msra.mxu0 0
    %2459 = vmatprep.subr.bf16.mxu0 0
    %2460 = vmatpush1.bf16.msra.mxu0 0
    %2461 = vmatprep.subr.bf16.mxu0 0
    %2462 = vmatpush1.bf16.msra.mxu0 0
    %2463 = vmatprep.subr.bf16.mxu0 0
    %2464 = vmatpush1.bf16.msra.mxu0 0
    %2465 = vmatprep.subr.bf16.mxu0 0
    %2466 = vmatpush1.bf16.msra.mxu0 0
    %2467 = vmatprep.subr.bf16.mxu0 0
    %2468 = vmatpush1.bf16.msra.mxu0 0
    %2469 = vmatprep.subr.bf16.mxu0 0
    %2470 = vmatpush1.bf16.msra.mxu0 0
    %2471 = vmatprep.subr.bf16.mxu0 0
    %2472 = vmatpush1.bf16.msra.mxu0 0
    %2473 = vmatprep.subr.bf16.mxu0 0
    %2474 = vmatpush1.bf16.msra.mxu0 0
    %2475 = vmatprep.mubr.bf16.mxu0 0
    %2476 = vmatmul.mubr.bf16.gmra.mrb[0].mxu0 %v2438
    %v2477 = vpop.f32.mrb[0].mxu0
    %v2478 = vadd.f32 0.0, %v2477
    %v2479 = vpop.f32.mrb[0].mxu0
    %v2480 = vpop.f32.mrb[0].mxu0
    %v2481 = vpop.f32.mrb[0].mxu0
    %2482 = vdwg.mxu0
    %v2484 = vsel %vm1956, %v2436, 0
    %v2487 = vsel %vm1984, %v1857, 0
    %2489 = vmatprep.subr.bf16.mxu0 0
    %2490 = vmatpush1.bf16.msra.mxu0 %v2487
    %2491 = vmatprep.subr.bf16.mxu0 0
    %2492 = vmatpush1.bf16.msra.mxu0 0
    %2493 = vmatprep.subr.bf16.mxu0 0
    %2494 = vmatpush1.bf16.msra.mxu0 0
    %2495 = vmatprep.subr.bf16.mxu0 0
    %2496 = vmatpush1.bf16.msra.mxu0 0
    %2497 = vmatprep.subr.bf16.mxu0 0
    %2498 = vmatpush1.bf16.msra.mxu0 0
    %2499 = vmatprep.subr.bf16.mxu0 0
    %2500 = vmatpush1.bf16.msra.mxu0 0
    %2501 = vmatprep.subr.bf16.mxu0 0
    %2502 = vmatpush1.bf16.msra.mxu0 0
    %2503 = vmatprep.subr.bf16.mxu0 0
    %2504 = vmatpush1.bf16.msra.mxu0 0
    %2505 = vmatprep.subr.bf16.mxu0 0
    %2506 = vmatpush1.bf16.msra.mxu0 0
    %2507 = vmatprep.subr.bf16.mxu0 0
    %2508 = vmatpush1.bf16.msra.mxu0 0
    %2509 = vmatprep.subr.bf16.mxu0 0
    %2510 = vmatpush1.bf16.msra.mxu0 0
    %2511 = vmatprep.subr.bf16.mxu0 0
    %2512 = vmatpush1.bf16.msra.mxu0 0
    %2513 = vmatprep.subr.bf16.mxu0 0
    %2514 = vmatpush1.bf16.msra.mxu0 0
    %2515 = vmatprep.subr.bf16.mxu0 0
    %2516 = vmatpush1.bf16.msra.mxu0 0
    %2517 = vmatprep.subr.bf16.mxu0 0
    %2518 = vmatpush1.bf16.msra.mxu0 0
    %2519 = vmatprep.subr.bf16.mxu0 0
    %2520 = vmatpush1.bf16.msra.mxu0 0
    %2521 = vmatprep.mubr.bf16.mxu0 0
    %2522 = vmatmul.mubr.bf16.gmra.mrb[0].mxu0 %v2484
    %v2523 = vpop.f32.mrb[0].mxu0
    %v2524 = vadd.f32 0.0, %v2523
    %v2525 = vpop.f32.mrb[0].mxu0
    %v2526 = vpop.f32.mrb[0].mxu0
    %v2527 = vpop.f32.mrb[0].mxu0
    %2528 = vdwg.mxu0
    %2529 = vst.msk [vmem:[#allocation2 + $0x8] sm:$0xff] %vm1859, %v2478
    %2530 = vst.msk [vmem:[#allocation2 + $0x20] sm:$0xff] %vm1859, %v2524
    %2532 = vrot.lane.b32.xlu0 %v1842, 64
    %v2533 = vpop.permute.xlu0 %2532
    %2535 = vrot.lane.b32.xlu0 %v1845, 64
    %v2536 = vpop.permute.xlu0 %2535
    %v2538 = vsel %vm1859, %v2533, 0
    %v2541 = vsel %vm1859, %v2536, 0
    %2543 = vmatprep.subr.bf16.mxu0 0
    %2544 = vmatpush1.bf16.xpose.msra.mxu0 %v2541
    %2545 = vmatprep.subr.bf16.mxu0 0
    %2546 = vmatpush1.bf16.xpose.msra.mxu0 0
    %2547 = vmatprep.subr.bf16.mxu0 0
    %2548 = vmatpush1.bf16.xpose.msra.mxu0 0
    %2549 = vmatprep.subr.bf16.mxu0 0
    %2550 = vmatpush1.bf16.xpose.msra.mxu0 0
    %2551 = vmatprep.subr.bf16.mxu0 0
    %2552 = vmatpush1.bf16.xpose.msra.mxu0 0
    %2553 = vmatprep.subr.bf16.mxu0 0
    %2554 = vmatpush1.bf16.xpose.msra.mxu0 0
    %2555 = vmatprep.subr.bf16.mxu0 0
    %2556 = vmatpush1.bf16.xpose.msra.mxu0 0
    %2557 = vmatprep.subr.bf16.mxu0 0
    %2558 = vmatpush1.bf16.xpose.msra.mxu0 0
    %2559 = vmatprep.subr.bf16.mxu0 0
    %2560 = vmatpush1.bf16.xpose.msra.mxu0 0
    %2561 = vmatprep.subr.bf16.mxu0 0
    %2562 = vmatpush1.bf16.xpose.msra.mxu0 0
    %2563 = vmatprep.subr.bf16.mxu0 0
    %2564 = vmatpush1.bf16.xpose.msra.mxu0 0
    %2565 = vmatprep.subr.bf16.mxu0 0
    %2566 = vmatpush1.bf16.xpose.msra.mxu0 0
    %2567 = vmatprep.subr.bf16.mxu0 0
    %2568 = vmatpush1.bf16.xpose.msra.mxu0 0
    %2569 = vmatprep.subr.bf16.mxu0 0
    %2570 = vmatpush1.bf16.xpose.msra.mxu0 0
    %2571 = vmatprep.subr.bf16.mxu0 0
    %2572 = vmatpush1.bf16.xpose.msra.mxu0 0
    %2573 = vmatprep.subr.bf16.mxu0 0
    %2574 = vmatpush1.bf16.xpose.msra.mxu0 0
    %2575 = vmatprep.mubr.bf16.mxu0 0
    %2576 = vmatmul.mubr.bf16.gmra.mrb[0].mxu0 %v2538
    %v2577 = vpop.f32.mrb[0].mxu0
    %v2578 = vadd.f32 0.0, %v2577
    %v2579 = vpop.f32.mrb[0].mxu0
    %v2580 = vpop.f32.mrb[0].mxu0
    %v2581 = vpop.f32.mrb[0].mxu0
    %2582 = vdwg.mxu0
    %2584 = vrot.lane.b32.xlu0 %v1851, 64
    %v2585 = vpop.permute.xlu0 %2584
    %2587 = vrot.lane.b32.xlu0 %v1854, 64
    %v2588 = vpop.permute.xlu0 %2587
    %v2590 = vsel %vm1859, %v2585, 0
    %v2593 = vsel %vm1859, %v2588, 0
    %2595 = vmatprep.subr.bf16.mxu0 0
    %2596 = vmatpush1.bf16.xpose.msra.mxu0 %v2593
    %2597 = vmatprep.subr.bf16.mxu0 0
    %2598 = vmatpush1.bf16.xpose.msra.mxu0 0
    %2599 = vmatprep.subr.bf16.mxu0 0
    %2600 = vmatpush1.bf16.xpose.msra.mxu0 0
    %2601 = vmatprep.subr.bf16.mxu0 0
    %2602 = vmatpush1.bf16.xpose.msra.mxu0 0
    %2603 = vmatprep.subr.bf16.mxu0 0
    %2604 = vmatpush1.bf16.xpose.msra.mxu0 0
    %2605 = vmatprep.subr.bf16.mxu0 0
    %2606 = vmatpush1.bf16.xpose.msra.mxu0 0
    %2607 = vmatprep.subr.bf16.mxu0 0
    %2608 = vmatpush1.bf16.xpose.msra.mxu0 0
    %2609 = vmatprep.subr.bf16.mxu0 0
    %2610 = vmatpush1.bf16.xpose.msra.mxu0 0
    %2611 = vmatprep.subr.bf16.mxu0 0
    %2612 = vmatpush1.bf16.xpose.msra.mxu0 0
    %2613 = vmatprep.subr.bf16.mxu0 0
    %2614 = vmatpush1.bf16.xpose.msra.mxu0 0
    %2615 = vmatprep.subr.bf16.mxu0 0
    %2616 = vmatpush1.bf16.xpose.msra.mxu0 0
    %2617 = vmatprep.subr.bf16.mxu0 0
    %2618 = vmatpush1.bf16.xpose.msra.mxu0 0
    %2619 = vmatprep.subr.bf16.mxu0 0
    %2620 = vmatpush1.bf16.xpose.msra.mxu0 0
    %2621 = vmatprep.subr.bf16.mxu0 0
    %2622 = vmatpush1.bf16.xpose.msra.mxu0 0
    %2623 = vmatprep.subr.bf16.mxu0 0
    %2624 = vmatpush1.bf16.xpose.msra.mxu0 0
    %2625 = vmatprep.subr.bf16.mxu0 0
    %2626 = vmatpush1.bf16.xpose.msra.mxu0 0
    %2627 = vmatprep.mubr.bf16.mxu0 0
    %2628 = vmatmul.mubr.bf16.gmra.mrb[0].mxu0 %v2590
    %v2629 = vpop.f32.mrb[0].mxu0
    %v2630 = vadd.f32 0.0, %v2629
    %v2631 = vpop.f32.mrb[0].mxu0
    %v2632 = vpop.f32.mrb[0].mxu0
    %v2633 = vpop.f32.mrb[0].mxu0
    %2634 = vdwg.mxu0
    %v2635 = vmul.f32 %v2578, 0.125
    %v2636 = vmul.f32 %v2630, 0.125
    %v2637 = vadd.f32 %v2635, %v67
    %v2638 = vadd.f32 %v2636, %v67
    %v2639 = vsel %vm1956, %v2637, -inf
    %2640 = vmax.xlane.f32.xlu0 %v2639
    %v2641 = vpop.xlane.xlu0 %2640
    %v2642 = vsel %vm1956, %v2638, -inf
    %2643 = vmax.xlane.f32.xlu0 %v2642
    %v2644 = vpop.xlane.xlu0 %2643
    %v2645 = vsub.f32 %v2637, %v2641
    %v2646 = vsub.f32 %v2638, %v2644
    %v2647 = vmul.f32 %v2645, 1.442695
    %v2648 = vpow.pop %v2647
    %v2649 = vmul.f32 %v2646, 1.442695
    %v2650 = vpow.pop %v2649
    %v2651 = vsel %vm1956, %v2648, 0.0
    %2652 = vadd.xlane.f32.xlu0 %v2651
    %v2653 = vpop.xlane.xlu0 %2652
    %v2654 = vsel %vm1956, %v2650, 0.0
    %2655 = vadd.xlane.f32.xlu0 %v2654
    %v2656 = vpop.xlane.xlu0 %2655
    %v2657 = vrcp.pop %v2653
    %v2658 = vmul.f32 %v2648, %v2657
    %v2659 = vrcp.pop %v2656
    %v2660 = vmul.f32 %v2650, %v2659
    %v2661 = vpack.c.bf16 %v2658, %v2658
    %v2662 = vpack.c.bf16 %v2660, %v2660
    %2664 = vrot.lane.b32.xlu0 %v1848, 64
    %v2665 = vpop.permute.xlu0 %2664
    %v2667 = vsel %vm1956, %v2661, 0
    %v2670 = vsel %vm1984, %v2665, 0
    %2672 = vmatprep.subr.bf16.mxu0 0
    %2673 = vmatpush1.bf16.msra.mxu0 %v2670
    %2674 = vmatprep.subr.bf16.mxu0 0
    %2675 = vmatpush1.bf16.msra.mxu0 0
    %2676 = vmatprep.subr.bf16.mxu0 0
    %2677 = vmatpush1.bf16.msra.mxu0 0
    %2678 = vmatprep.subr.bf16.mxu0 0
    %2679 = vmatpush1.bf16.msra.mxu0 0
    %2680 = vmatprep.subr.bf16.mxu0 0
    %2681 = vmatpush1.bf16.msra.mxu0 0
    %2682 = vmatprep.subr.bf16.mxu0 0
    %2683 = vmatpush1.bf16.msra.mxu0 0
    %2684 = vmatprep.subr.bf16.mxu0 0
    %2685 = vmatpush1.bf16.msra.mxu0 0
    %2686 = vmatprep.subr.bf16.mxu0 0
    %2687 = vmatpush1.bf16.msra.mxu0 0
    %2688 = vmatprep.subr.bf16.mxu0 0
    %2689 = vmatpush1.bf16.msra.mxu0 0
    %2690 = vmatprep.subr.bf16.mxu0 0
    %2691 = vmatpush1.bf16.msra.mxu0 0
    %2692 = vmatprep.subr.bf16.mxu0 0
    %2693 = vmatpush1.bf16.msra.mxu0 0
    %2694 = vmatprep.subr.bf16.mxu0 0
    %2695 = vmatpush1.bf16.msra.mxu0 0
    %2696 = vmatprep.subr.bf16.mxu0 0
    %2697 = vmatpush1.bf16.msra.mxu0 0
    %2698 = vmatprep.subr.bf16.mxu0 0
    %2699 = vmatpush1.bf16.msra.mxu0 0
    %2700 = vmatprep.subr.bf16.mxu0 0
    %2701 = vmatpush1.bf16.msra.mxu0 0
    %2702 = vmatprep.subr.bf16.mxu0 0
    %2703 = vmatpush1.bf16.msra.mxu0 0
    %2704 = vmatprep.mubr.bf16.mxu0 0
    %2705 = vmatmul.mubr.bf16.gmra.mrb[0].mxu0 %v2667
    %v2706 = vpop.f32.mrb[0].mxu0
    %v2707 = vadd.f32 0.0, %v2706
    %v2708 = vpop.f32.mrb[0].mxu0
    %v2709 = vpop.f32.mrb[0].mxu0
    %v2710 = vpop.f32.mrb[0].mxu0
    %2711 = vdwg.mxu0
    %2713 = vrot.lane.b32.xlu0 %v1857, 64
    %v2714 = vpop.permute.xlu0 %2713
    %v2716 = vsel %vm1956, %v2662, 0
    %v2719 = vsel %vm1984, %v2714, 0
    %2721 = vmatprep.subr.bf16.mxu0 0
    %2722 = vmatpush1.bf16.msra.mxu0 %v2719
    %2723 = vmatprep.subr.bf16.mxu0 0
    %2724 = vmatpush1.bf16.msra.mxu0 0
    %2725 = vmatprep.subr.bf16.mxu0 0
    %2726 = vmatpush1.bf16.msra.mxu0 0
    %2727 = vmatprep.subr.bf16.mxu0 0
    %2728 = vmatpush1.bf16.msra.mxu0 0
    %2729 = vmatprep.subr.bf16.mxu0 0
    %2730 = vmatpush1.bf16.msra.mxu0 0
    %2731 = vmatprep.subr.bf16.mxu0 0
    %2732 = vmatpush1.bf16.msra.mxu0 0
    %2733 = vmatprep.subr.bf16.mxu0 0
    %2734 = vmatpush1.bf16.msra.mxu0 0
    %2735 = vmatprep.subr.bf16.mxu0 0
    %2736 = vmatpush1.bf16.msra.mxu0 0
    %2737 = vmatprep.subr.bf16.mxu0 0
    %2738 = vmatpush1.bf16.msra.mxu0 0
    %2739 = vmatprep.subr.bf16.mxu0 0
    %2740 = vmatpush1.bf16.msra.mxu0 0
    %2741 = vmatprep.subr.bf16.mxu0 0
    %2742 = vmatpush1.bf16.msra.mxu0 0
    %2743 = vmatprep.subr.bf16.mxu0 0
    %2744 = vmatpush1.bf16.msra.mxu0 0
    %2745 = vmatprep.subr.bf16.mxu0 0
    %2746 = vmatpush1.bf16.msra.mxu0 0
    %2747 = vmatprep.subr.bf16.mxu0 0
    %2748 = vmatpush1.bf16.msra.mxu0 0
    %2749 = vmatprep.subr.bf16.mxu0 0
    %2750 = vmatpush1.bf16.msra.mxu0 0
    %2751 = vmatprep.subr.bf16.mxu0 0
    %2752 = vmatpush1.bf16.msra.mxu0 0
    %2753 = vmatprep.mubr.bf16.mxu0 0
    %2754 = vmatmul.mubr.bf16.gmra.mrb[0].mxu0 %v2716
    %v2755 = vpop.f32.mrb[0].mxu0
    %v2756 = vadd.f32 0.0, %v2755
    %v2757 = vpop.f32.mrb[0].mxu0
    %v2758 = vpop.f32.mrb[0].mxu0
    %v2759 = vpop.f32.mrb[0].mxu0
    %2760 = vdwg.mxu0
    %2763 = vrot.lane.b32.xlu0 %v2707, 64
    %v2764 = vpop.permute.xlu0 %2763
    %2765 = vrot.lane.b32.xlu0 %v2756, 64
    %v2766 = vpop.permute.xlu0 %2765
    %2769 = vst.msk [vmem:[#allocation2 + $0x8] sm:$0xff] %vm2314, %v2764
    %2770 = vst.msk [vmem:[#allocation2 + $0x20] sm:$0xff] %vm2314, %v2766
    %v2772 = vsel %vm1859, %v1843, 0
    %v2775 = vsel %vm1859, %v1846, 0
    %2777 = vmatprep.subr.bf16.mxu0 0
    %2778 = vmatpush1.bf16.xpose.msra.mxu0 %v2775
    %2779 = vmatprep.subr.bf16.mxu0 0
    %2780 = vmatpush1.bf16.xpose.msra.mxu0 0
    %2781 = vmatprep.subr.bf16.mxu0 0
    %2782 = vmatpush1.bf16.xpose.msra.mxu0 0
    %2783 = vmatprep.subr.bf16.mxu0 0
    %2784 = vmatpush1.bf16.xpose.msra.mxu0 0
    %2785 = vmatprep.subr.bf16.mxu0 0
    %2786 = vmatpush1.bf16.xpose.msra.mxu0 0
    %2787 = vmatprep.subr.bf16.mxu0 0
    %2788 = vmatpush1.bf16.xpose.msra.mxu0 0
    %2789 = vmatprep.subr.bf16.mxu0 0
    %2790 = vmatpush1.bf16.xpose.msra.mxu0 0
    %2791 = vmatprep.subr.bf16.mxu0 0
    %2792 = vmatpush1.bf16.xpose.msra.mxu0 0
    %2793 = vmatprep.subr.bf16.mxu0 0
    %2794 = vmatpush1.bf16.xpose.msra.mxu0 0
    %2795 = vmatprep.subr.bf16.mxu0 0
    %2796 = vmatpush1.bf16.xpose.msra.mxu0 0
    %2797 = vmatprep.subr.bf16.mxu0 0
    %2798 = vmatpush1.bf16.xpose.msra.mxu0 0
    %2799 = vmatprep.subr.bf16.mxu0 0
    %2800 = vmatpush1.bf16.xpose.msra.mxu0 0
    %2801 = vmatprep.subr.bf16.mxu0 0
    %2802 = vmatpush1.bf16.xpose.msra.mxu0 0
    %2803 = vmatprep.subr.bf16.mxu0 0
    %2804 = vmatpush1.bf16.xpose.msra.mxu0 0
    %2805 = vmatprep.subr.bf16.mxu0 0
    %2806 = vmatpush1.bf16.xpose.msra.mxu0 0
    %2807 = vmatprep.subr.bf16.mxu0 0
    %2808 = vmatpush1.bf16.xpose.msra.mxu0 0
    %2809 = vmatprep.mubr.bf16.mxu0 0
    %2810 = vmatmul.mubr.bf16.gmra.mrb[0].mxu0 %v2772
    %v2811 = vpop.f32.mrb[0].mxu0
    %v2812 = vadd.f32 0.0, %v2811
    %v2813 = vpop.f32.mrb[0].mxu0
    %v2814 = vpop.f32.mrb[0].mxu0
    %v2815 = vpop.f32.mrb[0].mxu0
    %2816 = vdwg.mxu0
    %v2818 = vsel %vm1859, %v1852, 0
    %v2821 = vsel %vm1859, %v1855, 0
    %2823 = vmatprep.subr.bf16.mxu0 0
    %2824 = vmatpush1.bf16.xpose.msra.mxu0 %v2821
    %2825 = vmatprep.subr.bf16.mxu0 0
    %2826 = vmatpush1.bf16.xpose.msra.mxu0 0
    %2827 = vmatprep.subr.bf16.mxu0 0
    %2828 = vmatpush1.bf16.xpose.msra.mxu0 0
    %2829 = vmatprep.subr.bf16.mxu0 0
    %2830 = vmatpush1.bf16.xpose.msra.mxu0 0
    %2831 = vmatprep.subr.bf16.mxu0 0
    %2832 = vmatpush1.bf16.xpose.msra.mxu0 0
    %2833 = vmatprep.subr.bf16.mxu0 0
    %2834 = vmatpush1.bf16.xpose.msra.mxu0 0
    %2835 = vmatprep.subr.bf16.mxu0 0
    %2836 = vmatpush1.bf16.xpose.msra.mxu0 0
    %2837 = vmatprep.subr.bf16.mxu0 0
    %2838 = vmatpush1.bf16.xpose.msra.mxu0 0
    %2839 = vmatprep.subr.bf16.mxu0 0
    %2840 = vmatpush1.bf16.xpose.msra.mxu0 0
    %2841 = vmatprep.subr.bf16.mxu0 0
    %2842 = vmatpush1.bf16.xpose.msra.mxu0 0
    %2843 = vmatprep.subr.bf16.mxu0 0
    %2844 = vmatpush1.bf16.xpose.msra.mxu0 0
    %2845 = vmatprep.subr.bf16.mxu0 0
    %2846 = vmatpush1.bf16.xpose.msra.mxu0 0
    %2847 = vmatprep.subr.bf16.mxu0 0
    %2848 = vmatpush1.bf16.xpose.msra.mxu0 0
    %2849 = vmatprep.subr.bf16.mxu0 0
    %2850 = vmatpush1.bf16.xpose.msra.mxu0 0
    %2851 = vmatprep.subr.bf16.mxu0 0
    %2852 = vmatpush1.bf16.xpose.msra.mxu0 0
    %2853 = vmatprep.subr.bf16.mxu0 0
    %2854 = vmatpush1.bf16.xpose.msra.mxu0 0
    %2855 = vmatprep.mubr.bf16.mxu0 0
    %2856 = vmatmul.mubr.bf16.gmra.mrb[0].mxu0 %v2818
    %v2857 = vpop.f32.mrb[0].mxu0
    %v2858 = vadd.f32 0.0, %v2857
    %v2859 = vpop.f32.mrb[0].mxu0
    %v2860 = vpop.f32.mrb[0].mxu0
    %v2861 = vpop.f32.mrb[0].mxu0
    %2862 = vdwg.mxu0
    %v2863 = vmul.f32 %v2812, 0.125
    %v2864 = vmul.f32 %v2858, 0.125
    %v2865 = vadd.f32 %v2863, %v67
    %v2866 = vadd.f32 %v2864, %v67
    %v2867 = vsel %vm1956, %v2865, -inf
    %2868 = vmax.xlane.f32.xlu0 %v2867
    %v2869 = vpop.xlane.xlu0 %2868
    %v2870 = vsel %vm1956, %v2866, -inf
    %2871 = vmax.xlane.f32.xlu0 %v2870
    %v2872 = vpop.xlane.xlu0 %2871
    %v2873 = vsub.f32 %v2865, %v2869
    %v2874 = vsub.f32 %v2866, %v2872
    %v2875 = vmul.f32 %v2873, 1.442695
    %v2876 = vpow.pop %v2875
    %v2877 = vmul.f32 %v2874, 1.442695
    %v2878 = vpow.pop %v2877
    %v2879 = vsel %vm1956, %v2876, 0.0
    %2880 = vadd.xlane.f32.xlu0 %v2879
    %v2881 = vpop.xlane.xlu0 %2880
    %v2882 = vsel %vm1956, %v2878, 0.0
    %2883 = vadd.xlane.f32.xlu0 %v2882
    %v2884 = vpop.xlane.xlu0 %2883
    %v2885 = vrcp.pop %v2881
    %v2886 = vmul.f32 %v2876, %v2885
    %v2887 = vrcp.pop %v2884
    %v2888 = vmul.f32 %v2878, %v2887
    %v2889 = vpack.c.bf16 %v2886, %v2886
    %v2890 = vpack.c.bf16 %v2888, %v2888
    %v2892 = vsel %vm1956, %v2889, 0
    %v2895 = vsel %vm1984, %v1849, 0
    %2897 = vmatprep.subr.bf16.mxu0 0
    %2898 = vmatpush1.bf16.msra.mxu0 %v2895
    %2899 = vmatprep.subr.bf16.mxu0 0
    %2900 = vmatpush1.bf16.msra.mxu0 0
    %2901 = vmatprep.subr.bf16.mxu0 0
    %2902 = vmatpush1.bf16.msra.mxu0 0
    %2903 = vmatprep.subr.bf16.mxu0 0
    %2904 = vmatpush1.bf16.msra.mxu0 0
    %2905 = vmatprep.subr.bf16.mxu0 0
    %2906 = vmatpush1.bf16.msra.mxu0 0
    %2907 = vmatprep.subr.bf16.mxu0 0
    %2908 = vmatpush1.bf16.msra.mxu0 0
    %2909 = vmatprep.subr.bf16.mxu0 0
    %2910 = vmatpush1.bf16.msra.mxu0 0
    %2911 = vmatprep.subr.bf16.mxu0 0
    %2912 = vmatpush1.bf16.msra.mxu0 0
    %2913 = vmatprep.subr.bf16.mxu0 0
    %2914 = vmatpush1.bf16.msra.mxu0 0
    %2915 = vmatprep.subr.bf16.mxu0 0
    %2916 = vmatpush1.bf16.msra.mxu0 0
    %2917 = vmatprep.subr.bf16.mxu0 0
    %2918 = vmatpush1.bf16.msra.mxu0 0
    %2919 = vmatprep.subr.bf16.mxu0 0
    %2920 = vmatpush1.bf16.msra.mxu0 0
    %2921 = vmatprep.subr.bf16.mxu0 0
    %2922 = vmatpush1.bf16.msra.mxu0 0
    %2923 = vmatprep.subr.bf16.mxu0 0
    %2924 = vmatpush1.bf16.msra.mxu0 0
    %2925 = vmatprep.subr.bf16.mxu0 0
    %2926 = vmatpush1.bf16.msra.mxu0 0
    %2927 = vmatprep.subr.bf16.mxu0 0
    %2928 = vmatpush1.bf16.msra.mxu0 0
    %2929 = vmatprep.mubr.bf16.mxu0 0
    %2930 = vmatmul.mubr.bf16.gmra.mrb[0].mxu0 %v2892
    %v2931 = vpop.f32.mrb[0].mxu0
    %v2932 = vadd.f32 0.0, %v2931
    %v2933 = vpop.f32.mrb[0].mxu0
    %v2934 = vpop.f32.mrb[0].mxu0
    %v2935 = vpop.f32.mrb[0].mxu0
    %2936 = vdwg.mxu0
    %v2938 = vsel %vm1956, %v2890, 0
    %v2941 = vsel %vm1984, %v1858, 0
    %2943 = vmatprep.subr.bf16.mxu0 0
    %2944 = vmatpush1.bf16.msra.mxu0 %v2941
    %2945 = vmatprep.subr.bf16.mxu0 0
    %2946 = vmatpush1.bf16.msra.mxu0 0
    %2947 = vmatprep.subr.bf16.mxu0 0
    %2948 = vmatpush1.bf16.msra.mxu0 0
    %2949 = vmatprep.subr.bf16.mxu0 0
    %2950 = vmatpush1.bf16.msra.mxu0 0
    %2951 = vmatprep.subr.bf16.mxu0 0
    %2952 = vmatpush1.bf16.msra.mxu0 0
    %2953 = vmatprep.subr.bf16.mxu0 0
    %2954 = vmatpush1.bf16.msra.mxu0 0
    %2955 = vmatprep.subr.bf16.mxu0 0
    %2956 = vmatpush1.bf16.msra.mxu0 0
    %2957 = vmatprep.subr.bf16.mxu0 0
    %2958 = vmatpush1.bf16.msra.mxu0 0
    %2959 = vmatprep.subr.bf16.mxu0 0
    %2960 = vmatpush1.bf16.msra.mxu0 0
    %2961 = vmatprep.subr.bf16.mxu0 0
    %2962 = vmatpush1.bf16.msra.mxu0 0
    %2963 = vmatprep.subr.bf16.mxu0 0
    %2964 = vmatpush1.bf16.msra.mxu0 0
    %2965 = vmatprep.subr.bf16.mxu0 0
    %2966 = vmatpush1.bf16.msra.mxu0 0
    %2967 = vmatprep.subr.bf16.mxu0 0
    %2968 = vmatpush1.bf16.msra.mxu0 0
    %2969 = vmatprep.subr.bf16.mxu0 0
    %2970 = vmatpush1.bf16.msra.mxu0 0
    %2971 = vmatprep.subr.bf16.mxu0 0
    %2972 = vmatpush1.bf16.msra.mxu0 0
    %2973 = vmatprep.subr.bf16.mxu0 0
    %2974 = vmatpush1.bf16.msra.mxu0 0
    %2975 = vmatprep.mubr.bf16.mxu0 0
    %2976 = vmatmul.mubr.bf16.gmra.mrb[0].mxu0 %v2938
    %v2977 = vpop.f32.mrb[0].mxu0
    %v2978 = vadd.f32 0.0, %v2977
    %v2979 = vpop.f32.mrb[0].mxu0
    %v2980 = vpop.f32.mrb[0].mxu0
    %v2981 = vpop.f32.mrb[0].mxu0
    %2982 = vdwg.mxu0
    %2983 = vst.msk [vmem:[#allocation2 + $0x10] sm:$0xff] %vm1859, %v2932
    %2984 = vst.msk [vmem:[#allocation2 + $0x28] sm:$0xff] %vm1859, %v2978
    %2986 = vrot.lane.b32.xlu0 %v1843, 64
    %v2987 = vpop.permute.xlu0 %2986
    %2989 = vrot.lane.b32.xlu0 %v1846, 64
    %v2990 = vpop.permute.xlu0 %2989
    %v2992 = vsel %vm1859, %v2987, 0
    %v2995 = vsel %vm1859, %v2990, 0
    %2997 = vmatprep.subr.bf16.mxu0 0
    %2998 = vmatpush1.bf16.xpose.msra.mxu0 %v2995
    %2999 = vmatprep.subr.bf16.mxu0 0
    %3000 = vmatpush1.bf16.xpose.msra.mxu0 0
    %3001 = vmatprep.subr.bf16.mxu0 0
    %3002 = vmatpush1.bf16.xpose.msra.mxu0 0
    %3003 = vmatprep.subr.bf16.mxu0 0
    %3004 = vmatpush1.bf16.xpose.msra.mxu0 0
    %3005 = vmatprep.subr.bf16.mxu0 0
    %3006 = vmatpush1.bf16.xpose.msra.mxu0 0
    %3007 = vmatprep.subr.bf16.mxu0 0
    %3008 = vmatpush1.bf16.xpose.msra.mxu0 0
    %3009 = vmatprep.subr.bf16.mxu0 0
    %3010 = vmatpush1.bf16.xpose.msra.mxu0 0
    %3011 = vmatprep.subr.bf16.mxu0 0
    %3012 = vmatpush1.bf16.xpose.msra.mxu0 0
    %3013 = vmatprep.subr.bf16.mxu0 0
    %3014 = vmatpush1.bf16.xpose.msra.mxu0 0
    %3015 = vmatprep.subr.bf16.mxu0 0
    %3016 = vmatpush1.bf16.xpose.msra.mxu0 0
    %3017 = vmatprep.subr.bf16.mxu0 0
    %3018 = vmatpush1.bf16.xpose.msra.mxu0 0
    %3019 = vmatprep.subr.bf16.mxu0 0
    %3020 = vmatpush1.bf16.xpose.msra.mxu0 0
    %3021 = vmatprep.subr.bf16.mxu0 0
    %3022 = vmatpush1.bf16.xpose.msra.mxu0 0
    %3023 = vmatprep.subr.bf16.mxu0 0
    %3024 = vmatpush1.bf16.xpose.msra.mxu0 0
    %3025 = vmatprep.subr.bf16.mxu0 0
    %3026 = vmatpush1.bf16.xpose.msra.mxu0 0
    %3027 = vmatprep.subr.bf16.mxu0 0
    %3028 = vmatpush1.bf16.xpose.msra.mxu0 0
    %3029 = vmatprep.mubr.bf16.mxu0 0
    %3030 = vmatmul.mubr.bf16.gmra.mrb[0].mxu0 %v2992
    %v3031 = vpop.f32.mrb[0].mxu0
    %v3032 = vadd.f32 0.0, %v3031
    %v3033 = vpop.f32.mrb[0].mxu0
    %v3034 = vpop.f32.mrb[0].mxu0
    %v3035 = vpop.f32.mrb[0].mxu0
    %3036 = vdwg.mxu0
    %3038 = vrot.lane.b32.xlu0 %v1852, 64
    %v3039 = vpop.permute.xlu0 %3038
    %3041 = vrot.lane.b32.xlu0 %v1855, 64
    %v3042 = vpop.permute.xlu0 %3041
    %v3044 = vsel %vm1859, %v3039, 0
    %v3047 = vsel %vm1859, %v3042, 0
    %3049 = vmatprep.subr.bf16.mxu0 0
    %3050 = vmatpush1.bf16.xpose.msra.mxu0 %v3047
    %3051 = vmatprep.subr.bf16.mxu0 0
    %3052 = vmatpush1.bf16.xpose.msra.mxu0 0
    %3053 = vmatprep.subr.bf16.mxu0 0
    %3054 = vmatpush1.bf16.xpose.msra.mxu0 0
    %3055 = vmatprep.subr.bf16.mxu0 0
    %3056 = vmatpush1.bf16.xpose.msra.mxu0 0
    %3057 = vmatprep.subr.bf16.mxu0 0
    %3058 = vmatpush1.bf16.xpose.msra.mxu0 0
    %3059 = vmatprep.subr.bf16.mxu0 0
    %3060 = vmatpush1.bf16.xpose.msra.mxu0 0
    %3061 = vmatprep.subr.bf16.mxu0 0
    %3062 = vmatpush1.bf16.xpose.msra.mxu0 0
    %3063 = vmatprep.subr.bf16.mxu0 0
    %3064 = vmatpush1.bf16.xpose.msra.mxu0 0
    %3065 = vmatprep.subr.bf16.mxu0 0
    %3066 = vmatpush1.bf16.xpose.msra.mxu0 0
    %3067 = vmatprep.subr.bf16.mxu0 0
    %3068 = vmatpush1.bf16.xpose.msra.mxu0 0
    %3069 = vmatprep.subr.bf16.mxu0 0
    %3070 = vmatpush1.bf16.xpose.msra.mxu0 0
    %3071 = vmatprep.subr.bf16.mxu0 0
    %3072 = vmatpush1.bf16.xpose.msra.mxu0 0
    %3073 = vmatprep.subr.bf16.mxu0 0
    %3074 = vmatpush1.bf16.xpose.msra.mxu0 0
    %3075 = vmatprep.subr.bf16.mxu0 0
    %3076 = vmatpush1.bf16.xpose.msra.mxu0 0
    %3077 = vmatprep.subr.bf16.mxu0 0
    %3078 = vmatpush1.bf16.xpose.msra.mxu0 0
    %3079 = vmatprep.subr.bf16.mxu0 0
    %3080 = vmatpush1.bf16.xpose.msra.mxu0 0
    %3081 = vmatprep.mubr.bf16.mxu0 0
    %3082 = vmatmul.mubr.bf16.gmra.mrb[0].mxu0 %v3044
    %v3083 = vpop.f32.mrb[0].mxu0
    %v3084 = vadd.f32 0.0, %v3083
    %v3085 = vpop.f32.mrb[0].mxu0
    %v3086 = vpop.f32.mrb[0].mxu0
    %v3087 = vpop.f32.mrb[0].mxu0
    %3088 = vdwg.mxu0
    %v3089 = vmul.f32 %v3032, 0.125
    %v3090 = vmul.f32 %v3084, 0.125
    %v3091 = vadd.f32 %v3089, %v67
    %v3092 = vadd.f32 %v3090, %v67
    %v3093 = vsel %vm1956, %v3091, -inf
    %3094 = vmax.xlane.f32.xlu0 %v3093
    %v3095 = vpop.xlane.xlu0 %3094
    %v3096 = vsel %vm1956, %v3092, -inf
    %3097 = vmax.xlane.f32.xlu0 %v3096
    %v3098 = vpop.xlane.xlu0 %3097
    %v3099 = vsub.f32 %v3091, %v3095
    %v3100 = vsub.f32 %v3092, %v3098
    %v3101 = vmul.f32 %v3099, 1.442695
    %v3102 = vpow.pop %v3101
    %v3103 = vmul.f32 %v3100, 1.442695
    %v3104 = vpow.pop %v3103
    %v3105 = vsel %vm1956, %v3102, 0.0
    %3106 = vadd.xlane.f32.xlu0 %v3105
    %v3107 = vpop.xlane.xlu0 %3106
    %v3108 = vsel %vm1956, %v3104, 0.0
    %3109 = vadd.xlane.f32.xlu0 %v3108
    %v3110 = vpop.xlane.xlu0 %3109
    %v3111 = vrcp.pop %v3107
    %v3112 = vmul.f32 %v3102, %v3111
    %v3113 = vrcp.pop %v3110
    %v3114 = vmul.f32 %v3104, %v3113
    %v3115 = vpack.c.bf16 %v3112, %v3112
    %v3116 = vpack.c.bf16 %v3114, %v3114
    %3118 = vrot.lane.b32.xlu0 %v1849, 64
    %v3119 = vpop.permute.xlu0 %3118
    %v3121 = vsel %vm1956, %v3115, 0
    %v3124 = vsel %vm1984, %v3119, 0
    %3126 = vmatprep.subr.bf16.mxu0 0
    %3127 = vmatpush1.bf16.msra.mxu0 %v3124
    %3128 = vmatprep.subr.bf16.mxu0 0
    %3129 = vmatpush1.bf16.msra.mxu0 0
    %3130 = vmatprep.subr.bf16.mxu0 0
    %3131 = vmatpush1.bf16.msra.mxu0 0
    %3132 = vmatprep.subr.bf16.mxu0 0
    %3133 = vmatpush1.bf16.msra.mxu0 0
    %3134 = vmatprep.subr.bf16.mxu0 0
    %3135 = vmatpush1.bf16.msra.mxu0 0
    %3136 = vmatprep.subr.bf16.mxu0 0
    %3137 = vmatpush1.bf16.msra.mxu0 0
    %3138 = vmatprep.subr.bf16.mxu0 0
    %3139 = vmatpush1.bf16.msra.mxu0 0
    %3140 = vmatprep.subr.bf16.mxu0 0
    %3141 = vmatpush1.bf16.msra.mxu0 0
    %3142 = vmatprep.subr.bf16.mxu0 0
    %3143 = vmatpush1.bf16.msra.mxu0 0
    %3144 = vmatprep.subr.bf16.mxu0 0
    %3145 = vmatpush1.bf16.msra.mxu0 0
    %3146 = vmatprep.subr.bf16.mxu0 0
    %3147 = vmatpush1.bf16.msra.mxu0 0
    %3148 = vmatprep.subr.bf16.mxu0 0
    %3149 = vmatpush1.bf16.msra.mxu0 0
    %3150 = vmatprep.subr.bf16.mxu0 0
    %3151 = vmatpush1.bf16.msra.mxu0 0
    %3152 = vmatprep.subr.bf16.mxu0 0
    %3153 = vmatpush1.bf16.msra.mxu0 0
    %3154 = vmatprep.subr.bf16.mxu0 0
    %3155 = vmatpush1.bf16.msra.mxu0 0
    %3156 = vmatprep.subr.bf16.mxu0 0
    %3157 = vmatpush1.bf16.msra.mxu0 0
    %3158 = vmatprep.mubr.bf16.mxu0 0
    %3159 = vmatmul.mubr.bf16.gmra.mrb[0].mxu0 %v3121
    %v3160 = vpop.f32.mrb[0].mxu0
    %v3161 = vadd.f32 0.0, %v3160
    %v3162 = vpop.f32.mrb[0].mxu0
    %v3163 = vpop.f32.mrb[0].mxu0
    %v3164 = vpop.f32.mrb[0].mxu0
    %3165 = vdwg.mxu0
    %3167 = vrot.lane.b32.xlu0 %v1858, 64
    %v3168 = vpop.permute.xlu0 %3167
    %v3170 = vsel %vm1956, %v3116, 0
    %v3173 = vsel %vm1984, %v3168, 0
    %3175 = vmatprep.subr.bf16.mxu0 0
    %3176 = vmatpush1.bf16.msra.mxu0 %v3173
    %3177 = vmatprep.subr.bf16.mxu0 0
    %3178 = vmatpush1.bf16.msra.mxu0 0
    %3179 = vmatprep.subr.bf16.mxu0 0
    %3180 = vmatpush1.bf16.msra.mxu0 0
    %3181 = vmatprep.subr.bf16.mxu0 0
    %3182 = vmatpush1.bf16.msra.mxu0 0
    %3183 = vmatprep.subr.bf16.mxu0 0
    %3184 = vmatpush1.bf16.msra.mxu0 0
    %3185 = vmatprep.subr.bf16.mxu0 0
    %3186 = vmatpush1.bf16.msra.mxu0 0
    %3187 = vmatprep.subr.bf16.mxu0 0
    %3188 = vmatpush1.bf16.msra.mxu0 0
    %3189 = vmatprep.subr.bf16.mxu0 0
    %3190 = vmatpush1.bf16.msra.mxu0 0
    %3191 = vmatprep.subr.bf16.mxu0 0
    %3192 = vmatpush1.bf16.msra.mxu0 0
    %3193 = vmatprep.subr.bf16.mxu0 0
    %3194 = vmatpush1.bf16.msra.mxu0 0
    %3195 = vmatprep.subr.bf16.mxu0 0
    %3196 = vmatpush1.bf16.msra.mxu0 0
    %3197 = vmatprep.subr.bf16.mxu0 0
    %3198 = vmatpush1.bf16.msra.mxu0 0
    %3199 = vmatprep.subr.bf16.mxu0 0
    %3200 = vmatpush1.bf16.msra.mxu0 0
    %3201 = vmatprep.subr.bf16.mxu0 0
    %3202 = vmatpush1.bf16.msra.mxu0 0
    %3203 = vmatprep.subr.bf16.mxu0 0
    %3204 = vmatpush1.bf16.msra.mxu0 0
    %3205 = vmatprep.subr.bf16.mxu0 0
    %3206 = vmatpush1.bf16.msra.mxu0 0
    %3207 = vmatprep.mubr.bf16.mxu0 0
    %3208 = vmatmul.mubr.bf16.gmra.mrb[0].mxu0 %v3170
    %v3209 = vpop.f32.mrb[0].mxu0
    %v3210 = vadd.f32 0.0, %v3209
    %v3211 = vpop.f32.mrb[0].mxu0
    %v3212 = vpop.f32.mrb[0].mxu0
    %v3213 = vpop.f32.mrb[0].mxu0
    %3214 = vdwg.mxu0
    %3217 = vrot.lane.b32.xlu0 %v3161, 64
    %v3218 = vpop.permute.xlu0 %3217
    %3219 = vrot.lane.b32.xlu0 %v3210, 64
    %v3220 = vpop.permute.xlu0 %3219
    %3223 = vst.msk [vmem:[#allocation2 + $0x10] sm:$0xff] %vm2314, %v3218
    %3224 = vst.msk [vmem:[#allocation2 + $0x28] sm:$0xff] %vm2314, %v3220
    %v3225 = vld [vmem:[#allocation2] sm:$0xff]
    %v3226 = vld [vmem:[#allocation2 + $0x8] sm:$0xff]
    %v3227 = vld [vmem:[#allocation2 + $0x10] sm:$0xff]
    %v3228 = vld [vmem:[#allocation2 + $0x18] sm:$0xff]
    %v3229 = vld [vmem:[#allocation2 + $0x20] sm:$0xff]
    %v3230 = vld [vmem:[#allocation2 + $0x28] sm:$0xff]
    %v3231 = vadd.f32 %v61, %v3225
    %v3232 = vadd.f32 %v62, %v3226
    %v3233 = vadd.f32 %v63, %v3227
    %v3234 = vadd.f32 %v64, %v3228
    %v3235 = vadd.f32 %v65, %v3229
    %v3236 = vadd.f32 %v66, %v3230
    %v3237 = vpack.c.bf16 %v3234, %v3231
    %v3238 = vpack.c.bf16 %v3235, %v3232
    %v3239 = vpack.c.bf16 %v3236, %v3233
    %s3240 = scalar_lea.vmem [#allocation3], 1728
    %v3241 = vld [vmem:[%s3240] sm:$0xff]
    %v3242 = vld [vmem:[%s3240 + $0x8] sm:$0xff]
    %v3243 = vld [vmem:[%s3240 + $0x10] sm:$0xff]
    %v3244 = vld [vmem:[%s3240 + $0x18] sm:$0xff]
    %v3245 = vld [vmem:[%s3240 + $0x20] sm:$0xf]
    %v3246 = vld [vmem:[%s3240 + $0x24] sm:$0xff]
    %v3247 = vld [vmem:[%s3240 + $0x2c] sm:$0xff]
    %v3248 = vld [vmem:[%s3240 + $0x34] sm:$0xff]
    %v3249 = vld [vmem:[%s3240 + $0x3c] sm:$0xff]
    %v3250 = vld [vmem:[%s3240 + $0x44] sm:$0xf]
    %v3251 = vld [vmem:[%s3240 + $0x48] sm:$0xff]
    %v3252 = vld [vmem:[%s3240 + $0x50] sm:$0xff]
    %v3253 = vld [vmem:[%s3240 + $0x58] sm:$0xff]
    %v3254 = vld [vmem:[%s3240 + $0x60] sm:$0xff]
    %v3255 = vld [vmem:[%s3240 + $0x68] sm:$0xf]
    %v3256 = vld [vmem:[%s3240 + $0x6c] sm:$0xff]
    %v3257 = vld [vmem:[%s3240 + $0x74] sm:$0xff]
    %v3258 = vld [vmem:[%s3240 + $0x7c] sm:$0xff]
    %v3259 = vld [vmem:[%s3240 + $0x84] sm:$0xff]
    %v3260 = vld [vmem:[%s3240 + $0x8c] sm:$0xf]
    %v3261 = vld [vmem:[%s3240 + $0x90] sm:$0xff]
    %v3262 = vld [vmem:[%s3240 + $0x98] sm:$0xff]
    %v3263 = vld [vmem:[%s3240 + $0xa0] sm:$0xff]
    %v3264 = vld [vmem:[%s3240 + $0xa8] sm:$0xff]
    %v3265 = vld [vmem:[%s3240 + $0xb0] sm:$0xf]
    %v3266 = vld [vmem:[%s3240 + $0xb4] sm:$0xff]
    %v3267 = vld [vmem:[%s3240 + $0xbc] sm:$0xff]
    %v3268 = vld [vmem:[%s3240 + $0xc4] sm:$0xff]
    %v3269 = vld [vmem:[%s3240 + $0xcc] sm:$0xff]
    %v3270 = vld [vmem:[%s3240 + $0xd4] sm:$0xf]
    %v3271 = vld [vmem:[%s3240 + $0xd8] sm:$0xff]
    %v3272 = vld [vmem:[%s3240 + $0xe0] sm:$0xff]
    %v3273 = vld [vmem:[%s3240 + $0xe8] sm:$0xff]
    %v3274 = vld [vmem:[%s3240 + $0xf0] sm:$0xff]
    %v3275 = vld [vmem:[%s3240 + $0xf8] sm:$0xf]
    %v3276 = vld [vmem:[%s3240 + $0xfc] sm:$0xff]
    %v3277 = vld [vmem:[%s3240 + $0x104] sm:$0xff]
    %v3278 = vld [vmem:[%s3240 + $0x10c] sm:$0xff]
    %v3279 = vld [vmem:[%s3240 + $0x114] sm:$0xff]
    %v3280 = vld [vmem:[%s3240 + $0x11c] sm:$0xf]
    %v3281 = vld [vmem:[%s3240 + $0x120] sm:$0xff]
    %v3282 = vld [vmem:[%s3240 + $0x128] sm:$0xff]
    %v3283 = vld [vmem:[%s3240 + $0x130] sm:$0xff]
    %v3284 = vld [vmem:[%s3240 + $0x138] sm:$0xff]
    %v3285 = vld [vmem:[%s3240 + $0x140] sm:$0xf]
    %v3286 = vld [vmem:[%s3240 + $0x144] sm:$0xff]
    %v3287 = vld [vmem:[%s3240 + $0x14c] sm:$0xff]
    %v3288 = vld [vmem:[%s3240 + $0x154] sm:$0xff]
    %v3289 = vld [vmem:[%s3240 + $0x15c] sm:$0xff]
    %v3290 = vld [vmem:[%s3240 + $0x164] sm:$0xf]
    %v3291 = vld [vmem:[%s3240 + $0x168] sm:$0xff]
    %v3292 = vld [vmem:[%s3240 + $0x170] sm:$0xff]
    %v3293 = vld [vmem:[%s3240 + $0x178] sm:$0xff]
    %v3294 = vld [vmem:[%s3240 + $0x180] sm:$0xff]
    %v3295 = vld [vmem:[%s3240 + $0x188] sm:$0xf]
    %v3296 = vld [vmem:[%s3240 + $0x18c] sm:$0xff]
    %v3297 = vld [vmem:[%s3240 + $0x194] sm:$0xff]
    %v3298 = vld [vmem:[%s3240 + $0x19c] sm:$0xff]
    %v3299 = vld [vmem:[%s3240 + $0x1a4] sm:$0xff]
    %v3300 = vld [vmem:[%s3240 + $0x1ac] sm:$0xf]
    %v3301 = vld [vmem:[%s3240 + $0x1b0] sm:$0xff]
    %v3302 = vld [vmem:[%s3240 + $0x1b8] sm:$0xff]
    %v3303 = vld [vmem:[%s3240 + $0x1c0] sm:$0xff]
    %v3304 = vld [vmem:[%s3240 + $0x1c8] sm:$0xff]
    %v3305 = vld [vmem:[%s3240 + $0x1d0] sm:$0xf]
    %v3306 = vld [vmem:[%s3240 + $0x1d4] sm:$0xff]
    %v3307 = vld [vmem:[%s3240 + $0x1dc] sm:$0xff]
    %v3308 = vld [vmem:[%s3240 + $0x1e4] sm:$0xff]
    %v3309 = vld [vmem:[%s3240 + $0x1ec] sm:$0xff]
    %v3310 = vld [vmem:[%s3240 + $0x1f4] sm:$0xf]
    %v3311 = vld [vmem:[%s3240 + $0x1f8] sm:$0xff]
    %v3312 = vld [vmem:[%s3240 + $0x200] sm:$0xff]
    %v3313 = vld [vmem:[%s3240 + $0x208] sm:$0xff]
    %v3314 = vld [vmem:[%s3240 + $0x210] sm:$0xff]
    %v3315 = vld [vmem:[%s3240 + $0x218] sm:$0xf]
    %v3316 = vld [vmem:[%s3240 + $0x21c] sm:$0xff]
    %v3317 = vld [vmem:[%s3240 + $0x224] sm:$0xff]
    %v3318 = vld [vmem:[%s3240 + $0x22c] sm:$0xff]
    %v3319 = vld [vmem:[%s3240 + $0x234] sm:$0xff]
    %v3320 = vld [vmem:[%s3240 + $0x23c] sm:$0xf]
    %v3321 = vld [vmem:[%s3240 + $0x240] sm:$0xff]
    %v3322 = vld [vmem:[%s3240 + $0x248] sm:$0xff]
    %v3323 = vld [vmem:[%s3240 + $0x250] sm:$0xff]
    %v3324 = vld [vmem:[%s3240 + $0x258] sm:$0xff]
    %v3325 = vld [vmem:[%s3240 + $0x260] sm:$0xf]
    %v3326 = vld [vmem:[%s3240 + $0x264] sm:$0xff]
    %v3327 = vld [vmem:[%s3240 + $0x26c] sm:$0xff]
    %v3328 = vld [vmem:[%s3240 + $0x274] sm:$0xff]
    %v3329 = vld [vmem:[%s3240 + $0x27c] sm:$0xff]
    %v3330 = vld [vmem:[%s3240 + $0x284] sm:$0xf]
    %v3331 = vld [vmem:[%s3240 + $0x288] sm:$0xff]
    %v3332 = vld [vmem:[%s3240 + $0x290] sm:$0xff]
    %v3333 = vld [vmem:[%s3240 + $0x298] sm:$0xff]
    %v3334 = vld [vmem:[%s3240 + $0x2a0] sm:$0xff]
    %v3335 = vld [vmem:[%s3240 + $0x2a8] sm:$0xf]
    %v3336 = vld [vmem:[%s3240 + $0x2ac] sm:$0xff]
    %v3337 = vld [vmem:[%s3240 + $0x2b4] sm:$0xff]
    %v3338 = vld [vmem:[%s3240 + $0x2bc] sm:$0xff]
    %v3339 = vld [vmem:[%s3240 + $0x2c4] sm:$0xff]
    %v3340 = vld [vmem:[%s3240 + $0x2cc] sm:$0xf]
    %v3341 = vld [vmem:[%s3240 + $0x2d0] sm:$0xff]
    %v3342 = vld [vmem:[%s3240 + $0x2d8] sm:$0xff]
    %v3343 = vld [vmem:[%s3240 + $0x2e0] sm:$0xff]
    %v3344 = vld [vmem:[%s3240 + $0x2e8] sm:$0xff]
    %v3345 = vld [vmem:[%s3240 + $0x2f0] sm:$0xf]
    %v3346 = vld [vmem:[%s3240 + $0x2f4] sm:$0xff]
    %v3347 = vld [vmem:[%s3240 + $0x2fc] sm:$0xff]
    %v3348 = vld [vmem:[%s3240 + $0x304] sm:$0xff]
    %v3349 = vld [vmem:[%s3240 + $0x30c] sm:$0xff]
    %v3350 = vld [vmem:[%s3240 + $0x314] sm:$0xf]
    %v3351 = vld [vmem:[%s3240 + $0x318] sm:$0xff]
    %v3352 = vld [vmem:[%s3240 + $0x320] sm:$0xff]
    %v3353 = vld [vmem:[%s3240 + $0x328] sm:$0xff]
    %v3354 = vld [vmem:[%s3240 + $0x330] sm:$0xff]
    %v3355 = vld [vmem:[%s3240 + $0x338] sm:$0xf]
    %v3356 = vld [vmem:[%s3240 + $0x33c] sm:$0xff]
    %v3357 = vld [vmem:[%s3240 + $0x344] sm:$0xff]
    %v3358 = vld [vmem:[%s3240 + $0x34c] sm:$0xff]
    %v3359 = vld [vmem:[%s3240 + $0x354] sm:$0xff]
    %v3360 = vld [vmem:[%s3240 + $0x35c] sm:$0xf]
    %v3361 = vld [vmem:[%s3240 + $0x360] sm:$0xff]
    %v3362 = vld [vmem:[%s3240 + $0x368] sm:$0xff]
    %v3363 = vld [vmem:[%s3240 + $0x370] sm:$0xff]
    %v3364 = vld [vmem:[%s3240 + $0x378] sm:$0xff]
    %v3365 = vld [vmem:[%s3240 + $0x380] sm:$0xf]
    %v3366 = vld [vmem:[%s3240 + $0x384] sm:$0xff]
    %v3367 = vld [vmem:[%s3240 + $0x38c] sm:$0xff]
    %v3368 = vld [vmem:[%s3240 + $0x394] sm:$0xff]
    %v3369 = vld [vmem:[%s3240 + $0x39c] sm:$0xff]
    %v3370 = vld [vmem:[%s3240 + $0x3a4] sm:$0xf]
    %v3371 = vld [vmem:[%s3240 + $0x3a8] sm:$0xff]
    %v3372 = vld [vmem:[%s3240 + $0x3b0] sm:$0xff]
    %v3373 = vld [vmem:[%s3240 + $0x3b8] sm:$0xff]
    %v3374 = vld [vmem:[%s3240 + $0x3c0] sm:$0xff]
    %v3375 = vld [vmem:[%s3240 + $0x3c8] sm:$0xf]
    %v3376 = vld [vmem:[%s3240 + $0x3cc] sm:$0xff]
    %v3377 = vld [vmem:[%s3240 + $0x3d4] sm:$0xff]
    %v3378 = vld [vmem:[%s3240 + $0x3dc] sm:$0xff]
    %v3379 = vld [vmem:[%s3240 + $0x3e4] sm:$0xff]
    %v3380 = vld [vmem:[%s3240 + $0x3ec] sm:$0xf]
    %v3381 = vld [vmem:[%s3240 + $0x3f0] sm:$0xff]
    %v3382 = vld [vmem:[%s3240 + $0x3f8] sm:$0xff]
    %v3383 = vld [vmem:[%s3240 + $0x400] sm:$0xff]
    %v3384 = vld [vmem:[%s3240 + $0x408] sm:$0xff]
    %v3385 = vld [vmem:[%s3240 + $0x410] sm:$0xf]
    %v3386 = vld [vmem:[%s3240 + $0x414] sm:$0xff]
    %v3387 = vld [vmem:[%s3240 + $0x41c] sm:$0xff]
    %v3388 = vld [vmem:[%s3240 + $0x424] sm:$0xff]
    %v3389 = vld [vmem:[%s3240 + $0x42c] sm:$0xff]
    %v3390 = vld [vmem:[%s3240 + $0x434] sm:$0xf]
    %v3391 = vld [vmem:[%s3240 + $0x438] sm:$0xff]
    %v3392 = vld [vmem:[%s3240 + $0x440] sm:$0xff]
    %v3393 = vld [vmem:[%s3240 + $0x448] sm:$0xff]
    %v3394 = vld [vmem:[%s3240 + $0x450] sm:$0xff]
    %v3395 = vld [vmem:[%s3240 + $0x458] sm:$0xf]
    %v3396 = vld [vmem:[%s3240 + $0x45c] sm:$0xff]
    %v3397 = vld [vmem:[%s3240 + $0x464] sm:$0xff]
    %v3398 = vld [vmem:[%s3240 + $0x46c] sm:$0xff]
    %v3399 = vld [vmem:[%s3240 + $0x474] sm:$0xff]
    %v3400 = vld [vmem:[%s3240 + $0x47c] sm:$0xf]
    %v3401 = vld [vmem:[%s3240 + $0x480] sm:$0xff]
    %v3402 = vld [vmem:[%s3240 + $0x488] sm:$0xff]
    %v3403 = vld [vmem:[%s3240 + $0x490] sm:$0xff]
    %v3404 = vld [vmem:[%s3240 + $0x498] sm:$0xff]
    %v3405 = vld [vmem:[%s3240 + $0x4a0] sm:$0xf]
    %v3406 = vld [vmem:[%s3240 + $0x4a4] sm:$0xff]
    %v3407 = vld [vmem:[%s3240 + $0x4ac] sm:$0xff]
    %v3408 = vld [vmem:[%s3240 + $0x4b4] sm:$0xff]
    %v3409 = vld [vmem:[%s3240 + $0x4bc] sm:$0xff]
    %v3410 = vld [vmem:[%s3240 + $0x4c4] sm:$0xf]
    %v3411 = vld [vmem:[%s3240 + $0x4c8] sm:$0xff]
    %v3412 = vld [vmem:[%s3240 + $0x4d0] sm:$0xff]
    %v3413 = vld [vmem:[%s3240 + $0x4d8] sm:$0xff]
    %v3414 = vld [vmem:[%s3240 + $0x4e0] sm:$0xff]
    %v3415 = vld [vmem:[%s3240 + $0x4e8] sm:$0xf]
    %v3416 = vld [vmem:[%s3240 + $0x4ec] sm:$0xff]
    %v3417 = vld [vmem:[%s3240 + $0x4f4] sm:$0xff]
    %v3418 = vld [vmem:[%s3240 + $0x4fc] sm:$0xff]
    %v3419 = vld [vmem:[%s3240 + $0x504] sm:$0xff]
    %v3420 = vld [vmem:[%s3240 + $0x50c] sm:$0xf]
    %v3421 = vld [vmem:[%s3240 + $0x510] sm:$0xff]
    %v3422 = vld [vmem:[%s3240 + $0x518] sm:$0xff]
    %v3423 = vld [vmem:[%s3240 + $0x520] sm:$0xff]
    %v3424 = vld [vmem:[%s3240 + $0x528] sm:$0xff]
    %v3425 = vld [vmem:[%s3240 + $0x530] sm:$0xf]
    %v3426 = vld [vmem:[%s3240 + $0x534] sm:$0xff]
    %v3427 = vld [vmem:[%s3240 + $0x53c] sm:$0xff]
    %v3428 = vld [vmem:[%s3240 + $0x544] sm:$0xff]
    %v3429 = vld [vmem:[%s3240 + $0x54c] sm:$0xff]
    %v3430 = vld [vmem:[%s3240 + $0x554] sm:$0xf]
    %v3431 = vld [vmem:[%s3240 + $0x558] sm:$0xff]
    %v3432 = vld [vmem:[%s3240 + $0x560] sm:$0xff]
    %v3433 = vld [vmem:[%s3240 + $0x568] sm:$0xff]
    %v3434 = vld [vmem:[%s3240 + $0x570] sm:$0xff]
    %v3435 = vld [vmem:[%s3240 + $0x578] sm:$0xf]
    %v3436 = vld [vmem:[%s3240 + $0x57c] sm:$0xff]
    %v3437 = vld [vmem:[%s3240 + $0x584] sm:$0xff]
    %v3438 = vld [vmem:[%s3240 + $0x58c] sm:$0xff]
    %v3439 = vld [vmem:[%s3240 + $0x594] sm:$0xff]
    %v3440 = vld [vmem:[%s3240 + $0x59c] sm:$0xf]
    %v3441 = vld [vmem:[%s3240 + $0x5a0] sm:$0xff]
    %v3442 = vld [vmem:[%s3240 + $0x5a8] sm:$0xff]
    %v3443 = vld [vmem:[%s3240 + $0x5b0] sm:$0xff]
    %v3444 = vld [vmem:[%s3240 + $0x5b8] sm:$0xff]
    %v3445 = vld [vmem:[%s3240 + $0x5c0] sm:$0xf]
    %v3446 = vld [vmem:[%s3240 + $0x5c4] sm:$0xff]
    %v3447 = vld [vmem:[%s3240 + $0x5cc] sm:$0xff]
    %v3448 = vld [vmem:[%s3240 + $0x5d4] sm:$0xff]
    %v3449 = vld [vmem:[%s3240 + $0x5dc] sm:$0xff]
    %v3450 = vld [vmem:[%s3240 + $0x5e4] sm:$0xf]
    %v3451 = vld [vmem:[%s3240 + $0x5e8] sm:$0xff]
    %v3452 = vld [vmem:[%s3240 + $0x5f0] sm:$0xff]
    %v3453 = vld [vmem:[%s3240 + $0x5f8] sm:$0xff]
    %v3454 = vld [vmem:[%s3240 + $0x600] sm:$0xff]
    %v3455 = vld [vmem:[%s3240 + $0x608] sm:$0xf]
    %v3456 = vld [vmem:[%s3240 + $0x60c] sm:$0xff]
    %v3457 = vld [vmem:[%s3240 + $0x614] sm:$0xff]
    %v3458 = vld [vmem:[%s3240 + $0x61c] sm:$0xff]
    %v3459 = vld [vmem:[%s3240 + $0x624] sm:$0xff]
    %v3460 = vld [vmem:[%s3240 + $0x62c] sm:$0xf]
    %v3461 = vld [vmem:[%s3240 + $0x630] sm:$0xff]
    %v3462 = vld [vmem:[%s3240 + $0x638] sm:$0xff]
    %v3463 = vld [vmem:[%s3240 + $0x640] sm:$0xff]
    %v3464 = vld [vmem:[%s3240 + $0x648] sm:$0xff]
    %v3465 = vld [vmem:[%s3240 + $0x650] sm:$0xf]
    %v3466 = vld [vmem:[%s3240 + $0x654] sm:$0xff]
    %v3467 = vld [vmem:[%s3240 + $0x65c] sm:$0xff]
    %v3468 = vld [vmem:[%s3240 + $0x664] sm:$0xff]
    %v3469 = vld [vmem:[%s3240 + $0x66c] sm:$0xff]
    %v3470 = vld [vmem:[%s3240 + $0x674] sm:$0xf]
    %v3471 = vld [vmem:[%s3240 + $0x678] sm:$0xff]
    %v3472 = vld [vmem:[%s3240 + $0x680] sm:$0xff]
    %v3473 = vld [vmem:[%s3240 + $0x688] sm:$0xff]
    %v3474 = vld [vmem:[%s3240 + $0x690] sm:$0xff]
    %v3475 = vld [vmem:[%s3240 + $0x698] sm:$0xf]
    %v3476 = vld [vmem:[%s3240 + $0x69c] sm:$0xff]
    %v3477 = vld [vmem:[%s3240 + $0x6a4] sm:$0xff]
    %v3478 = vld [vmem:[%s3240 + $0x6ac] sm:$0xff]
    %v3479 = vld [vmem:[%s3240 + $0x6b4] sm:$0xff]
    %v3480 = vld [vmem:[%s3240 + $0x6bc] sm:$0xf]
    %v3721 = vunpack.c.l.b16 %v3241
    %v3722 = vunpack.c.h.b16 %v3241
    %v3723 = vunpack.c.l.b16 %v3242
    %v3724 = vunpack.c.h.b16 %v3242
    %v3725 = vunpack.c.l.b16 %v3243
    %v3726 = vunpack.c.h.b16 %v3243
    %v3727 = vunpack.c.l.b16 %v3244
    %v3728 = vunpack.c.h.b16 %v3244
    %v3729 = vunpack.c.l.b16 %v3245
    %v3730 = vunpack.c.l.b16 %v3246
    %v3731 = vunpack.c.h.b16 %v3246
    %v3732 = vunpack.c.l.b16 %v3247
    %v3733 = vunpack.c.h.b16 %v3247
    %v3734 = vunpack.c.l.b16 %v3248
    %v3735 = vunpack.c.h.b16 %v3248
    %v3736 = vunpack.c.l.b16 %v3249
    %v3737 = vunpack.c.h.b16 %v3249
    %v3738 = vunpack.c.l.b16 %v3250
    %v3739 = vunpack.c.l.b16 %v3251
    %v3740 = vunpack.c.h.b16 %v3251
    %v3741 = vunpack.c.l.b16 %v3252
    %v3742 = vunpack.c.h.b16 %v3252
    %v3743 = vunpack.c.l.b16 %v3253
    %v3744 = vunpack.c.h.b16 %v3253
    %v3745 = vunpack.c.l.b16 %v3254
    %v3746 = vunpack.c.h.b16 %v3254
    %v3747 = vunpack.c.l.b16 %v3255
    %v3748 = vunpack.c.l.b16 %v3256
    %v3749 = vunpack.c.h.b16 %v3256
    %v3750 = vunpack.c.l.b16 %v3257
    %v3751 = vunpack.c.h.b16 %v3257
    %v3752 = vunpack.c.l.b16 %v3258
    %v3753 = vunpack.c.h.b16 %v3258
    %v3754 = vunpack.c.l.b16 %v3259
    %v3755 = vunpack.c.h.b16 %v3259
    %v3756 = vunpack.c.l.b16 %v3260
    %v3757 = vunpack.c.l.b16 %v3261
    %v3758 = vunpack.c.h.b16 %v3261
    %v3759 = vunpack.c.l.b16 %v3262
    %v3760 = vunpack.c.h.b16 %v3262
    %v3761 = vunpack.c.l.b16 %v3263
    %v3762 = vunpack.c.h.b16 %v3263
    %v3763 = vunpack.c.l.b16 %v3264
    %v3764 = vunpack.c.h.b16 %v3264
    %v3765 = vunpack.c.l.b16 %v3265
    %v3766 = vunpack.c.l.b16 %v3266
    %v3767 = vunpack.c.h.b16 %v3266
    %v3768 = vunpack.c.l.b16 %v3267
    %v3769 = vunpack.c.h.b16 %v3267
    %v3770 = vunpack.c.l.b16 %v3268
    %v3771 = vunpack.c.h.b16 %v3268
    %v3772 = vunpack.c.l.b16 %v3269
    %v3773 = vunpack.c.h.b16 %v3269
    %v3774 = vunpack.c.l.b16 %v3270
    %v3775 = vunpack.c.l.b16 %v3271
    %v3776 = vunpack.c.h.b16 %v3271
    %v3777 = vunpack.c.l.b16 %v3272
    %v3778 = vunpack.c.h.b16 %v3272
    %v3779 = vunpack.c.l.b16 %v3273
    %v3780 = vunpack.c.h.b16 %v3273
    %v3781 = vunpack.c.l.b16 %v3274
    %v3782 = vunpack.c.h.b16 %v3274
    %v3783 = vunpack.c.l.b16 %v3275
    %v3784 = vunpack.c.l.b16 %v3276
    %v3785 = vunpack.c.h.b16 %v3276
    %v3786 = vunpack.c.l.b16 %v3277
    %v3787 = vunpack.c.h.b16 %v3277
    %v3788 = vunpack.c.l.b16 %v3278
    %v3789 = vunpack.c.h.b16 %v3278
    %v3790 = vunpack.c.l.b16 %v3279
    %v3791 = vunpack.c.h.b16 %v3279
    %v3792 = vunpack.c.l.b16 %v3280
    %v3793 = vunpack.c.l.b16 %v3281
    %v3794 = vunpack.c.h.b16 %v3281
    %v3795 = vunpack.c.l.b16 %v3282
    %v3796 = vunpack.c.h.b16 %v3282
    %v3797 = vunpack.c.l.b16 %v3283
    %v3798 = vunpack.c.h.b16 %v3283
    %v3799 = vunpack.c.l.b16 %v3284
    %v3800 = vunpack.c.h.b16 %v3284
    %v3801 = vunpack.c.l.b16 %v3285
    %v3802 = vunpack.c.l.b16 %v3286
    %v3803 = vunpack.c.h.b16 %v3286
    %v3804 = vunpack.c.l.b16 %v3287
    %v3805 = vunpack.c.h.b16 %v3287
    %v3806 = vunpack.c.l.b16 %v3288
    %v3807 = vunpack.c.h.b16 %v3288
    %v3808 = vunpack.c.l.b16 %v3289
    %v3809 = vunpack.c.h.b16 %v3289
    %v3810 = vunpack.c.l.b16 %v3290
    %v3811 = vunpack.c.l.b16 %v3291
    %v3812 = vunpack.c.h.b16 %v3291
    %v3813 = vunpack.c.l.b16 %v3292
    %v3814 = vunpack.c.h.b16 %v3292
    %v3815 = vunpack.c.l.b16 %v3293
    %v3816 = vunpack.c.h.b16 %v3293
    %v3817 = vunpack.c.l.b16 %v3294
    %v3818 = vunpack.c.h.b16 %v3294
    %v3819 = vunpack.c.l.b16 %v3295
    %v3820 = vunpack.c.l.b16 %v3296
    %v3821 = vunpack.c.h.b16 %v3296
    %v3822 = vunpack.c.l.b16 %v3297
    %v3823 = vunpack.c.h.b16 %v3297
    %v3824 = vunpack.c.l.b16 %v3298
    %v3825 = vunpack.c.h.b16 %v3298
    %v3826 = vunpack.c.l.b16 %v3299
    %v3827 = vunpack.c.h.b16 %v3299
    %v3828 = vunpack.c.l.b16 %v3300
    %v3829 = vunpack.c.l.b16 %v3301
    %v3830 = vunpack.c.h.b16 %v3301
    %v3831 = vunpack.c.l.b16 %v3302
    %v3832 = vunpack.c.h.b16 %v3302
    %v3833 = vunpack.c.l.b16 %v3303
    %v3834 = vunpack.c.h.b16 %v3303
    %v3835 = vunpack.c.l.b16 %v3304
    %v3836 = vunpack.c.h.b16 %v3304
    %v3837 = vunpack.c.l.b16 %v3305
    %v3838 = vunpack.c.l.b16 %v3306
    %v3839 = vunpack.c.h.b16 %v3306
    %v3840 = vunpack.c.l.b16 %v3307
    %v3841 = vunpack.c.h.b16 %v3307
    %v3842 = vunpack.c.l.b16 %v3308
    %v3843 = vunpack.c.h.b16 %v3308
    %v3844 = vunpack.c.l.b16 %v3309
    %v3845 = vunpack.c.h.b16 %v3309
    %v3846 = vunpack.c.l.b16 %v3310
    %v3847 = vunpack.c.l.b16 %v3311
    %v3848 = vunpack.c.h.b16 %v3311
    %v3849 = vunpack.c.l.b16 %v3312
    %v3850 = vunpack.c.h.b16 %v3312
    %v3851 = vunpack.c.l.b16 %v3313
    %v3852 = vunpack.c.h.b16 %v3313
    %v3853 = vunpack.c.l.b16 %v3314
    %v3854 = vunpack.c.h.b16 %v3314
    %v3855 = vunpack.c.l.b16 %v3315
    %v3856 = vunpack.c.l.b16 %v3316
    %v3857 = vunpack.c.h.b16 %v3316
    %v3858 = vunpack.c.l.b16 %v3317
    %v3859 = vunpack.c.h.b16 %v3317
    %v3860 = vunpack.c.l.b16 %v3318
    %v3861 = vunpack.c.h.b16 %v3318
    %v3862 = vunpack.c.l.b16 %v3319
    %v3863 = vunpack.c.h.b16 %v3319
    %v3864 = vunpack.c.l.b16 %v3320
    %v3865 = vunpack.c.l.b16 %v3321
    %v3866 = vunpack.c.h.b16 %v3321
    %v3867 = vunpack.c.l.b16 %v3322
    %v3868 = vunpack.c.h.b16 %v3322
    %v3869 = vunpack.c.l.b16 %v3323
    %v3870 = vunpack.c.h.b16 %v3323
    %v3871 = vunpack.c.l.b16 %v3324
    %v3872 = vunpack.c.h.b16 %v3324
    %v3873 = vunpack.c.l.b16 %v3325
    %v3874 = vunpack.c.l.b16 %v3326
    %v3875 = vunpack.c.h.b16 %v3326
    %v3876 = vunpack.c.l.b16 %v3327
    %v3877 = vunpack.c.h.b16 %v3327
    %v3878 = vunpack.c.l.b16 %v3328
    %v3879 = vunpack.c.h.b16 %v3328
    %v3880 = vunpack.c.l.b16 %v3329
    %v3881 = vunpack.c.h.b16 %v3329
    %v3882 = vunpack.c.l.b16 %v3330
    %v3883 = vunpack.c.l.b16 %v3331
    %v3884 = vunpack.c.h.b16 %v3331
    %v3885 = vunpack.c.l.b16 %v3332
    %v3886 = vunpack.c.h.b16 %v3332
    %v3887 = vunpack.c.l.b16 %v3333
    %v3888 = vunpack.c.h.b16 %v3333
    %v3889 = vunpack.c.l.b16 %v3334
    %v3890 = vunpack.c.h.b16 %v3334
    %v3891 = vunpack.c.l.b16 %v3335
    %v3892 = vunpack.c.l.b16 %v3336
    %v3893 = vunpack.c.h.b16 %v3336
    %v3894 = vunpack.c.l.b16 %v3337
    %v3895 = vunpack.c.h.b16 %v3337
    %v3896 = vunpack.c.l.b16 %v3338
    %v3897 = vunpack.c.h.b16 %v3338
    %v3898 = vunpack.c.l.b16 %v3339
    %v3899 = vunpack.c.h.b16 %v3339
    %v3900 = vunpack.c.l.b16 %v3340
    %v3901 = vunpack.c.l.b16 %v3341
    %v3902 = vunpack.c.h.b16 %v3341
    %v3903 = vunpack.c.l.b16 %v3342
    %v3904 = vunpack.c.h.b16 %v3342
    %v3905 = vunpack.c.l.b16 %v3343
    %v3906 = vunpack.c.h.b16 %v3343
    %v3907 = vunpack.c.l.b16 %v3344
    %v3908 = vunpack.c.h.b16 %v3344
    %v3909 = vunpack.c.l.b16 %v3345
    %v3910 = vunpack.c.l.b16 %v3346
    %v3911 = vunpack.c.h.b16 %v3346
    %v3912 = vunpack.c.l.b16 %v3347
    %v3913 = vunpack.c.h.b16 %v3347
    %v3914 = vunpack.c.l.b16 %v3348
    %v3915 = vunpack.c.h.b16 %v3348
    %v3916 = vunpack.c.l.b16 %v3349
    %v3917 = vunpack.c.h.b16 %v3349
    %v3918 = vunpack.c.l.b16 %v3350
    %v3919 = vunpack.c.l.b16 %v3351
    %v3920 = vunpack.c.h.b16 %v3351
    %v3921 = vunpack.c.l.b16 %v3352
    %v3922 = vunpack.c.h.b16 %v3352
    %v3923 = vunpack.c.l.b16 %v3353
    %v3924 = vunpack.c.h.b16 %v3353
    %v3925 = vunpack.c.l.b16 %v3354
    %v3926 = vunpack.c.h.b16 %v3354
    %v3927 = vunpack.c.l.b16 %v3355
    %v3928 = vunpack.c.l.b16 %v3356
    %v3929 = vunpack.c.h.b16 %v3356
    %v3930 = vunpack.c.l.b16 %v3357
    %v3931 = vunpack.c.h.b16 %v3357
    %v3932 = vunpack.c.l.b16 %v3358
    %v3933 = vunpack.c.h.b16 %v3358
    %v3934 = vunpack.c.l.b16 %v3359
    %v3935 = vunpack.c.h.b16 %v3359
    %v3936 = vunpack.c.l.b16 %v3360
    %v3937 = vunpack.c.l.b16 %v3361
    %v3938 = vunpack.c.h.b16 %v3361
    %v3939 = vunpack.c.l.b16 %v3362
    %v3940 = vunpack.c.h.b16 %v3362
    %v3941 = vunpack.c.l.b16 %v3363
    %v3942 = vunpack.c.h.b16 %v3363
    %v3943 = vunpack.c.l.b16 %v3364
    %v3944 = vunpack.c.h.b16 %v3364
    %v3945 = vunpack.c.l.b16 %v3365
    %v3946 = vunpack.c.l.b16 %v3366
    %v3947 = vunpack.c.h.b16 %v3366
    %v3948 = vunpack.c.l.b16 %v3367
    %v3949 = vunpack.c.h.b16 %v3367
    %v3950 = vunpack.c.l.b16 %v3368
    %v3951 = vunpack.c.h.b16 %v3368
    %v3952 = vunpack.c.l.b16 %v3369
    %v3953 = vunpack.c.h.b16 %v3369
    %v3954 = vunpack.c.l.b16 %v3370
    %v3955 = vunpack.c.l.b16 %v3371
    %v3956 = vunpack.c.h.b16 %v3371
    %v3957 = vunpack.c.l.b16 %v3372
    %v3958 = vunpack.c.h.b16 %v3372
    %v3959 = vunpack.c.l.b16 %v3373
    %v3960 = vunpack.c.h.b16 %v3373
    %v3961 = vunpack.c.l.b16 %v3374
    %v3962 = vunpack.c.h.b16 %v3374
    %v3963 = vunpack.c.l.b16 %v3375
    %v3964 = vunpack.c.l.b16 %v3376
    %v3965 = vunpack.c.h.b16 %v3376
    %v3966 = vunpack.c.l.b16 %v3377
    %v3967 = vunpack.c.h.b16 %v3377
    %v3968 = vunpack.c.l.b16 %v3378
    %v3969 = vunpack.c.h.b16 %v3378
    %v3970 = vunpack.c.l.b16 %v3379
    %v3971 = vunpack.c.h.b16 %v3379
    %v3972 = vunpack.c.l.b16 %v3380
    %v3973 = vunpack.c.l.b16 %v3381
    %v3974 = vunpack.c.h.b16 %v3381
    %v3975 = vunpack.c.l.b16 %v3382
    %v3976 = vunpack.c.h.b16 %v3382
    %v3977 = vunpack.c.l.b16 %v3383
    %v3978 = vunpack.c.h.b16 %v3383
    %v3979 = vunpack.c.l.b16 %v3384
    %v3980 = vunpack.c.h.b16 %v3384
    %v3981 = vunpack.c.l.b16 %v3385
    %v3982 = vunpack.c.l.b16 %v3386
    %v3983 = vunpack.c.h.b16 %v3386
    %v3984 = vunpack.c.l.b16 %v3387
    %v3985 = vunpack.c.h.b16 %v3387
    %v3986 = vunpack.c.l.b16 %v3388
    %v3987 = vunpack.c.h.b16 %v3388
    %v3988 = vunpack.c.l.b16 %v3389
    %v3989 = vunpack.c.h.b16 %v3389
    %v3990 = vunpack.c.l.b16 %v3390
    %v3991 = vunpack.c.l.b16 %v3391
    %v3992 = vunpack.c.h.b16 %v3391
    %v3993 = vunpack.c.l.b16 %v3392
    %v3994 = vunpack.c.h.b16 %v3392
    %v3995 = vunpack.c.l.b16 %v3393
    %v3996 = vunpack.c.h.b16 %v3393
    %v3997 = vunpack.c.l.b16 %v3394
    %v3998 = vunpack.c.h.b16 %v3394
    %v3999 = vunpack.c.l.b16 %v3395
    %v4000 = vunpack.c.l.b16 %v3396
    %v4001 = vunpack.c.h.b16 %v3396
    %v4002 = vunpack.c.l.b16 %v3397
    %v4003 = vunpack.c.h.b16 %v3397
    %v4004 = vunpack.c.l.b16 %v3398
    %v4005 = vunpack.c.h.b16 %v3398
    %v4006 = vunpack.c.l.b16 %v3399
    %v4007 = vunpack.c.h.b16 %v3399
    %v4008 = vunpack.c.l.b16 %v3400
    %v4009 = vunpack.c.l.b16 %v3401
    %v4010 = vunpack.c.h.b16 %v3401
    %v4011 = vunpack.c.l.b16 %v3402
    %v4012 = vunpack.c.h.b16 %v3402
    %v4013 = vunpack.c.l.b16 %v3403
    %v4014 = vunpack.c.h.b16 %v3403
    %v4015 = vunpack.c.l.b16 %v3404
    %v4016 = vunpack.c.h.b16 %v3404
    %v4017 = vunpack.c.l.b16 %v3405
    %v4018 = vunpack.c.l.b16 %v3406
    %v4019 = vunpack.c.h.b16 %v3406
    %v4020 = vunpack.c.l.b16 %v3407
    %v4021 = vunpack.c.h.b16 %v3407
    %v4022 = vunpack.c.l.b16 %v3408
    %v4023 = vunpack.c.h.b16 %v3408
    %v4024 = vunpack.c.l.b16 %v3409
    %v4025 = vunpack.c.h.b16 %v3409
    %v4026 = vunpack.c.l.b16 %v3410
    %v4027 = vunpack.c.l.b16 %v3411
    %v4028 = vunpack.c.h.b16 %v3411
    %v4029 = vunpack.c.l.b16 %v3412
    %v4030 = vunpack.c.h.b16 %v3412
    %v4031 = vunpack.c.l.b16 %v3413
    %v4032 = vunpack.c.h.b16 %v3413
    %v4033 = vunpack.c.l.b16 %v3414
    %v4034 = vunpack.c.h.b16 %v3414
    %v4035 = vunpack.c.l.b16 %v3415
    %v4036 = vunpack.c.l.b16 %v3416
    %v4037 = vunpack.c.h.b16 %v3416
    %v4038 = vunpack.c.l.b16 %v3417
    %v4039 = vunpack.c.h.b16 %v3417
    %v4040 = vunpack.c.l.b16 %v3418
    %v4041 = vunpack.c.h.b16 %v3418
    %v4042 = vunpack.c.l.b16 %v3419
    %v4043 = vunpack.c.h.b16 %v3419
    %v4044 = vunpack.c.l.b16 %v3420
    %v4045 = vunpack.c.l.b16 %v3421
    %v4046 = vunpack.c.h.b16 %v3421
    %v4047 = vunpack.c.l.b16 %v3422
    %v4048 = vunpack.c.h.b16 %v3422
    %v4049 = vunpack.c.l.b16 %v3423
    %v4050 = vunpack.c.h.b16 %v3423
    %v4051 = vunpack.c.l.b16 %v3424
    %v4052 = vunpack.c.h.b16 %v3424
    %v4053 = vunpack.c.l.b16 %v3425
    %v4054 = vunpack.c.l.b16 %v3426
    %v4055 = vunpack.c.h.b16 %v3426
    %v4056 = vunpack.c.l.b16 %v3427
    %v4057 = vunpack.c.h.b16 %v3427
    %v4058 = vunpack.c.l.b16 %v3428
    %v4059 = vunpack.c.h.b16 %v3428
    %v4060 = vunpack.c.l.b16 %v3429
    %v4061 = vunpack.c.h.b16 %v3429
    %v4062 = vunpack.c.l.b16 %v3430
    %v4063 = vunpack.c.l.b16 %v3431
    %v4064 = vunpack.c.h.b16 %v3431
    %v4065 = vunpack.c.l.b16 %v3432
    %v4066 = vunpack.c.h.b16 %v3432
    %v4067 = vunpack.c.l.b16 %v3433
    %v4068 = vunpack.c.h.b16 %v3433
    %v4069 = vunpack.c.l.b16 %v3434
    %v4070 = vunpack.c.h.b16 %v3434
    %v4071 = vunpack.c.l.b16 %v3435
    %v4072 = vunpack.c.l.b16 %v3436
    %v4073 = vunpack.c.h.b16 %v3436
    %v4074 = vunpack.c.l.b16 %v3437
    %v4075 = vunpack.c.h.b16 %v3437
    %v4076 = vunpack.c.l.b16 %v3438
    %v4077 = vunpack.c.h.b16 %v3438
    %v4078 = vunpack.c.l.b16 %v3439
    %v4079 = vunpack.c.h.b16 %v3439
    %v4080 = vunpack.c.l.b16 %v3440
    %v4081 = vunpack.c.l.b16 %v3441
    %v4082 = vunpack.c.h.b16 %v3441
    %v4083 = vunpack.c.l.b16 %v3442
    %v4084 = vunpack.c.h.b16 %v3442
    %v4085 = vunpack.c.l.b16 %v3443
    %v4086 = vunpack.c.h.b16 %v3443
    %v4087 = vunpack.c.l.b16 %v3444
    %v4088 = vunpack.c.h.b16 %v3444
    %v4089 = vunpack.c.l.b16 %v3445
    %v4090 = vunpack.c.l.b16 %v3446
    %v4091 = vunpack.c.h.b16 %v3446
    %v4092 = vunpack.c.l.b16 %v3447
    %v4093 = vunpack.c.h.b16 %v3447
    %v4094 = vunpack.c.l.b16 %v3448
    %v4095 = vunpack.c.h.b16 %v3448
    %v4096 = vunpack.c.l.b16 %v3449
    %v4097 = vunpack.c.h.b16 %v3449
    %v4098 = vunpack.c.l.b16 %v3450
    %v4099 = vunpack.c.l.b16 %v3451
    %v4100 = vunpack.c.h.b16 %v3451
    %v4101 = vunpack.c.l.b16 %v3452
    %v4102 = vunpack.c.h.b16 %v3452
    %v4103 = vunpack.c.l.b16 %v3453
    %v4104 = vunpack.c.h.b16 %v3453
    %v4105 = vunpack.c.l.b16 %v3454
    %v4106 = vunpack.c.h.b16 %v3454
    %v4107 = vunpack.c.l.b16 %v3455
    %v4108 = vunpack.c.l.b16 %v3456
    %v4109 = vunpack.c.h.b16 %v3456
    %v4110 = vunpack.c.l.b16 %v3457
    %v4111 = vunpack.c.h.b16 %v3457
    %v4112 = vunpack.c.l.b16 %v3458
    %v4113 = vunpack.c.h.b16 %v3458
    %v4114 = vunpack.c.l.b16 %v3459
    %v4115 = vunpack.c.h.b16 %v3459
    %v4116 = vunpack.c.l.b16 %v3460
    %v4117 = vunpack.c.l.b16 %v3461
    %v4118 = vunpack.c.h.b16 %v3461
    %v4119 = vunpack.c.l.b16 %v3462
    %v4120 = vunpack.c.h.b16 %v3462
    %v4121 = vunpack.c.l.b16 %v3463
    %v4122 = vunpack.c.h.b16 %v3463
    %v4123 = vunpack.c.l.b16 %v3464
    %v4124 = vunpack.c.h.b16 %v3464
    %v4125 = vunpack.c.l.b16 %v3465
    %v4126 = vunpack.c.l.b16 %v3466
    %v4127 = vunpack.c.h.b16 %v3466
    %v4128 = vunpack.c.l.b16 %v3467
    %v4129 = vunpack.c.h.b16 %v3467
    %v4130 = vunpack.c.l.b16 %v3468
    %v4131 = vunpack.c.h.b16 %v3468
    %v4132 = vunpack.c.l.b16 %v3469
    %v4133 = vunpack.c.h.b16 %v3469
    %v4134 = vunpack.c.l.b16 %v3470
    %v4135 = vunpack.c.l.b16 %v3471
    %v4136 = vunpack.c.h.b16 %v3471
    %v4137 = vunpack.c.l.b16 %v3472
    %v4138 = vunpack.c.h.b16 %v3472
    %v4139 = vunpack.c.l.b16 %v3473
    %v4140 = vunpack.c.h.b16 %v3473
    %v4141 = vunpack.c.l.b16 %v3474
    %v4142 = vunpack.c.h.b16 %v3474
    %v4143 = vunpack.c.l.b16 %v3475
    %v4144 = vunpack.c.l.b16 %v3476
    %v4145 = vunpack.c.h.b16 %v3476
    %v4146 = vunpack.c.l.b16 %v3477
    %v4147 = vunpack.c.h.b16 %v3477
    %v4148 = vunpack.c.l.b16 %v3478
    %v4149 = vunpack.c.h.b16 %v3478
    %v4150 = vunpack.c.l.b16 %v3479
    %v4151 = vunpack.c.h.b16 %v3479
    %v4152 = vunpack.c.l.b16 %v3480
    %v4153 = vpack.c.b16 %v3730, %v3721
    %v4154 = vpack.c.b16 %v3731, %v3722
    %v4155 = vpack.c.b16 %v3732, %v3723
    %v4156 = vpack.c.b16 %v3733, %v3724
    %v4157 = vpack.c.b16 %v3734, %v3725
    %v4158 = vpack.c.b16 %v3735, %v3726
    %v4159 = vpack.c.b16 %v3736, %v3727
    %v4160 = vpack.c.b16 %v3737, %v3728
    %v4161 = vpack.c.b16 %v3738, %v3729
    %v4162 = vpack.c.b16 %v3748, %v3739
    %v4163 = vpack.c.b16 %v3749, %v3740
    %v4164 = vpack.c.b16 %v3750, %v3741
    %v4165 = vpack.c.b16 %v3751, %v3742
    %v4166 = vpack.c.b16 %v3752, %v3743
    %v4167 = vpack.c.b16 %v3753, %v3744
    %v4168 = vpack.c.b16 %v3754, %v3745
    %v4169 = vpack.c.b16 %v3755, %v3746
    %v4170 = vpack.c.b16 %v3756, %v3747
    %v4171 = vpack.c.b16 %v3766, %v3757
    %v4172 = vpack.c.b16 %v3767, %v3758
    %v4173 = vpack.c.b16 %v3768, %v3759
    %v4174 = vpack.c.b16 %v3769, %v3760
    %v4175 = vpack.c.b16 %v3770, %v3761
    %v4176 = vpack.c.b16 %v3771, %v3762
    %v4177 = vpack.c.b16 %v3772, %v3763
    %v4178 = vpack.c.b16 %v3773, %v3764
    %v4179 = vpack.c.b16 %v3774, %v3765
    %v4180 = vpack.c.b16 %v3784, %v3775
    %v4181 = vpack.c.b16 %v3785, %v3776
    %v4182 = vpack.c.b16 %v3786, %v3777
    %v4183 = vpack.c.b16 %v3787, %v3778
    %v4184 = vpack.c.b16 %v3788, %v3779
    %v4185 = vpack.c.b16 %v3789, %v3780
    %v4186 = vpack.c.b16 %v3790, %v3781
    %v4187 = vpack.c.b16 %v3791, %v3782
    %v4188 = vpack.c.b16 %v3792, %v3783
    %v4189 = vpack.c.b16 %v3802, %v3793
    %v4190 = vpack.c.b16 %v3803, %v3794
    %v4191 = vpack.c.b16 %v3804, %v3795
    %v4192 = vpack.c.b16 %v3805, %v3796
    %v4193 = vpack.c.b16 %v3806, %v3797
    %v4194 = vpack.c.b16 %v3807, %v3798
    %v4195 = vpack.c.b16 %v3808, %v3799
    %v4196 = vpack.c.b16 %v3809, %v3800
    %v4197 = vpack.c.b16 %v3810, %v3801
    %v4198 = vpack.c.b16 %v3820, %v3811
    %v4199 = vpack.c.b16 %v3821, %v3812
    %v4200 = vpack.c.b16 %v3822, %v3813
    %v4201 = vpack.c.b16 %v3823, %v3814
    %v4202 = vpack.c.b16 %v3824, %v3815
    %v4203 = vpack.c.b16 %v3825, %v3816
    %v4204 = vpack.c.b16 %v3826, %v3817
    %v4205 = vpack.c.b16 %v3827, %v3818
    %v4206 = vpack.c.b16 %v3828, %v3819
    %v4207 = vpack.c.b16 %v3838, %v3829
    %v4208 = vpack.c.b16 %v3839, %v3830
    %v4209 = vpack.c.b16 %v3840, %v3831
    %v4210 = vpack.c.b16 %v3841, %v3832
    %v4211 = vpack.c.b16 %v3842, %v3833
    %v4212 = vpack.c.b16 %v3843, %v3834
    %v4213 = vpack.c.b16 %v3844, %v3835
    %v4214 = vpack.c.b16 %v3845, %v3836
    %v4215 = vpack.c.b16 %v3846, %v3837
    %v4216 = vpack.c.b16 %v3856, %v3847
    %v4217 = vpack.c.b16 %v3857, %v3848
    %v4218 = vpack.c.b16 %v3858, %v3849
    %v4219 = vpack.c.b16 %v3859, %v3850
    %v4220 = vpack.c.b16 %v3860, %v3851
    %v4221 = vpack.c.b16 %v3861, %v3852
    %v4222 = vpack.c.b16 %v3862, %v3853
    %v4223 = vpack.c.b16 %v3863, %v3854
    %v4224 = vpack.c.b16 %v3864, %v3855
    %v4225 = vpack.c.b16 %v3874, %v3865
    %v4226 = vpack.c.b16 %v3875, %v3866
    %v4227 = vpack.c.b16 %v3876, %v3867
    %v4228 = vpack.c.b16 %v3877, %v3868
    %v4229 = vpack.c.b16 %v3878, %v3869
    %v4230 = vpack.c.b16 %v3879, %v3870
    %v4231 = vpack.c.b16 %v3880, %v3871
    %v4232 = vpack.c.b16 %v3881, %v3872
    %v4233 = vpack.c.b16 %v3882, %v3873
    %v4234 = vpack.c.b16 %v3892, %v3883
    %v4235 = vpack.c.b16 %v3893, %v3884
    %v4236 = vpack.c.b16 %v3894, %v3885
    %v4237 = vpack.c.b16 %v3895, %v3886
    %v4238 = vpack.c.b16 %v3896, %v3887
    %v4239 = vpack.c.b16 %v3897, %v3888
    %v4240 = vpack.c.b16 %v3898, %v3889
    %v4241 = vpack.c.b16 %v3899, %v3890
    %v4242 = vpack.c.b16 %v3900, %v3891
    %v4243 = vpack.c.b16 %v3910, %v3901
    %v4244 = vpack.c.b16 %v3911, %v3902
    %v4245 = vpack.c.b16 %v3912, %v3903
    %v4246 = vpack.c.b16 %v3913, %v3904
    %v4247 = vpack.c.b16 %v3914, %v3905
    %v4248 = vpack.c.b16 %v3915, %v3906
    %v4249 = vpack.c.b16 %v3916, %v3907
    %v4250 = vpack.c.b16 %v3917, %v3908
    %v4251 = vpack.c.b16 %v3918, %v3909
    %v4252 = vpack.c.b16 %v3928, %v3919
    %v4253 = vpack.c.b16 %v3929, %v3920
    %v4254 = vpack.c.b16 %v3930, %v3921
    %v4255 = vpack.c.b16 %v3931, %v3922
    %v4256 = vpack.c.b16 %v3932, %v3923
    %v4257 = vpack.c.b16 %v3933, %v3924
    %v4258 = vpack.c.b16 %v3934, %v3925
    %v4259 = vpack.c.b16 %v3935, %v3926
    %v4260 = vpack.c.b16 %v3936, %v3927
    %v4261 = vpack.c.b16 %v3946, %v3937
    %v4262 = vpack.c.b16 %v3947, %v3938
    %v4263 = vpack.c.b16 %v3948, %v3939
    %v4264 = vpack.c.b16 %v3949, %v3940
    %v4265 = vpack.c.b16 %v3950, %v3941
    %v4266 = vpack.c.b16 %v3951, %v3942
    %v4267 = vpack.c.b16 %v3952, %v3943
    %v4268 = vpack.c.b16 %v3953, %v3944
    %v4269 = vpack.c.b16 %v3954, %v3945
    %v4270 = vpack.c.b16 %v3964, %v3955
    %v4271 = vpack.c.b16 %v3965, %v3956
    %v4272 = vpack.c.b16 %v3966, %v3957
    %v4273 = vpack.c.b16 %v3967, %v3958
    %v4274 = vpack.c.b16 %v3968, %v3959
    %v4275 = vpack.c.b16 %v3969, %v3960
    %v4276 = vpack.c.b16 %v3970, %v3961
    %v4277 = vpack.c.b16 %v3971, %v3962
    %v4278 = vpack.c.b16 %v3972, %v3963
    %v4279 = vpack.c.b16 %v3982, %v3973
    %v4280 = vpack.c.b16 %v3983, %v3974
    %v4281 = vpack.c.b16 %v3984, %v3975
    %v4282 = vpack.c.b16 %v3985, %v3976
    %v4283 = vpack.c.b16 %v3986, %v3977
    %v4284 = vpack.c.b16 %v3987, %v3978
    %v4285 = vpack.c.b16 %v3988, %v3979
    %v4286 = vpack.c.b16 %v3989, %v3980
    %v4287 = vpack.c.b16 %v3990, %v3981
    %v4288 = vpack.c.b16 %v4000, %v3991
    %v4289 = vpack.c.b16 %v4001, %v3992
    %v4290 = vpack.c.b16 %v4002, %v3993
    %v4291 = vpack.c.b16 %v4003, %v3994
    %v4292 = vpack.c.b16 %v4004, %v3995
    %v4293 = vpack.c.b16 %v4005, %v3996
    %v4294 = vpack.c.b16 %v4006, %v3997
    %v4295 = vpack.c.b16 %v4007, %v3998
    %v4296 = vpack.c.b16 %v4008, %v3999
    %v4297 = vpack.c.b16 %v4018, %v4009
    %v4298 = vpack.c.b16 %v4019, %v4010
    %v4299 = vpack.c.b16 %v4020, %v4011
    %v4300 = vpack.c.b16 %v4021, %v4012
    %v4301 = vpack.c.b16 %v4022, %v4013
    %v4302 = vpack.c.b16 %v4023, %v4014
    %v4303 = vpack.c.b16 %v4024, %v4015
    %v4304 = vpack.c.b16 %v4025, %v4016
    %v4305 = vpack.c.b16 %v4026, %v4017
    %v4306 = vpack.c.b16 %v4036, %v4027
    %v4307 = vpack.c.b16 %v4037, %v4028
    %v4308 = vpack.c.b16 %v4038, %v4029
    %v4309 = vpack.c.b16 %v4039, %v4030
    %v4310 = vpack.c.b16 %v4040, %v4031
    %v4311 = vpack.c.b16 %v4041, %v4032
    %v4312 = vpack.c.b16 %v4042, %v4033
    %v4313 = vpack.c.b16 %v4043, %v4034
    %v4314 = vpack.c.b16 %v4044, %v4035
    %v4315 = vpack.c.b16 %v4054, %v4045
    %v4316 = vpack.c.b16 %v4055, %v4046
    %v4317 = vpack.c.b16 %v4056, %v4047
    %v4318 = vpack.c.b16 %v4057, %v4048
    %v4319 = vpack.c.b16 %v4058, %v4049
    %v4320 = vpack.c.b16 %v4059, %v4050
    %v4321 = vpack.c.b16 %v4060, %v4051
    %v4322 = vpack.c.b16 %v4061, %v4052
    %v4323 = vpack.c.b16 %v4062, %v4053
    %v4324 = vpack.c.b16 %v4072, %v4063
    %v4325 = vpack.c.b16 %v4073, %v4064
    %v4326 = vpack.c.b16 %v4074, %v4065
    %v4327 = vpack.c.b16 %v4075, %v4066
    %v4328 = vpack.c.b16 %v4076, %v4067
    %v4329 = vpack.c.b16 %v4077, %v4068
    %v4330 = vpack.c.b16 %v4078, %v4069
    %v4331 = vpack.c.b16 %v4079, %v4070
    %v4332 = vpack.c.b16 %v4080, %v4071
    %v4333 = vpack.c.b16 %v4090, %v4081
    %v4334 = vpack.c.b16 %v4091, %v4082
    %v4335 = vpack.c.b16 %v4092, %v4083
    %v4336 = vpack.c.b16 %v4093, %v4084
    %v4337 = vpack.c.b16 %v4094, %v4085
    %v4338 = vpack.c.b16 %v4095, %v4086
    %v4339 = vpack.c.b16 %v4096, %v4087
    %v4340 = vpack.c.b16 %v4097, %v4088
    %v4341 = vpack.c.b16 %v4098, %v4089
    %v4342 = vpack.c.b16 %v4108, %v4099
    %v4343 = vpack.c.b16 %v4109, %v4100
    %v4344 = vpack.c.b16 %v4110, %v4101
    %v4345 = vpack.c.b16 %v4111, %v4102
    %v4346 = vpack.c.b16 %v4112, %v4103
    %v4347 = vpack.c.b16 %v4113, %v4104
    %v4348 = vpack.c.b16 %v4114, %v4105
    %v4349 = vpack.c.b16 %v4115, %v4106
    %v4350 = vpack.c.b16 %v4116, %v4107
    %v4351 = vpack.c.b16 %v4126, %v4117
    %v4352 = vpack.c.b16 %v4127, %v4118
    %v4353 = vpack.c.b16 %v4128, %v4119
    %v4354 = vpack.c.b16 %v4129, %v4120
    %v4355 = vpack.c.b16 %v4130, %v4121
    %v4356 = vpack.c.b16 %v4131, %v4122
    %v4357 = vpack.c.b16 %v4132, %v4123
    %v4358 = vpack.c.b16 %v4133, %v4124
    %v4359 = vpack.c.b16 %v4134, %v4125
    %v4360 = vpack.c.b16 %v4144, %v4135
    %v4361 = vpack.c.b16 %v4145, %v4136
    %v4362 = vpack.c.b16 %v4146, %v4137
    %v4363 = vpack.c.b16 %v4147, %v4138
    %v4364 = vpack.c.b16 %v4148, %v4139
    %v4365 = vpack.c.b16 %v4149, %v4140
    %v4366 = vpack.c.b16 %v4150, %v4141
    %v4367 = vpack.c.b16 %v4151, %v4142
    %v4368 = vpack.c.b16 %v4152, %v4143
    %4585 = vmatprep.subr.bf16.mxu0 %v4154
    %4586 = vmatpush1.bf16.msra.mxu0 %v4153
    %4587 = vmatprep.subr.bf16.mxu0 %v4163
    %4588 = vmatpush1.bf16.msra.mxu0 %v4162
    %4589 = vmatprep.subr.bf16.mxu0 %v4172
    %4590 = vmatpush1.bf16.msra.mxu0 %v4171
    %4591 = vmatprep.subr.bf16.mxu0 %v4181
    %4592 = vmatpush1.bf16.msra.mxu0 %v4180
    %4593 = vmatprep.subr.bf16.mxu0 %v4190
    %4594 = vmatpush1.bf16.msra.mxu0 %v4189
    %4595 = vmatprep.subr.bf16.mxu0 %v4199
    %4596 = vmatpush1.bf16.msra.mxu0 %v4198
    %4597 = vmatprep.subr.bf16.mxu0 %v4208
    %4598 = vmatpush1.bf16.msra.mxu0 %v4207
    %4599 = vmatprep.subr.bf16.mxu0 %v4217
    %4600 = vmatpush1.bf16.msra.mxu0 %v4216
    %4601 = vmatprep.subr.bf16.mxu0 %v4226
    %4602 = vmatpush1.bf16.msra.mxu0 %v4225
    %4603 = vmatprep.subr.bf16.mxu0 %v4235
    %4604 = vmatpush1.bf16.msra.mxu0 %v4234
    %4605 = vmatprep.subr.bf16.mxu0 %v4244
    %4606 = vmatpush1.bf16.msra.mxu0 %v4243
    %4607 = vmatprep.subr.bf16.mxu0 %v4253
    %4608 = vmatpush1.bf16.msra.mxu0 %v4252
    %4609 = vmatprep.subr.bf16.mxu0 %v4262
    %4610 = vmatpush1.bf16.msra.mxu0 %v4261
    %4611 = vmatprep.subr.bf16.mxu0 %v4271
    %4612 = vmatpush1.bf16.msra.mxu0 %v4270
    %4613 = vmatprep.subr.bf16.mxu0 %v4280
    %4614 = vmatpush1.bf16.msra.mxu0 %v4279
    %4615 = vmatprep.subr.bf16.mxu0 %v4289
    %4616 = vmatpush1.bf16.msra.mxu0 %v4288
    %4617 = vmatprep.mubr.bf16.mxu0 %v3238
    %4618 = vmatmul.mubr.bf16.gmra.mrb[0].mxu0 %v3237
    %v4619 = vpop.f32.mrb[0].mxu0
    %v4620 = vadd.f32 0.0, %v4619
    %v4621 = vpop.f32.mrb[0].mxu0
    %v4622 = vadd.f32 0.0, %v4621
    %v4623 = vpop.f32.mrb[0].mxu0
    %v4624 = vadd.f32 0.0, %v4623
    %v4625 = vpop.f32.mrb[0].mxu0
    %v4626 = vadd.f32 0.0, %v4625
    %4627 = vdwg.mxu0
    %4628 = vmatprep.subr.bf16.mxu0 %v4298
    %4629 = vmatpush1.bf16.msra.mxu0 %v4297
    %4630 = vmatprep.subr.bf16.mxu0 %v4307
    %4631 = vmatpush1.bf16.msra.mxu0 %v4306
    %4632 = vmatprep.subr.bf16.mxu0 %v4316
    %4633 = vmatpush1.bf16.msra.mxu0 %v4315
    %4634 = vmatprep.subr.bf16.mxu0 %v4325
    %4635 = vmatpush1.bf16.msra.mxu0 %v4324
    %4636 = vmatprep.subr.bf16.mxu0 %v4334
    %4637 = vmatpush1.bf16.msra.mxu0 %v4333
    %4638 = vmatprep.subr.bf16.mxu0 %v4343
    %4639 = vmatpush1.bf16.msra.mxu0 %v4342
    %4640 = vmatprep.subr.bf16.mxu0 %v4352
    %4641 = vmatpush1.bf16.msra.mxu0 %v4351
    %4642 = vmatprep.subr.bf16.mxu0 %v4361
    %4643 = vmatpush1.bf16.msra.mxu0 %v4360
    %4644 = vmatprep.subr.bf16.mxu0 0
    %4645 = vmatpush1.bf16.msra.mxu0 0
    %4646 = vmatprep.subr.bf16.mxu0 0
    %4647 = vmatpush1.bf16.msra.mxu0 0
    %4648 = vmatprep.subr.bf16.mxu0 0
    %4649 = vmatpush1.bf16.msra.mxu0 0
    %4650 = vmatprep.subr.bf16.mxu0 0
    %4651 = vmatpush1.bf16.msra.mxu0 0
    %4652 = vmatprep.subr.bf16.mxu0 0
    %4653 = vmatpush1.bf16.msra.mxu0 0
    %4654 = vmatprep.subr.bf16.mxu0 0
    %4655 = vmatpush1.bf16.msra.mxu0 0
    %4656 = vmatprep.subr.bf16.mxu0 0
    %4657 = vmatpush1.bf16.msra.mxu0 0
    %4658 = vmatprep.subr.bf16.mxu0 0
    %4659 = vmatpush1.bf16.msra.mxu0 0
    %4660 = vmatprep.mubr.bf16.mxu0 0
    %4661 = vmatmul.mubr.bf16.gmra.mrb[0].mxu0 %v3239
    %v4662 = vpop.f32.mrb[0].mxu0
    %v4663 = vadd.f32 %v4620, %v4662
    %v4664 = vpop.f32.mrb[0].mxu0
    %v4665 = vadd.f32 %v4622, %v4664
    %v4666 = vpop.f32.mrb[0].mxu0
    %v4667 = vadd.f32 %v4624, %v4666
    %v4668 = vpop.f32.mrb[0].mxu0
    %v4669 = vadd.f32 %v4626, %v4668
    %4670 = vdwg.mxu0
    %4671 = vmatprep.subr.bf16.mxu0 %v4156
    %4672 = vmatpush1.bf16.msra.mxu0 %v4155
    %4673 = vmatprep.subr.bf16.mxu0 %v4165
    %4674 = vmatpush1.bf16.msra.mxu0 %v4164
    %4675 = vmatprep.subr.bf16.mxu0 %v4174
    %4676 = vmatpush1.bf16.msra.mxu0 %v4173
    %4677 = vmatprep.subr.bf16.mxu0 %v4183
    %4678 = vmatpush1.bf16.msra.mxu0 %v4182
    %4679 = vmatprep.subr.bf16.mxu0 %v4192
    %4680 = vmatpush1.bf16.msra.mxu0 %v4191
    %4681 = vmatprep.subr.bf16.mxu0 %v4201
    %4682 = vmatpush1.bf16.msra.mxu0 %v4200
    %4683 = vmatprep.subr.bf16.mxu0 %v4210
    %4684 = vmatpush1.bf16.msra.mxu0 %v4209
    %4685 = vmatprep.subr.bf16.mxu0 %v4219
    %4686 = vmatpush1.bf16.msra.mxu0 %v4218
    %4687 = vmatprep.subr.bf16.mxu0 %v4228
    %4688 = vmatpush1.bf16.msra.mxu0 %v4227
    %4689 = vmatprep.subr.bf16.mxu0 %v4237
    %4690 = vmatpush1.bf16.msra.mxu0 %v4236
    %4691 = vmatprep.subr.bf16.mxu0 %v4246
    %4692 = vmatpush1.bf16.msra.mxu0 %v4245
    %4693 = vmatprep.subr.bf16.mxu0 %v4255
    %4694 = vmatpush1.bf16.msra.mxu0 %v4254
    %4695 = vmatprep.subr.bf16.mxu0 %v4264
    %4696 = vmatpush1.bf16.msra.mxu0 %v4263
    %4697 = vmatprep.subr.bf16.mxu0 %v4273
    %4698 = vmatpush1.bf16.msra.mxu0 %v4272
    %4699 = vmatprep.subr.bf16.mxu0 %v4282
    %4700 = vmatpush1.bf16.msra.mxu0 %v4281
    %4701 = vmatprep.subr.bf16.mxu0 %v4291
    %4702 = vmatpush1.bf16.msra.mxu0 %v4290
    %4703 = vmatprep.mubr.bf16.mxu0 %v3238
    %4704 = vmatmul.mubr.bf16.gmra.mrb[0].mxu0 %v3237
    %v4705 = vpop.f32.mrb[0].mxu0
    %v4706 = vadd.f32 0.0, %v4705
    %v4707 = vpop.f32.mrb[0].mxu0
    %v4708 = vadd.f32 0.0, %v4707
    %v4709 = vpop.f32.mrb[0].mxu0
    %v4710 = vadd.f32 0.0, %v4709
    %v4711 = vpop.f32.mrb[0].mxu0
    %v4712 = vadd.f32 0.0, %v4711
    %4713 = vdwg.mxu0
    %4714 = vmatprep.subr.bf16.mxu0 %v4300
    %4715 = vmatpush1.bf16.msra.mxu0 %v4299
    %4716 = vmatprep.subr.bf16.mxu0 %v4309
    %4717 = vmatpush1.bf16.msra.mxu0 %v4308
    %4718 = vmatprep.subr.bf16.mxu0 %v4318
    %4719 = vmatpush1.bf16.msra.mxu0 %v4317
    %4720 = vmatprep.subr.bf16.mxu0 %v4327
    %4721 = vmatpush1.bf16.msra.mxu0 %v4326
    %4722 = vmatprep.subr.bf16.mxu0 %v4336
    %4723 = vmatpush1.bf16.msra.mxu0 %v4335
    %4724 = vmatprep.subr.bf16.mxu0 %v4345
    %4725 = vmatpush1.bf16.msra.mxu0 %v4344
    %4726 = vmatprep.subr.bf16.mxu0 %v4354
    %4727 = vmatpush1.bf16.msra.mxu0 %v4353
    %4728 = vmatprep.subr.bf16.mxu0 %v4363
    %4729 = vmatpush1.bf16.msra.mxu0 %v4362
    %4730 = vmatprep.subr.bf16.mxu0 0
    %4731 = vmatpush1.bf16.msra.mxu0 0
    %4732 = vmatprep.subr.bf16.mxu0 0
    %4733 = vmatpush1.bf16.msra.mxu0 0
    %4734 = vmatprep.subr.bf16.mxu0 0
    %4735 = vmatpush1.bf16.msra.mxu0 0
    %4736 = vmatprep.subr.bf16.mxu0 0
    %4737 = vmatpush1.bf16.msra.mxu0 0
    %4738 = vmatprep.subr.bf16.mxu0 0
    %4739 = vmatpush1.bf16.msra.mxu0 0
    %4740 = vmatprep.subr.bf16.mxu0 0
    %4741 = vmatpush1.bf16.msra.mxu0 0
    %4742 = vmatprep.subr.bf16.mxu0 0
    %4743 = vmatpush1.bf16.msra.mxu0 0
    %4744 = vmatprep.subr.bf16.mxu0 0
    %4745 = vmatpush1.bf16.msra.mxu0 0
    %4746 = vmatprep.mubr.bf16.mxu0 0
    %4747 = vmatmul.mubr.bf16.gmra.mrb[0].mxu0 %v3239
    %v4748 = vpop.f32.mrb[0].mxu0
    %v4749 = vadd.f32 %v4706, %v4748
    %v4750 = vpop.f32.mrb[0].mxu0
    %v4751 = vadd.f32 %v4708, %v4750
    %v4752 = vpop.f32.mrb[0].mxu0
    %v4753 = vadd.f32 %v4710, %v4752
    %v4754 = vpop.f32.mrb[0].mxu0
    %v4755 = vadd.f32 %v4712, %v4754
    %4756 = vdwg.mxu0
    %4757 = vmatprep.subr.bf16.mxu0 %v4158
    %4758 = vmatpush1.bf16.msra.mxu0 %v4157
    %4759 = vmatprep.subr.bf16.mxu0 %v4167
    %4760 = vmatpush1.bf16.msra.mxu0 %v4166
    %4761 = vmatprep.subr.bf16.mxu0 %v4176
    %4762 = vmatpush1.bf16.msra.mxu0 %v4175
    %4763 = vmatprep.subr.bf16.mxu0 %v4185
    %4764 = vmatpush1.bf16.msra.mxu0 %v4184
    %4765 = vmatprep.subr.bf16.mxu0 %v4194
    %4766 = vmatpush1.bf16.msra.mxu0 %v4193
    %4767 = vmatprep.subr.bf16.mxu0 %v4203
    %4768 = vmatpush1.bf16.msra.mxu0 %v4202
    %4769 = vmatprep.subr.bf16.mxu0 %v4212
    %4770 = vmatpush1.bf16.msra.mxu0 %v4211
    %4771 = vmatprep.subr.bf16.mxu0 %v4221
    %4772 = vmatpush1.bf16.msra.mxu0 %v4220
    %4773 = vmatprep.subr.bf16.mxu0 %v4230
    %4774 = vmatpush1.bf16.msra.mxu0 %v4229
    %4775 = vmatprep.subr.bf16.mxu0 %v4239
    %4776 = vmatpush1.bf16.msra.mxu0 %v4238
    %4777 = vmatprep.subr.bf16.mxu0 %v4248
    %4778 = vmatpush1.bf16.msra.mxu0 %v4247
    %4779 = vmatprep.subr.bf16.mxu0 %v4257
    %4780 = vmatpush1.bf16.msra.mxu0 %v4256
    %4781 = vmatprep.subr.bf16.mxu0 %v4266
    %4782 = vmatpush1.bf16.msra.mxu0 %v4265
    %4783 = vmatprep.subr.bf16.mxu0 %v4275
    %4784 = vmatpush1.bf16.msra.mxu0 %v4274
    %4785 = vmatprep.subr.bf16.mxu0 %v4284
    %4786 = vmatpush1.bf16.msra.mxu0 %v4283
    %4787 = vmatprep.subr.bf16.mxu0 %v4293
    %4788 = vmatpush1.bf16.msra.mxu0 %v4292
    %4789 = vmatprep.mubr.bf16.mxu0 %v3238
    %4790 = vmatmul.mubr.bf16.gmra.mrb[0].mxu0 %v3237
    %v4791 = vpop.f32.mrb[0].mxu0
    %v4792 = vadd.f32 0.0, %v4791
    %v4793 = vpop.f32.mrb[0].mxu0
    %v4794 = vadd.f32 0.0, %v4793
    %v4795 = vpop.f32.mrb[0].mxu0
    %v4796 = vadd.f32 0.0, %v4795
    %v4797 = vpop.f32.mrb[0].mxu0
    %v4798 = vadd.f32 0.0, %v4797
    %4799 = vdwg.mxu0
    %4800 = vmatprep.subr.bf16.mxu0 %v4302
    %4801 = vmatpush1.bf16.msra.mxu0 %v4301
    %4802 = vmatprep.subr.bf16.mxu0 %v4311
    %4803 = vmatpush1.bf16.msra.mxu0 %v4310
    %4804 = vmatprep.subr.bf16.mxu0 %v4320
    %4805 = vmatpush1.bf16.msra.mxu0 %v4319
    %4806 = vmatprep.subr.bf16.mxu0 %v4329
    %4807 = vmatpush1.bf16.msra.mxu0 %v4328
    %4808 = vmatprep.subr.bf16.mxu0 %v4338
    %4809 = vmatpush1.bf16.msra.mxu0 %v4337
    %4810 = vmatprep.subr.bf16.mxu0 %v4347
    %4811 = vmatpush1.bf16.msra.mxu0 %v4346
    %4812 = vmatprep.subr.bf16.mxu0 %v4356
    %4813 = vmatpush1.bf16.msra.mxu0 %v4355
    %4814 = vmatprep.subr.bf16.mxu0 %v4365
    %4815 = vmatpush1.bf16.msra.mxu0 %v4364
    %4816 = vmatprep.subr.bf16.mxu0 0
    %4817 = vmatpush1.bf16.msra.mxu0 0
    %4818 = vmatprep.subr.bf16.mxu0 0
    %4819 = vmatpush1.bf16.msra.mxu0 0
    %4820 = vmatprep.subr.bf16.mxu0 0
    %4821 = vmatpush1.bf16.msra.mxu0 0
    %4822 = vmatprep.subr.bf16.mxu0 0
    %4823 = vmatpush1.bf16.msra.mxu0 0
    %4824 = vmatprep.subr.bf16.mxu0 0
    %4825 = vmatpush1.bf16.msra.mxu0 0
    %4826 = vmatprep.subr.bf16.mxu0 0
    %4827 = vmatpush1.bf16.msra.mxu0 0
    %4828 = vmatprep.subr.bf16.mxu0 0
    %4829 = vmatpush1.bf16.msra.mxu0 0
    %4830 = vmatprep.subr.bf16.mxu0 0
    %4831 = vmatpush1.bf16.msra.mxu0 0
    %4832 = vmatprep.mubr.bf16.mxu0 0
    %4833 = vmatmul.mubr.bf16.gmra.mrb[0].mxu0 %v3239
    %v4834 = vpop.f32.mrb[0].mxu0
    %v4835 = vadd.f32 %v4792, %v4834
    %v4836 = vpop.f32.mrb[0].mxu0
    %v4837 = vadd.f32 %v4794, %v4836
    %v4838 = vpop.f32.mrb[0].mxu0
    %v4839 = vadd.f32 %v4796, %v4838
    %v4840 = vpop.f32.mrb[0].mxu0
    %v4841 = vadd.f32 %v4798, %v4840
    %4842 = vdwg.mxu0
    %4843 = vmatprep.subr.bf16.mxu0 %v4160
    %4844 = vmatpush1.bf16.msra.mxu0 %v4159
    %4845 = vmatprep.subr.bf16.mxu0 %v4169
    %4846 = vmatpush1.bf16.msra.mxu0 %v4168
    %4847 = vmatprep.subr.bf16.mxu0 %v4178
    %4848 = vmatpush1.bf16.msra.mxu0 %v4177
    %4849 = vmatprep.subr.bf16.mxu0 %v4187
    %4850 = vmatpush1.bf16.msra.mxu0 %v4186
    %4851 = vmatprep.subr.bf16.mxu0 %v4196
    %4852 = vmatpush1.bf16.msra.mxu0 %v4195
    %4853 = vmatprep.subr.bf16.mxu0 %v4205
    %4854 = vmatpush1.bf16.msra.mxu0 %v4204
    %4855 = vmatprep.subr.bf16.mxu0 %v4214
    %4856 = vmatpush1.bf16.msra.mxu0 %v4213
    %4857 = vmatprep.subr.bf16.mxu0 %v4223
    %4858 = vmatpush1.bf16.msra.mxu0 %v4222
    %4859 = vmatprep.subr.bf16.mxu0 %v4232
    %4860 = vmatpush1.bf16.msra.mxu0 %v4231
    %4861 = vmatprep.subr.bf16.mxu0 %v4241
    %4862 = vmatpush1.bf16.msra.mxu0 %v4240
    %4863 = vmatprep.subr.bf16.mxu0 %v4250
    %4864 = vmatpush1.bf16.msra.mxu0 %v4249
    %4865 = vmatprep.subr.bf16.mxu0 %v4259
    %4866 = vmatpush1.bf16.msra.mxu0 %v4258
    %4867 = vmatprep.subr.bf16.mxu0 %v4268
    %4868 = vmatpush1.bf16.msra.mxu0 %v4267
    %4869 = vmatprep.subr.bf16.mxu0 %v4277
    %4870 = vmatpush1.bf16.msra.mxu0 %v4276
    %4871 = vmatprep.subr.bf16.mxu0 %v4286
    %4872 = vmatpush1.bf16.msra.mxu0 %v4285
    %4873 = vmatprep.subr.bf16.mxu0 %v4295
    %4874 = vmatpush1.bf16.msra.mxu0 %v4294
    %4875 = vmatprep.mubr.bf16.mxu0 %v3238
    %4876 = vmatmul.mubr.bf16.gmra.mrb[0].mxu0 %v3237
    %v4877 = vpop.f32.mrb[0].mxu0
    %v4878 = vadd.f32 0.0, %v4877
    %v4879 = vpop.f32.mrb[0].mxu0
    %v4880 = vadd.f32 0.0, %v4879
    %v4881 = vpop.f32.mrb[0].mxu0
    %v4882 = vadd.f32 0.0, %v4881
    %v4883 = vpop.f32.mrb[0].mxu0
    %v4884 = vadd.f32 0.0, %v4883
    %4885 = vdwg.mxu0
    %4886 = vmatprep.subr.bf16.mxu0 %v4304
    %4887 = vmatpush1.bf16.msra.mxu0 %v4303
    %4888 = vmatprep.subr.bf16.mxu0 %v4313
    %4889 = vmatpush1.bf16.msra.mxu0 %v4312
    %4890 = vmatprep.subr.bf16.mxu0 %v4322
    %4891 = vmatpush1.bf16.msra.mxu0 %v4321
    %4892 = vmatprep.subr.bf16.mxu0 %v4331
    %4893 = vmatpush1.bf16.msra.mxu0 %v4330
    %4894 = vmatprep.subr.bf16.mxu0 %v4340
    %4895 = vmatpush1.bf16.msra.mxu0 %v4339
    %4896 = vmatprep.subr.bf16.mxu0 %v4349
    %4897 = vmatpush1.bf16.msra.mxu0 %v4348
    %4898 = vmatprep.subr.bf16.mxu0 %v4358
    %4899 = vmatpush1.bf16.msra.mxu0 %v4357
    %4900 = vmatprep.subr.bf16.mxu0 %v4367
    %4901 = vmatpush1.bf16.msra.mxu0 %v4366
    %4902 = vmatprep.subr.bf16.mxu0 0
    %4903 = vmatpush1.bf16.msra.mxu0 0
    %4904 = vmatprep.subr.bf16.mxu0 0
    %4905 = vmatpush1.bf16.msra.mxu0 0
    %4906 = vmatprep.subr.bf16.mxu0 0
    %4907 = vmatpush1.bf16.msra.mxu0 0
    %4908 = vmatprep.subr.bf16.mxu0 0
    %4909 = vmatpush1.bf16.msra.mxu0 0
    %4910 = vmatprep.subr.bf16.mxu0 0
    %4911 = vmatpush1.bf16.msra.mxu0 0
    %4912 = vmatprep.subr.bf16.mxu0 0
    %4913 = vmatpush1.bf16.msra.mxu0 0
    %4914 = vmatprep.subr.bf16.mxu0 0
    %4915 = vmatpush1.bf16.msra.mxu0 0
    %4916 = vmatprep.subr.bf16.mxu0 0
    %4917 = vmatpush1.bf16.msra.mxu0 0
    %4918 = vmatprep.mubr.bf16.mxu0 0
    %4919 = vmatmul.mubr.bf16.gmra.mrb[0].mxu0 %v3239
    %v4920 = vpop.f32.mrb[0].mxu0
    %v4921 = vadd.f32 %v4878, %v4920
    %v4922 = vpop.f32.mrb[0].mxu0
    %v4923 = vadd.f32 %v4880, %v4922
    %v4924 = vpop.f32.mrb[0].mxu0
    %v4925 = vadd.f32 %v4882, %v4924
    %v4926 = vpop.f32.mrb[0].mxu0
    %v4927 = vadd.f32 %v4884, %v4926
    %4928 = vdwg.mxu0
    %4929 = vmatprep.subr.bf16.mxu0 0
    %4930 = vmatpush1.bf16.msra.mxu0 %v4161
    %4931 = vmatprep.subr.bf16.mxu0 0
    %4932 = vmatpush1.bf16.msra.mxu0 %v4170
    %4933 = vmatprep.subr.bf16.mxu0 0
    %4934 = vmatpush1.bf16.msra.mxu0 %v4179
    %4935 = vmatprep.subr.bf16.mxu0 0
    %4936 = vmatpush1.bf16.msra.mxu0 %v4188
    %4937 = vmatprep.subr.bf16.mxu0 0
    %4938 = vmatpush1.bf16.msra.mxu0 %v4197
    %4939 = vmatprep.subr.bf16.mxu0 0
    %4940 = vmatpush1.bf16.msra.mxu0 %v4206
    %4941 = vmatprep.subr.bf16.mxu0 0
    %4942 = vmatpush1.bf16.msra.mxu0 %v4215
    %4943 = vmatprep.subr.bf16.mxu0 0
    %4944 = vmatpush1.bf16.msra.mxu0 %v4224
    %4945 = vmatprep.subr.bf16.mxu0 0
    %4946 = vmatpush1.bf16.msra.mxu0 %v4233
    %4947 = vmatprep.subr.bf16.mxu0 0
    %4948 = vmatpush1.bf16.msra.mxu0 %v4242
    %4949 = vmatprep.subr.bf16.mxu0 0
    %4950 = vmatpush1.bf16.msra.mxu0 %v4251
    %4951 = vmatprep.subr.bf16.mxu0 0
    %4952 = vmatpush1.bf16.msra.mxu0 %v4260
    %4953 = vmatprep.subr.bf16.mxu0 0
    %4954 = vmatpush1.bf16.msra.mxu0 %v4269
    %4955 = vmatprep.subr.bf16.mxu0 0
    %4956 = vmatpush1.bf16.msra.mxu0 %v4278
    %4957 = vmatprep.subr.bf16.mxu0 0
    %4958 = vmatpush1.bf16.msra.mxu0 %v4287
    %4959 = vmatprep.subr.bf16.mxu0 0
    %4960 = vmatpush1.bf16.msra.mxu0 %v4296
    %4961 = vmatprep.mubr.bf16.mxu0 %v3238
    %4962 = vmatmul.mubr.bf16.gmra.mrb[0].mxu0 %v3237
    %v4963 = vpop.f32.mrb[0].mxu0
    %v4964 = vadd.f32 0.0, %v4963
    %v4965 = vpop.f32.mrb[0].mxu0
    %v4966 = vpop.f32.mrb[0].mxu0
    %v4967 = vadd.f32 0.0, %v4966
    %v4968 = vpop.f32.mrb[0].mxu0
    %4969 = vdwg.mxu0
    %4970 = vmatprep.subr.bf16.mxu0 0
    %4971 = vmatpush1.bf16.msra.mxu0 %v4305
    %4972 = vmatprep.subr.bf16.mxu0 0
    %4973 = vmatpush1.bf16.msra.mxu0 %v4314
    %4974 = vmatprep.subr.bf16.mxu0 0
    %4975 = vmatpush1.bf16.msra.mxu0 %v4323
    %4976 = vmatprep.subr.bf16.mxu0 0
    %4977 = vmatpush1.bf16.msra.mxu0 %v4332
    %4978 = vmatprep.subr.bf16.mxu0 0
    %4979 = vmatpush1.bf16.msra.mxu0 %v4341
    %4980 = vmatprep.subr.bf16.mxu0 0
    %4981 = vmatpush1.bf16.msra.mxu0 %v4350
    %4982 = vmatprep.subr.bf16.mxu0 0
    %4983 = vmatpush1.bf16.msra.mxu0 %v4359
    %4984 = vmatprep.subr.bf16.mxu0 0
    %4985 = vmatpush1.bf16.msra.mxu0 %v4368
    %4986 = vmatprep.subr.bf16.mxu0 0
    %4987 = vmatpush1.bf16.msra.mxu0 0
    %4988 = vmatprep.subr.bf16.mxu0 0
    %4989 = vmatpush1.bf16.msra.mxu0 0
    %4990 = vmatprep.subr.bf16.mxu0 0
    %4991 = vmatpush1.bf16.msra.mxu0 0
    %4992 = vmatprep.subr.bf16.mxu0 0
    %4993 = vmatpush1.bf16.msra.mxu0 0
    %4994 = vmatprep.subr.bf16.mxu0 0
    %4995 = vmatpush1.bf16.msra.mxu0 0
    %4996 = vmatprep.subr.bf16.mxu0 0
    %4997 = vmatpush1.bf16.msra.mxu0 0
    %4998 = vmatprep.subr.bf16.mxu0 0
    %4999 = vmatpush1.bf16.msra.mxu0 0
    %5000 = vmatprep.subr.bf16.mxu0 0
    %5001 = vmatpush1.bf16.msra.mxu0 0
    %5002 = vmatprep.mubr.bf16.mxu0 0
    %5003 = vmatmul.mubr.bf16.gmra.mrb[0].mxu0 %v3239
    %v5004 = vpop.f32.mrb[0].mxu0
    %v5005 = vadd.f32 %v4964, %v5004
    %v5006 = vpop.f32.mrb[0].mxu0
    %v5007 = vpop.f32.mrb[0].mxu0
    %v5008 = vadd.f32 %v4967, %v5007
    %v5009 = vpop.f32.mrb[0].mxu0
    %5010 = vdwg.mxu0
    %v5011 = vpack.c.bf16 %v4663, %v4663
    %v5012 = vpack.c.bf16 %v4665, %v4665
    %v5013 = vpack.c.bf16 %v4749, %v4749
    %v5014 = vpack.c.bf16 %v4751, %v4751
    %v5015 = vpack.c.bf16 %v4835, %v4835
    %v5016 = vpack.c.bf16 %v4837, %v4837
    %v5017 = vpack.c.bf16 %v4921, %v4921
    %v5018 = vpack.c.bf16 %v4923, %v4923
    %v5019 = vpack.c.bf16 %v5005, %v5005
    %v5020 = vpack.c.bf16 %v4667, %v4667
    %v5021 = vpack.c.bf16 %v4669, %v4669
    %v5022 = vpack.c.bf16 %v4753, %v4753
    %v5023 = vpack.c.bf16 %v4755, %v4755
    %v5024 = vpack.c.bf16 %v4839, %v4839
    %v5025 = vpack.c.bf16 %v4841, %v4841
    %v5026 = vpack.c.bf16 %v4925, %v4925
    %v5027 = vpack.c.bf16 %v4927, %v4927
    %v5028 = vpack.c.bf16 %v5008, %v5008
    %v5030 = vsel %vm1859, %v5011, 0
    %v5033 = vsel %vm1859, %v5014, 0
    %5035 = vmatprep.subr.bf16.mxu0 0
    %5036 = vmatpush1.bf16.xpose.msra.mxu0 %v5033
    %5037 = vmatprep.subr.bf16.mxu0 0
    %5038 = vmatpush1.bf16.xpose.msra.mxu0 0
    %5039 = vmatprep.subr.bf16.mxu0 0
    %5040 = vmatpush1.bf16.xpose.msra.mxu0 0
    %5041 = vmatprep.subr.bf16.mxu0 0
    %5042 = vmatpush1.bf16.xpose.msra.mxu0 0
    %5043 = vmatprep.subr.bf16.mxu0 0
    %5044 = vmatpush1.bf16.xpose.msra.mxu0 0
    %5045 = vmatprep.subr.bf16.mxu0 0
    %5046 = vmatpush1.bf16.xpose.msra.mxu0 0
    %5047 = vmatprep.subr.bf16.mxu0 0
    %5048 = vmatpush1.bf16.xpose.msra.mxu0 0
    %5049 = vmatprep.subr.bf16.mxu0 0
    %5050 = vmatpush1.bf16.xpose.msra.mxu0 0
    %5051 = vmatprep.subr.bf16.mxu0 0
    %5052 = vmatpush1.bf16.xpose.msra.mxu0 0
    %5053 = vmatprep.subr.bf16.mxu0 0
    %5054 = vmatpush1.bf16.xpose.msra.mxu0 0
    %5055 = vmatprep.subr.bf16.mxu0 0
    %5056 = vmatpush1.bf16.xpose.msra.mxu0 0
    %5057 = vmatprep.subr.bf16.mxu0 0
    %5058 = vmatpush1.bf16.xpose.msra.mxu0 0
    %5059 = vmatprep.subr.bf16.mxu0 0
    %5060 = vmatpush1.bf16.xpose.msra.mxu0 0
    %5061 = vmatprep.subr.bf16.mxu0 0
    %5062 = vmatpush1.bf16.xpose.msra.mxu0 0
    %5063 = vmatprep.subr.bf16.mxu0 0
    %5064 = vmatpush1.bf16.xpose.msra.mxu0 0
    %5065 = vmatprep.subr.bf16.mxu0 0
    %5066 = vmatpush1.bf16.xpose.msra.mxu0 0
    %5067 = vmatprep.mubr.bf16.mxu0 0
    %5068 = vmatmul.mubr.bf16.gmra.mrb[0].mxu0 %v5030
    %v5069 = vpop.f32.mrb[0].mxu0
    %v5070 = vadd.f32 0.0, %v5069
    %v5071 = vpop.f32.mrb[0].mxu0
    %v5072 = vpop.f32.mrb[0].mxu0
    %v5073 = vpop.f32.mrb[0].mxu0
    %5074 = vdwg.mxu0
    %v5076 = vsel %vm1859, %v5020, 0
    %v5079 = vsel %vm1859, %v5023, 0
    %5081 = vmatprep.subr.bf16.mxu0 0
    %5082 = vmatpush1.bf16.xpose.msra.mxu0 %v5079
    %5083 = vmatprep.subr.bf16.mxu0 0
    %5084 = vmatpush1.bf16.xpose.msra.mxu0 0
    %5085 = vmatprep.subr.bf16.mxu0 0
    %5086 = vmatpush1.bf16.xpose.msra.mxu0 0
    %5087 = vmatprep.subr.bf16.mxu0 0
    %5088 = vmatpush1.bf16.xpose.msra.mxu0 0
    %5089 = vmatprep.subr.bf16.mxu0 0
    %5090 = vmatpush1.bf16.xpose.msra.mxu0 0
    %5091 = vmatprep.subr.bf16.mxu0 0
    %5092 = vmatpush1.bf16.xpose.msra.mxu0 0
    %5093 = vmatprep.subr.bf16.mxu0 0
    %5094 = vmatpush1.bf16.xpose.msra.mxu0 0
    %5095 = vmatprep.subr.bf16.mxu0 0
    %5096 = vmatpush1.bf16.xpose.msra.mxu0 0
    %5097 = vmatprep.subr.bf16.mxu0 0
    %5098 = vmatpush1.bf16.xpose.msra.mxu0 0
    %5099 = vmatprep.subr.bf16.mxu0 0
    %5100 = vmatpush1.bf16.xpose.msra.mxu0 0
    %5101 = vmatprep.subr.bf16.mxu0 0
    %5102 = vmatpush1.bf16.xpose.msra.mxu0 0
    %5103 = vmatprep.subr.bf16.mxu0 0
    %5104 = vmatpush1.bf16.xpose.msra.mxu0 0
    %5105 = vmatprep.subr.bf16.mxu0 0
    %5106 = vmatpush1.bf16.xpose.msra.mxu0 0
    %5107 = vmatprep.subr.bf16.mxu0 0
    %5108 = vmatpush1.bf16.xpose.msra.mxu0 0
    %5109 = vmatprep.subr.bf16.mxu0 0
    %5110 = vmatpush1.bf16.xpose.msra.mxu0 0
    %5111 = vmatprep.subr.bf16.mxu0 0
    %5112 = vmatpush1.bf16.xpose.msra.mxu0 0
    %5113 = vmatprep.mubr.bf16.mxu0 0
    %5114 = vmatmul.mubr.bf16.gmra.mrb[0].mxu0 %v5076
    %v5115 = vpop.f32.mrb[0].mxu0
    %v5116 = vadd.f32 0.0, %v5115
    %v5117 = vpop.f32.mrb[0].mxu0
    %v5118 = vpop.f32.mrb[0].mxu0
    %v5119 = vpop.f32.mrb[0].mxu0
    %5120 = vdwg.mxu0
    %v5121 = vmul.f32 %v5070, 0.125
    %v5122 = vmul.f32 %v5116, 0.125
    %v5123 = vadd.f32 %v5121, %v67
    %v5124 = vadd.f32 %v5122, %v67
    %v5125 = vsel %vm1956, %v5123, -inf
    %5126 = vmax.xlane.f32.xlu0 %v5125
    %v5127 = vpop.xlane.xlu0 %5126
    %v5128 = vsel %vm1956, %v5124, -inf
    %5129 = vmax.xlane.f32.xlu0 %v5128
    %v5130 = vpop.xlane.xlu0 %5129
    %v5131 = vsub.f32 %v5123, %v5127
    %v5132 = vsub.f32 %v5124, %v5130
    %v5133 = vmul.f32 %v5131, 1.442695
    %v5134 = vpow.pop %v5133
    %v5135 = vmul.f32 %v5132, 1.442695
    %v5136 = vpow.pop %v5135
    %v5137 = vsel %vm1956, %v5134, 0.0
    %5138 = vadd.xlane.f32.xlu0 %v5137
    %v5139 = vpop.xlane.xlu0 %5138
    %v5140 = vsel %vm1956, %v5136, 0.0
    %5141 = vadd.xlane.f32.xlu0 %v5140
    %v5142 = vpop.xlane.xlu0 %5141
    %v5143 = vrcp.pop %v5139
    %v5144 = vmul.f32 %v5134, %v5143
    %v5145 = vrcp.pop %v5142
    %v5146 = vmul.f32 %v5136, %v5145
    %v5147 = vpack.c.bf16 %v5144, %v5144
    %v5148 = vpack.c.bf16 %v5146, %v5146
    %v5150 = vsel %vm1956, %v5147, 0
    %v5153 = vsel %vm1984, %v5017, 0
    %5155 = vmatprep.subr.bf16.mxu0 0
    %5156 = vmatpush1.bf16.msra.mxu0 %v5153
    %5157 = vmatprep.subr.bf16.mxu0 0
    %5158 = vmatpush1.bf16.msra.mxu0 0
    %5159 = vmatprep.subr.bf16.mxu0 0
    %5160 = vmatpush1.bf16.msra.mxu0 0
    %5161 = vmatprep.subr.bf16.mxu0 0
    %5162 = vmatpush1.bf16.msra.mxu0 0
    %5163 = vmatprep.subr.bf16.mxu0 0
    %5164 = vmatpush1.bf16.msra.mxu0 0
    %5165 = vmatprep.subr.bf16.mxu0 0
    %5166 = vmatpush1.bf16.msra.mxu0 0
    %5167 = vmatprep.subr.bf16.mxu0 0
    %5168 = vmatpush1.bf16.msra.mxu0 0
    %5169 = vmatprep.subr.bf16.mxu0 0
    %5170 = vmatpush1.bf16.msra.mxu0 0
    %5171 = vmatprep.subr.bf16.mxu0 0
    %5172 = vmatpush1.bf16.msra.mxu0 0
    %5173 = vmatprep.subr.bf16.mxu0 0
    %5174 = vmatpush1.bf16.msra.mxu0 0
    %5175 = vmatprep.subr.bf16.mxu0 0
    %5176 = vmatpush1.bf16.msra.mxu0 0
    %5177 = vmatprep.subr.bf16.mxu0 0
    %5178 = vmatpush1.bf16.msra.mxu0 0
    %5179 = vmatprep.subr.bf16.mxu0 0
    %5180 = vmatpush1.bf16.msra.mxu0 0
    %5181 = vmatprep.subr.bf16.mxu0 0
    %5182 = vmatpush1.bf16.msra.mxu0 0
    %5183 = vmatprep.subr.bf16.mxu0 0
    %5184 = vmatpush1.bf16.msra.mxu0 0
    %5185 = vmatprep.subr.bf16.mxu0 0
    %5186 = vmatpush1.bf16.msra.mxu0 0
    %5187 = vmatprep.mubr.bf16.mxu0 0
    %5188 = vmatmul.mubr.bf16.gmra.mrb[0].mxu0 %v5150
    %v5189 = vpop.f32.mrb[0].mxu0
    %v5190 = vadd.f32 0.0, %v5189
    %v5191 = vpop.f32.mrb[0].mxu0
    %v5192 = vpop.f32.mrb[0].mxu0
    %v5193 = vpop.f32.mrb[0].mxu0
    %5194 = vdwg.mxu0
    %v5196 = vsel %vm1956, %v5148, 0
    %v5199 = vsel %vm1984, %v5026, 0
    %5201 = vmatprep.subr.bf16.mxu0 0
    %5202 = vmatpush1.bf16.msra.mxu0 %v5199
    %5203 = vmatprep.subr.bf16.mxu0 0
    %5204 = vmatpush1.bf16.msra.mxu0 0
    %5205 = vmatprep.subr.bf16.mxu0 0
    %5206 = vmatpush1.bf16.msra.mxu0 0
    %5207 = vmatprep.subr.bf16.mxu0 0
    %5208 = vmatpush1.bf16.msra.mxu0 0
    %5209 = vmatprep.subr.bf16.mxu0 0
    %5210 = vmatpush1.bf16.msra.mxu0 0
    %5211 = vmatprep.subr.bf16.mxu0 0
    %5212 = vmatpush1.bf16.msra.mxu0 0
    %5213 = vmatprep.subr.bf16.mxu0 0
    %5214 = vmatpush1.bf16.msra.mxu0 0
    %5215 = vmatprep.subr.bf16.mxu0 0
    %5216 = vmatpush1.bf16.msra.mxu0 0
    %5217 = vmatprep.subr.bf16.mxu0 0
    %5218 = vmatpush1.bf16.msra.mxu0 0
    %5219 = vmatprep.subr.bf16.mxu0 0
    %5220 = vmatpush1.bf16.msra.mxu0 0
    %5221 = vmatprep.subr.bf16.mxu0 0
    %5222 = vmatpush1.bf16.msra.mxu0 0
    %5223 = vmatprep.subr.bf16.mxu0 0
    %5224 = vmatpush1.bf16.msra.mxu0 0
    %5225 = vmatprep.subr.bf16.mxu0 0
    %5226 = vmatpush1.bf16.msra.mxu0 0
    %5227 = vmatprep.subr.bf16.mxu0 0
    %5228 = vmatpush1.bf16.msra.mxu0 0
    %5229 = vmatprep.subr.bf16.mxu0 0
    %5230 = vmatpush1.bf16.msra.mxu0 0
    %5231 = vmatprep.subr.bf16.mxu0 0
    %5232 = vmatpush1.bf16.msra.mxu0 0
    %5233 = vmatprep.mubr.bf16.mxu0 0
    %5234 = vmatmul.mubr.bf16.gmra.mrb[0].mxu0 %v5196
    %v5235 = vpop.f32.mrb[0].mxu0
    %v5236 = vadd.f32 0.0, %v5235
    %v5237 = vpop.f32.mrb[0].mxu0
    %v5238 = vpop.f32.mrb[0].mxu0
    %v5239 = vpop.f32.mrb[0].mxu0
    %5240 = vdwg.mxu0
    %5241 = vst.msk [vmem:[#allocation2] sm:$0xff] %vm1859, %v5190
    %5242 = vst.msk [vmem:[#allocation2 + $0x18] sm:$0xff] %vm1859, %v5236
    %5244 = vrot.lane.b32.xlu0 %v5011, 64
    %v5245 = vpop.permute.xlu0 %5244
    %5247 = vrot.lane.b32.xlu0 %v5014, 64
    %v5248 = vpop.permute.xlu0 %5247
    %v5250 = vsel %vm1859, %v5245, 0
    %v5253 = vsel %vm1859, %v5248, 0
    %5255 = vmatprep.subr.bf16.mxu0 0
    %5256 = vmatpush1.bf16.xpose.msra.mxu0 %v5253
    %5257 = vmatprep.subr.bf16.mxu0 0
    %5258 = vmatpush1.bf16.xpose.msra.mxu0 0
    %5259 = vmatprep.subr.bf16.mxu0 0
    %5260 = vmatpush1.bf16.xpose.msra.mxu0 0
    %5261 = vmatprep.subr.bf16.mxu0 0
    %5262 = vmatpush1.bf16.xpose.msra.mxu0 0
    %5263 = vmatprep.subr.bf16.mxu0 0
    %5264 = vmatpush1.bf16.xpose.msra.mxu0 0
    %5265 = vmatprep.subr.bf16.mxu0 0
    %5266 = vmatpush1.bf16.xpose.msra.mxu0 0
    %5267 = vmatprep.subr.bf16.mxu0 0
    %5268 = vmatpush1.bf16.xpose.msra.mxu0 0
    %5269 = vmatprep.subr.bf16.mxu0 0
    %5270 = vmatpush1.bf16.xpose.msra.mxu0 0
    %5271 = vmatprep.subr.bf16.mxu0 0
    %5272 = vmatpush1.bf16.xpose.msra.mxu0 0
    %5273 = vmatprep.subr.bf16.mxu0 0
    %5274 = vmatpush1.bf16.xpose.msra.mxu0 0
    %5275 = vmatprep.subr.bf16.mxu0 0
    %5276 = vmatpush1.bf16.xpose.msra.mxu0 0
    %5277 = vmatprep.subr.bf16.mxu0 0
    %5278 = vmatpush1.bf16.xpose.msra.mxu0 0
    %5279 = vmatprep.subr.bf16.mxu0 0
    %5280 = vmatpush1.bf16.xpose.msra.mxu0 0
    %5281 = vmatprep.subr.bf16.mxu0 0
    %5282 = vmatpush1.bf16.xpose.msra.mxu0 0
    %5283 = vmatprep.subr.bf16.mxu0 0
    %5284 = vmatpush1.bf16.xpose.msra.mxu0 0
    %5285 = vmatprep.subr.bf16.mxu0 0
    %5286 = vmatpush1.bf16.xpose.msra.mxu0 0
    %5287 = vmatprep.mubr.bf16.mxu0 0
    %5288 = vmatmul.mubr.bf16.gmra.mrb[0].mxu0 %v5250
    %v5289 = vpop.f32.mrb[0].mxu0
    %v5290 = vadd.f32 0.0, %v5289
    %v5291 = vpop.f32.mrb[0].mxu0
    %v5292 = vpop.f32.mrb[0].mxu0
    %v5293 = vpop.f32.mrb[0].mxu0
    %5294 = vdwg.mxu0
    %5296 = vrot.lane.b32.xlu0 %v5020, 64
    %v5297 = vpop.permute.xlu0 %5296
    %5299 = vrot.lane.b32.xlu0 %v5023, 64
    %v5300 = vpop.permute.xlu0 %5299
    %v5302 = vsel %vm1859, %v5297, 0
    %v5305 = vsel %vm1859, %v5300, 0
    %5307 = vmatprep.subr.bf16.mxu0 0
    %5308 = vmatpush1.bf16.xpose.msra.mxu0 %v5305
    %5309 = vmatprep.subr.bf16.mxu0 0
    %5310 = vmatpush1.bf16.xpose.msra.mxu0 0
    %5311 = vmatprep.subr.bf16.mxu0 0
    %5312 = vmatpush1.bf16.xpose.msra.mxu0 0
    %5313 = vmatprep.subr.bf16.mxu0 0
    %5314 = vmatpush1.bf16.xpose.msra.mxu0 0
    %5315 = vmatprep.subr.bf16.mxu0 0
    %5316 = vmatpush1.bf16.xpose.msra.mxu0 0
    %5317 = vmatprep.subr.bf16.mxu0 0
    %5318 = vmatpush1.bf16.xpose.msra.mxu0 0
    %5319 = vmatprep.subr.bf16.mxu0 0
    %5320 = vmatpush1.bf16.xpose.msra.mxu0 0
    %5321 = vmatprep.subr.bf16.mxu0 0
    %5322 = vmatpush1.bf16.xpose.msra.mxu0 0
    %5323 = vmatprep.subr.bf16.mxu0 0
    %5324 = vmatpush1.bf16.xpose.msra.mxu0 0
    %5325 = vmatprep.subr.bf16.mxu0 0
    %5326 = vmatpush1.bf16.xpose.msra.mxu0 0
    %5327 = vmatprep.subr.bf16.mxu0 0
    %5328 = vmatpush1.bf16.xpose.msra.mxu0 0
    %5329 = vmatprep.subr.bf16.mxu0 0
    %5330 = vmatpush1.bf16.xpose.msra.mxu0 0
    %5331 = vmatprep.subr.bf16.mxu0 0
    %5332 = vmatpush1.bf16.xpose.msra.mxu0 0
    %5333 = vmatprep.subr.bf16.mxu0 0
    %5334 = vmatpush1.bf16.xpose.msra.mxu0 0
    %5335 = vmatprep.subr.bf16.mxu0 0
    %5336 = vmatpush1.bf16.xpose.msra.mxu0 0
    %5337 = vmatprep.subr.bf16.mxu0 0
    %5338 = vmatpush1.bf16.xpose.msra.mxu0 0
    %5339 = vmatprep.mubr.bf16.mxu0 0
    %5340 = vmatmul.mubr.bf16.gmra.mrb[0].mxu0 %v5302
    %v5341 = vpop.f32.mrb[0].mxu0
    %v5342 = vadd.f32 0.0, %v5341
    %v5343 = vpop.f32.mrb[0].mxu0
    %v5344 = vpop.f32.mrb[0].mxu0
    %v5345 = vpop.f32.mrb[0].mxu0
    %5346 = vdwg.mxu0
    %v5347 = vmul.f32 %v5290, 0.125
    %v5348 = vmul.f32 %v5342, 0.125
    %v5349 = vadd.f32 %v5347, %v67
    %v5350 = vadd.f32 %v5348, %v67
    %v5351 = vsel %vm1956, %v5349, -inf
    %5352 = vmax.xlane.f32.xlu0 %v5351
    %v5353 = vpop.xlane.xlu0 %5352
    %v5354 = vsel %vm1956, %v5350, -inf
    %5355 = vmax.xlane.f32.xlu0 %v5354
    %v5356 = vpop.xlane.xlu0 %5355
    %v5357 = vsub.f32 %v5349, %v5353
    %v5358 = vsub.f32 %v5350, %v5356
    %v5359 = vmul.f32 %v5357, 1.442695
    %v5360 = vpow.pop %v5359
    %v5361 = vmul.f32 %v5358, 1.442695
    %v5362 = vpow.pop %v5361
    %v5363 = vsel %vm1956, %v5360, 0.0
    %5364 = vadd.xlane.f32.xlu0 %v5363
    %v5365 = vpop.xlane.xlu0 %5364
    %v5366 = vsel %vm1956, %v5362, 0.0
    %5367 = vadd.xlane.f32.xlu0 %v5366
    %v5368 = vpop.xlane.xlu0 %5367
    %v5369 = vrcp.pop %v5365
    %v5370 = vmul.f32 %v5360, %v5369
    %v5371 = vrcp.pop %v5368
    %v5372 = vmul.f32 %v5362, %v5371
    %v5373 = vpack.c.bf16 %v5370, %v5370
    %v5374 = vpack.c.bf16 %v5372, %v5372
    %5376 = vrot.lane.b32.xlu0 %v5017, 64
    %v5377 = vpop.permute.xlu0 %5376
    %v5379 = vsel %vm1956, %v5373, 0
    %v5382 = vsel %vm1984, %v5377, 0
    %5384 = vmatprep.subr.bf16.mxu0 0
    %5385 = vmatpush1.bf16.msra.mxu0 %v5382
    %5386 = vmatprep.subr.bf16.mxu0 0
    %5387 = vmatpush1.bf16.msra.mxu0 0
    %5388 = vmatprep.subr.bf16.mxu0 0
    %5389 = vmatpush1.bf16.msra.mxu0 0
    %5390 = vmatprep.subr.bf16.mxu0 0
    %5391 = vmatpush1.bf16.msra.mxu0 0
    %5392 = vmatprep.subr.bf16.mxu0 0
    %5393 = vmatpush1.bf16.msra.mxu0 0
    %5394 = vmatprep.subr.bf16.mxu0 0
    %5395 = vmatpush1.bf16.msra.mxu0 0
    %5396 = vmatprep.subr.bf16.mxu0 0
    %5397 = vmatpush1.bf16.msra.mxu0 0
    %5398 = vmatprep.subr.bf16.mxu0 0
    %5399 = vmatpush1.bf16.msra.mxu0 0
    %5400 = vmatprep.subr.bf16.mxu0 0
    %5401 = vmatpush1.bf16.msra.mxu0 0
    %5402 = vmatprep.subr.bf16.mxu0 0
    %5403 = vmatpush1.bf16.msra.mxu0 0
    %5404 = vmatprep.subr.bf16.mxu0 0
    %5405 = vmatpush1.bf16.msra.mxu0 0
    %5406 = vmatprep.subr.bf16.mxu0 0
    %5407 = vmatpush1.bf16.msra.mxu0 0
    %5408 = vmatprep.subr.bf16.mxu0 0
    %5409 = vmatpush1.bf16.msra.mxu0 0
    %5410 = vmatprep.subr.bf16.mxu0 0
    %5411 = vmatpush1.bf16.msra.mxu0 0
    %5412 = vmatprep.subr.bf16.mxu0 0
    %5413 = vmatpush1.bf16.msra.mxu0 0
    %5414 = vmatprep.subr.bf16.mxu0 0
    %5415 = vmatpush1.bf16.msra.mxu0 0
    %5416 = vmatprep.mubr.bf16.mxu0 0
    %5417 = vmatmul.mubr.bf16.gmra.mrb[0].mxu0 %v5379
    %v5418 = vpop.f32.mrb[0].mxu0
    %v5419 = vadd.f32 0.0, %v5418
    %v5420 = vpop.f32.mrb[0].mxu0
    %v5421 = vpop.f32.mrb[0].mxu0
    %v5422 = vpop.f32.mrb[0].mxu0
    %5423 = vdwg.mxu0
    %5425 = vrot.lane.b32.xlu0 %v5026, 64
    %v5426 = vpop.permute.xlu0 %5425
    %v5428 = vsel %vm1956, %v5374, 0
    %v5431 = vsel %vm1984, %v5426, 0
    %5433 = vmatprep.subr.bf16.mxu0 0
    %5434 = vmatpush1.bf16.msra.mxu0 %v5431
    %5435 = vmatprep.subr.bf16.mxu0 0
    %5436 = vmatpush1.bf16.msra.mxu0 0
    %5437 = vmatprep.subr.bf16.mxu0 0
    %5438 = vmatpush1.bf16.msra.mxu0 0
    %5439 = vmatprep.subr.bf16.mxu0 0
    %5440 = vmatpush1.bf16.msra.mxu0 0
    %5441 = vmatprep.subr.bf16.mxu0 0
    %5442 = vmatpush1.bf16.msra.mxu0 0
    %5443 = vmatprep.subr.bf16.mxu0 0
    %5444 = vmatpush1.bf16.msra.mxu0 0
    %5445 = vmatprep.subr.bf16.mxu0 0
    %5446 = vmatpush1.bf16.msra.mxu0 0
    %5447 = vmatprep.subr.bf16.mxu0 0
    %5448 = vmatpush1.bf16.msra.mxu0 0
    %5449 = vmatprep.subr.bf16.mxu0 0
    %5450 = vmatpush1.bf16.msra.mxu0 0
    %5451 = vmatprep.subr.bf16.mxu0 0
    %5452 = vmatpush1.bf16.msra.mxu0 0
    %5453 = vmatprep.subr.bf16.mxu0 0
    %5454 = vmatpush1.bf16.msra.mxu0 0
    %5455 = vmatprep.subr.bf16.mxu0 0
    %5456 = vmatpush1.bf16.msra.mxu0 0
    %5457 = vmatprep.subr.bf16.mxu0 0
    %5458 = vmatpush1.bf16.msra.mxu0 0
    %5459 = vmatprep.subr.bf16.mxu0 0
    %5460 = vmatpush1.bf16.msra.mxu0 0
    %5461 = vmatprep.subr.bf16.mxu0 0
    %5462 = vmatpush1.bf16.msra.mxu0 0
    %5463 = vmatprep.subr.bf16.mxu0 0
    %5464 = vmatpush1.bf16.msra.mxu0 0
    %5465 = vmatprep.mubr.bf16.mxu0 0
    %5466 = vmatmul.mubr.bf16.gmra.mrb[0].mxu0 %v5428
    %v5467 = vpop.f32.mrb[0].mxu0
    %v5468 = vadd.f32 0.0, %v5467
    %v5469 = vpop.f32.mrb[0].mxu0
    %v5470 = vpop.f32.mrb[0].mxu0
    %v5471 = vpop.f32.mrb[0].mxu0
    %5472 = vdwg.mxu0
    %5475 = vrot.lane.b32.xlu0 %v5419, 64
    %v5476 = vpop.permute.xlu0 %5475
    %5477 = vrot.lane.b32.xlu0 %v5468, 64
    %v5478 = vpop.permute.xlu0 %5477
    %5481 = vst.msk [vmem:[#allocation2] sm:$0xff] %vm2314, %v5476
    %5482 = vst.msk [vmem:[#allocation2 + $0x18] sm:$0xff] %vm2314, %v5478
    %v5484 = vsel %vm1859, %v5012, 0
    %v5487 = vsel %vm1859, %v5015, 0
    %5489 = vmatprep.subr.bf16.mxu0 0
    %5490 = vmatpush1.bf16.xpose.msra.mxu0 %v5487
    %5491 = vmatprep.subr.bf16.mxu0 0
    %5492 = vmatpush1.bf16.xpose.msra.mxu0 0
    %5493 = vmatprep.subr.bf16.mxu0 0
    %5494 = vmatpush1.bf16.xpose.msra.mxu0 0
    %5495 = vmatprep.subr.bf16.mxu0 0
    %5496 = vmatpush1.bf16.xpose.msra.mxu0 0
    %5497 = vmatprep.subr.bf16.mxu0 0
    %5498 = vmatpush1.bf16.xpose.msra.mxu0 0
    %5499 = vmatprep.subr.bf16.mxu0 0
    %5500 = vmatpush1.bf16.xpose.msra.mxu0 0
    %5501 = vmatprep.subr.bf16.mxu0 0
    %5502 = vmatpush1.bf16.xpose.msra.mxu0 0
    %5503 = vmatprep.subr.bf16.mxu0 0
    %5504 = vmatpush1.bf16.xpose.msra.mxu0 0
    %5505 = vmatprep.subr.bf16.mxu0 0
    %5506 = vmatpush1.bf16.xpose.msra.mxu0 0
    %5507 = vmatprep.subr.bf16.mxu0 0
    %5508 = vmatpush1.bf16.xpose.msra.mxu0 0
    %5509 = vmatprep.subr.bf16.mxu0 0
    %5510 = vmatpush1.bf16.xpose.msra.mxu0 0
    %5511 = vmatprep.subr.bf16.mxu0 0
    %5512 = vmatpush1.bf16.xpose.msra.mxu0 0
    %5513 = vmatprep.subr.bf16.mxu0 0
    %5514 = vmatpush1.bf16.xpose.msra.mxu0 0
    %5515 = vmatprep.subr.bf16.mxu0 0
    %5516 = vmatpush1.bf16.xpose.msra.mxu0 0
    %5517 = vmatprep.subr.bf16.mxu0 0
    %5518 = vmatpush1.bf16.xpose.msra.mxu0 0
    %5519 = vmatprep.subr.bf16.mxu0 0
    %5520 = vmatpush1.bf16.xpose.msra.mxu0 0
    %5521 = vmatprep.mubr.bf16.mxu0 0
    %5522 = vmatmul.mubr.bf16.gmra.mrb[0].mxu0 %v5484
    %v5523 = vpop.f32.mrb[0].mxu0
    %v5524 = vadd.f32 0.0, %v5523
    %v5525 = vpop.f32.mrb[0].mxu0
    %v5526 = vpop.f32.mrb[0].mxu0
    %v5527 = vpop.f32.mrb[0].mxu0
    %5528 = vdwg.mxu0
    %v5530 = vsel %vm1859, %v5021, 0
    %v5533 = vsel %vm1859, %v5024, 0
    %5535 = vmatprep.subr.bf16.mxu0 0
    %5536 = vmatpush1.bf16.xpose.msra.mxu0 %v5533
    %5537 = vmatprep.subr.bf16.mxu0 0
    %5538 = vmatpush1.bf16.xpose.msra.mxu0 0
    %5539 = vmatprep.subr.bf16.mxu0 0
    %5540 = vmatpush1.bf16.xpose.msra.mxu0 0
    %5541 = vmatprep.subr.bf16.mxu0 0
    %5542 = vmatpush1.bf16.xpose.msra.mxu0 0
    %5543 = vmatprep.subr.bf16.mxu0 0
    %5544 = vmatpush1.bf16.xpose.msra.mxu0 0
    %5545 = vmatprep.subr.bf16.mxu0 0
    %5546 = vmatpush1.bf16.xpose.msra.mxu0 0
    %5547 = vmatprep.subr.bf16.mxu0 0
    %5548 = vmatpush1.bf16.xpose.msra.mxu0 0
    %5549 = vmatprep.subr.bf16.mxu0 0
    %5550 = vmatpush1.bf16.xpose.msra.mxu0 0
    %5551 = vmatprep.subr.bf16.mxu0 0
    %5552 = vmatpush1.bf16.xpose.msra.mxu0 0
    %5553 = vmatprep.subr.bf16.mxu0 0
    %5554 = vmatpush1.bf16.xpose.msra.mxu0 0
    %5555 = vmatprep.subr.bf16.mxu0 0
    %5556 = vmatpush1.bf16.xpose.msra.mxu0 0
    %5557 = vmatprep.subr.bf16.mxu0 0
    %5558 = vmatpush1.bf16.xpose.msra.mxu0 0
    %5559 = vmatprep.subr.bf16.mxu0 0
    %5560 = vmatpush1.bf16.xpose.msra.mxu0 0
    %5561 = vmatprep.subr.bf16.mxu0 0
    %5562 = vmatpush1.bf16.xpose.msra.mxu0 0
    %5563 = vmatprep.subr.bf16.mxu0 0
    %5564 = vmatpush1.bf16.xpose.msra.mxu0 0
    %5565 = vmatprep.subr.bf16.mxu0 0
    %5566 = vmatpush1.bf16.xpose.msra.mxu0 0
    %5567 = vmatprep.mubr.bf16.mxu0 0
    %5568 = vmatmul.mubr.bf16.gmra.mrb[0].mxu0 %v5530
    %v5569 = vpop.f32.mrb[0].mxu0
    %v5570 = vadd.f32 0.0, %v5569
    %v5571 = vpop.f32.mrb[0].mxu0
    %v5572 = vpop.f32.mrb[0].mxu0
    %v5573 = vpop.f32.mrb[0].mxu0
    %5574 = vdwg.mxu0
    %v5575 = vmul.f32 %v5524, 0.125
    %v5576 = vmul.f32 %v5570, 0.125
    %v5577 = vadd.f32 %v5575, %v67
    %v5578 = vadd.f32 %v5576, %v67
    %v5579 = vsel %vm1956, %v5577, -inf
    %5580 = vmax.xlane.f32.xlu0 %v5579
    %v5581 = vpop.xlane.xlu0 %5580
    %v5582 = vsel %vm1956, %v5578, -inf
    %5583 = vmax.xlane.f32.xlu0 %v5582
    %v5584 = vpop.xlane.xlu0 %5583
    %v5585 = vsub.f32 %v5577, %v5581
    %v5586 = vsub.f32 %v5578, %v5584
    %v5587 = vmul.f32 %v5585, 1.442695
    %v5588 = vpow.pop %v5587
    %v5589 = vmul.f32 %v5586, 1.442695
    %v5590 = vpow.pop %v5589
    %v5591 = vsel %vm1956, %v5588, 0.0
    %5592 = vadd.xlane.f32.xlu0 %v5591
    %v5593 = vpop.xlane.xlu0 %5592
    %v5594 = vsel %vm1956, %v5590, 0.0
    %5595 = vadd.xlane.f32.xlu0 %v5594
    %v5596 = vpop.xlane.xlu0 %5595
    %v5597 = vrcp.pop %v5593
    %v5598 = vmul.f32 %v5588, %v5597
    %v5599 = vrcp.pop %v5596
    %v5600 = vmul.f32 %v5590, %v5599
    %v5601 = vpack.c.bf16 %v5598, %v5598
    %v5602 = vpack.c.bf16 %v5600, %v5600
    %v5604 = vsel %vm1956, %v5601, 0
    %v5607 = vsel %vm1984, %v5018, 0
    %5609 = vmatprep.subr.bf16.mxu0 0
    %5610 = vmatpush1.bf16.msra.mxu0 %v5607
    %5611 = vmatprep.subr.bf16.mxu0 0
    %5612 = vmatpush1.bf16.msra.mxu0 0
    %5613 = vmatprep.subr.bf16.mxu0 0
    %5614 = vmatpush1.bf16.msra.mxu0 0
    %5615 = vmatprep.subr.bf16.mxu0 0
    %5616 = vmatpush1.bf16.msra.mxu0 0
    %5617 = vmatprep.subr.bf16.mxu0 0
    %5618 = vmatpush1.bf16.msra.mxu0 0
    %5619 = vmatprep.subr.bf16.mxu0 0
    %5620 = vmatpush1.bf16.msra.mxu0 0
    %5621 = vmatprep.subr.bf16.mxu0 0
    %5622 = vmatpush1.bf16.msra.mxu0 0
    %5623 = vmatprep.subr.bf16.mxu0 0
    %5624 = vmatpush1.bf16.msra.mxu0 0
    %5625 = vmatprep.subr.bf16.mxu0 0
    %5626 = vmatpush1.bf16.msra.mxu0 0
    %5627 = vmatprep.subr.bf16.mxu0 0
    %5628 = vmatpush1.bf16.msra.mxu0 0
    %5629 = vmatprep.subr.bf16.mxu0 0
    %5630 = vmatpush1.bf16.msra.mxu0 0
    %5631 = vmatprep.subr.bf16.mxu0 0
    %5632 = vmatpush1.bf16.msra.mxu0 0
    %5633 = vmatprep.subr.bf16.mxu0 0
    %5634 = vmatpush1.bf16.msra.mxu0 0
    %5635 = vmatprep.subr.bf16.mxu0 0
    %5636 = vmatpush1.bf16.msra.mxu0 0
    %5637 = vmatprep.subr.bf16.mxu0 0
    %5638 = vmatpush1.bf16.msra.mxu0 0
    %5639 = vmatprep.subr.bf16.mxu0 0
    %5640 = vmatpush1.bf16.msra.mxu0 0
    %5641 = vmatprep.mubr.bf16.mxu0 0
    %5642 = vmatmul.mubr.bf16.gmra.mrb[0].mxu0 %v5604
    %v5643 = vpop.f32.mrb[0].mxu0
    %v5644 = vadd.f32 0.0, %v5643
    %v5645 = vpop.f32.mrb[0].mxu0
    %v5646 = vpop.f32.mrb[0].mxu0
    %v5647 = vpop.f32.mrb[0].mxu0
    %5648 = vdwg.mxu0
    %v5650 = vsel %vm1956, %v5602, 0
    %v5653 = vsel %vm1984, %v5027, 0
    %5655 = vmatprep.subr.bf16.mxu0 0
    %5656 = vmatpush1.bf16.msra.mxu0 %v5653
    %5657 = vmatprep.subr.bf16.mxu0 0
    %5658 = vmatpush1.bf16.msra.mxu0 0
    %5659 = vmatprep.subr.bf16.mxu0 0
    %5660 = vmatpush1.bf16.msra.mxu0 0
    %5661 = vmatprep.subr.bf16.mxu0 0
    %5662 = vmatpush1.bf16.msra.mxu0 0
    %5663 = vmatprep.subr.bf16.mxu0 0
    %5664 = vmatpush1.bf16.msra.mxu0 0
    %5665 = vmatprep.subr.bf16.mxu0 0
    %5666 = vmatpush1.bf16.msra.mxu0 0
    %5667 = vmatprep.subr.bf16.mxu0 0
    %5668 = vmatpush1.bf16.msra.mxu0 0
    %5669 = vmatprep.subr.bf16.mxu0 0
    %5670 = vmatpush1.bf16.msra.mxu0 0
    %5671 = vmatprep.subr.bf16.mxu0 0
    %5672 = vmatpush1.bf16.msra.mxu0 0
    %5673 = vmatprep.subr.bf16.mxu0 0
    %5674 = vmatpush1.bf16.msra.mxu0 0
    %5675 = vmatprep.subr.bf16.mxu0 0
    %5676 = vmatpush1.bf16.msra.mxu0 0
    %5677 = vmatprep.subr.bf16.mxu0 0
    %5678 = vmatpush1.bf16.msra.mxu0 0
    %5679 = vmatprep.subr.bf16.mxu0 0
    %5680 = vmatpush1.bf16.msra.mxu0 0
    %5681 = vmatprep.subr.bf16.mxu0 0
    %5682 = vmatpush1.bf16.msra.mxu0 0
    %5683 = vmatprep.subr.bf16.mxu0 0
    %5684 = vmatpush1.bf16.msra.mxu0 0
    %5685 = vmatprep.subr.bf16.mxu0 0
    %5686 = vmatpush1.bf16.msra.mxu0 0
    %5687 = vmatprep.mubr.bf16.mxu0 0
    %5688 = vmatmul.mubr.bf16.gmra.mrb[0].mxu0 %v5650
    %v5689 = vpop.f32.mrb[0].mxu0
    %v5690 = vadd.f32 0.0, %v5689
    %v5691 = vpop.f32.mrb[0].mxu0
    %v5692 = vpop.f32.mrb[0].mxu0
    %v5693 = vpop.f32.mrb[0].mxu0
    %5694 = vdwg.mxu0
    %5695 = vst.msk [vmem:[#allocation2 + $0x8] sm:$0xff] %vm1859, %v5644
    %5696 = vst.msk [vmem:[#allocation2 + $0x20] sm:$0xff] %vm1859, %v5690
    %5698 = vrot.lane.b32.xlu0 %v5012, 64
    %v5699 = vpop.permute.xlu0 %5698
    %5701 = vrot.lane.b32.xlu0 %v5015, 64
    %v5702 = vpop.permute.xlu0 %5701
    %v5704 = vsel %vm1859, %v5699, 0
    %v5707 = vsel %vm1859, %v5702, 0
    %5709 = vmatprep.subr.bf16.mxu0 0
    %5710 = vmatpush1.bf16.xpose.msra.mxu0 %v5707
    %5711 = vmatprep.subr.bf16.mxu0 0
    %5712 = vmatpush1.bf16.xpose.msra.mxu0 0
    %5713 = vmatprep.subr.bf16.mxu0 0
    %5714 = vmatpush1.bf16.xpose.msra.mxu0 0
    %5715 = vmatprep.subr.bf16.mxu0 0
    %5716 = vmatpush1.bf16.xpose.msra.mxu0 0
    %5717 = vmatprep.subr.bf16.mxu0 0
    %5718 = vmatpush1.bf16.xpose.msra.mxu0 0
    %5719 = vmatprep.subr.bf16.mxu0 0
    %5720 = vmatpush1.bf16.xpose.msra.mxu0 0
    %5721 = vmatprep.subr.bf16.mxu0 0
    %5722 = vmatpush1.bf16.xpose.msra.mxu0 0
    %5723 = vmatprep.subr.bf16.mxu0 0
    %5724 = vmatpush1.bf16.xpose.msra.mxu0 0
    %5725 = vmatprep.subr.bf16.mxu0 0
    %5726 = vmatpush1.bf16.xpose.msra.mxu0 0
    %5727 = vmatprep.subr.bf16.mxu0 0
    %5728 = vmatpush1.bf16.xpose.msra.mxu0 0
    %5729 = vmatprep.subr.bf16.mxu0 0
    %5730 = vmatpush1.bf16.xpose.msra.mxu0 0
    %5731 = vmatprep.subr.bf16.mxu0 0
    %5732 = vmatpush1.bf16.xpose.msra.mxu0 0
    %5733 = vmatprep.subr.bf16.mxu0 0
    %5734 = vmatpush1.bf16.xpose.msra.mxu0 0
    %5735 = vmatprep.subr.bf16.mxu0 0
    %5736 = vmatpush1.bf16.xpose.msra.mxu0 0
    %5737 = vmatprep.subr.bf16.mxu0 0
    %5738 = vmatpush1.bf16.xpose.msra.mxu0 0
    %5739 = vmatprep.subr.bf16.mxu0 0
    %5740 = vmatpush1.bf16.xpose.msra.mxu0 0
    %5741 = vmatprep.mubr.bf16.mxu0 0
    %5742 = vmatmul.mubr.bf16.gmra.mrb[0].mxu0 %v5704
    %v5743 = vpop.f32.mrb[0].mxu0
    %v5744 = vadd.f32 0.0, %v5743
    %v5745 = vpop.f32.mrb[0].mxu0
    %v5746 = vpop.f32.mrb[0].mxu0
    %v5747 = vpop.f32.mrb[0].mxu0
    %5748 = vdwg.mxu0
    %5750 = vrot.lane.b32.xlu0 %v5021, 64
    %v5751 = vpop.permute.xlu0 %5750
    %5753 = vrot.lane.b32.xlu0 %v5024, 64
    %v5754 = vpop.permute.xlu0 %5753
    %v5756 = vsel %vm1859, %v5751, 0
    %v5759 = vsel %vm1859, %v5754, 0
    %5761 = vmatprep.subr.bf16.mxu0 0
    %5762 = vmatpush1.bf16.xpose.msra.mxu0 %v5759
    %5763 = vmatprep.subr.bf16.mxu0 0
    %5764 = vmatpush1.bf16.xpose.msra.mxu0 0
    %5765 = vmatprep.subr.bf16.mxu0 0
    %5766 = vmatpush1.bf16.xpose.msra.mxu0 0
    %5767 = vmatprep.subr.bf16.mxu0 0
    %5768 = vmatpush1.bf16.xpose.msra.mxu0 0
    %5769 = vmatprep.subr.bf16.mxu0 0
    %5770 = vmatpush1.bf16.xpose.msra.mxu0 0
    %5771 = vmatprep.subr.bf16.mxu0 0
    %5772 = vmatpush1.bf16.xpose.msra.mxu0 0
    %5773 = vmatprep.subr.bf16.mxu0 0
    %5774 = vmatpush1.bf16.xpose.msra.mxu0 0
    %5775 = vmatprep.subr.bf16.mxu0 0
    %5776 = vmatpush1.bf16.xpose.msra.mxu0 0
    %5777 = vmatprep.subr.bf16.mxu0 0
    %5778 = vmatpush1.bf16.xpose.msra.mxu0 0
    %5779 = vmatprep.subr.bf16.mxu0 0
    %5780 = vmatpush1.bf16.xpose.msra.mxu0 0
    %5781 = vmatprep.subr.bf16.mxu0 0
    %5782 = vmatpush1.bf16.xpose.msra.mxu0 0
    %5783 = vmatprep.subr.bf16.mxu0 0
    %5784 = vmatpush1.bf16.xpose.msra.mxu0 0
    %5785 = vmatprep.subr.bf16.mxu0 0
    %5786 = vmatpush1.bf16.xpose.msra.mxu0 0
    %5787 = vmatprep.subr.bf16.mxu0 0
    %5788 = vmatpush1.bf16.xpose.msra.mxu0 0
    %5789 = vmatprep.subr.bf16.mxu0 0
    %5790 = vmatpush1.bf16.xpose.msra.mxu0 0
    %5791 = vmatprep.subr.bf16.mxu0 0
    %5792 = vmatpush1.bf16.xpose.msra.mxu0 0
    %5793 = vmatprep.mubr.bf16.mxu0 0
    %5794 = vmatmul.mubr.bf16.gmra.mrb[0].mxu0 %v5756
    %v5795 = vpop.f32.mrb[0].mxu0
    %v5796 = vadd.f32 0.0, %v5795
    %v5797 = vpop.f32.mrb[0].mxu0
    %v5798 = vpop.f32.mrb[0].mxu0
    %v5799 = vpop.f32.mrb[0].mxu0
    %5800 = vdwg.mxu0
    %v5801 = vmul.f32 %v5744, 0.125
    %v5802 = vmul.f32 %v5796, 0.125
    %v5803 = vadd.f32 %v5801, %v67
    %v5804 = vadd.f32 %v5802, %v67
    %v5805 = vsel %vm1956, %v5803, -inf
    %5806 = vmax.xlane.f32.xlu0 %v5805
    %v5807 = vpop.xlane.xlu0 %5806
    %v5808 = vsel %vm1956, %v5804, -inf
    %5809 = vmax.xlane.f32.xlu0 %v5808
    %v5810 = vpop.xlane.xlu0 %5809
    %v5811 = vsub.f32 %v5803, %v5807
    %v5812 = vsub.f32 %v5804, %v5810
    %v5813 = vmul.f32 %v5811, 1.442695
    %v5814 = vpow.pop %v5813
    %v5815 = vmul.f32 %v5812, 1.442695
    %v5816 = vpow.pop %v5815
    %v5817 = vsel %vm1956, %v5814, 0.0
    %5818 = vadd.xlane.f32.xlu0 %v5817
    %v5819 = vpop.xlane.xlu0 %5818
    %v5820 = vsel %vm1956, %v5816, 0.0
    %5821 = vadd.xlane.f32.xlu0 %v5820
    %v5822 = vpop.xlane.xlu0 %5821
    %v5823 = vrcp.pop %v5819
    %v5824 = vmul.f32 %v5814, %v5823
    %v5825 = vrcp.pop %v5822
    %v5826 = vmul.f32 %v5816, %v5825
    %v5827 = vpack.c.bf16 %v5824, %v5824
    %v5828 = vpack.c.bf16 %v5826, %v5826
    %5830 = vrot.lane.b32.xlu0 %v5018, 64
    %v5831 = vpop.permute.xlu0 %5830
    %v5833 = vsel %vm1956, %v5827, 0
    %v5836 = vsel %vm1984, %v5831, 0
    %5838 = vmatprep.subr.bf16.mxu0 0
    %5839 = vmatpush1.bf16.msra.mxu0 %v5836
    %5840 = vmatprep.subr.bf16.mxu0 0
    %5841 = vmatpush1.bf16.msra.mxu0 0
    %5842 = vmatprep.subr.bf16.mxu0 0
    %5843 = vmatpush1.bf16.msra.mxu0 0
    %5844 = vmatprep.subr.bf16.mxu0 0
    %5845 = vmatpush1.bf16.msra.mxu0 0
    %5846 = vmatprep.subr.bf16.mxu0 0
    %5847 = vmatpush1.bf16.msra.mxu0 0
    %5848 = vmatprep.subr.bf16.mxu0 0
    %5849 = vmatpush1.bf16.msra.mxu0 0
    %5850 = vmatprep.subr.bf16.mxu0 0
    %5851 = vmatpush1.bf16.msra.mxu0 0
    %5852 = vmatprep.subr.bf16.mxu0 0
    %5853 = vmatpush1.bf16.msra.mxu0 0
    %5854 = vmatprep.subr.bf16.mxu0 0
    %5855 = vmatpush1.bf16.msra.mxu0 0
    %5856 = vmatprep.subr.bf16.mxu0 0
    %5857 = vmatpush1.bf16.msra.mxu0 0
    %5858 = vmatprep.subr.bf16.mxu0 0
    %5859 = vmatpush1.bf16.msra.mxu0 0
    %5860 = vmatprep.subr.bf16.mxu0 0
    %5861 = vmatpush1.bf16.msra.mxu0 0
    %5862 = vmatprep.subr.bf16.mxu0 0
    %5863 = vmatpush1.bf16.msra.mxu0 0
    %5864 = vmatprep.subr.bf16.mxu0 0
    %5865 = vmatpush1.bf16.msra.mxu0 0
    %5866 = vmatprep.subr.bf16.mxu0 0
    %5867 = vmatpush1.bf16.msra.mxu0 0
    %5868 = vmatprep.subr.bf16.mxu0 0
    %5869 = vmatpush1.bf16.msra.mxu0 0
    %5870 = vmatprep.mubr.bf16.mxu0 0
    %5871 = vmatmul.mubr.bf16.gmra.mrb[0].mxu0 %v5833
    %v5872 = vpop.f32.mrb[0].mxu0
    %v5873 = vadd.f32 0.0, %v5872
    %v5874 = vpop.f32.mrb[0].mxu0
    %v5875 = vpop.f32.mrb[0].mxu0
    %v5876 = vpop.f32.mrb[0].mxu0
    %5877 = vdwg.mxu0
    %5879 = vrot.lane.b32.xlu0 %v5027, 64
    %v5880 = vpop.permute.xlu0 %5879
    %v5882 = vsel %vm1956, %v5828, 0
    %v5885 = vsel %vm1984, %v5880, 0
    %5887 = vmatprep.subr.bf16.mxu0 0
    %5888 = vmatpush1.bf16.msra.mxu0 %v5885
    %5889 = vmatprep.subr.bf16.mxu0 0
    %5890 = vmatpush1.bf16.msra.mxu0 0
    %5891 = vmatprep.subr.bf16.mxu0 0
    %5892 = vmatpush1.bf16.msra.mxu0 0
    %5893 = vmatprep.subr.bf16.mxu0 0
    %5894 = vmatpush1.bf16.msra.mxu0 0
    %5895 = vmatprep.subr.bf16.mxu0 0
    %5896 = vmatpush1.bf16.msra.mxu0 0
    %5897 = vmatprep.subr.bf16.mxu0 0
    %5898 = vmatpush1.bf16.msra.mxu0 0
    %5899 = vmatprep.subr.bf16.mxu0 0
    %5900 = vmatpush1.bf16.msra.mxu0 0
    %5901 = vmatprep.subr.bf16.mxu0 0
    %5902 = vmatpush1.bf16.msra.mxu0 0
    %5903 = vmatprep.subr.bf16.mxu0 0
    %5904 = vmatpush1.bf16.msra.mxu0 0
    %5905 = vmatprep.subr.bf16.mxu0 0
    %5906 = vmatpush1.bf16.msra.mxu0 0
    %5907 = vmatprep.subr.bf16.mxu0 0
    %5908 = vmatpush1.bf16.msra.mxu0 0
    %5909 = vmatprep.subr.bf16.mxu0 0
    %5910 = vmatpush1.bf16.msra.mxu0 0
    %5911 = vmatprep.subr.bf16.mxu0 0
    %5912 = vmatpush1.bf16.msra.mxu0 0
    %5913 = vmatprep.subr.bf16.mxu0 0
    %5914 = vmatpush1.bf16.msra.mxu0 0
    %5915 = vmatprep.subr.bf16.mxu0 0
    %5916 = vmatpush1.bf16.msra.mxu0 0
    %5917 = vmatprep.subr.bf16.mxu0 0
    %5918 = vmatpush1.bf16.msra.mxu0 0
    %5919 = vmatprep.mubr.bf16.mxu0 0
    %5920 = vmatmul.mubr.bf16.gmra.mrb[0].mxu0 %v5882
    %v5921 = vpop.f32.mrb[0].mxu0
    %v5922 = vadd.f32 0.0, %v5921
    %v5923 = vpop.f32.mrb[0].mxu0
    %v5924 = vpop.f32.mrb[0].mxu0
    %v5925 = vpop.f32.mrb[0].mxu0
    %5926 = vdwg.mxu0
    %5929 = vrot.lane.b32.xlu0 %v5873, 64
    %v5930 = vpop.permute.xlu0 %5929
    %5931 = vrot.lane.b32.xlu0 %v5922, 64
    %v5932 = vpop.permute.xlu0 %5931
    %5935 = vst.msk [vmem:[#allocation2 + $0x8] sm:$0xff] %vm2314, %v5930
    %5936 = vst.msk [vmem:[#allocation2 + $0x20] sm:$0xff] %vm2314, %v5932
    %v5938 = vsel %vm1859, %v5013, 0
    %v5941 = vsel %vm1859, %v5016, 0
    %5943 = vmatprep.subr.bf16.mxu0 0
    %5944 = vmatpush1.bf16.xpose.msra.mxu0 %v5941
    %5945 = vmatprep.subr.bf16.mxu0 0
    %5946 = vmatpush1.bf16.xpose.msra.mxu0 0
    %5947 = vmatprep.subr.bf16.mxu0 0
    %5948 = vmatpush1.bf16.xpose.msra.mxu0 0
    %5949 = vmatprep.subr.bf16.mxu0 0
    %5950 = vmatpush1.bf16.xpose.msra.mxu0 0
    %5951 = vmatprep.subr.bf16.mxu0 0
    %5952 = vmatpush1.bf16.xpose.msra.mxu0 0
    %5953 = vmatprep.subr.bf16.mxu0 0
    %5954 = vmatpush1.bf16.xpose.msra.mxu0 0
    %5955 = vmatprep.subr.bf16.mxu0 0
    %5956 = vmatpush1.bf16.xpose.msra.mxu0 0
    %5957 = vmatprep.subr.bf16.mxu0 0
    %5958 = vmatpush1.bf16.xpose.msra.mxu0 0
    %5959 = vmatprep.subr.bf16.mxu0 0
    %5960 = vmatpush1.bf16.xpose.msra.mxu0 0
    %5961 = vmatprep.subr.bf16.mxu0 0
    %5962 = vmatpush1.bf16.xpose.msra.mxu0 0
    %5963 = vmatprep.subr.bf16.mxu0 0
    %5964 = vmatpush1.bf16.xpose.msra.mxu0 0
    %5965 = vmatprep.subr.bf16.mxu0 0
    %5966 = vmatpush1.bf16.xpose.msra.mxu0 0
    %5967 = vmatprep.subr.bf16.mxu0 0
    %5968 = vmatpush1.bf16.xpose.msra.mxu0 0
    %5969 = vmatprep.subr.bf16.mxu0 0
    %5970 = vmatpush1.bf16.xpose.msra.mxu0 0
    %5971 = vmatprep.subr.bf16.mxu0 0
    %5972 = vmatpush1.bf16.xpose.msra.mxu0 0
    %5973 = vmatprep.subr.bf16.mxu0 0
    %5974 = vmatpush1.bf16.xpose.msra.mxu0 0
    %5975 = vmatprep.mubr.bf16.mxu0 0
    %5976 = vmatmul.mubr.bf16.gmra.mrb[0].mxu0 %v5938
    %v5977 = vpop.f32.mrb[0].mxu0
    %v5978 = vadd.f32 0.0, %v5977
    %v5979 = vpop.f32.mrb[0].mxu0
    %v5980 = vpop.f32.mrb[0].mxu0
    %v5981 = vpop.f32.mrb[0].mxu0
    %5982 = vdwg.mxu0
    %v5984 = vsel %vm1859, %v5022, 0
    %v5987 = vsel %vm1859, %v5025, 0
    %5989 = vmatprep.subr.bf16.mxu0 0
    %5990 = vmatpush1.bf16.xpose.msra.mxu0 %v5987
    %5991 = vmatprep.subr.bf16.mxu0 0
    %5992 = vmatpush1.bf16.xpose.msra.mxu0 0
    %5993 = vmatprep.subr.bf16.mxu0 0
    %5994 = vmatpush1.bf16.xpose.msra.mxu0 0
    %5995 = vmatprep.subr.bf16.mxu0 0
    %5996 = vmatpush1.bf16.xpose.msra.mxu0 0
    %5997 = vmatprep.subr.bf16.mxu0 0
    %5998 = vmatpush1.bf16.xpose.msra.mxu0 0
    %5999 = vmatprep.subr.bf16.mxu0 0
    %6000 = vmatpush1.bf16.xpose.msra.mxu0 0
    %6001 = vmatprep.subr.bf16.mxu0 0
    %6002 = vmatpush1.bf16.xpose.msra.mxu0 0
    %6003 = vmatprep.subr.bf16.mxu0 0
    %6004 = vmatpush1.bf16.xpose.msra.mxu0 0
    %6005 = vmatprep.subr.bf16.mxu0 0
    %6006 = vmatpush1.bf16.xpose.msra.mxu0 0
    %6007 = vmatprep.subr.bf16.mxu0 0
    %6008 = vmatpush1.bf16.xpose.msra.mxu0 0
    %6009 = vmatprep.subr.bf16.mxu0 0
    %6010 = vmatpush1.bf16.xpose.msra.mxu0 0
    %6011 = vmatprep.subr.bf16.mxu0 0
    %6012 = vmatpush1.bf16.xpose.msra.mxu0 0
    %6013 = vmatprep.subr.bf16.mxu0 0
    %6014 = vmatpush1.bf16.xpose.msra.mxu0 0
    %6015 = vmatprep.subr.bf16.mxu0 0
    %6016 = vmatpush1.bf16.xpose.msra.mxu0 0
    %6017 = vmatprep.subr.bf16.mxu0 0
    %6018 = vmatpush1.bf16.xpose.msra.mxu0 0
    %6019 = vmatprep.subr.bf16.mxu0 0
    %6020 = vmatpush1.bf16.xpose.msra.mxu0 0
    %6021 = vmatprep.mubr.bf16.mxu0 0
    %6022 = vmatmul.mubr.bf16.gmra.mrb[0].mxu0 %v5984
    %v6023 = vpop.f32.mrb[0].mxu0
    %v6024 = vadd.f32 0.0, %v6023
    %v6025 = vpop.f32.mrb[0].mxu0
    %v6026 = vpop.f32.mrb[0].mxu0
    %v6027 = vpop.f32.mrb[0].mxu0
    %6028 = vdwg.mxu0
    %v6029 = vmul.f32 %v5978, 0.125
    %v6030 = vmul.f32 %v6024, 0.125
    %v6031 = vadd.f32 %v6029, %v67
    %v6032 = vadd.f32 %v6030, %v67
    %v6033 = vsel %vm1956, %v6031, -inf
    %6034 = vmax.xlane.f32.xlu0 %v6033
    %v6035 = vpop.xlane.xlu0 %6034
    %v6036 = vsel %vm1956, %v6032, -inf
    %6037 = vmax.xlane.f32.xlu0 %v6036
    %v6038 = vpop.xlane.xlu0 %6037
    %v6039 = vsub.f32 %v6031, %v6035
    %v6040 = vsub.f32 %v6032, %v6038
    %v6041 = vmul.f32 %v6039, 1.442695
    %v6042 = vpow.pop %v6041
    %v6043 = vmul.f32 %v6040, 1.442695
    %v6044 = vpow.pop %v6043
    %v6045 = vsel %vm1956, %v6042, 0.0
    %6046 = vadd.xlane.f32.xlu0 %v6045
    %v6047 = vpop.xlane.xlu0 %6046
    %v6048 = vsel %vm1956, %v6044, 0.0
    %6049 = vadd.xlane.f32.xlu0 %v6048
    %v6050 = vpop.xlane.xlu0 %6049
    %v6051 = vrcp.pop %v6047
    %v6052 = vmul.f32 %v6042, %v6051
    %v6053 = vrcp.pop %v6050
    %v6054 = vmul.f32 %v6044, %v6053
    %v6055 = vpack.c.bf16 %v6052, %v6052
    %v6056 = vpack.c.bf16 %v6054, %v6054
    %v6058 = vsel %vm1956, %v6055, 0
    %v6061 = vsel %vm1984, %v5019, 0
    %6063 = vmatprep.subr.bf16.mxu0 0
    %6064 = vmatpush1.bf16.msra.mxu0 %v6061
    %6065 = vmatprep.subr.bf16.mxu0 0
    %6066 = vmatpush1.bf16.msra.mxu0 0
    %6067 = vmatprep.subr.bf16.mxu0 0
    %6068 = vmatpush1.bf16.msra.mxu0 0
    %6069 = vmatprep.subr.bf16.mxu0 0
    %6070 = vmatpush1.bf16.msra.mxu0 0
    %6071 = vmatprep.subr.bf16.mxu0 0
    %6072 = vmatpush1.bf16.msra.mxu0 0
    %6073 = vmatprep.subr.bf16.mxu0 0
    %6074 = vmatpush1.bf16.msra.mxu0 0
    %6075 = vmatprep.subr.bf16.mxu0 0
    %6076 = vmatpush1.bf16.msra.mxu0 0
    %6077 = vmatprep.subr.bf16.mxu0 0
    %6078 = vmatpush1.bf16.msra.mxu0 0
    %6079 = vmatprep.subr.bf16.mxu0 0
    %6080 = vmatpush1.bf16.msra.mxu0 0
    %6081 = vmatprep.subr.bf16.mxu0 0
    %6082 = vmatpush1.bf16.msra.mxu0 0
    %6083 = vmatprep.subr.bf16.mxu0 0
    %6084 = vmatpush1.bf16.msra.mxu0 0
    %6085 = vmatprep.subr.bf16.mxu0 0
    %6086 = vmatpush1.bf16.msra.mxu0 0
    %6087 = vmatprep.subr.bf16.mxu0 0
    %6088 = vmatpush1.bf16.msra.mxu0 0
    %6089 = vmatprep.subr.bf16.mxu0 0
    %6090 = vmatpush1.bf16.msra.mxu0 0
    %6091 = vmatprep.subr.bf16.mxu0 0
    %6092 = vmatpush1.bf16.msra.mxu0 0
    %6093 = vmatprep.subr.bf16.mxu0 0
    %6094 = vmatpush1.bf16.msra.mxu0 0
    %6095 = vmatprep.mubr.bf16.mxu0 0
    %6096 = vmatmul.mubr.bf16.gmra.mrb[0].mxu0 %v6058
    %v6097 = vpop.f32.mrb[0].mxu0
    %v6098 = vadd.f32 0.0, %v6097
    %v6099 = vpop.f32.mrb[0].mxu0
    %v6100 = vpop.f32.mrb[0].mxu0
    %v6101 = vpop.f32.mrb[0].mxu0
    %6102 = vdwg.mxu0
    %v6104 = vsel %vm1956, %v6056, 0
    %v6107 = vsel %vm1984, %v5028, 0
    %6109 = vmatprep.subr.bf16.mxu0 0
    %6110 = vmatpush1.bf16.msra.mxu0 %v6107
    %6111 = vmatprep.subr.bf16.mxu0 0
    %6112 = vmatpush1.bf16.msra.mxu0 0
    %6113 = vmatprep.subr.bf16.mxu0 0
    %6114 = vmatpush1.bf16.msra.mxu0 0
    %6115 = vmatprep.subr.bf16.mxu0 0
    %6116 = vmatpush1.bf16.msra.mxu0 0
    %6117 = vmatprep.subr.bf16.mxu0 0
    %6118 = vmatpush1.bf16.msra.mxu0 0
    %6119 = vmatprep.subr.bf16.mxu0 0
    %6120 = vmatpush1.bf16.msra.mxu0 0
    %6121 = vmatprep.subr.bf16.mxu0 0
    %6122 = vmatpush1.bf16.msra.mxu0 0
    %6123 = vmatprep.subr.bf16.mxu0 0
    %6124 = vmatpush1.bf16.msra.mxu0 0
    %6125 = vmatprep.subr.bf16.mxu0 0
    %6126 = vmatpush1.bf16.msra.mxu0 0
    %6127 = vmatprep.subr.bf16.mxu0 0
    %6128 = vmatpush1.bf16.msra.mxu0 0
    %6129 = vmatprep.subr.bf16.mxu0 0
    %6130 = vmatpush1.bf16.msra.mxu0 0
    %6131 = vmatprep.subr.bf16.mxu0 0
    %6132 = vmatpush1.bf16.msra.mxu0 0
    %6133 = vmatprep.subr.bf16.mxu0 0
    %6134 = vmatpush1.bf16.msra.mxu0 0
    %6135 = vmatprep.subr.bf16.mxu0 0
    %6136 = vmatpush1.bf16.msra.mxu0 0
    %6137 = vmatprep.subr.bf16.mxu0 0
    %6138 = vmatpush1.bf16.msra.mxu0 0
    %6139 = vmatprep.subr.bf16.mxu0 0
    %6140 = vmatpush1.bf16.msra.mxu0 0
    %6141 = vmatprep.mubr.bf16.mxu0 0
    %6142 = vmatmul.mubr.bf16.gmra.mrb[0].mxu0 %v6104
    %v6143 = vpop.f32.mrb[0].mxu0
    %v6144 = vadd.f32 0.0, %v6143
    %v6145 = vpop.f32.mrb[0].mxu0
    %v6146 = vpop.f32.mrb[0].mxu0
    %v6147 = vpop.f32.mrb[0].mxu0
    %6148 = vdwg.mxu0
    %6149 = vst.msk [vmem:[#allocation2 + $0x10] sm:$0xff] %vm1859, %v6098
    %6150 = vst.msk [vmem:[#allocation2 + $0x28] sm:$0xff] %vm1859, %v6144
    %6152 = vrot.lane.b32.xlu0 %v5013, 64
    %v6153 = vpop.permute.xlu0 %6152
    %6155 = vrot.lane.b32.xlu0 %v5016, 64
    %v6156 = vpop.permute.xlu0 %6155
    %v6158 = vsel %vm1859, %v6153, 0
    %v6161 = vsel %vm1859, %v6156, 0
    %6163 = vmatprep.subr.bf16.mxu0 0
    %6164 = vmatpush1.bf16.xpose.msra.mxu0 %v6161
    %6165 = vmatprep.subr.bf16.mxu0 0
    %6166 = vmatpush1.bf16.xpose.msra.mxu0 0
    %6167 = vmatprep.subr.bf16.mxu0 0
    %6168 = vmatpush1.bf16.xpose.msra.mxu0 0
    %6169 = vmatprep.subr.bf16.mxu0 0
    %6170 = vmatpush1.bf16.xpose.msra.mxu0 0
    %6171 = vmatprep.subr.bf16.mxu0 0
    %6172 = vmatpush1.bf16.xpose.msra.mxu0 0
    %6173 = vmatprep.subr.bf16.mxu0 0
    %6174 = vmatpush1.bf16.xpose.msra.mxu0 0
    %6175 = vmatprep.subr.bf16.mxu0 0
    %6176 = vmatpush1.bf16.xpose.msra.mxu0 0
    %6177 = vmatprep.subr.bf16.mxu0 0
    %6178 = vmatpush1.bf16.xpose.msra.mxu0 0
    %6179 = vmatprep.subr.bf16.mxu0 0
    %6180 = vmatpush1.bf16.xpose.msra.mxu0 0
    %6181 = vmatprep.subr.bf16.mxu0 0
    %6182 = vmatpush1.bf16.xpose.msra.mxu0 0
    %6183 = vmatprep.subr.bf16.mxu0 0
    %6184 = vmatpush1.bf16.xpose.msra.mxu0 0
    %6185 = vmatprep.subr.bf16.mxu0 0
    %6186 = vmatpush1.bf16.xpose.msra.mxu0 0
    %6187 = vmatprep.subr.bf16.mxu0 0
    %6188 = vmatpush1.bf16.xpose.msra.mxu0 0
    %6189 = vmatprep.subr.bf16.mxu0 0
    %6190 = vmatpush1.bf16.xpose.msra.mxu0 0
    %6191 = vmatprep.subr.bf16.mxu0 0
    %6192 = vmatpush1.bf16.xpose.msra.mxu0 0
    %6193 = vmatprep.subr.bf16.mxu0 0
    %6194 = vmatpush1.bf16.xpose.msra.mxu0 0
    %6195 = vmatprep.mubr.bf16.mxu0 0
    %6196 = vmatmul.mubr.bf16.gmra.mrb[0].mxu0 %v6158
    %v6197 = vpop.f32.mrb[0].mxu0
    %v6198 = vadd.f32 0.0, %v6197
    %v6199 = vpop.f32.mrb[0].mxu0
    %v6200 = vpop.f32.mrb[0].mxu0
    %v6201 = vpop.f32.mrb[0].mxu0
    %6202 = vdwg.mxu0
    %6204 = vrot.lane.b32.xlu0 %v5022, 64
    %v6205 = vpop.permute.xlu0 %6204
    %6207 = vrot.lane.b32.xlu0 %v5025, 64
    %v6208 = vpop.permute.xlu0 %6207
    %v6210 = vsel %vm1859, %v6205, 0
    %v6213 = vsel %vm1859, %v6208, 0
    %6215 = vmatprep.subr.bf16.mxu0 0
    %6216 = vmatpush1.bf16.xpose.msra.mxu0 %v6213
    %6217 = vmatprep.subr.bf16.mxu0 0
    %6218 = vmatpush1.bf16.xpose.msra.mxu0 0
    %6219 = vmatprep.subr.bf16.mxu0 0
    %6220 = vmatpush1.bf16.xpose.msra.mxu0 0
    %6221 = vmatprep.subr.bf16.mxu0 0
    %6222 = vmatpush1.bf16.xpose.msra.mxu0 0
    %6223 = vmatprep.subr.bf16.mxu0 0
    %6224 = vmatpush1.bf16.xpose.msra.mxu0 0
    %6225 = vmatprep.subr.bf16.mxu0 0
    %6226 = vmatpush1.bf16.xpose.msra.mxu0 0
    %6227 = vmatprep.subr.bf16.mxu0 0
    %6228 = vmatpush1.bf16.xpose.msra.mxu0 0
    %6229 = vmatprep.subr.bf16.mxu0 0
    %6230 = vmatpush1.bf16.xpose.msra.mxu0 0
    %6231 = vmatprep.subr.bf16.mxu0 0
    %6232 = vmatpush1.bf16.xpose.msra.mxu0 0
    %6233 = vmatprep.subr.bf16.mxu0 0
    %6234 = vmatpush1.bf16.xpose.msra.mxu0 0
    %6235 = vmatprep.subr.bf16.mxu0 0
    %6236 = vmatpush1.bf16.xpose.msra.mxu0 0
    %6237 = vmatprep.subr.bf16.mxu0 0
    %6238 = vmatpush1.bf16.xpose.msra.mxu0 0
    %6239 = vmatprep.subr.bf16.mxu0 0
    %6240 = vmatpush1.bf16.xpose.msra.mxu0 0
    %6241 = vmatprep.subr.bf16.mxu0 0
    %6242 = vmatpush1.bf16.xpose.msra.mxu0 0
    %6243 = vmatprep.subr.bf16.mxu0 0
    %6244 = vmatpush1.bf16.xpose.msra.mxu0 0
    %6245 = vmatprep.subr.bf16.mxu0 0
    %6246 = vmatpush1.bf16.xpose.msra.mxu0 0
    %6247 = vmatprep.mubr.bf16.mxu0 0
    %6248 = vmatmul.mubr.bf16.gmra.mrb[0].mxu0 %v6210
    %v6249 = vpop.f32.mrb[0].mxu0
    %v6250 = vadd.f32 0.0, %v6249
    %v6251 = vpop.f32.mrb[0].mxu0
    %v6252 = vpop.f32.mrb[0].mxu0
    %v6253 = vpop.f32.mrb[0].mxu0
    %6254 = vdwg.mxu0
    %v6255 = vmul.f32 %v6198, 0.125
    %v6256 = vmul.f32 %v6250, 0.125
    %v6257 = vadd.f32 %v6255, %v67
    %v6258 = vadd.f32 %v6256, %v67
    %v6259 = vsel %vm1956, %v6257, -inf
    %6260 = vmax.xlane.f32.xlu0 %v6259
    %v6261 = vpop.xlane.xlu0 %6260
    %v6262 = vsel %vm1956, %v6258, -inf
    %6263 = vmax.xlane.f32.xlu0 %v6262
    %v6264 = vpop.xlane.xlu0 %6263
    %v6265 = vsub.f32 %v6257, %v6261
    %v6266 = vsub.f32 %v6258, %v6264
    %v6267 = vmul.f32 %v6265, 1.442695
    %v6268 = vpow.pop %v6267
    %v6269 = vmul.f32 %v6266, 1.442695
    %v6270 = vpow.pop %v6269
    %v6271 = vsel %vm1956, %v6268, 0.0
    %6272 = vadd.xlane.f32.xlu0 %v6271
    %v6273 = vpop.xlane.xlu0 %6272
    %v6274 = vsel %vm1956, %v6270, 0.0
    %6275 = vadd.xlane.f32.xlu0 %v6274
    %v6276 = vpop.xlane.xlu0 %6275
    %v6277 = vrcp.pop %v6273
    %v6278 = vmul.f32 %v6268, %v6277
    %v6279 = vrcp.pop %v6276
    %v6280 = vmul.f32 %v6270, %v6279
    %v6281 = vpack.c.bf16 %v6278, %v6278
    %v6282 = vpack.c.bf16 %v6280, %v6280
    %6284 = vrot.lane.b32.xlu0 %v5019, 64
    %v6285 = vpop.permute.xlu0 %6284
    %v6287 = vsel %vm1956, %v6281, 0
    %v6290 = vsel %vm1984, %v6285, 0
    %6292 = vmatprep.subr.bf16.mxu0 0
    %6293 = vmatpush1.bf16.msra.mxu0 %v6290
    %6294 = vmatprep.subr.bf16.mxu0 0
    %6295 = vmatpush1.bf16.msra.mxu0 0
    %6296 = vmatprep.subr.bf16.mxu0 0
    %6297 = vmatpush1.bf16.msra.mxu0 0
    %6298 = vmatprep.subr.bf16.mxu0 0
    %6299 = vmatpush1.bf16.msra.mxu0 0
    %6300 = vmatprep.subr.bf16.mxu0 0
    %6301 = vmatpush1.bf16.msra.mxu0 0
    %6302 = vmatprep.subr.bf16.mxu0 0
    %6303 = vmatpush1.bf16.msra.mxu0 0
    %6304 = vmatprep.subr.bf16.mxu0 0
    %6305 = vmatpush1.bf16.msra.mxu0 0
    %6306 = vmatprep.subr.bf16.mxu0 0
    %6307 = vmatpush1.bf16.msra.mxu0 0
    %6308 = vmatprep.subr.bf16.mxu0 0
    %6309 = vmatpush1.bf16.msra.mxu0 0
    %6310 = vmatprep.subr.bf16.mxu0 0
    %6311 = vmatpush1.bf16.msra.mxu0 0
    %6312 = vmatprep.subr.bf16.mxu0 0
    %6313 = vmatpush1.bf16.msra.mxu0 0
    %6314 = vmatprep.subr.bf16.mxu0 0
    %6315 = vmatpush1.bf16.msra.mxu0 0
    %6316 = vmatprep.subr.bf16.mxu0 0
    %6317 = vmatpush1.bf16.msra.mxu0 0
    %6318 = vmatprep.subr.bf16.mxu0 0
    %6319 = vmatpush1.bf16.msra.mxu0 0
    %6320 = vmatprep.subr.bf16.mxu0 0
    %6321 = vmatpush1.bf16.msra.mxu0 0
    %6322 = vmatprep.subr.bf16.mxu0 0
    %6323 = vmatpush1.bf16.msra.mxu0 0
    %6324 = vmatprep.mubr.bf16.mxu0 0
    %6325 = vmatmul.mubr.bf16.gmra.mrb[0].mxu0 %v6287
    %v6326 = vpop.f32.mrb[0].mxu0
    %v6327 = vadd.f32 0.0, %v6326
    %v6328 = vpop.f32.mrb[0].mxu0
    %v6329 = vpop.f32.mrb[0].mxu0
    %v6330 = vpop.f32.mrb[0].mxu0
    %6331 = vdwg.mxu0
    %6333 = vrot.lane.b32.xlu0 %v5028, 64
    %v6334 = vpop.permute.xlu0 %6333
    %v6336 = vsel %vm1956, %v6282, 0
    %v6339 = vsel %vm1984, %v6334, 0
    %6341 = vmatprep.subr.bf16.mxu0 0
    %6342 = vmatpush1.bf16.msra.mxu0 %v6339
    %6343 = vmatprep.subr.bf16.mxu0 0
    %6344 = vmatpush1.bf16.msra.mxu0 0
    %6345 = vmatprep.subr.bf16.mxu0 0
    %6346 = vmatpush1.bf16.msra.mxu0 0
    %6347 = vmatprep.subr.bf16.mxu0 0
    %6348 = vmatpush1.bf16.msra.mxu0 0
    %6349 = vmatprep.subr.bf16.mxu0 0
    %6350 = vmatpush1.bf16.msra.mxu0 0
    %6351 = vmatprep.subr.bf16.mxu0 0
    %6352 = vmatpush1.bf16.msra.mxu0 0
    %6353 = vmatprep.subr.bf16.mxu0 0
    %6354 = vmatpush1.bf16.msra.mxu0 0
    %6355 = vmatprep.subr.bf16.mxu0 0
    %6356 = vmatpush1.bf16.msra.mxu0 0
    %6357 = vmatprep.subr.bf16.mxu0 0
    %6358 = vmatpush1.bf16.msra.mxu0 0
    %6359 = vmatprep.subr.bf16.mxu0 0
    %6360 = vmatpush1.bf16.msra.mxu0 0
    %6361 = vmatprep.subr.bf16.mxu0 0
    %6362 = vmatpush1.bf16.msra.mxu0 0
    %6363 = vmatprep.subr.bf16.mxu0 0
    %6364 = vmatpush1.bf16.msra.mxu0 0
    %6365 = vmatprep.subr.bf16.mxu0 0
    %6366 = vmatpush1.bf16.msra.mxu0 0
    %6367 = vmatprep.subr.bf16.mxu0 0
    %6368 = vmatpush1.bf16.msra.mxu0 0
    %6369 = vmatprep.subr.bf16.mxu0 0
    %6370 = vmatpush1.bf16.msra.mxu0 0
    %6371 = vmatprep.subr.bf16.mxu0 0
    %6372 = vmatpush1.bf16.msra.mxu0 0
    %6373 = vmatprep.mubr.bf16.mxu0 0
    %6374 = vmatmul.mubr.bf16.gmra.mrb[0].mxu0 %v6336
    %v6375 = vpop.f32.mrb[0].mxu0
    %v6376 = vadd.f32 0.0, %v6375
    %v6377 = vpop.f32.mrb[0].mxu0
    %v6378 = vpop.f32.mrb[0].mxu0
    %v6379 = vpop.f32.mrb[0].mxu0
    %6380 = vdwg.mxu0
    %6383 = vrot.lane.b32.xlu0 %v6327, 64
    %v6384 = vpop.permute.xlu0 %6383
    %6385 = vrot.lane.b32.xlu0 %v6376, 64
    %v6386 = vpop.permute.xlu0 %6385
    %6389 = vst.msk [vmem:[#allocation2 + $0x10] sm:$0xff] %vm2314, %v6384
    %6390 = vst.msk [vmem:[#allocation2 + $0x28] sm:$0xff] %vm2314, %v6386
    %v6391 = vld [vmem:[#allocation2] sm:$0xff]
    %v6392 = vld [vmem:[#allocation2 + $0x8] sm:$0xff]
    %v6393 = vld [vmem:[#allocation2 + $0x10] sm:$0xff]
    %v6394 = vld [vmem:[#allocation2 + $0x18] sm:$0xff]
    %v6395 = vld [vmem:[#allocation2 + $0x20] sm:$0xff]
    %v6396 = vld [vmem:[#allocation2 + $0x28] sm:$0xff]
    %v6397 = vadd.f32 %v3231, %v6391
    %v6398 = vadd.f32 %v3232, %v6392
    %v6399 = vadd.f32 %v3233, %v6393
    %v6400 = vadd.f32 %v3234, %v6394
    %v6401 = vadd.f32 %v3235, %v6395
    %v6402 = vadd.f32 %v3236, %v6396
    %v6403 = vpack.c.bf16 %v6400, %v6397
    %v6404 = vpack.c.bf16 %v6401, %v6398
    %v6405 = vpack.c.bf16 %v6402, %v6399
    %v6406 = vld [vmem:[#allocation6] sm:$0xf]
    %v6407 = vld [vmem:[#allocation6 + $0x4] sm:$0xf]
    %v6408 = vld [vmem:[#allocation6 + $0x8] sm:$0xf]
    %v6409 = vld [vmem:[#allocation6 + $0xc] sm:$0xf]
    %v6410 = vld [vmem:[#allocation6 + $0x10] sm:$0xf]
    %v6411 = vld [vmem:[#allocation6 + $0x14] sm:$0xf]
    %v6412 = vld [vmem:[#allocation6 + $0x18] sm:$0xf]
    %v6413 = vld [vmem:[#allocation6 + $0x1c] sm:$0xf]
    %v6414 = vld [vmem:[#allocation6 + $0x20] sm:$0xf]
    %v6415 = vld [vmem:[#allocation6 + $0x24] sm:$0xf]
    %v6416 = vld [vmem:[#allocation6 + $0x28] sm:$0xf]
    %v6417 = vld [vmem:[#allocation6 + $0x2c] sm:$0xf]
    %v6418 = vld [vmem:[#allocation6 + $0x30] sm:$0xf]
    %v6419 = vld [vmem:[#allocation6 + $0x34] sm:$0xf]
    %v6420 = vld [vmem:[#allocation6 + $0x38] sm:$0xf]
    %v6421 = vld [vmem:[#allocation6 + $0x3c] sm:$0xf]
    %v6422 = vld [vmem:[#allocation6 + $0x40] sm:$0xf]
    %v6423 = vld [vmem:[#allocation6 + $0x44] sm:$0xf]
    %v6424 = vld [vmem:[#allocation6 + $0x48] sm:$0xf]
    %v6425 = vld [vmem:[#allocation6 + $0x4c] sm:$0xf]
    %v6426 = vld [vmem:[#allocation6 + $0x50] sm:$0xf]
    %v6427 = vld [vmem:[#allocation6 + $0x54] sm:$0xf]
    %v6428 = vld [vmem:[#allocation6 + $0x58] sm:$0xf]
    %v6429 = vld [vmem:[#allocation6 + $0x5c] sm:$0xf]
    %v6430 = vld [vmem:[#allocation6 + $0x60] sm:$0xf]
    %v6431 = vld [vmem:[#allocation6 + $0x64] sm:$0xf]
    %v6432 = vld [vmem:[#allocation6 + $0x68] sm:$0xf]
    %v6433 = vld [vmem:[#allocation6 + $0x6c] sm:$0xf]
    %v6434 = vld [vmem:[#allocation6 + $0x70] sm:$0xf]
    %v6435 = vld [vmem:[#allocation6 + $0x74] sm:$0xf]
    %v6436 = vld [vmem:[#allocation6 + $0x78] sm:$0xf]
    %v6437 = vld [vmem:[#allocation6 + $0x7c] sm:$0xf]
    %v6438 = vld [vmem:[#allocation6 + $0x80] sm:$0xf]
    %v6439 = vld [vmem:[#allocation6 + $0x84] sm:$0xf]
    %v6440 = vld [vmem:[#allocation6 + $0x88] sm:$0xf]
    %v6441 = vld [vmem:[#allocation6 + $0x8c] sm:$0xf]
    %v6442 = vld [vmem:[#allocation6 + $0x90] sm:$0xf]
    %v6443 = vld [vmem:[#allocation6 + $0x94] sm:$0xf]
    %v6444 = vld [vmem:[#allocation6 + $0x98] sm:$0xf]
    %v6445 = vld [vmem:[#allocation6 + $0x9c] sm:$0xf]
    %v6446 = vld [vmem:[#allocation6 + $0xa0] sm:$0xf]
    %v6447 = vld [vmem:[#allocation6 + $0xa4] sm:$0xf]
    %v6448 = vld [vmem:[#allocation6 + $0xa8] sm:$0xf]
    %v6449 = vld [vmem:[#allocation6 + $0xac] sm:$0xf]
    %v6450 = vld [vmem:[#allocation6 + $0xb0] sm:$0xf]
    %v6451 = vld [vmem:[#allocation6 + $0xb4] sm:$0xf]
    %v6452 = vld [vmem:[#allocation6 + $0xb8] sm:$0xf]
    %v6453 = vld [vmem:[#allocation6 + $0xbc] sm:$0xf]
    %v6454 = vld [vmem:[#allocation8] sm:$0x1]
    %v6456 = vlaneseq
    %v6457 = vshrl.u32 %v6456, 7
    %v6458 = vsub.s32 0, %v6457
    %v6459 = vrot.slane %v6454, %v6458
    %v6509 = vunpack.c.l.b16 %v6406
    %v6510 = vunpack.c.l.b16 %v6407
    %v6511 = vunpack.c.l.b16 %v6408
    %v6512 = vunpack.c.l.b16 %v6409
    %v6513 = vunpack.c.l.b16 %v6410
    %v6514 = vunpack.c.l.b16 %v6411
    %v6515 = vunpack.c.l.b16 %v6412
    %v6516 = vunpack.c.l.b16 %v6413
    %v6517 = vunpack.c.l.b16 %v6414
    %v6518 = vunpack.c.l.b16 %v6415
    %v6519 = vunpack.c.l.b16 %v6416
    %v6520 = vunpack.c.l.b16 %v6417
    %v6521 = vunpack.c.l.b16 %v6418
    %v6522 = vunpack.c.l.b16 %v6419
    %v6523 = vunpack.c.l.b16 %v6420
    %v6524 = vunpack.c.l.b16 %v6421
    %v6525 = vunpack.c.l.b16 %v6422
    %v6526 = vunpack.c.l.b16 %v6423
    %v6527 = vunpack.c.l.b16 %v6424
    %v6528 = vunpack.c.l.b16 %v6425
    %v6529 = vunpack.c.l.b16 %v6426
    %v6530 = vunpack.c.l.b16 %v6427
    %v6531 = vunpack.c.l.b16 %v6428
    %v6532 = vunpack.c.l.b16 %v6429
    %v6533 = vunpack.c.l.b16 %v6430
    %v6534 = vunpack.c.l.b16 %v6431
    %v6535 = vunpack.c.l.b16 %v6432
    %v6536 = vunpack.c.l.b16 %v6433
    %v6537 = vunpack.c.l.b16 %v6434
    %v6538 = vunpack.c.l.b16 %v6435
    %v6539 = vunpack.c.l.b16 %v6436
    %v6540 = vunpack.c.l.b16 %v6437
    %v6541 = vunpack.c.l.b16 %v6438
    %v6542 = vunpack.c.l.b16 %v6439
    %v6543 = vunpack.c.l.b16 %v6440
    %v6544 = vunpack.c.l.b16 %v6441
    %v6545 = vunpack.c.l.b16 %v6442
    %v6546 = vunpack.c.l.b16 %v6443
    %v6547 = vunpack.c.l.b16 %v6444
    %v6548 = vunpack.c.l.b16 %v6445
    %v6549 = vunpack.c.l.b16 %v6446
    %v6550 = vunpack.c.l.b16 %v6447
    %v6551 = vunpack.c.l.b16 %v6448
    %v6552 = vunpack.c.l.b16 %v6449
    %v6553 = vunpack.c.l.b16 %v6450
    %v6554 = vunpack.c.l.b16 %v6451
    %v6555 = vunpack.c.l.b16 %v6452
    %v6556 = vunpack.c.l.b16 %v6453
    %v6557 = vpack.c.b16 %v6510, %v6509
    %v6558 = vpack.c.b16 %v6512, %v6511
    %v6559 = vpack.c.b16 %v6514, %v6513
    %v6560 = vpack.c.b16 %v6516, %v6515
    %v6561 = vpack.c.b16 %v6518, %v6517
    %v6562 = vpack.c.b16 %v6520, %v6519
    %v6563 = vpack.c.b16 %v6522, %v6521
    %v6564 = vpack.c.b16 %v6524, %v6523
    %v6565 = vpack.c.b16 %v6526, %v6525
    %v6566 = vpack.c.b16 %v6528, %v6527
    %v6567 = vpack.c.b16 %v6530, %v6529
    %v6568 = vpack.c.b16 %v6532, %v6531
    %v6569 = vpack.c.b16 %v6534, %v6533
    %v6570 = vpack.c.b16 %v6536, %v6535
    %v6571 = vpack.c.b16 %v6538, %v6537
    %v6572 = vpack.c.b16 %v6540, %v6539
    %v6573 = vpack.c.b16 %v6542, %v6541
    %v6574 = vpack.c.b16 %v6544, %v6543
    %v6575 = vpack.c.b16 %v6546, %v6545
    %v6576 = vpack.c.b16 %v6548, %v6547
    %v6577 = vpack.c.b16 %v6550, %v6549
    %v6578 = vpack.c.b16 %v6552, %v6551
    %v6579 = vpack.c.b16 %v6554, %v6553
    %v6580 = vpack.c.b16 %v6556, %v6555
    %6605 = vmatprep.subr.bf16.mxu0 0
    %6606 = vmatpush1.bf16.msra.mxu0 %v6557
    %6607 = vmatprep.subr.bf16.mxu0 0
    %6608 = vmatpush1.bf16.msra.mxu0 %v6558
    %6609 = vmatprep.subr.bf16.mxu0 0
    %6610 = vmatpush1.bf16.msra.mxu0 %v6559
    %6611 = vmatprep.subr.bf16.mxu0 0
    %6612 = vmatpush1.bf16.msra.mxu0 %v6560
    %6613 = vmatprep.subr.bf16.mxu0 0
    %6614 = vmatpush1.bf16.msra.mxu0 %v6561
    %6615 = vmatprep.subr.bf16.mxu0 0
    %6616 = vmatpush1.bf16.msra.mxu0 %v6562
    %6617 = vmatprep.subr.bf16.mxu0 0
    %6618 = vmatpush1.bf16.msra.mxu0 %v6563
    %6619 = vmatprep.subr.bf16.mxu0 0
    %6620 = vmatpush1.bf16.msra.mxu0 %v6564
    %6621 = vmatprep.subr.bf16.mxu0 0
    %6622 = vmatpush1.bf16.msra.mxu0 %v6565
    %6623 = vmatprep.subr.bf16.mxu0 0
    %6624 = vmatpush1.bf16.msra.mxu0 %v6566
    %6625 = vmatprep.subr.bf16.mxu0 0
    %6626 = vmatpush1.bf16.msra.mxu0 %v6567
    %6627 = vmatprep.subr.bf16.mxu0 0
    %6628 = vmatpush1.bf16.msra.mxu0 %v6568
    %6629 = vmatprep.subr.bf16.mxu0 0
    %6630 = vmatpush1.bf16.msra.mxu0 %v6569
    %6631 = vmatprep.subr.bf16.mxu0 0
    %6632 = vmatpush1.bf16.msra.mxu0 %v6570
    %6633 = vmatprep.subr.bf16.mxu0 0
    %6634 = vmatpush1.bf16.msra.mxu0 %v6571
    %6635 = vmatprep.subr.bf16.mxu0 0
    %6636 = vmatpush1.bf16.msra.mxu0 %v6572
    %6637 = vmatprep.mubr.bf16.mxu0 %v6404
    %6638 = vmatmul.mubr.bf16.gmra.mrb[0].mxu0 %v6403
    %v6639 = vpop.f32.mrb[0].mxu0
    %v6640 = vadd.f32 %v6459, %v6639
    %v6641 = vpop.f32.mrb[0].mxu0
    %v6642 = vpop.f32.mrb[0].mxu0
    %v6643 = vadd.f32 %v6459, %v6642
    %v6644 = vpop.f32.mrb[0].mxu0
    %6645 = vdwg.mxu0
    %6646 = vmatprep.subr.bf16.mxu0 0
    %6647 = vmatpush1.bf16.msra.mxu0 %v6573
    %6648 = vmatprep.subr.bf16.mxu0 0
    %6649 = vmatpush1.bf16.msra.mxu0 %v6574
    %6650 = vmatprep.subr.bf16.mxu0 0
    %6651 = vmatpush1.bf16.msra.mxu0 %v6575
    %6652 = vmatprep.subr.bf16.mxu0 0
    %6653 = vmatpush1.bf16.msra.mxu0 %v6576
    %6654 = vmatprep.subr.bf16.mxu0 0
    %6655 = vmatpush1.bf16.msra.mxu0 %v6577
    %6656 = vmatprep.subr.bf16.mxu0 0
    %6657 = vmatpush1.bf16.msra.mxu0 %v6578
    %6658 = vmatprep.subr.bf16.mxu0 0
    %6659 = vmatpush1.bf16.msra.mxu0 %v6579
    %6660 = vmatprep.subr.bf16.mxu0 0
    %6661 = vmatpush1.bf16.msra.mxu0 %v6580
    %6662 = vmatprep.subr.bf16.mxu0 0
    %6663 = vmatpush1.bf16.msra.mxu0 0
    %6664 = vmatprep.subr.bf16.mxu0 0
    %6665 = vmatpush1.bf16.msra.mxu0 0
    %6666 = vmatprep.subr.bf16.mxu0 0
    %6667 = vmatpush1.bf16.msra.mxu0 0
    %6668 = vmatprep.subr.bf16.mxu0 0
    %6669 = vmatpush1.bf16.msra.mxu0 0
    %6670 = vmatprep.subr.bf16.mxu0 0
    %6671 = vmatpush1.bf16.msra.mxu0 0
    %6672 = vmatprep.subr.bf16.mxu0 0
    %6673 = vmatpush1.bf16.msra.mxu0 0
    %6674 = vmatprep.subr.bf16.mxu0 0
    %6675 = vmatpush1.bf16.msra.mxu0 0
    %6676 = vmatprep.subr.bf16.mxu0 0
    %6677 = vmatpush1.bf16.msra.mxu0 0
    %6678 = vmatprep.mubr.bf16.mxu0 0
    %6679 = vmatmul.mubr.bf16.gmra.mrb[0].mxu0 %v6405
    %v6680 = vpop.f32.mrb[0].mxu0
    %v6681 = vadd.f32 %v6640, %v6680
    %v6682 = vpop.f32.mrb[0].mxu0
    %v6683 = vpop.f32.mrb[0].mxu0
    %v6684 = vadd.f32 %v6643, %v6683
    %v6685 = vpop.f32.mrb[0].mxu0
    %6686 = vdwg.mxu0
    %6687 = vst [vmem:[#allocation9] sm:$0xff] %v6681
    %6688 = vst [vmem:[#allocation9 + $0x8] sm:$0xff] %v6684
    // Predicated region
    $region34: #{forward.1} parent=1 // pred_check
      _
    $region35: #{forward.1} parent=1 // pred_check_branch
      %6690 = sbr.rel (0) target = $region37
    $region36: #{forward.1} parent=1 // pred_region
      %s6692 = ssub.s32 256, 256
      %6693 = vsyncadd [#allocation5], %s6692
      %s6694 = sshll.u32 [#allocation9], 4
      %s6695 = int_to_ptr.vmem [resolvable:$true] %s6694
      %6700 = dma.vmem_to_hbm [thread:$0]  %s6695, 256, %s5, [#allocation5], 128, 128, 8
    $region37: #{forward.1} parent=1 // pred_fallthru
      _
    // Predicated region
    $region38: #{forward.1} parent=1 // pred_check
      _
    $region39: #{forward.1} parent=1 // pred_check_branch
      %6702 = sbr.rel (0) target = $region41
    $region40: #{forward.1} parent=1 // pred_region
      %6703 = dma.done [#allocation5], 256
    $region41: #{forward.1} parent=1 // pred_fallthru
      _
    %6704 = vsyncpa [#allocation4], 1
    %6705 = vsyncpa [#allocation7], 1
    %6706 = vsyncpa [#allocation5], 1

</llo_original>
